<compile_context>
chip_gen: v7x
topology: tpu7x:2x2x1
jax: 0.10.0
libtpu: 0.0.40
codegen_flags: <defaults>
</compile_context>

<pallas_src>
import functools

import jax
import jax.numpy as jnp
from jax.experimental import pallas as pl
from jax.experimental.pallas import tpu as pltpu

DEPTH = 10
INPUT_DIM = 2 * DEPTH      # 20
LATENT_DIM = 10
OUTPUT_DIM = 2
H1 = 2000                  # encoder hidden 1 / decoder hidden 2 (true model dim)
H2 = 1000                  # encoder hidden 2 / decoder hidden 1 (true model dim)

SUBLANE = 8
NBIG = 2048                # H1 padded so it splits into lane-aligned chunks
NHID = 1024                # H2 padded to a lane multiple
CHUNK = 512                # streamed chunk width along the padded 2048 axis
NC = NBIG // CHUNK         # 4 chunks per phase


def _round_up(x, m):
    return ((x + m - 1) // m) * m


# -----------------------------------------------------------------------------
# Kernel: grid = (phase, chunk).  Phase 0 streams w2 over its K dimension and
# builds the packed decoder input; phase 1 streams w5 over its N dimension and
# accumulates the final output.  All weight padding is zero, so padded lanes
# contribute exactly nothing (ReLU(0)=0 times zero rows/cols).
# -----------------------------------------------------------------------------
def autoencoder_kernel(x0_ref, w1_ref, b1_ref, w2_ref, b2_ref, w3_ref,
                       kw4_ref, kb4_ref, w5_ref, b5_ref, w6_ref, b6_ref,
                       out_ref, acc2_ref, d1_ref):
    p = pl.program_id(0)           # 0 = encoder phase (stream w2), 1 = decoder phase (stream w5)
    k = pl.program_id(1)           # chunk index along the padded 2048 axis
    nk = pl.num_programs(1)
    dot = functools.partial(jnp.dot, preferred_element_type=jnp.float32)

    # ---------------- phase 0: encoder, streamed over w2 K-chunks ----------------
    @pl.when(p == 0)
    def _encoder_phase():
        @pl.when(k == 0)
        def _():
            acc2_ref[...] = jnp.zeros_like(acc2_ref)

        # encoder layer 1 for this chunk of the 2048 axis (tiny, recomputed per chunk)
        h1 = jnp.maximum(dot(x0_ref[...], w1_ref[...]) + b1_ref[...], 0.0)      # [Bp, C]
        # encoder layer 2 partial sum over the streamed (bf16) w2 chunk
        acc2_ref[...] += dot(h1.astype(w2_ref.dtype), w2_ref[...])              # [Bp, NHID]

        @pl.when(k == nk - 1)
        def _finalize_encoder():
            h2 = jnp.maximum(acc2_ref[...] + b2_ref[...], 0.0)                  # [Bp, NHID]
            y0 = dot(h2, w3_ref[...])                                           # [Bp, 10] (b3 folded into kb4)
            b_pad = x0_ref.shape[0]
            n_steps = kw4_ref.shape[0]
            for t in range(n_steps):
                # decoder layer 1 with (K^steps[t]).T folded in: one lane-dense
                # [Bp, NHID] row-block store per step into the packed buffer.
                d1_ref[t * b_pad:(t + 1) * b_pad, :] = jnp.maximum(
                    dot(y0, kw4_ref[t]) + kb4_ref[t], 0.0)

    # ---------------- phase 1: decoder layers 2/3, streamed over w5 N-chunks -----
    @pl.when(p == 1)
    def _decoder_phase():
        @pl.when(k == 0)
        def _():
            out_ref[...] = jnp.broadcast_to(b6_ref[...], out_ref.shape)

        d2 = jnp.maximum(
            dot(d1_ref[...].astype(w5_ref.dtype), w5_ref[...]) + b5_ref[...], 0.0)   # [S*Bp, C]
        out_ref[...] += dot(d2, w6_ref[...])                                          # [S*Bp, 2]


# -----------------------------------------------------------------------------
# One-time parameter preparation (hoisted out of the per-call path).
# -----------------------------------------------------------------------------
def prepare_params(params, steps):
    """Cast / pad / fold the parameters once for a static `steps` tuple.

    Returns a dict of kernel-ready operands.  Reuse the result across calls.
    """
    steps = tuple(int(s) for s in steps)

    def pad_to(a, shape):
        pads = [(0, t - s) for s, t in zip(a.shape, shape)]
        return jnp.pad(a, pads)

    # Fold (K^i).T, b3 and b4 into decoder layer 1:  d1_t = relu(y0 @ kw4[t] + kb4[t])
    K = params["K"].astype(jnp.float32)
    w3, b3 = params["w3"], params["b3"]
    w4, b4 = params["w4"], params["b4"]
    kw4, kb4 = [], []
    for i in steps:
        KiT = jnp.linalg.matrix_power(K, i).T                   # [10, 10]
        kw4.append(KiT @ w4)                                    # [10, 1000]
        kb4.append(b3 @ KiT @ w4 + b4)                          # [1, 1000]
    kw4 = jnp.stack(kw4, axis=0)                                # [S, 10, 1000]
    kb4 = jnp.stack(kb4, axis=0)                                # [S, 1, 1000]

    prep = {
        "w1":  pad_to(params["w1"], (INPUT_DIM, NBIG)),                          # f32 [20, 2048]
        "b1":  pad_to(params["b1"], (1, NBIG)),                                  # f32 [1, 2048]
        "w2":  pad_to(params["w2"], (NBIG, NHID)).astype(jnp.bfloat16),          # bf16 [2048, 1024]
        "b2":  pad_to(params["b2"], (1, NHID)),                                  # f32 [1, 1024]
        "w3":  pad_to(w3, (NHID, LATENT_DIM)),                                   # f32 [1024, 10]
        "kw4": pad_to(kw4, (len(steps), LATENT_DIM, NHID)),                      # f32 [S, 10, 1024]
        "kb4": pad_to(kb4, (len(steps), 1, NHID)),                               # f32 [S, 1, 1024]
        "w5":  pad_to(params["w5"], (NHID, NBIG)).astype(jnp.bfloat16),          # bf16 [1024, 2048]
        "b5":  pad_to(params["b5"], (1, NBIG)),                                  # f32 [1, 2048]
        "w6":  pad_to(params["w6"], (NBIG, OUTPUT_DIM)),                         # f32 [2048, 2]
        "b6":  params["b6"],                                                     # f32 [1, 2]
    }
    return prep


# -----------------------------------------------------------------------------
# Per-call wrapper (only pads the batch; everything heavy was done in prepare).
# -----------------------------------------------------------------------------
def autoencoder_forward(x0, prep):
    batch = x0.shape[0]
    b_pad = max(SUBLANE, _round_up(batch, SUBLANE))
    n_steps = prep["kw4"].shape[0]
    m_dec = n_steps * b_pad

    x0_pad = jnp.zeros((b_pad, INPUT_DIM), jnp.float32).at[:batch].set(
        x0.astype(jnp.float32))

    nc = NC

    # Index maps: each weight is streamed in its own phase and frozen at a
    # constant block index in the other phase, so the pipeline never re-DMAs it.
    def enc_chunk_col(p, k):  # w1, b1: chunked along 2048 in phase 0
        return (0, k * (1 - p) + (nc - 1) * p)

    def w2_map(p, k):         # w2: K-chunks in phase 0
        return (k * (1 - p) + (nc - 1) * p, 0)

    def dec_chunk_col(p, k):  # w5, b5: chunked along 2048 in phase 1
        return (0, k * p)

    def w6_map(p, k):         # w6: K-chunks in phase 1
        return (k * p, 0)

    const2 = lambda p, k: (0, 0)
    const3 = lambda p, k: (0, 0, 0)

    in_specs = [
        pl.BlockSpec((b_pad, INPUT_DIM), const2),            # x0
        pl.BlockSpec((INPUT_DIM, CHUNK), enc_chunk_col),      # w1
        pl.BlockSpec((1, CHUNK), enc_chunk_col),              # b1
        pl.BlockSpec((CHUNK, NHID), w2_map),                  # w2 (bf16, streamed)
        pl.BlockSpec((1, NHID), const2),                      # b2
        pl.BlockSpec((NHID, LATENT_DIM), const2),             # w3
        pl.BlockSpec((n_steps, LATENT_DIM, NHID), const3),    # kw4
        pl.BlockSpec((n_steps, 1, NHID), const3),             # kb4
        pl.BlockSpec((NHID, CHUNK), dec_chunk_col),           # w5 (bf16, streamed)
        pl.BlockSpec((1, CHUNK), dec_chunk_col),              # b5
        pl.BlockSpec((CHUNK, OUTPUT_DIM), w6_map),            # w6
        pl.BlockSpec((1, OUTPUT_DIM), const2),                # b6
    ]
    out_spec = pl.BlockSpec((m_dec, OUTPUT_DIM), const2)

    args = (x0_pad, prep["w1"], prep["b1"], prep["w2"], prep["b2"], prep["w3"],
            prep["kw4"], prep["kb4"], prep["w5"], prep["b5"], prep["w6"], prep["b6"])

    flops = 2 * (b_pad * INPUT_DIM * NBIG            # enc L1
                 + b_pad * NBIG * NHID               # enc L2
                 + b_pad * NHID * LATENT_DIM         # enc L3
                 + m_dec * LATENT_DIM * NHID         # dec L1 (K-power folded)
                 + m_dec * NHID * NBIG               # dec L2
                 + m_dec * NBIG * OUTPUT_DIM)        # dec L3
    bytes_accessed = (sum(int(a.size) * a.dtype.itemsize for a in args)
                      + m_dec * OUTPUT_DIM * 4)

    out_padded = pl.pallas_call(
        autoencoder_kernel,
        out_shape=jax.ShapeDtypeStruct((m_dec, OUTPUT_DIM), jnp.float32),
        grid=(2, nc),
        in_specs=in_specs,
        out_specs=out_spec,
        scratch_shapes=[pltpu.VMEM((b_pad, NHID), jnp.float32),      # encoder L2 accumulator
                        pltpu.VMEM((m_dec, NHID), jnp.float32)],     # packed decoder-L1 activations
        compiler_params=pltpu.CompilerParams(
            dimension_semantics=("arbitrary", "arbitrary"),
            vmem_limit_bytes=32 * 1024 * 1024),       # ~5 MiB actually used; safe on v7x (64 MiB)
        cost_estimate=pl.CostEstimate(
            flops=int(flops), transcendentals=0,
            bytes_accessed=int(bytes_accessed)),
    )(*args)

    # [S * B_pad, 2] -> [S, batch, 2]
    return out_padded.reshape(n_steps, b_pad, OUTPUT_DIM)[:, :batch, :]


# -----------------------------------------------------------------------------
# Parameter init + pure-JAX reference (PyTorch forward semantics, f32 weights).
# -----------------------------------------------------------------------------
def make_params(key):
    """PyTorch-style U(-1/sqrt(fan_in), 1/sqrt(fan_in)) init; K = identity."""
    def linear(k, fan_in, fan_out):
        kw, kb = jax.random.split(k)
        bound = 1.0 / (fan_in ** 0.5)
        w = jax.random.uniform(kw, (fan_in, fan_out), jnp.float32, -bound, bound)
        b = jax.random.uniform(kb, (1, fan_out), jnp.float32, -bound, bound)
        return w, b

    keys = jax.random.split(key, 6)
    p = {}
    p["w1"], p["b1"] = linear(keys[0], INPUT_DIM, H1)
    p["w2"], p["b2"] = linear(keys[1], H1, H2)
    p["w3"], p["b3"] = linear(keys[2], H2, LATENT_DIM)
    p["w4"], p["b4"] = linear(keys[3], LATENT_DIM, H2)
    p["w5"], p["b5"] = linear(keys[4], H2, H1)
    p["w6"], p["b6"] = linear(keys[5], H1, OUTPUT_DIM)
    p["K"] = jnp.eye(LATENT_DIM, dtype=jnp.float32)
    return p


def reference_forward(x0, params, steps):
    h = jnp.maximum(x0 @ params["w1"] + params["b1"], 0.0)
    h = jnp.maximum(h @ params["w2"] + params["b2"], 0.0)
    y0 = h @ params["w3"] + params["b3"]
    preds = []
    for i in steps:
        Kp = jnp.linalg.matrix_power(params["K"], int(i))
        y_i = y0 @ Kp.T
        d = jnp.maximum(y_i @ params["w4"] + params["b4"], 0.0)
        d = jnp.maximum(d @ params["w5"] + params["b5"], 0.0)
        preds.append(d @ params["w6"] + params["b6"])
    return jnp.stack(preds, axis=0)


if __name__ == "__main__":
    key = jax.random.PRNGKey(0)
    k_params, k_x, k_K = jax.random.split(key, 3)

    params = make_params(k_params)
    # Perturb K away from the identity so the K-power folding path is actually
    # exercised (review concern: identity K makes matrix_power a no-op).
    params["K"] = params["K"] + 0.05 * jax.random.normal(
        k_K, (LATENT_DIM, LATENT_DIM), dtype=jnp.float32)

    batch = 2
    x0 = jax.random.normal(k_x, (batch, INPUT_DIM), dtype=jnp.float32)
    steps = (1, 2, 3, 4)

    prep = prepare_params(params, steps)        # one-time: bf16 cast, padding, K-power folding
    fwd = jax.jit(autoencoder_forward)

    out = jax.block_until_ready(fwd(x0, prep))
    ref = jax.block_until_ready(reference_forward(x0, params, steps))

    assert out.shape == (len(steps), batch, OUTPUT_DIM), out.shape
    # w2/w5 run in bf16 inside the kernel (intentional); all accumulation is f32.
    assert jnp.allclose(out, ref, rtol=5e-2, atol=5e-2), (out, ref)

    print("KERNEL_OK")
</pallas_src>

<mosaic_0001>
module attributes {stable_mosaic.version = 11 : i64} {
  func.func @autoencoder_kernel(%arg0: i32, %arg1: i32, %arg2: memref<8x20xf32, #tpu.memory_space<vmem>>, %arg3: memref<20x512xf32, #tpu.memory_space<vmem>>, %arg4: memref<1x512xf32, #tpu.memory_space<vmem>>, %arg5: memref<512x1024xbf16, #tpu.memory_space<vmem>>, %arg6: memref<1x1024xf32, #tpu.memory_space<vmem>>, %arg7: memref<1024x10xf32, #tpu.memory_space<vmem>>, %arg8: memref<4x10x1024xf32, #tpu.memory_space<vmem>>, %arg9: memref<4x1x1024xf32, #tpu.memory_space<vmem>>, %arg10: memref<1024x512xbf16, #tpu.memory_space<vmem>>, %arg11: memref<1x512xf32, #tpu.memory_space<vmem>>, %arg12: memref<512x2xf32, #tpu.memory_space<vmem>>, %arg13: memref<1x2xf32, #tpu.memory_space<vmem>>, %arg14: memref<32x2xf32, #tpu.memory_space<vmem>>, %arg15: memref<8x1024xf32, #tpu.memory_space<vmem>>, %arg16: memref<32x1024xf32, #tpu.memory_space<vmem>>) attributes {dimension_semantics = [#tpu.dimension_semantics<arbitrary>, #tpu.dimension_semantics<arbitrary>], iteration_bounds = array<i64: 2, 4>, scalar_prefetch = 0 : i64, scratch_operands = 2 : i64, tpu.core_type = #tpu.core_type<tc>, window_params = [{pipeline_mode = #tpu.pipeline_mode<synchronous>, transform_indices = @transform_0, window_bounds = array<i64: 8, 20>}, {transform_indices = @transform_1, window_bounds = array<i64: 20, 512>}, {transform_indices = @transform_2, window_bounds = array<i64: 1, 512>}, {transform_indices = @transform_3, window_bounds = array<i64: 512, 1024>}, {pipeline_mode = #tpu.pipeline_mode<synchronous>, transform_indices = @transform_4, window_bounds = array<i64: 1, 1024>}, {pipeline_mode = #tpu.pipeline_mode<synchronous>, transform_indices = @transform_5, window_bounds = array<i64: 1024, 10>}, {pipeline_mode = #tpu.pipeline_mode<synchronous>, transform_indices = @transform_6, window_bounds = array<i64: 4, 10, 1024>}, {pipeline_mode = #tpu.pipeline_mode<synchronous>, transform_indices = @transform_7, window_bounds = array<i64: 4, 1, 1024>}, {transform_indices = @transform_8, window_bounds = array<i64: 1024, 512>}, {transform_indices = @transform_9, window_bounds = array<i64: 1, 512>}, {transform_indices = @transform_10, window_bounds = array<i64: 512, 2>}, {pipeline_mode = #tpu.pipeline_mode<synchronous>, transform_indices = @transform_11, window_bounds = array<i64: 1, 2>}, {pipeline_mode = #tpu.pipeline_mode<synchronous>, transform_indices = @transform_12, window_bounds = array<i64: 32, 2>}]} {
    %c0_i32 = arith.constant 0 : i32
    %0 = arith.cmpi eq, %arg0, %c0_i32 : i32
    %1 = arith.extui %0 : i1 to i32
    %c0_i32_0 = arith.constant 0 : i32
    %2 = arith.cmpi ne, %1, %c0_i32_0 : i32
    scf.if %2 {
      %c0_i32_2 = arith.constant 0 : i32
      %6 = arith.cmpi eq, %arg1, %c0_i32_2 : i32
      %7 = arith.extui %6 : i1 to i32
      %c0_i32_3 = arith.constant 0 : i32
      %8 = arith.cmpi ne, %7, %c0_i32_3 : i32
      scf.if %8 {
        %cst_18 = arith.constant 0.000000e+00 : f32
        %26 = vector.broadcast %cst_18 : f32 to vector<8x1024xf32>
        %c0_19 = arith.constant 0 : index
        %c0_20 = arith.constant 0 : index
        %27 = vector.load %arg15[%c0_19, %c0_20] : memref<8x1024xf32, #tpu.memory_space<vmem>>, vector<8x1024xf32>
        tpu.vector_store %arg15[%c0_19, %c0_20], %26 {strides = array<i32>} : memref<8x1024xf32, #tpu.memory_space<vmem>>, vector<8x1024xf32>,
      } else {
      }
      %c0 = arith.constant 0 : index
      %c0_4 = arith.constant 0 : index
      %9 = vector.load %arg2[%c0, %c0_4] : memref<8x20xf32, #tpu.memory_space<vmem>>, vector<8x20xf32>
      %c0_5 = arith.constant 0 : index
      %c0_6 = arith.constant 0 : index
      %10 = vector.load %arg3[%c0_5, %c0_6] : memref<20x512xf32, #tpu.memory_space<vmem>>, vector<20x512xf32>
      %cst = arith.constant dense<0.000000e+00> : vector<8x512xf32>
      %11 = tpu.matmul %9, %10, %cst {dimension_numbers = #tpu.dot_dimension_numbers<[1], [0], [0], [1], [0, 0, 1, 1], [], []>} : vector<8x20xf32>, vector<20x512xf32>, vector<8x512xf32> -> vector<8x512xf32>
      %c0_7 = arith.constant 0 : index
      %c0_8 = arith.constant 0 : index
      %12 = vector.load %arg4[%c0_7, %c0_8] : memref<1x512xf32, #tpu.memory_space<vmem>>, vector<1x512xf32>
      %13 = vector.broadcast %12 : vector<1x512xf32> to vector<8x512xf32>
      %14 = arith.addf %11, %13 : vector<8x512xf32>
      %cst_9 = arith.constant 0.000000e+00 : f32
      %15 = vector.broadcast %cst_9 : f32 to vector<8x512xf32>
      %16 = arith.maximumf %14, %15 : vector<8x512xf32>
      %c0_10 = arith.constant 0 : index
      %c0_11 = arith.constant 0 : index
      %17 = vector.load %arg15[%c0_10, %c0_11] : memref<8x1024xf32, #tpu.memory_space<vmem>>, vector<8x1024xf32>
      %18 = arith.truncf %16 : vector<8x512xf32> to vector<8x512xbf16>
      %c0_12 = arith.constant 0 : index
      %c0_13 = arith.constant 0 : index
      %19 = vector.load %arg5[%c0_12, %c0_13] : memref<512x1024xbf16, #tpu.memory_space<vmem>>, vector<512x1024xbf16>
      %cst_14 = arith.constant dense<0.000000e+00> : vector<8x1024xf32>
      %20 = tpu.matmul %18, %19, %cst_14 {dimension_numbers = #tpu.dot_dimension_numbers<[1], [0], [0], [1], [0, 0, 1, 1], [], []>} : vector<8x512xbf16>, vector<512x1024xbf16>, vector<8x1024xf32> -> vector<8x1024xf32>
      %21 = arith.addf %17, %20 : vector<8x1024xf32>
      %c0_15 = arith.constant 0 : index
      %c0_16 = arith.constant 0 : index
      %22 = vector.load %arg15[%c0_15, %c0_16] : memref<8x1024xf32, #tpu.memory_space<vmem>>, vector<8x1024xf32>
      tpu.vector_store %arg15[%c0_15, %c0_16], %21 {strides = array<i32>} : memref<8x1024xf32, #tpu.memory_space<vmem>>, vector<8x1024xf32>,
      %c3_i32 = arith.constant 3 : i32
      %23 = arith.cmpi eq, %arg1, %c3_i32 : i32
      %24 = arith.extui %23 : i1 to i32
      %c0_i32_17 = arith.constant 0 : i32
      %25 = arith.cmpi ne, %24, %c0_i32_17 : i32
      scf.if %25 {
        %c0_18 = arith.constant 0 : index
        %c0_19 = arith.constant 0 : index
        %26 = vector.load %arg15[%c0_18, %c0_19] : memref<8x1024xf32, #tpu.memory_space<vmem>>, vector<8x1024xf32>
        %c0_20 = arith.constant 0 : index
        %c0_21 = arith.constant 0 : index
        %27 = vector.load %arg6[%c0_20, %c0_21] : memref<1x1024xf32, #tpu.memory_space<vmem>>, vector<1x1024xf32>
        %28 = vector.broadcast %27 : vector<1x1024xf32> to vector<8x1024xf32>
        %29 = arith.addf %26, %28 : vector<8x1024xf32>
        %cst_22 = arith.constant 0.000000e+00 : f32
        %30 = vector.broadcast %cst_22 : f32 to vector<8x1024xf32>
        %31 = arith.maximumf %29, %30 : vector<8x1024xf32>
        %c0_23 = arith.constant 0 : index
        %c0_24 = arith.constant 0 : index
        %32 = vector.load %arg7[%c0_23, %c0_24] : memref<1024x10xf32, #tpu.memory_space<vmem>>, vector<1024x10xf32>
        %cst_25 = arith.constant dense<0.000000e+00> : vector<8x10xf32>
        %33 = tpu.matmul %31, %32, %cst_25 {dimension_numbers = #tpu.dot_dimension_numbers<[1], [0], [0], [1], [0, 0, 1, 1], [], []>} : vector<8x1024xf32>, vector<1024x10xf32>, vector<8x10xf32> -> vector<8x10xf32>
        %c0_26 = arith.constant 0 : index
        %c0_27 = arith.constant 0 : index
        %c0_28 = arith.constant 0 : index
        %34 = vector.load %arg8[%c0_26, %c0_27, %c0_28] : memref<4x10x1024xf32, #tpu.memory_space<vmem>>, vector<1x10x1024xf32>
        %35 = vector.shape_cast %34 : vector<1x10x1024xf32> to vector<10x1024xf32>
        %cst_29 = arith.constant dense<0.000000e+00> : vector<8x1024xf32>
        %36 = tpu.matmul %33, %35, %cst_29 {dimension_numbers = #tpu.dot_dimension_numbers<[1], [0], [0], [1], [0, 0, 1, 1], [], []>} : vector<8x10xf32>, vector<10x1024xf32>, vector<8x1024xf32> -> vector<8x1024xf32>
        %c0_30 = arith.constant 0 : index
        %c0_31 = arith.constant 0 : index
        %c0_32 = arith.constant 0 : index
        %37 = vector.load %arg9[%c0_30, %c0_31, %c0_32] : memref<4x1x1024xf32, #tpu.memory_space<vmem>>, vector<1x1x1024xf32>
        %38 = vector.shape_cast %37 : vector<1x1x1024xf32> to vector<1x1024xf32>
        %39 = vector.broadcast %38 : vector<1x1024xf32> to vector<8x1024xf32>
        %40 = arith.addf %36, %39 : vector<8x1024xf32>
        %cst_33 = arith.constant 0.000000e+00 : f32
        %41 = vector.broadcast %cst_33 : f32 to vector<8x1024xf32>
        %42 = arith.maximumf %40, %41 : vector<8x1024xf32>
        %c0_34 = arith.constant 0 : index
        %c0_35 = arith.constant 0 : index
        %43 = vector.load %arg16[%c0_34, %c0_35] : memref<32x1024xf32, #tpu.memory_space<vmem>>, vector<8x1024xf32>
        tpu.vector_store %arg16[%c0_34, %c0_35], %42 {strides = array<i32>} : memref<32x1024xf32, #tpu.memory_space<vmem>>, vector<8x1024xf32>,
        %c1 = arith.constant 1 : index
        %c0_36 = arith.constant 0 : index
        %c0_37 = arith.constant 0 : index
        %44 = vector.load %arg8[%c1, %c0_36, %c0_37] : memref<4x10x1024xf32, #tpu.memory_space<vmem>>, vector<1x10x1024xf32>
        %45 = vector.shape_cast %44 : vector<1x10x1024xf32> to vector<10x1024xf32>
        %cst_38 = arith.constant dense<0.000000e+00> : vector<8x1024xf32>
        %46 = tpu.matmul %33, %45, %cst_38 {dimension_numbers = #tpu.dot_dimension_numbers<[1], [0], [0], [1], [0, 0, 1, 1], [], []>} : vector<8x10xf32>, vector<10x1024xf32>, vector<8x1024xf32> -> vector<8x1024xf32>
        %c1_39 = arith.constant 1 : index
        %c0_40 = arith.constant 0 : index
        %c0_41 = arith.constant 0 : index
        %47 = vector.load %arg9[%c1_39, %c0_40, %c0_41] : memref<4x1x1024xf32, #tpu.memory_space<vmem>>, vector<1x1x1024xf32>
        %48 = vector.shape_cast %47 : vector<1x1x1024xf32> to vector<1x1024xf32>
        %49 = vector.broadcast %48 : vector<1x1024xf32> to vector<8x1024xf32>
        %50 = arith.addf %46, %49 : vector<8x1024xf32>
        %cst_42 = arith.constant 0.000000e+00 : f32
        %51 = vector.broadcast %cst_42 : f32 to vector<8x1024xf32>
        %52 = arith.maximumf %50, %51 : vector<8x1024xf32>
        %c8 = arith.constant 8 : index
        %c0_43 = arith.constant 0 : index
        %53 = vector.load %arg16[%c8, %c0_43] : memref<32x1024xf32, #tpu.memory_space<vmem>>, vector<8x1024xf32>
        tpu.vector_store %arg16[%c8, %c0_43], %52 {strides = array<i32>} : memref<32x1024xf32, #tpu.memory_space<vmem>>, vector<8x1024xf32>,
        %c2 = arith.constant 2 : index
        %c0_44 = arith.constant 0 : index
        %c0_45 = arith.constant 0 : index
        %54 = vector.load %arg8[%c2, %c0_44, %c0_45] : memref<4x10x1024xf32, #tpu.memory_space<vmem>>, vector<1x10x1024xf32>
        %55 = vector.shape_cast %54 : vector<1x10x1024xf32> to vector<10x1024xf32>
        %cst_46 = arith.constant dense<0.000000e+00> : vector<8x1024xf32>
        %56 = tpu.matmul %33, %55, %cst_46 {dimension_numbers = #tpu.dot_dimension_numbers<[1], [0], [0], [1], [0, 0, 1, 1], [], []>} : vector<8x10xf32>, vector<10x1024xf32>, vector<8x1024xf32> -> vector<8x1024xf32>
        %c2_47 = arith.constant 2 : index
        %c0_48 = arith.constant 0 : index
        %c0_49 = arith.constant 0 : index
        %57 = vector.load %arg9[%c2_47, %c0_48, %c0_49] : memref<4x1x1024xf32, #tpu.memory_space<vmem>>, vector<1x1x1024xf32>
        %58 = vector.shape_cast %57 : vector<1x1x1024xf32> to vector<1x1024xf32>
        %59 = vector.broadcast %58 : vector<1x1024xf32> to vector<8x1024xf32>
        %60 = arith.addf %56, %59 : vector<8x1024xf32>
        %cst_50 = arith.constant 0.000000e+00 : f32
        %61 = vector.broadcast %cst_50 : f32 to vector<8x1024xf32>
        %62 = arith.maximumf %60, %61 : vector<8x1024xf32>
        %c16 = arith.constant 16 : index
        %c0_51 = arith.constant 0 : index
        %63 = vector.load %arg16[%c16, %c0_51] : memref<32x1024xf32, #tpu.memory_space<vmem>>, vector<8x1024xf32>
        tpu.vector_store %arg16[%c16, %c0_51], %62 {strides = array<i32>} : memref<32x1024xf32, #tpu.memory_space<vmem>>, vector<8x1024xf32>,
        %c3 = arith.constant 3 : index
        %c0_52 = arith.constant 0 : index
        %c0_53 = arith.constant 0 : index
        %64 = vector.load %arg8[%c3, %c0_52, %c0_53] : memref<4x10x1024xf32, #tpu.memory_space<vmem>>, vector<1x10x1024xf32>
        %65 = vector.shape_cast %64 : vector<1x10x1024xf32> to vector<10x1024xf32>
        %cst_54 = arith.constant dense<0.000000e+00> : vector<8x1024xf32>
        %66 = tpu.matmul %33, %65, %cst_54 {dimension_numbers = #tpu.dot_dimension_numbers<[1], [0], [0], [1], [0, 0, 1, 1], [], []>} : vector<8x10xf32>, vector<10x1024xf32>, vector<8x1024xf32> -> vector<8x1024xf32>
        %c3_55 = arith.constant 3 : index
        %c0_56 = arith.constant 0 : index
        %c0_57 = arith.constant 0 : index
        %67 = vector.load %arg9[%c3_55, %c0_56, %c0_57] : memref<4x1x1024xf32, #tpu.memory_space<vmem>>, vector<1x1x1024xf32>
        %68 = vector.shape_cast %67 : vector<1x1x1024xf32> to vector<1x1024xf32>
        %69 = vector.broadcast %68 : vector<1x1024xf32> to vector<8x1024xf32>
        %70 = arith.addf %66, %69 : vector<8x1024xf32>
        %cst_58 = arith.constant 0.000000e+00 : f32
        %71 = vector.broadcast %cst_58 : f32 to vector<8x1024xf32>
        %72 = arith.maximumf %70, %71 : vector<8x1024xf32>
        %c24 = arith.constant 24 : index
        %c0_59 = arith.constant 0 : index
        %73 = vector.load %arg16[%c24, %c0_59] : memref<32x1024xf32, #tpu.memory_space<vmem>>, vector<8x1024xf32>
        tpu.vector_store %arg16[%c24, %c0_59], %72 {strides = array<i32>} : memref<32x1024xf32, #tpu.memory_space<vmem>>, vector<8x1024xf32>,
      } else {
      }
    } else {
    }
    %c1_i32 = arith.constant 1 : i32
    %3 = arith.cmpi eq, %arg0, %c1_i32 : i32
    %4 = arith.extui %3 : i1 to i32
    %c0_i32_1 = arith.constant 0 : i32
    %5 = arith.cmpi ne, %4, %c0_i32_1 : i32
    scf.if %5 {
      %c0_i32_2 = arith.constant 0 : i32
      %6 = arith.cmpi eq, %arg1, %c0_i32_2 : i32
      %7 = arith.extui %6 : i1 to i32
      %c0_i32_3 = arith.constant 0 : i32
      %8 = arith.cmpi ne, %7, %c0_i32_3 : i32
      scf.if %8 {
        %c0_17 = arith.constant 0 : index
        %c0_18 = arith.constant 0 : index
        %23 = vector.load %arg13[%c0_17, %c0_18] : memref<1x2xf32, #tpu.memory_space<vmem>>, vector<1x2xf32>
        %24 = vector.shape_cast %23 : vector<1x2xf32> to vector<1x2xf32>
        %25 = vector.broadcast %24 : vector<1x2xf32> to vector<32x2xf32>
        %c0_19 = arith.constant 0 : index
        %c0_20 = arith.constant 0 : index
        %26 = vector.load %arg14[%c0_19, %c0_20] : memref<32x2xf32, #tpu.memory_space<vmem>>, vector<32x2xf32>
        tpu.vector_store %arg14[%c0_19, %c0_20], %25 {strides = array<i32>} : memref<32x2xf32, #tpu.memory_space<vmem>>, vector<32x2xf32>,
      } else {
      }
      %c0 = arith.constant 0 : index
      %c0_4 = arith.constant 0 : index
      %9 = vector.load %arg16[%c0, %c0_4] : memref<32x1024xf32, #tpu.memory_space<vmem>>, vector<32x1024xf32>
      %10 = arith.truncf %9 : vector<32x1024xf32> to vector<32x1024xbf16>
      %c0_5 = arith.constant 0 : index
      %c0_6 = arith.constant 0 : index
      %11 = vector.load %arg10[%c0_5, %c0_6] : memref<1024x512xbf16, #tpu.memory_space<vmem>>, vector<1024x512xbf16>
      %cst = arith.constant dense<0.000000e+00> : vector<32x512xf32>
      %12 = tpu.matmul %10, %11, %cst {dimension_numbers = #tpu.dot_dimension_numbers<[1], [0], [0], [1], [0, 0, 1, 1], [], []>} : vector<32x1024xbf16>, vector<1024x512xbf16>, vector<32x512xf32> -> vector<32x512xf32>
      %c0_7 = arith.constant 0 : index
      %c0_8 = arith.constant 0 : index
      %13 = vector.load %arg11[%c0_7, %c0_8] : memref<1x512xf32, #tpu.memory_space<vmem>>, vector<1x512xf32>
      %14 = vector.broadcast %13 : vector<1x512xf32> to vector<32x512xf32>
      %15 = arith.addf %12, %14 : vector<32x512xf32>
      %cst_9 = arith.constant 0.000000e+00 : f32
      %16 = vector.broadcast %cst_9 : f32 to vector<32x512xf32>
      %17 = arith.maximumf %15, %16 : vector<32x512xf32>
      %c0_10 = arith.constant 0 : index
      %c0_11 = arith.constant 0 : index
      %18 = vector.load %arg14[%c0_10, %c0_11] : memref<32x2xf32, #tpu.memory_space<vmem>>, vector<32x2xf32>
      %c0_12 = arith.constant 0 : index
      %c0_13 = arith.constant 0 : index
      %19 = vector.load %arg12[%c0_12, %c0_13] : memref<512x2xf32, #tpu.memory_space<vmem>>, vector<512x2xf32>
      %cst_14 = arith.constant dense<0.000000e+00> : vector<32x2xf32>
      %20 = tpu.matmul %17, %19, %cst_14 {dimension_numbers = #tpu.dot_dimension_numbers<[1], [0], [0], [1], [0, 0, 1, 1], [], []>} : vector<32x512xf32>, vector<512x2xf32>, vector<32x2xf32> -> vector<32x2xf32>
      %21 = arith.addf %18, %20 : vector<32x2xf32>
      %c0_15 = arith.constant 0 : index
      %c0_16 = arith.constant 0 : index
      %22 = vector.load %arg14[%c0_15, %c0_16] : memref<32x2xf32, #tpu.memory_space<vmem>>, vector<32x2xf32>
      tpu.vector_store %arg14[%c0_15, %c0_16], %21 {strides = array<i32>} : memref<32x2xf32, #tpu.memory_space<vmem>>, vector<32x2xf32>,
    } else {
    }
    return
  }
  func.func @transform_0(%arg0: i32, %arg1: i32) -> (i32, i32) {
    %c0_i32 = arith.constant 0 : i32
    %c0_i32_0 = arith.constant 0 : i32
    %c0_i32_1 = arith.constant 0 : i32
    return %c0_i32, %c0_i32_0 : i32, i32
  }
  func.func @transform_1(%arg0: i32, %arg1: i32) -> (i32, i32) {
    %c1_i32 = arith.constant 1 : i32
    %0 = arith.subi %c1_i32, %arg0 : i32
    %1 = arith.muli %arg1, %0 : i32
    %c3_i32 = arith.constant 3 : i32
    %2 = arith.muli %c3_i32, %arg0 : i32
    %3 = arith.addi %1, %2 : i32
    %c0_i32 = arith.constant 0 : i32
    %c0_i32_0 = arith.constant 0 : i32
    return %c0_i32, %3 : i32, i32
  }
  func.func @transform_2(%arg0: i32, %arg1: i32) -> (i32, i32) {
    %c1_i32 = arith.constant 1 : i32
    %0 = arith.subi %c1_i32, %arg0 : i32
    %1 = arith.muli %arg1, %0 : i32
    %c3_i32 = arith.constant 3 : i32
    %2 = arith.muli %c3_i32, %arg0 : i32
    %3 = arith.addi %1, %2 : i32
    %c0_i32 = arith.constant 0 : i32
    %c0_i32_0 = arith.constant 0 : i32
    return %c0_i32, %3 : i32, i32
  }
  func.func @transform_3(%arg0: i32, %arg1: i32) -> (i32, i32) {
    %c1_i32 = arith.constant 1 : i32
    %0 = arith.subi %c1_i32, %arg0 : i32
    %1 = arith.muli %arg1, %0 : i32
    %c3_i32 = arith.constant 3 : i32
    %2 = arith.muli %c3_i32, %arg0 : i32
    %3 = arith.addi %1, %2 : i32
    %c0_i32 = arith.constant 0 : i32
    %c0_i32_0 = arith.constant 0 : i32
    return %3, %c0_i32 : i32, i32
  }
  func.func @transform_4(%arg0: i32, %arg1: i32) -> (i32, i32) {
    %c0_i32 = arith.constant 0 : i32
    %c0_i32_0 = arith.constant 0 : i32
    %c0_i32_1 = arith.constant 0 : i32
    return %c0_i32, %c0_i32_0 : i32, i32
  }
  func.func @transform_5(%arg0: i32, %arg1: i32) -> (i32, i32) {
    %c0_i32 = arith.constant 0 : i32
    %c0_i32_0 = arith.constant 0 : i32
    %c0_i32_1 = arith.constant 0 : i32
    return %c0_i32, %c0_i32_0 : i32, i32
  }
  func.func @transform_6(%arg0: i32, %arg1: i32) -> (i32, i32, i32) {
    %c0_i32 = arith.constant 0 : i32
    %c0_i32_0 = arith.constant 0 : i32
    %c0_i32_1 = arith.constant 0 : i32
    %c0_i32_2 = arith.constant 0 : i32
    return %c0_i32, %c0_i32_0, %c0_i32_1 : i32, i32, i32
  }
  func.func @transform_7(%arg0: i32, %arg1: i32) -> (i32, i32, i32) {
    %c0_i32 = arith.constant 0 : i32
    %c0_i32_0 = arith.constant 0 : i32
    %c0_i32_1 = arith.constant 0 : i32
    %c0_i32_2 = arith.constant 0 : i32
    return %c0_i32, %c0_i32_0, %c0_i32_1 : i32, i32, i32
  }
  func.func @transform_8(%arg0: i32, %arg1: i32) -> (i32, i32) {
    %0 = arith.muli %arg1, %arg0 : i32
    %c0_i32 = arith.constant 0 : i32
    %c0_i32_0 = arith.constant 0 : i32
    return %c0_i32, %0 : i32, i32
  }
  func.func @transform_9(%arg0: i32, %arg1: i32) -> (i32, i32) {
    %0 = arith.muli %arg1, %arg0 : i32
    %c0_i32 = arith.constant 0 : i32
    %c0_i32_0 = arith.constant 0 : i32
    return %c0_i32, %0 : i32, i32
  }
  func.func @transform_10(%arg0: i32, %arg1: i32) -> (i32, i32) {
    %0 = arith.muli %arg1, %arg0 : i32
    %c0_i32 = arith.constant 0 : i32
    %c0_i32_0 = arith.constant 0 : i32
    return %0, %c0_i32 : i32, i32
  }
  func.func @transform_11(%arg0: i32, %arg1: i32) -> (i32, i32) {
    %c0_i32 = arith.constant 0 : i32
    %c0_i32_0 = arith.constant 0 : i32
    %c0_i32_1 = arith.constant 0 : i32
    return %c0_i32, %c0_i32_0 : i32, i32
  }
  func.func @transform_12(%arg0: i32, %arg1: i32) -> (i32, i32) {
    %c0_i32 = arith.constant 0 : i32
    %c0_i32_0 = arith.constant 0 : i32
    %c0_i32_1 = arith.constant 0 : i32
    return %c0_i32, %c0_i32_0 : i32, i32
  }
}

</mosaic_0001>

<llo_original>
// kernel: autoencoder_forward.1
$region0: #{autoencoder_forward.1}
  #allocation0 [shape = 'u32[]', space=smem, size = 0x4, offset = 0x4, fixed_abs, tag = 'smem constant byte address 0x4 - core index']
  #allocation1 [shape = 'u32[144,128]{1,0:T(1,128)}', space=vmem, size = 0x12000, scoped, tag = 'internal scratch']
  #allocation2 [shape = 'f32[8,1024]{1,0:T(8,128)}', space=vmem, size = 0x8000, scoped, tag = 'scratch operand']
  #allocation3 [shape = 'f32[32,1024]{1,0:T(8,128)}', space=vmem, size = 0x20000, scoped, tag = 'scratch operand']
  %s0 = inlined_call_operand.vmem [shape: f32[8,20], index: 0, kind: input, shape index: {}]
  %s1 = inlined_call_operand.hbm [shape: f32[20,2048], index: 1, kind: input, shape index: {}]
  %s2 = inlined_call_operand.hbm [shape: f32[1,2048], index: 2, kind: input, shape index: {}]
  %s3 = inlined_call_operand.hbm [shape: bf16[2048,1024], index: 3, kind: input, shape index: {}]
  %s4 = inlined_call_operand.hbm [shape: f32[1,1024], index: 4, kind: input, shape index: {}]
  %s5 = inlined_call_operand.vmem [shape: f32[1024,10], index: 5, kind: input, shape index: {}]
  %s6 = inlined_call_operand.vmem [shape: f32[4,10,1024], index: 6, kind: input, shape index: {}]
  %s7 = inlined_call_operand.hbm [shape: f32[4,1,1024], index: 7, kind: input, shape index: {}]
  %s8 = inlined_call_operand.hbm [shape: bf16[1024,2048], index: 8, kind: input, shape index: {}]
  %s9 = inlined_call_operand.hbm [shape: f32[1,2048], index: 9, kind: input, shape index: {}]
  %s10 = inlined_call_operand.vmem [shape: f32[2048,2], index: 10, kind: input, shape index: {}]
  %s11 = inlined_call_operand.hbm [shape: f32[1,2], index: 11, kind: input, shape index: {}]
  %s12 = inlined_call_operand.vmem [shape: f32[32,2], index: 12, kind: output, shape index: {}]
  %s13 = sld [smem:[#allocation0]]
  $region133: #{autoencoder_forward.1} parent=0
    _
  %s15 = ssub.s32 1, %s13
  %s16 = scalar_select 0, %s15, %s13
  $region1: #{autoencoder_forward.1} parent=0
    #allocation4 [shape = 'u8[98304]{0}', space=vmem, size = 0x18000, scoped, tag = 'input window, operand 1']
    #allocation5 [shape = 's32[2]{0}', space=sflag, size = 0x8, scoped, tag = 'scoped memory for autoencoder_forward.1']
    #allocation6 [shape = 'u8[4096]{0}', space=vmem, size = 0x1000, scoped, tag = 'input window, operand 2']
    #allocation7 [shape = 's32[2]{0}', space=sflag, size = 0x8, scoped, tag = 'scoped memory for autoencoder_forward.1']
    #allocation8 [shape = 'u8[2097152]{0}', space=vmem, size = 0x200000, scoped, tag = 'input window, operand 3']
    #allocation9 [shape = 'u8[4096]{0}', space=vmem, size = 0x1000, scoped, tag = 'input window, operand 4, single buffered']
    #allocation10 [shape = 's32[1]{0}', space=sflag, size = 0x4, scoped, tag = 'scoped memory for autoencoder_forward.1']
    #allocation11 [shape = 'u8[16384]{0}', space=vmem, size = 0x4000, scoped, tag = 'input window, operand 7, single buffered']
    #allocation12 [shape = 'u8[2097152]{0}', space=vmem, size = 0x200000, scoped, tag = 'input window, operand 8']
    #allocation13 [shape = 's32[2]{0}', space=sflag, size = 0x8, scoped, tag = 'scoped memory for autoencoder_forward.1']
    #allocation14 [shape = 'u8[4096]{0}', space=vmem, size = 0x1000, scoped, tag = 'input window, operand 9']
    #allocation15 [shape = 'u8[512]{0}', space=vmem, size = 0x400, scoped, tag = 'input window, operand 11, single buffered']
    #allocation16 [shape = 's32[1]{0}', space=sflag, size = 0x4, scoped, tag = 'scoped memory for autoencoder_forward.1']
    %17 = vsyncpa [#allocation5], 0
    %s18 = scalar_lea.sflag [#allocation5], 1
    %19 = vsyncpa %s18, 0
    %20 = vsyncpa [#allocation7], 0
    %s21 = scalar_lea.sflag [#allocation7], 1
    %22 = vsyncpa %s21, 0
    %23 = vsyncpa [#allocation10], 0
    %24 = vsyncpa [#allocation13], 0
    %s25 = scalar_lea.sflag [#allocation13], 1
    %26 = vsyncpa %s25, 0
    %27 = vsyncpa [#allocation16], 0
    loop: start=0, step=1, limit=10
    $region2: #{autoencoder_forward.1} parent=1 // loop_pre_header
      _
    $region3: #{autoencoder_forward.1} parent=1 // loop_header
      %s29 = sphi 0, %s33
      %p30 = scmp.ge.s32.totalorder %s29, 10
      %s36 = sphi 0, %s48
      %s37 = sphi 0, %s44
      %s38 = sphi 0, %s36
      %s39 = sphi 0, %s37
      %s40 = sphi 0, %s38
      %s41 = sphi 0, %s39
      %s49 = sphi 0, %s49
      %s51 = sphi 0, %s49
      %s52 = sphi 0, %s51
      %s66 = sphi 0, %s52
      %s80 = sphi 0, %s82
      %s83 = sphi 0, %s80
      %s84 = sphi 0, %s83
      %s100 = sphi 0, %s84
      %s114 = sphi 0, %s116
      %s117 = sphi 0, %s114
      %s118 = sphi 0, %s117
      %s134 = sphi 0, %s118
      %s148 = sphi 0, %s150
      %s151 = sphi 0, %s148
      %s152 = sphi 0, %s151
      %s168 = sphi 0, %s152
      %s172 = sphi 0, %s172
      %s174 = sphi 0, %s172
      %s175 = sphi 0, %s174
      %s189 = sphi 0, %s175
      %s193 = sphi 0, %s193
      %s195 = sphi 0, %s193
      %s196 = sphi 0, %s195
      %s210 = sphi 0, %s196
      %s214 = sphi 0, %s214
      %s216 = sphi 0, %s214
      %s217 = sphi 0, %s216
      %s231 = sphi 0, %s217
      %s235 = sphi 0, %s235
      %s237 = sphi 0, %s235
      %s238 = sphi 0, %s237
      %s252 = sphi 0, %s238
      %s260 = sphi 0, %s262
      %s263 = sphi 0, %s260
      %s264 = sphi 0, %s263
      %s280 = sphi 0, %s264
      %s288 = sphi 0, %s290
      %s291 = sphi 0, %s288
      %s292 = sphi 0, %s291
      %s308 = sphi 0, %s292
      %s316 = sphi 0, %s318
      %s319 = sphi 0, %s316
      %s320 = sphi 0, %s319
      %s336 = sphi 0, %s320
      %s340 = sphi 0, %s340
      %s342 = sphi 0, %s340
      %s343 = sphi 0, %s342
      %s357 = sphi 0, %s343
      %s361 = sphi 0, %s361
      %s363 = sphi 0, %s361
      %s364 = sphi 0, %s363
      %s378 = sphi 0, %s364
    $region4: #{autoencoder_forward.1} parent=1 // loop_header_branch
      %32 = sbr.rel (%p30) target = $region8
    $region5: #{autoencoder_forward.1} parent=1 // loop_body
      %s34 = ssub.s32 %s29, 1
      %s35 = ssub.s32 %s29, 2
      %s42 = sadd.s32 1, %s37
      %p43 = scmp.ge.s32.totalorder %s42, 4
      %s44 = scalar_select %p43, 0, %s42
      %s45 = sadd.s32 1, %s36
      %s46 = scalar_select %p43, %s45, %s36
      %p47 = scmp.ge.s32.totalorder %s46, 2
      %s48 = scalar_select %p47, 0, %s46
      %s50 = sadd.s32 %s49, 1
      %p53 = scmp.eq.s32.totalorder %s29, 7
      %p54 = scmp.ne.s32.totalorder %s49, %s51
      %p55 = scmp.eq.s32.totalorder %s29, 0
      %p56 = por %p54, %p55
      %p57 = scmp.ne.s32.totalorder %s49, %s51
      %p58 = scmp.eq.s32.totalorder %s34, 7
      %p59 = por %p57, %p58
      %p60 = scmp.ne.s32.totalorder %s51, %s52
      %p61 = scmp.eq.s32.totalorder %s34, 0
      %p62 = por %p60, %p61
      %p63 = scmp.ne.s32.totalorder %s51, %s52
      %p64 = scmp.eq.s32.totalorder %s35, 7
      %p65 = por %p63, %p64
      %p67 = scmp.ne.s32.totalorder %s52, %s66
      %p68 = scmp.eq.s32.totalorder %s35, 0
      %p69 = por %p67, %p68
      %s70 = ssub.s32 1, %s36
      %s71 = smul.u32 %s37, %s70
      %s72 = smul.u32 %s36, 3
      %s73 = sadd.s32 %s71, %s72
      %s74 = ssub.s32 1, %s48
      %s75 = smul.u32 %s44, %s74
      %s76 = smul.u32 %s48, 3
      %s77 = sadd.s32 %s75, %s76
      %s78 = ssub.s32 %s73, %s77
      %p79 = scmp.eq.s32.totalorder %s78, 0
      %s81 = sadd.s32 %s80, 1
      %s82 = scalar_select %p79, %s80, %s81
      %p85 = pneg %p79
      %p86 = scmp.eq.s32.totalorder %s29, 7
      %p87 = por %p85, %p86
      %p88 = scmp.ne.s32.totalorder %s80, %s83
      %p89 = scmp.eq.s32.totalorder %s29, 0
      %p90 = por %p88, %p89
      %p91 = scmp.ne.s32.totalorder %s80, %s83
      %p92 = scmp.eq.s32.totalorder %s34, 7
      %p93 = por %p91, %p92
      %p94 = scmp.ne.s32.totalorder %s83, %s84
      %p95 = scmp.eq.s32.totalorder %s34, 0
      %p96 = por %p94, %p95
      %p97 = scmp.ne.s32.totalorder %s83, %s84
      %p98 = scmp.eq.s32.totalorder %s35, 7
      %p99 = por %p97, %p98
      %p101 = scmp.ne.s32.totalorder %s84, %s100
      %p102 = scmp.eq.s32.totalorder %s35, 0
      %p103 = por %p101, %p102
      %s104 = ssub.s32 1, %s36
      %s105 = smul.u32 %s37, %s104
      %s106 = smul.u32 %s36, 3
      %s107 = sadd.s32 %s105, %s106
      %s108 = ssub.s32 1, %s48
      %s109 = smul.u32 %s44, %s108
      %s110 = smul.u32 %s48, 3
      %s111 = sadd.s32 %s109, %s110
      %s112 = ssub.s32 %s107, %s111
      %p113 = scmp.eq.s32.totalorder %s112, 0
      %s115 = sadd.s32 %s114, 1
      %s116 = scalar_select %p113, %s114, %s115
      %p119 = pneg %p113
      %p120 = scmp.eq.s32.totalorder %s29, 7
      %p121 = por %p119, %p120
      %p122 = scmp.ne.s32.totalorder %s114, %s117
      %p123 = scmp.eq.s32.totalorder %s29, 0
      %p124 = por %p122, %p123
      %p125 = scmp.ne.s32.totalorder %s114, %s117
      %p126 = scmp.eq.s32.totalorder %s34, 7
      %p127 = por %p125, %p126
      %p128 = scmp.ne.s32.totalorder %s117, %s118
      %p129 = scmp.eq.s32.totalorder %s34, 0
      %p130 = por %p128, %p129
      %p131 = scmp.ne.s32.totalorder %s117, %s118
      %p132 = scmp.eq.s32.totalorder %s35, 7
      %p133 = por %p131, %p132
      %p135 = scmp.ne.s32.totalorder %s118, %s134
      %p136 = scmp.eq.s32.totalorder %s35, 0
      %p137 = por %p135, %p136
      %s138 = ssub.s32 1, %s36
      %s139 = smul.u32 %s37, %s138
      %s140 = smul.u32 %s36, 3
      %s141 = sadd.s32 %s139, %s140
      %s142 = ssub.s32 1, %s48
      %s143 = smul.u32 %s44, %s142
      %s144 = smul.u32 %s48, 3
      %s145 = sadd.s32 %s143, %s144
      %s146 = ssub.s32 %s141, %s145
      %p147 = scmp.eq.s32.totalorder %s146, 0
      %s149 = sadd.s32 %s148, 1
      %s150 = scalar_select %p147, %s148, %s149
      %p153 = pneg %p147
      %p154 = scmp.eq.s32.totalorder %s29, 7
      %p155 = por %p153, %p154
      %p156 = scmp.ne.s32.totalorder %s148, %s151
      %p157 = scmp.eq.s32.totalorder %s29, 0
      %p158 = por %p156, %p157
      %p159 = scmp.ne.s32.totalorder %s148, %s151
      %p160 = scmp.eq.s32.totalorder %s34, 7
      %p161 = por %p159, %p160
      %p162 = scmp.ne.s32.totalorder %s151, %s152
      %p163 = scmp.eq.s32.totalorder %s34, 0
      %p164 = por %p162, %p163
      %p165 = scmp.ne.s32.totalorder %s151, %s152
      %p166 = scmp.eq.s32.totalorder %s35, 7
      %p167 = por %p165, %p166
      %p169 = scmp.ne.s32.totalorder %s152, %s168
      %p170 = scmp.eq.s32.totalorder %s35, 0
      %p171 = por %p169, %p170
      %s173 = sadd.s32 %s172, 1
      %p176 = scmp.eq.s32.totalorder %s29, 7
      %p177 = scmp.ne.s32.totalorder %s172, %s174
      %p178 = scmp.eq.s32.totalorder %s29, 0
      %p179 = por %p177, %p178
      %p180 = scmp.ne.s32.totalorder %s172, %s174
      %p181 = scmp.eq.s32.totalorder %s34, 7
      %p182 = por %p180, %p181
      %p183 = scmp.ne.s32.totalorder %s174, %s175
      %p184 = scmp.eq.s32.totalorder %s34, 0
      %p185 = por %p183, %p184
      %p186 = scmp.ne.s32.totalorder %s174, %s175
      %p187 = scmp.eq.s32.totalorder %s35, 7
      %p188 = por %p186, %p187
      %p190 = scmp.ne.s32.totalorder %s175, %s189
      %p191 = scmp.eq.s32.totalorder %s35, 0
      %p192 = por %p190, %p191
      %s194 = sadd.s32 %s193, 1
      %p197 = scmp.eq.s32.totalorder %s29, 7
      %p198 = scmp.ne.s32.totalorder %s193, %s195
      %p199 = scmp.eq.s32.totalorder %s29, 0
      %p200 = por %p198, %p199
      %p201 = scmp.ne.s32.totalorder %s193, %s195
      %p202 = scmp.eq.s32.totalorder %s34, 7
      %p203 = por %p201, %p202
      %p204 = scmp.ne.s32.totalorder %s195, %s196
      %p205 = scmp.eq.s32.totalorder %s34, 0
      %p206 = por %p204, %p205
      %p207 = scmp.ne.s32.totalorder %s195, %s196
      %p208 = scmp.eq.s32.totalorder %s35, 7
      %p209 = por %p207, %p208
      %p211 = scmp.ne.s32.totalorder %s196, %s210
      %p212 = scmp.eq.s32.totalorder %s35, 0
      %p213 = por %p211, %p212
      %s215 = sadd.s32 %s214, 1
      %p218 = scmp.eq.s32.totalorder %s29, 7
      %p219 = scmp.ne.s32.totalorder %s214, %s216
      %p220 = scmp.eq.s32.totalorder %s29, 0
      %p221 = por %p219, %p220
      %p222 = scmp.ne.s32.totalorder %s214, %s216
      %p223 = scmp.eq.s32.totalorder %s34, 7
      %p224 = por %p222, %p223
      %p225 = scmp.ne.s32.totalorder %s216, %s217
      %p226 = scmp.eq.s32.totalorder %s34, 0
      %p227 = por %p225, %p226
      %p228 = scmp.ne.s32.totalorder %s216, %s217
      %p229 = scmp.eq.s32.totalorder %s35, 7
      %p230 = por %p228, %p229
      %p232 = scmp.ne.s32.totalorder %s217, %s231
      %p233 = scmp.eq.s32.totalorder %s35, 0
      %p234 = por %p232, %p233
      %s236 = sadd.s32 %s235, 1
      %p239 = scmp.eq.s32.totalorder %s29, 7
      %p240 = scmp.ne.s32.totalorder %s235, %s237
      %p241 = scmp.eq.s32.totalorder %s29, 0
      %p242 = por %p240, %p241
      %p243 = scmp.ne.s32.totalorder %s235, %s237
      %p244 = scmp.eq.s32.totalorder %s34, 7
      %p245 = por %p243, %p244
      %p246 = scmp.ne.s32.totalorder %s237, %s238
      %p247 = scmp.eq.s32.totalorder %s34, 0
      %p248 = por %p246, %p247
      %p249 = scmp.ne.s32.totalorder %s237, %s238
      %p250 = scmp.eq.s32.totalorder %s35, 7
      %p251 = por %p249, %p250
      %p253 = scmp.ne.s32.totalorder %s238, %s252
      %p254 = scmp.eq.s32.totalorder %s35, 0
      %p255 = por %p253, %p254
      %s256 = smul.u32 %s37, %s36
      %s257 = smul.u32 %s44, %s48
      %s258 = ssub.s32 %s256, %s257
      %p259 = scmp.eq.s32.totalorder %s258, 0
      %s261 = sadd.s32 %s260, 1
      %s262 = scalar_select %p259, %s260, %s261
      %p265 = pneg %p259
      %p266 = scmp.eq.s32.totalorder %s29, 7
      %p267 = por %p265, %p266
      %p268 = scmp.ne.s32.totalorder %s260, %s263
      %p269 = scmp.eq.s32.totalorder %s29, 0
      %p270 = por %p268, %p269
      %p271 = scmp.ne.s32.totalorder %s260, %s263
      %p272 = scmp.eq.s32.totalorder %s34, 7
      %p273 = por %p271, %p272
      %p274 = scmp.ne.s32.totalorder %s263, %s264
      %p275 = scmp.eq.s32.totalorder %s34, 0
      %p276 = por %p274, %p275
      %p277 = scmp.ne.s32.totalorder %s263, %s264
      %p278 = scmp.eq.s32.totalorder %s35, 7
      %p279 = por %p277, %p278
      %p281 = scmp.ne.s32.totalorder %s264, %s280
      %p282 = scmp.eq.s32.totalorder %s35, 0
      %p283 = por %p281, %p282
      %s284 = smul.u32 %s37, %s36
      %s285 = smul.u32 %s44, %s48
      %s286 = ssub.s32 %s284, %s285
      %p287 = scmp.eq.s32.totalorder %s286, 0
      %s289 = sadd.s32 %s288, 1
      %s290 = scalar_select %p287, %s288, %s289
      %p293 = pneg %p287
      %p294 = scmp.eq.s32.totalorder %s29, 7
      %p295 = por %p293, %p294
      %p296 = scmp.ne.s32.totalorder %s288, %s291
      %p297 = scmp.eq.s32.totalorder %s29, 0
      %p298 = por %p296, %p297
      %p299 = scmp.ne.s32.totalorder %s288, %s291
      %p300 = scmp.eq.s32.totalorder %s34, 7
      %p301 = por %p299, %p300
      %p302 = scmp.ne.s32.totalorder %s291, %s292
      %p303 = scmp.eq.s32.totalorder %s34, 0
      %p304 = por %p302, %p303
      %p305 = scmp.ne.s32.totalorder %s291, %s292
      %p306 = scmp.eq.s32.totalorder %s35, 7
      %p307 = por %p305, %p306
      %p309 = scmp.ne.s32.totalorder %s292, %s308
      %p310 = scmp.eq.s32.totalorder %s35, 0
      %p311 = por %p309, %p310
      %s312 = smul.u32 %s37, %s36
      %s313 = smul.u32 %s44, %s48
      %s314 = ssub.s32 %s312, %s313
      %p315 = scmp.eq.s32.totalorder %s314, 0
      %s317 = sadd.s32 %s316, 1
      %s318 = scalar_select %p315, %s316, %s317
      %p321 = pneg %p315
      %p322 = scmp.eq.s32.totalorder %s29, 7
      %p323 = por %p321, %p322
      %p324 = scmp.ne.s32.totalorder %s316, %s319
      %p325 = scmp.eq.s32.totalorder %s29, 0
      %p326 = por %p324, %p325
      %p327 = scmp.ne.s32.totalorder %s316, %s319
      %p328 = scmp.eq.s32.totalorder %s34, 7
      %p329 = por %p327, %p328
      %p330 = scmp.ne.s32.totalorder %s319, %s320
      %p331 = scmp.eq.s32.totalorder %s34, 0
      %p332 = por %p330, %p331
      %p333 = scmp.ne.s32.totalorder %s319, %s320
      %p334 = scmp.eq.s32.totalorder %s35, 7
      %p335 = por %p333, %p334
      %p337 = scmp.ne.s32.totalorder %s320, %s336
      %p338 = scmp.eq.s32.totalorder %s35, 0
      %p339 = por %p337, %p338
      %s341 = sadd.s32 %s340, 1
      %p344 = scmp.eq.s32.totalorder %s29, 7
      %p345 = scmp.ne.s32.totalorder %s340, %s342
      %p346 = scmp.eq.s32.totalorder %s29, 0
      %p347 = por %p345, %p346
      %p348 = scmp.ne.s32.totalorder %s340, %s342
      %p349 = scmp.eq.s32.totalorder %s34, 7
      %p350 = por %p348, %p349
      %p351 = scmp.ne.s32.totalorder %s342, %s343
      %p352 = scmp.eq.s32.totalorder %s34, 0
      %p353 = por %p351, %p352
      %p354 = scmp.ne.s32.totalorder %s342, %s343
      %p355 = scmp.eq.s32.totalorder %s35, 7
      %p356 = por %p354, %p355
      %p358 = scmp.ne.s32.totalorder %s343, %s357
      %p359 = scmp.eq.s32.totalorder %s35, 0
      %p360 = por %p358, %p359
      %s362 = sadd.s32 %s361, 1
      %p365 = scmp.eq.s32.totalorder %s29, 7
      %p366 = scmp.ne.s32.totalorder %s361, %s363
      %p367 = scmp.eq.s32.totalorder %s29, 0
      %p368 = por %p366, %p367
      %p369 = scmp.ne.s32.totalorder %s361, %s363
      %p370 = scmp.eq.s32.totalorder %s34, 7
      %p371 = por %p369, %p370
      %p372 = scmp.ne.s32.totalorder %s363, %s364
      %p373 = scmp.eq.s32.totalorder %s34, 0
      %p374 = por %p372, %p373
      %p375 = scmp.ne.s32.totalorder %s363, %s364
      %p376 = scmp.eq.s32.totalorder %s35, 7
      %p377 = por %p375, %p376
      %p379 = scmp.ne.s32.totalorder %s364, %s378
      %p380 = scmp.eq.s32.totalorder %s35, 0
      %p381 = por %p379, %p380
      %p382 = scmp.le.s32.totalorder 1, %s29
      %p383 = scmp.lt.s32.totalorder %s29, 9
      %p384 = pnand %p382, %p383
      %p385 = pneg %p384
      // Predicated region
      $region9: #{autoencoder_forward.1} parent=5 // pred_check
        _
      $region10: #{autoencoder_forward.1} parent=5 // pred_check_branch
        %387 = sbr.rel (%p384) target = $region12
      $region11: #{autoencoder_forward.1} parent=5 // pred_region
        %s388 = ssub.s32 %s29, 1
        // Predicated region
        $region13: #{autoencoder_forward.1} parent=11 // pred_check
          %p389 = pneg %p62
        $region14: #{autoencoder_forward.1} parent=11 // pred_check_branch
          %391 = sbr.rel (%p389) target = $region16
        $region15: #{autoencoder_forward.1} parent=11 // pred_region
          _
        $region16: #{autoencoder_forward.1} parent=11 // pred_fallthru
          _
        // Predicated region
        $region17: #{autoencoder_forward.1} parent=11 // pred_check
          %p392 = pneg %p185
        $region18: #{autoencoder_forward.1} parent=11 // pred_check_branch
          %394 = sbr.rel (%p392) target = $region20
        $region19: #{autoencoder_forward.1} parent=11 // pred_region
          %s396 = ssub.s32 128, 128
          %397 = vsyncadd [#allocation10], %s396
          %s399 = sshll.u32 [#allocation9], 4
          %s400 = int_to_ptr.vmem [resolvable:$true] %s399
          %402 = dma.hbm_to_vmem [thread:$0]  %s4, 128, %s400, [#allocation10]
        $region20: #{autoencoder_forward.1} parent=11 // pred_fallthru
          _
        // Predicated region
        $region21: #{autoencoder_forward.1} parent=11 // pred_check
          %p403 = pneg %p206
        $region22: #{autoencoder_forward.1} parent=11 // pred_check_branch
          %405 = sbr.rel (%p403) target = $region24
        $region23: #{autoencoder_forward.1} parent=11 // pred_region
          _
        $region24: #{autoencoder_forward.1} parent=11 // pred_fallthru
          _
        // Predicated region
        $region25: #{autoencoder_forward.1} parent=11 // pred_check
          %p406 = pneg %p227
        $region26: #{autoencoder_forward.1} parent=11 // pred_check_branch
          %408 = sbr.rel (%p406) target = $region28
        $region27: #{autoencoder_forward.1} parent=11 // pred_region
          _
        $region28: #{autoencoder_forward.1} parent=11 // pred_fallthru
          _
        // Predicated region
        $region29: #{autoencoder_forward.1} parent=11 // pred_check
          %p409 = pneg %p248
        $region30: #{autoencoder_forward.1} parent=11 // pred_check_branch
          %411 = sbr.rel (%p409) target = $region32
        $region31: #{autoencoder_forward.1} parent=11 // pred_region
          %s413 = ssub.s32 512, 512
          %414 = vsyncadd [#allocation10], %s413
          %s415 = sshll.u32 [#allocation11], 4
          %s416 = int_to_ptr.vmem [resolvable:$true] %s415
          %421 = dma.hbm_to_vmem [thread:$0]  %s7, 512, %s416, [#allocation10], 128, 128, 8
        $region32: #{autoencoder_forward.1} parent=11 // pred_fallthru
          _
        // Predicated region
        $region33: #{autoencoder_forward.1} parent=11 // pred_check
          %p422 = pneg %p353
        $region34: #{autoencoder_forward.1} parent=11 // pred_check_branch
          %424 = sbr.rel (%p422) target = $region36
        $region35: #{autoencoder_forward.1} parent=11 // pred_region
          %s426 = ssub.s32 16, 16
          %427 = vsyncadd [#allocation16], %s426
          %s429 = sshll.u32 [#allocation15], 4
          %s430 = int_to_ptr.vmem [resolvable:$true] %s429
          %432 = dma.hbm_to_vmem [thread:$0]  %s11, 16, %s430, [#allocation16]
        $region36: #{autoencoder_forward.1} parent=11 // pred_fallthru
          _
      $region12: #{autoencoder_forward.1} parent=5 // pred_fallthru
        _
      %p433 = scmp.lt.s32.totalorder %s29, 8
      // Predicated region
      $region37: #{autoencoder_forward.1} parent=5 // pred_check
        %p434 = pneg %p433
      $region38: #{autoencoder_forward.1} parent=5 // pred_check_branch
        %436 = sbr.rel (%p434) target = $region40
      $region39: #{autoencoder_forward.1} parent=5 // pred_region
        // Predicated region
        $region41: #{autoencoder_forward.1} parent=39 // pred_check
          %p437 = pneg %p90
        $region42: #{autoencoder_forward.1} parent=39 // pred_check_branch
          %439 = sbr.rel (%p437) target = $region44
        $region43: #{autoencoder_forward.1} parent=39 // pred_region
          %s440 = sand.u32 %s80, 1
          %s441 = scalar_lea.sflag [#allocation5], %s440
          %s442 = sand.u32 %s80, 1
          %s443 = smul.addr %s442, 96
          %s444 = scalar_lea.vmem [#allocation4], %s443
          %s445 = ssub.s32 1, %s36
          %s446 = smul.u32 %s37, %s445
          %s447 = smul.u32 %s36, 3
          %s448 = sadd.s32 %s446, %s447
          %s449 = smul.u32 4, %s448
          %s451 = ssub.s32 1536, 1536
          %452 = vsyncadd %s441, %s451
          %s453 = smul.addr %s449, 128
          %s454 = scalar_lea.hbm %s1, %s453
          %s455 = sshll.u32 %s444, 4
          %s456 = int_to_ptr.vmem [resolvable:$true] %s455
          %461 = dma.hbm_to_vmem [thread:$0]  %s454, 1536, %s456, %s441, 2048, 512, 32
        $region44: #{autoencoder_forward.1} parent=39 // pred_fallthru
          _
        // Predicated region
        $region45: #{autoencoder_forward.1} parent=39 // pred_check
          %p462 = pneg %p124
        $region46: #{autoencoder_forward.1} parent=39 // pred_check_branch
          %464 = sbr.rel (%p462) target = $region48
        $region47: #{autoencoder_forward.1} parent=39 // pred_region
          %s465 = sand.u32 %s29, 1
          %s466 = scalar_lea.sflag [#allocation7], %s465
          %s467 = sand.u32 %s114, 1
          %s468 = smul.addr %s467, 4
          %s469 = scalar_lea.vmem [#allocation6], %s468
          %s470 = ssub.s32 1, %s36
          %s471 = smul.u32 %s37, %s470
          %s472 = smul.u32 %s36, 3
          %s473 = sadd.s32 %s471, %s472
          %s474 = smul.u32 4, %s473
          %s476 = ssub.s32 64, 64
          %477 = vsyncadd %s466, %s476
          %s478 = smul.addr %s474, 16
          %s479 = scalar_lea.hbm %s2, %s478
          %s481 = sshll.u32 %s469, 4
          %s482 = int_to_ptr.vmem [resolvable:$true] %s481
          %484 = dma.hbm_to_vmem [thread:$0]  %s479, 64, %s482, %s466
        $region48: #{autoencoder_forward.1} parent=39 // pred_fallthru
          _
        // Predicated region
        $region49: #{autoencoder_forward.1} parent=39 // pred_check
          %p485 = pneg %p158
        $region50: #{autoencoder_forward.1} parent=39 // pred_check_branch
          %487 = sbr.rel (%p485) target = $region52
        $region51: #{autoencoder_forward.1} parent=39 // pred_region
          %s488 = sand.u32 %s29, 1
          %s489 = scalar_lea.sflag [#allocation7], %s488
          %s490 = sand.u32 %s148, 1
          %s491 = smul.addr %s490, 2048
          %s492 = scalar_lea.vmem [#allocation8], %s491
          %s493 = ssub.s32 1, %s36
          %s494 = smul.u32 %s37, %s493
          %s495 = smul.u32 %s36, 3
          %s496 = sadd.s32 %s494, %s495
          %s497 = smul.u32 64, %s496
          %s499 = ssub.s32 32768, 32768
          %500 = vsyncadd %s489, %s499
          %s501 = smul.addr %s497, 8
          %s502 = smul.addr %s501, 64
          %s503 = scalar_lea.hbm %s3, %s502
          %s504 = sshll.u32 %s492, 4
          %s505 = int_to_ptr.vmem [resolvable:$true] %s504
          %510 = dma.hbm_to_vmem [thread:$0]  %s503, 32768, %s505, %s489, 512, 512, 32
        $region52: #{autoencoder_forward.1} parent=39 // pred_fallthru
          _
        // Predicated region
        $region53: #{autoencoder_forward.1} parent=39 // pred_check
          %p511 = pneg %p270
        $region54: #{autoencoder_forward.1} parent=39 // pred_check_branch
          %513 = sbr.rel (%p511) target = $region56
        $region55: #{autoencoder_forward.1} parent=39 // pred_region
          %s514 = sand.u32 %s29, 1
          %s515 = scalar_lea.sflag [#allocation13], %s514
          %s516 = sand.u32 %s260, 1
          %s517 = smul.addr %s516, 2048
          %s518 = scalar_lea.vmem [#allocation12], %s517
          %s519 = smul.u32 %s37, %s36
          %s520 = smul.u32 4, %s519
          %s522 = ssub.s32 32768, 32768
          %523 = vsyncadd %s515, %s522
          %s524 = smul.addr %s520, 64
          %s525 = scalar_lea.hbm %s8, %s524
          %s526 = sshll.u32 %s518, 4
          %s527 = int_to_ptr.vmem [resolvable:$true] %s526
          %532 = dma.hbm_to_vmem [thread:$0]  %s525, 32768, %s527, %s515, 1024, 256, 16
        $region56: #{autoencoder_forward.1} parent=39 // pred_fallthru
          _
        // Predicated region
        $region57: #{autoencoder_forward.1} parent=39 // pred_check
          %p533 = pneg %p298
        $region58: #{autoencoder_forward.1} parent=39 // pred_check_branch
          %535 = sbr.rel (%p533) target = $region60
        $region59: #{autoencoder_forward.1} parent=39 // pred_region
          %s536 = sand.u32 %s29, 1
          %s537 = scalar_lea.sflag [#allocation13], %s536
          %s538 = sand.u32 %s288, 1
          %s539 = smul.addr %s538, 4
          %s540 = scalar_lea.vmem [#allocation14], %s539
          %s541 = smul.u32 %s37, %s36
          %s542 = smul.u32 4, %s541
          %s544 = ssub.s32 64, 64
          %545 = vsyncadd %s537, %s544
          %s546 = smul.addr %s542, 16
          %s547 = scalar_lea.hbm %s9, %s546
          %s549 = sshll.u32 %s540, 4
          %s550 = int_to_ptr.vmem [resolvable:$true] %s549
          %552 = dma.hbm_to_vmem [thread:$0]  %s547, 64, %s550, %s537
        $region60: #{autoencoder_forward.1} parent=39 // pred_fallthru
          _
        // Predicated region
        $region61: #{autoencoder_forward.1} parent=39 // pred_check
          %p553 = pneg %p326
        $region62: #{autoencoder_forward.1} parent=39 // pred_check_branch
          %555 = sbr.rel (%p553) target = $region64
        $region63: #{autoencoder_forward.1} parent=39 // pred_region
          %s556 = smul.u32 %s37, %s36
          %s557 = smul.u32 64, %s556
          %p558 = scmp.lt.s32.totalorder %s557, 255
          %s559 = scalar_select %p558, %s557, 255
          %s560 = smul.addr %s559, 8
          %s561 = scalar_lea.vmem %s10, %s560
          %s562 = smul.u32 %s37, %s36
          %s563 = smul.u32 64, %s562
        $region64: #{autoencoder_forward.1} parent=39 // pred_fallthru
          _
      $region40: #{autoencoder_forward.1} parent=5 // pred_fallthru
        _
      %p564 = scmp.le.s32.totalorder 1, %s29
      %p565 = scmp.lt.s32.totalorder %s29, 9
      %p566 = pnand %p564, %p565
      %p567 = pneg %p566
      // Predicated region
      $region65: #{autoencoder_forward.1} parent=5 // pred_check
        _
      $region66: #{autoencoder_forward.1} parent=5 // pred_check_branch
        %569 = sbr.rel (%p566) target = $region68
      $region67: #{autoencoder_forward.1} parent=5 // pred_region
        %s570 = ssub.s32 %s29, 1
        %s571 = sand.u32 %s83, 1
        %s572 = scalar_lea.sflag [#allocation5], %s571
        %s573 = sand.u32 %s83, 1
        %s574 = smul.addr %s573, 96
        %s575 = scalar_lea.vmem [#allocation4], %s574
        // Predicated region
        $region69: #{autoencoder_forward.1} parent=67 // pred_check
          %p576 = pneg %p96
        $region70: #{autoencoder_forward.1} parent=67 // pred_check_branch
          %578 = sbr.rel (%p576) target = $region72
        $region71: #{autoencoder_forward.1} parent=67 // pred_region
          %579 = dma.done %s572, 1536
        $region72: #{autoencoder_forward.1} parent=67 // pred_fallthru
          _
        %s580 = sand.u32 %s34, 1
        %s581 = scalar_lea.sflag [#allocation7], %s580
        %s582 = sand.u32 %s117, 1
        %s583 = smul.addr %s582, 4
        %s584 = scalar_lea.vmem [#allocation6], %s583
        // Predicated region
        $region73: #{autoencoder_forward.1} parent=67 // pred_check
          %p585 = pneg %p130
        $region74: #{autoencoder_forward.1} parent=67 // pred_check_branch
          %587 = sbr.rel (%p585) target = $region76
        $region75: #{autoencoder_forward.1} parent=67 // pred_region
          %588 = dma.done %s581, 64
        $region76: #{autoencoder_forward.1} parent=67 // pred_fallthru
          _
        %s589 = sand.u32 %s34, 1
        %s590 = scalar_lea.sflag [#allocation7], %s589
        %s591 = sand.u32 %s151, 1
        %s592 = smul.addr %s591, 2048
        %s593 = scalar_lea.vmem [#allocation8], %s592
        // Predicated region
        $region77: #{autoencoder_forward.1} parent=67 // pred_check
          %p594 = pneg %p164
        $region78: #{autoencoder_forward.1} parent=67 // pred_check_branch
          %596 = sbr.rel (%p594) target = $region80
        $region79: #{autoencoder_forward.1} parent=67 // pred_region
          %597 = dma.done %s590, 32768
        $region80: #{autoencoder_forward.1} parent=67 // pred_fallthru
          _
        // Predicated region
        $region81: #{autoencoder_forward.1} parent=67 // pred_check
          %p598 = pneg %p185
        $region82: #{autoencoder_forward.1} parent=67 // pred_check_branch
          %600 = sbr.rel (%p598) target = $region84
        $region83: #{autoencoder_forward.1} parent=67 // pred_region
          %601 = dma.done [#allocation10], 128
        $region84: #{autoencoder_forward.1} parent=67 // pred_fallthru
          _
        // Predicated region
        $region85: #{autoencoder_forward.1} parent=67 // pred_check
          %p602 = pneg %p248
        $region86: #{autoencoder_forward.1} parent=67 // pred_check_branch
          %604 = sbr.rel (%p602) target = $region88
        $region87: #{autoencoder_forward.1} parent=67 // pred_region
          %605 = dma.done [#allocation10], 512
        $region88: #{autoencoder_forward.1} parent=67 // pred_fallthru
          _
        %s606 = sand.u32 %s34, 1
        %s607 = scalar_lea.sflag [#allocation13], %s606
        %s608 = sand.u32 %s263, 1
        %s609 = smul.addr %s608, 2048
        %s610 = scalar_lea.vmem [#allocation12], %s609
        // Predicated region
        $region89: #{autoencoder_forward.1} parent=67 // pred_check
          %p611 = pneg %p276
        $region90: #{autoencoder_forward.1} parent=67 // pred_check_branch
          %613 = sbr.rel (%p611) target = $region92
        $region91: #{autoencoder_forward.1} parent=67 // pred_region
          %614 = dma.done %s607, 32768
        $region92: #{autoencoder_forward.1} parent=67 // pred_fallthru
          _
        %s615 = sand.u32 %s34, 1
        %s616 = scalar_lea.sflag [#allocation13], %s615
        %s617 = sand.u32 %s291, 1
        %s618 = smul.addr %s617, 4
        %s619 = scalar_lea.vmem [#allocation14], %s618
        // Predicated region
        $region93: #{autoencoder_forward.1} parent=67 // pred_check
          %p620 = pneg %p304
        $region94: #{autoencoder_forward.1} parent=67 // pred_check_branch
          %622 = sbr.rel (%p620) target = $region96
        $region95: #{autoencoder_forward.1} parent=67 // pred_region
          %623 = dma.done %s616, 64
        $region96: #{autoencoder_forward.1} parent=67 // pred_fallthru
          _
        // Predicated region
        $region97: #{autoencoder_forward.1} parent=67 // pred_check
          %p624 = pneg %p353
        $region98: #{autoencoder_forward.1} parent=67 // pred_check_branch
          %626 = sbr.rel (%p624) target = $region100
        $region99: #{autoencoder_forward.1} parent=67 // pred_region
          %627 = dma.done [#allocation16], 16
        $region100: #{autoencoder_forward.1} parent=67 // pred_fallthru
          _
        %p628 = pneg %p62
        %p629 = pneg %p59
        %s630 = sand.u32 %s83, 1
        %s631 = scalar_lea.sflag [#allocation5], %s630
        %s632 = sand.u32 %s83, 1
        %s633 = smul.addr %s632, 96
        %s634 = scalar_lea.vmem [#allocation4], %s633
        %p635 = pneg %p96
        %p636 = pneg %p93
        %s637 = sand.u32 %s34, 1
        %s638 = scalar_lea.sflag [#allocation7], %s637
        %s639 = sand.u32 %s117, 1
        %s640 = smul.addr %s639, 4
        %s641 = scalar_lea.vmem [#allocation6], %s640
        %p642 = pneg %p130
        %p643 = pneg %p127
        %s644 = sand.u32 %s34, 1
        %s645 = scalar_lea.sflag [#allocation7], %s644
        %s646 = sand.u32 %s151, 1
        %s647 = smul.addr %s646, 2048
        %s648 = scalar_lea.vmem [#allocation8], %s647
        %p649 = pneg %p164
        %p650 = pneg %p161
        %p651 = pneg %p185
        %p652 = pneg %p182
        %p653 = pneg %p206
        %p654 = pneg %p203
        %p655 = pneg %p227
        %p656 = pneg %p224
        %p657 = pneg %p248
        %p658 = pneg %p245
        %s659 = sand.u32 %s34, 1
        %s660 = scalar_lea.sflag [#allocation13], %s659
        %s661 = sand.u32 %s263, 1
        %s662 = smul.addr %s661, 2048
        %s663 = scalar_lea.vmem [#allocation12], %s662
        %p664 = pneg %p276
        %p665 = pneg %p273
        %s666 = sand.u32 %s34, 1
        %s667 = scalar_lea.sflag [#allocation13], %s666
        %s668 = sand.u32 %s291, 1
        %s669 = smul.addr %s668, 4
        %s670 = scalar_lea.vmem [#allocation14], %s669
        %p671 = pneg %p304
        %p672 = pneg %p301
        %s673 = smul.u32 %s39, %s38
        %s674 = smul.u32 64, %s673
        %p675 = scmp.lt.s32.totalorder %s674, 255
        %s676 = scalar_select %p675, %s674, 255
        %s677 = smul.addr %s676, 8
        %s678 = scalar_lea.vmem %s10, %s677
        %p679 = pneg %p332
        %p680 = pneg %p329
        %p681 = pneg %p353
        %p682 = pneg %p350
        %p683 = pneg %p374
        %p684 = pneg %p371
        %s685 = ssub.s32 1, %s38
        %s686 = smul.u32 %s39, %s685
        %s687 = smul.u32 %s38, 3
        %s688 = sadd.s32 %s686, %s687
        %s689 = smul.u32 4, %s688
        %s690 = ssub.s32 1, %s38
        %s691 = smul.u32 %s39, %s690
        %s692 = smul.u32 %s38, 3
        %s693 = sadd.s32 %s691, %s692
        %s694 = smul.u32 4, %s693
        %s695 = ssub.s32 1, %s38
        %s696 = smul.u32 %s39, %s695
        %s697 = smul.u32 %s38, 3
        %s698 = sadd.s32 %s696, %s697
        %s699 = smul.u32 64, %s698
        %s700 = smul.u32 %s39, %s38
        %s701 = smul.u32 4, %s700
        %s702 = smul.u32 %s39, %s38
        %s703 = smul.u32 4, %s702
        %s704 = smul.u32 %s39, %s38
        %s705 = smul.u32 64, %s704
        %p706 = scmp.lt.s32.totalorder %s705, 255
        %s707 = scalar_select %p706, %s705, 255
        %s708 = smul.addr %s707, 8
        %s709 = scalar_lea.vmem %s10, %s708
        %s710 = smul.u32 %s39, %s38
        %s711 = smul.u32 64, %s710
        %p712 = scmp.eq.s32.totalorder %s38, 0
        // Predicated region
        $region101: #{autoencoder_forward.1} parent=67 // pred_check
          %p713 = pneg %p712
        $region102: #{autoencoder_forward.1} parent=67 // pred_check_branch
          %715 = sbr.rel (%p713) target = $region104
        $region103: #{autoencoder_forward.1} parent=67 // pred_region
          %p716 = scmp.eq.s32.totalorder %s39, 0
          // Predicated region
          $region105: #{autoencoder_forward.1} parent=103 // pred_check
            %p717 = pneg %p716
          $region106: #{autoencoder_forward.1} parent=103 // pred_check_branch
            %719 = sbr.rel (%p717) target = $region108
          $region107: #{autoencoder_forward.1} parent=103 // pred_region
            %720 = vst [vmem:[#allocation2] sm:$0xff] 0.0
            %721 = vst [vmem:[#allocation2 + $0x8] sm:$0xff] 0.0
            %722 = vst [vmem:[#allocation2 + $0x10] sm:$0xff] 0.0
            %723 = vst [vmem:[#allocation2 + $0x18] sm:$0xff] 0.0
            %724 = vst [vmem:[#allocation2 + $0x20] sm:$0xff] 0.0
            %725 = vst [vmem:[#allocation2 + $0x28] sm:$0xff] 0.0
            %726 = vst [vmem:[#allocation2 + $0x30] sm:$0xff] 0.0
            %727 = vst [vmem:[#allocation2 + $0x38] sm:$0xff] 0.0
          $region108: #{autoencoder_forward.1} parent=103 // pred_fallthru
            _
          %v728 = vld [vmem:[%s0] sm:$0xff]
          %v729 = vld [vmem:[%s575] sm:$0xff]
          %v730 = vld [vmem:[%s575 + $0x8] sm:$0xff]
          %v731 = vld [vmem:[%s575 + $0x10] sm:$0xff]
          %v732 = vld [vmem:[%s575 + $0x18] sm:$0xff]
          %v733 = vld [vmem:[%s575 + $0x20] sm:$0xff]
          %v734 = vld [vmem:[%s575 + $0x28] sm:$0xff]
          %v735 = vld [vmem:[%s575 + $0x30] sm:$0xff]
          %v736 = vld [vmem:[%s575 + $0x38] sm:$0xff]
          %v737 = vld [vmem:[%s575 + $0x40] sm:$0xf]
          %v738 = vld [vmem:[%s575 + $0x48] sm:$0xf]
          %v739 = vld [vmem:[%s575 + $0x50] sm:$0xf]
          %v740 = vld [vmem:[%s575 + $0x58] sm:$0xf]
          %v741 = vld [vmem:[%s584] sm:$0xf]
          %v743 = vlaneseq
          %v744 = vshrl.u32 %v743, 7
          %v745 = vsub.s32 0, %v744
          %v746 = vrot.slane %v741, %v745
          %v747 = vlaneseq
          %v748 = vshrl.u32 %v747, 7
          %v749 = vsub.s32 1, %v748
          %v750 = vrot.slane %v741, %v749
          %v751 = vlaneseq
          %v752 = vshrl.u32 %v751, 7
          %v753 = vsub.s32 2, %v752
          %v754 = vrot.slane %v741, %v753
          %v755 = vlaneseq
          %v756 = vshrl.u32 %v755, 7
          %v757 = vsub.s32 3, %v756
          %v758 = vrot.slane %v741, %v757
          %vm763 = vcmask 162816
          %v765 = vsel %vm763, %v728, 0
          %vm767 = vcmask 1043456
          %v769 = vsel %vm767, %v737, 0
          %v772 = vsel %vm767, %v738, 0
          %v775 = vsel %vm767, %v739, 0
          %v778 = vsel %vm767, %v740, 0
          %780 = vmatprep.subr.mxu0 %v730
          %781 = vmatpush1.msra.mxu0 %v729
          %782 = vmatprep.subr.mxu0 %v734
          %783 = vmatpush1.msra.mxu0 %v733
          %784 = vmatprep.subr.mxu0 %v772
          %785 = vmatpush1.msra.mxu0 %v769
          %786 = vmatprep.subr.mxu0 0.0
          %787 = vmatpush1.msra.mxu0 0.0
          %788 = vmatprep.subr.mxu0 0.0
          %789 = vmatpush1.msra.mxu0 0.0
          %790 = vmatprep.subr.mxu0 0.0
          %791 = vmatpush1.msra.mxu0 0.0
          %792 = vmatprep.subr.mxu0 0.0
          %793 = vmatpush1.msra.mxu0 0.0
          %794 = vmatprep.subr.mxu0 0.0
          %795 = vmatpush1.msra.mxu0 0.0
          %796 = vmatprep.subr.mxu0 0.0
          %797 = vmatpush1.msra.mxu0 0.0
          %798 = vmatprep.subr.mxu0 0.0
          %799 = vmatpush1.msra.mxu0 0.0
          %800 = vmatprep.subr.mxu0 0.0
          %801 = vmatpush1.msra.mxu0 0.0
          %802 = vmatprep.subr.mxu0 0.0
          %803 = vmatpush1.msra.mxu0 0.0
          %804 = vmatprep.subr.mxu0 0.0
          %805 = vmatpush1.msra.mxu0 0.0
          %806 = vmatprep.subr.mxu0 0.0
          %807 = vmatpush1.msra.mxu0 0.0
          %808 = vmatprep.subr.mxu0 0.0
          %809 = vmatpush1.msra.mxu0 0.0
          %810 = vmatprep.subr.mxu0 0.0
          %811 = vmatpush1.msra.mxu0 0.0
          %812 = vmatprep.subr.mxu0 0.0
          %813 = vmatpush1.msra.mxu0 0.0
          %814 = vmatprep.subr.mxu0 0.0
          %815 = vmatpush1.msra.mxu0 0.0
          %816 = vmatprep.subr.mxu0 0.0
          %817 = vmatpush1.msra.mxu0 0.0
          %818 = vmatprep.subr.mxu0 0.0
          %819 = vmatpush1.msra.mxu0 0.0
          %820 = vmatprep.subr.mxu0 0.0
          %821 = vmatpush1.msra.mxu0 0.0
          %822 = vmatprep.subr.mxu0 0.0
          %823 = vmatpush1.msra.mxu0 0.0
          %824 = vmatprep.subr.mxu0 0.0
          %825 = vmatpush1.msra.mxu0 0.0
          %826 = vmatprep.subr.mxu0 0.0
          %827 = vmatpush1.msra.mxu0 0.0
          %828 = vmatprep.subr.mxu0 0.0
          %829 = vmatpush1.msra.mxu0 0.0
          %830 = vmatprep.subr.mxu0 0.0
          %831 = vmatpush1.msra.mxu0 0.0
          %832 = vmatprep.subr.mxu0 0.0
          %833 = vmatpush1.msra.mxu0 0.0
          %834 = vmatprep.subr.mxu0 0.0
          %835 = vmatpush1.msra.mxu0 0.0
          %836 = vmatprep.subr.mxu0 0.0
          %837 = vmatpush1.msra.mxu0 0.0
          %838 = vmatprep.subr.mxu0 0.0
          %839 = vmatpush1.msra.mxu0 0.0
          %840 = vmatprep.subr.mxu0 0.0
          %841 = vmatpush1.msra.mxu0 0.0
          %842 = vmatprep.subr.mxu0 0.0
          %843 = vmatpush1.msra.mxu0 0.0
          %844 = vmatprep.mubr.f32.mxu0 0.0
          %845 = vmatmul.mubr.f32.gmra.mrb[0].mxu0 %v765
          %v846 = vpop.f32.mrb[0].mxu0
          %v847 = vadd.f32 %v746, %v846
          %v848 = vpop.f32.mrb[0].mxu0
          %v849 = vadd.f32 %v750, %v848
          %850 = vdwg.mxu0
          %851 = vmatprep.subr.mxu0 %v732
          %852 = vmatpush1.msra.mxu0 %v731
          %853 = vmatprep.subr.mxu0 %v736
          %854 = vmatpush1.msra.mxu0 %v735
          %855 = vmatprep.subr.mxu0 %v778
          %856 = vmatpush1.msra.mxu0 %v775
          %857 = vmatprep.subr.mxu0 0.0
          %858 = vmatpush1.msra.mxu0 0.0
          %859 = vmatprep.subr.mxu0 0.0
          %860 = vmatpush1.msra.mxu0 0.0
          %861 = vmatprep.subr.mxu0 0.0
          %862 = vmatpush1.msra.mxu0 0.0
          %863 = vmatprep.subr.mxu0 0.0
          %864 = vmatpush1.msra.mxu0 0.0
          %865 = vmatprep.subr.mxu0 0.0
          %866 = vmatpush1.msra.mxu0 0.0
          %867 = vmatprep.subr.mxu0 0.0
          %868 = vmatpush1.msra.mxu0 0.0
          %869 = vmatprep.subr.mxu0 0.0
          %870 = vmatpush1.msra.mxu0 0.0
          %871 = vmatprep.subr.mxu0 0.0
          %872 = vmatpush1.msra.mxu0 0.0
          %873 = vmatprep.subr.mxu0 0.0
          %874 = vmatpush1.msra.mxu0 0.0
          %875 = vmatprep.subr.mxu0 0.0
          %876 = vmatpush1.msra.mxu0 0.0
          %877 = vmatprep.subr.mxu0 0.0
          %878 = vmatpush1.msra.mxu0 0.0
          %879 = vmatprep.subr.mxu0 0.0
          %880 = vmatpush1.msra.mxu0 0.0
          %881 = vmatprep.subr.mxu0 0.0
          %882 = vmatpush1.msra.mxu0 0.0
          %883 = vmatprep.subr.mxu0 0.0
          %884 = vmatpush1.msra.mxu0 0.0
          %885 = vmatprep.subr.mxu0 0.0
          %886 = vmatpush1.msra.mxu0 0.0
          %887 = vmatprep.subr.mxu0 0.0
          %888 = vmatpush1.msra.mxu0 0.0
          %889 = vmatprep.subr.mxu0 0.0
          %890 = vmatpush1.msra.mxu0 0.0
          %891 = vmatprep.subr.mxu0 0.0
          %892 = vmatpush1.msra.mxu0 0.0
          %893 = vmatprep.subr.mxu0 0.0
          %894 = vmatpush1.msra.mxu0 0.0
          %895 = vmatprep.subr.mxu0 0.0
          %896 = vmatpush1.msra.mxu0 0.0
          %897 = vmatprep.subr.mxu0 0.0
          %898 = vmatpush1.msra.mxu0 0.0
          %899 = vmatprep.subr.mxu0 0.0
          %900 = vmatpush1.msra.mxu0 0.0
          %901 = vmatprep.subr.mxu0 0.0
          %902 = vmatpush1.msra.mxu0 0.0
          %903 = vmatprep.subr.mxu0 0.0
          %904 = vmatpush1.msra.mxu0 0.0
          %905 = vmatprep.subr.mxu0 0.0
          %906 = vmatpush1.msra.mxu0 0.0
          %907 = vmatprep.subr.mxu0 0.0
          %908 = vmatpush1.msra.mxu0 0.0
          %909 = vmatprep.subr.mxu0 0.0
          %910 = vmatpush1.msra.mxu0 0.0
          %911 = vmatprep.subr.mxu0 0.0
          %912 = vmatpush1.msra.mxu0 0.0
          %913 = vmatprep.subr.mxu0 0.0
          %914 = vmatpush1.msra.mxu0 0.0
          %915 = vmatprep.mubr.f32.mxu0 0.0
          %916 = vmatmul.mubr.f32.gmra.mrb[0].mxu0 %v765
          %v917 = vpop.f32.mrb[0].mxu0
          %v918 = vadd.f32 %v754, %v917
          %v919 = vpop.f32.mrb[0].mxu0
          %v920 = vadd.f32 %v758, %v919
          %921 = vdwg.mxu0
          %v922 = vmax.f32 %v847, 0.0
          %v923 = vmax.f32 %v849, 0.0
          %v924 = vmax.f32 %v918, 0.0
          %v925 = vmax.f32 %v920, 0.0
          %v926 = vld [vmem:[#allocation2] sm:$0xff]
          %v927 = vld [vmem:[#allocation2 + $0x8] sm:$0xff]
          %v928 = vld [vmem:[#allocation2 + $0x10] sm:$0xff]
          %v929 = vld [vmem:[#allocation2 + $0x18] sm:$0xff]
          %v930 = vld [vmem:[#allocation2 + $0x20] sm:$0xff]
          %v931 = vld [vmem:[#allocation2 + $0x28] sm:$0xff]
          %v932 = vld [vmem:[#allocation2 + $0x30] sm:$0xff]
          %v933 = vld [vmem:[#allocation2 + $0x38] sm:$0xff]
          %v934 = vpack.c.bf16 %v922, %v922
          %v935 = vpack.c.bf16 %v923, %v923
          %v936 = vpack.c.bf16 %v924, %v924
          %v937 = vpack.c.bf16 %v925, %v925
          %v938 = vld [vmem:[%s593] sm:$0xff]
          %v939 = vld [vmem:[%s593 + $0x8] sm:$0xff]
          %v940 = vld [vmem:[%s593 + $0x10] sm:$0xff]
          %v941 = vld [vmem:[%s593 + $0x18] sm:$0xff]
          %v942 = vld [vmem:[%s593 + $0x20] sm:$0xff]
          %v943 = vld [vmem:[%s593 + $0x28] sm:$0xff]
          %v944 = vld [vmem:[%s593 + $0x30] sm:$0xff]
          %v945 = vld [vmem:[%s593 + $0x38] sm:$0xff]
          %v946 = vld [vmem:[%s593 + $0x40] sm:$0xff]
          %v947 = vld [vmem:[%s593 + $0x48] sm:$0xff]
          %v948 = vld [vmem:[%s593 + $0x50] sm:$0xff]
          %v949 = vld [vmem:[%s593 + $0x58] sm:$0xff]
          %v950 = vld [vmem:[%s593 + $0x60] sm:$0xff]
          %v951 = vld [vmem:[%s593 + $0x68] sm:$0xff]
          %v952 = vld [vmem:[%s593 + $0x70] sm:$0xff]
          %v953 = vld [vmem:[%s593 + $0x78] sm:$0xff]
          %v954 = vld [vmem:[%s593 + $0x80] sm:$0xff]
          %v955 = vld [vmem:[%s593 + $0x88] sm:$0xff]
          %v956 = vld [vmem:[%s593 + $0x90] sm:$0xff]
          %v957 = vld [vmem:[%s593 + $0x98] sm:$0xff]
          %v958 = vld [vmem:[%s593 + $0xa0] sm:$0xff]
          %v959 = vld [vmem:[%s593 + $0xa8] sm:$0xff]
          %v960 = vld [vmem:[%s593 + $0xb0] sm:$0xff]
          %v961 = vld [vmem:[%s593 + $0xb8] sm:$0xff]
          %v962 = vld [vmem:[%s593 + $0xc0] sm:$0xff]
          %v963 = vld [vmem:[%s593 + $0xc8] sm:$0xff]
          %v964 = vld [vmem:[%s593 + $0xd0] sm:$0xff]
          %v965 = vld [vmem:[%s593 + $0xd8] sm:$0xff]
          %v966 = vld [vmem:[%s593 + $0xe0] sm:$0xff]
          %v967 = vld [vmem:[%s593 + $0xe8] sm:$0xff]
          %v968 = vld [vmem:[%s593 + $0xf0] sm:$0xff]
          %v969 = vld [vmem:[%s593 + $0xf8] sm:$0xff]
          %v970 = vld [vmem:[%s593 + $0x100] sm:$0xff]
          %v971 = vld [vmem:[%s593 + $0x108] sm:$0xff]
          %v972 = vld [vmem:[%s593 + $0x110] sm:$0xff]
          %v973 = vld [vmem:[%s593 + $0x118] sm:$0xff]
          %v974 = vld [vmem:[%s593 + $0x120] sm:$0xff]
          %v975 = vld [vmem:[%s593 + $0x128] sm:$0xff]
          %v976 = vld [vmem:[%s593 + $0x130] sm:$0xff]
          %v977 = vld [vmem:[%s593 + $0x138] sm:$0xff]
          %v978 = vld [vmem:[%s593 + $0x140] sm:$0xff]
          %v979 = vld [vmem:[%s593 + $0x148] sm:$0xff]
          %v980 = vld [vmem:[%s593 + $0x150] sm:$0xff]
          %v981 = vld [vmem:[%s593 + $0x158] sm:$0xff]
          %v982 = vld [vmem:[%s593 + $0x160] sm:$0xff]
          %v983 = vld [vmem:[%s593 + $0x168] sm:$0xff]
          %v984 = vld [vmem:[%s593 + $0x170] sm:$0xff]
          %v985 = vld [vmem:[%s593 + $0x178] sm:$0xff]
          %v986 = vld [vmem:[%s593 + $0x180] sm:$0xff]
          %v987 = vld [vmem:[%s593 + $0x188] sm:$0xff]
          %v988 = vld [vmem:[%s593 + $0x190] sm:$0xff]
          %v989 = vld [vmem:[%s593 + $0x198] sm:$0xff]
          %v990 = vld [vmem:[%s593 + $0x1a0] sm:$0xff]
          %v991 = vld [vmem:[%s593 + $0x1a8] sm:$0xff]
          %v992 = vld [vmem:[%s593 + $0x1b0] sm:$0xff]
          %v993 = vld [vmem:[%s593 + $0x1b8] sm:$0xff]
          %v994 = vld [vmem:[%s593 + $0x1c0] sm:$0xff]
          %v995 = vld [vmem:[%s593 + $0x1c8] sm:$0xff]
          %v996 = vld [vmem:[%s593 + $0x1d0] sm:$0xff]
          %v997 = vld [vmem:[%s593 + $0x1d8] sm:$0xff]
          %v998 = vld [vmem:[%s593 + $0x1e0] sm:$0xff]
          %v999 = vld [vmem:[%s593 + $0x1e8] sm:$0xff]
          %v1000 = vld [vmem:[%s593 + $0x1f0] sm:$0xff]
          %v1001 = vld [vmem:[%s593 + $0x1f8] sm:$0xff]
          %v1002 = vld [vmem:[%s593 + $0x200] sm:$0xff]
          %v1003 = vld [vmem:[%s593 + $0x208] sm:$0xff]
          %v1004 = vld [vmem:[%s593 + $0x210] sm:$0xff]
          %v1005 = vld [vmem:[%s593 + $0x218] sm:$0xff]
          %v1006 = vld [vmem:[%s593 + $0x220] sm:$0xff]
          %v1007 = vld [vmem:[%s593 + $0x228] sm:$0xff]
          %v1008 = vld [vmem:[%s593 + $0x230] sm:$0xff]
          %v1009 = vld [vmem:[%s593 + $0x238] sm:$0xff]
          %v1010 = vld [vmem:[%s593 + $0x240] sm:$0xff]
          %v1011 = vld [vmem:[%s593 + $0x248] sm:$0xff]
          %v1012 = vld [vmem:[%s593 + $0x250] sm:$0xff]
          %v1013 = vld [vmem:[%s593 + $0x258] sm:$0xff]
          %v1014 = vld [vmem:[%s593 + $0x260] sm:$0xff]
          %v1015 = vld [vmem:[%s593 + $0x268] sm:$0xff]
          %v1016 = vld [vmem:[%s593 + $0x270] sm:$0xff]
          %v1017 = vld [vmem:[%s593 + $0x278] sm:$0xff]
          %v1018 = vld [vmem:[%s593 + $0x280] sm:$0xff]
          %v1019 = vld [vmem:[%s593 + $0x288] sm:$0xff]
          %v1020 = vld [vmem:[%s593 + $0x290] sm:$0xff]
          %v1021 = vld [vmem:[%s593 + $0x298] sm:$0xff]
          %v1022 = vld [vmem:[%s593 + $0x2a0] sm:$0xff]
          %v1023 = vld [vmem:[%s593 + $0x2a8] sm:$0xff]
          %v1024 = vld [vmem:[%s593 + $0x2b0] sm:$0xff]
          %v1025 = vld [vmem:[%s593 + $0x2b8] sm:$0xff]
          %v1026 = vld [vmem:[%s593 + $0x2c0] sm:$0xff]
          %v1027 = vld [vmem:[%s593 + $0x2c8] sm:$0xff]
          %v1028 = vld [vmem:[%s593 + $0x2d0] sm:$0xff]
          %v1029 = vld [vmem:[%s593 + $0x2d8] sm:$0xff]
          %v1030 = vld [vmem:[%s593 + $0x2e0] sm:$0xff]
          %v1031 = vld [vmem:[%s593 + $0x2e8] sm:$0xff]
          %v1032 = vld [vmem:[%s593 + $0x2f0] sm:$0xff]
          %v1033 = vld [vmem:[%s593 + $0x2f8] sm:$0xff]
          %v1034 = vld [vmem:[%s593 + $0x300] sm:$0xff]
          %v1035 = vld [vmem:[%s593 + $0x308] sm:$0xff]
          %v1036 = vld [vmem:[%s593 + $0x310] sm:$0xff]
          %v1037 = vld [vmem:[%s593 + $0x318] sm:$0xff]
          %v1038 = vld [vmem:[%s593 + $0x320] sm:$0xff]
          %v1039 = vld [vmem:[%s593 + $0x328] sm:$0xff]
          %v1040 = vld [vmem:[%s593 + $0x330] sm:$0xff]
          %v1041 = vld [vmem:[%s593 + $0x338] sm:$0xff]
          %v1042 = vld [vmem:[%s593 + $0x340] sm:$0xff]
          %v1043 = vld [vmem:[%s593 + $0x348] sm:$0xff]
          %v1044 = vld [vmem:[%s593 + $0x350] sm:$0xff]
          %v1045 = vld [vmem:[%s593 + $0x358] sm:$0xff]
          %v1046 = vld [vmem:[%s593 + $0x360] sm:$0xff]
          %v1047 = vld [vmem:[%s593 + $0x368] sm:$0xff]
          %v1048 = vld [vmem:[%s593 + $0x370] sm:$0xff]
          %v1049 = vld [vmem:[%s593 + $0x378] sm:$0xff]
          %v1050 = vld [vmem:[%s593 + $0x380] sm:$0xff]
          %v1051 = vld [vmem:[%s593 + $0x388] sm:$0xff]
          %v1052 = vld [vmem:[%s593 + $0x390] sm:$0xff]
          %v1053 = vld [vmem:[%s593 + $0x398] sm:$0xff]
          %v1054 = vld [vmem:[%s593 + $0x3a0] sm:$0xff]
          %v1055 = vld [vmem:[%s593 + $0x3a8] sm:$0xff]
          %v1056 = vld [vmem:[%s593 + $0x3b0] sm:$0xff]
          %v1057 = vld [vmem:[%s593 + $0x3b8] sm:$0xff]
          %v1058 = vld [vmem:[%s593 + $0x3c0] sm:$0xff]
          %v1059 = vld [vmem:[%s593 + $0x3c8] sm:$0xff]
          %v1060 = vld [vmem:[%s593 + $0x3d0] sm:$0xff]
          %v1061 = vld [vmem:[%s593 + $0x3d8] sm:$0xff]
          %v1062 = vld [vmem:[%s593 + $0x3e0] sm:$0xff]
          %v1063 = vld [vmem:[%s593 + $0x3e8] sm:$0xff]
          %v1064 = vld [vmem:[%s593 + $0x3f0] sm:$0xff]
          %v1065 = vld [vmem:[%s593 + $0x3f8] sm:$0xff]
          %v1066 = vld [vmem:[%s593 + $0x400] sm:$0xff]
          %v1067 = vld [vmem:[%s593 + $0x408] sm:$0xff]
          %v1068 = vld [vmem:[%s593 + $0x410] sm:$0xff]
          %v1069 = vld [vmem:[%s593 + $0x418] sm:$0xff]
          %v1070 = vld [vmem:[%s593 + $0x420] sm:$0xff]
          %v1071 = vld [vmem:[%s593 + $0x428] sm:$0xff]
          %v1072 = vld [vmem:[%s593 + $0x430] sm:$0xff]
          %v1073 = vld [vmem:[%s593 + $0x438] sm:$0xff]
          %v1074 = vld [vmem:[%s593 + $0x440] sm:$0xff]
          %v1075 = vld [vmem:[%s593 + $0x448] sm:$0xff]
          %v1076 = vld [vmem:[%s593 + $0x450] sm:$0xff]
          %v1077 = vld [vmem:[%s593 + $0x458] sm:$0xff]
          %v1078 = vld [vmem:[%s593 + $0x460] sm:$0xff]
          %v1079 = vld [vmem:[%s593 + $0x468] sm:$0xff]
          %v1080 = vld [vmem:[%s593 + $0x470] sm:$0xff]
          %v1081 = vld [vmem:[%s593 + $0x478] sm:$0xff]
          %v1082 = vld [vmem:[%s593 + $0x480] sm:$0xff]
          %v1083 = vld [vmem:[%s593 + $0x488] sm:$0xff]
          %v1084 = vld [vmem:[%s593 + $0x490] sm:$0xff]
          %v1085 = vld [vmem:[%s593 + $0x498] sm:$0xff]
          %v1086 = vld [vmem:[%s593 + $0x4a0] sm:$0xff]
          %v1087 = vld [vmem:[%s593 + $0x4a8] sm:$0xff]
          %v1088 = vld [vmem:[%s593 + $0x4b0] sm:$0xff]
          %v1089 = vld [vmem:[%s593 + $0x4b8] sm:$0xff]
          %v1090 = vld [vmem:[%s593 + $0x4c0] sm:$0xff]
          %v1091 = vld [vmem:[%s593 + $0x4c8] sm:$0xff]
          %v1092 = vld [vmem:[%s593 + $0x4d0] sm:$0xff]
          %v1093 = vld [vmem:[%s593 + $0x4d8] sm:$0xff]
          %v1094 = vld [vmem:[%s593 + $0x4e0] sm:$0xff]
          %v1095 = vld [vmem:[%s593 + $0x4e8] sm:$0xff]
          %v1096 = vld [vmem:[%s593 + $0x4f0] sm:$0xff]
          %v1097 = vld [vmem:[%s593 + $0x4f8] sm:$0xff]
          %v1098 = vld [vmem:[%s593 + $0x500] sm:$0xff]
          %v1099 = vld [vmem:[%s593 + $0x508] sm:$0xff]
          %v1100 = vld [vmem:[%s593 + $0x510] sm:$0xff]
          %v1101 = vld [vmem:[%s593 + $0x518] sm:$0xff]
          %v1102 = vld [vmem:[%s593 + $0x520] sm:$0xff]
          %v1103 = vld [vmem:[%s593 + $0x528] sm:$0xff]
          %v1104 = vld [vmem:[%s593 + $0x530] sm:$0xff]
          %v1105 = vld [vmem:[%s593 + $0x538] sm:$0xff]
          %v1106 = vld [vmem:[%s593 + $0x540] sm:$0xff]
          %v1107 = vld [vmem:[%s593 + $0x548] sm:$0xff]
          %v1108 = vld [vmem:[%s593 + $0x550] sm:$0xff]
          %v1109 = vld [vmem:[%s593 + $0x558] sm:$0xff]
          %v1110 = vld [vmem:[%s593 + $0x560] sm:$0xff]
          %v1111 = vld [vmem:[%s593 + $0x568] sm:$0xff]
          %v1112 = vld [vmem:[%s593 + $0x570] sm:$0xff]
          %v1113 = vld [vmem:[%s593 + $0x578] sm:$0xff]
          %v1114 = vld [vmem:[%s593 + $0x580] sm:$0xff]
          %v1115 = vld [vmem:[%s593 + $0x588] sm:$0xff]
          %v1116 = vld [vmem:[%s593 + $0x590] sm:$0xff]
          %v1117 = vld [vmem:[%s593 + $0x598] sm:$0xff]
          %v1118 = vld [vmem:[%s593 + $0x5a0] sm:$0xff]
          %v1119 = vld [vmem:[%s593 + $0x5a8] sm:$0xff]
          %v1120 = vld [vmem:[%s593 + $0x5b0] sm:$0xff]
          %v1121 = vld [vmem:[%s593 + $0x5b8] sm:$0xff]
          %v1122 = vld [vmem:[%s593 + $0x5c0] sm:$0xff]
          %v1123 = vld [vmem:[%s593 + $0x5c8] sm:$0xff]
          %v1124 = vld [vmem:[%s593 + $0x5d0] sm:$0xff]
          %v1125 = vld [vmem:[%s593 + $0x5d8] sm:$0xff]
          %v1126 = vld [vmem:[%s593 + $0x5e0] sm:$0xff]
          %v1127 = vld [vmem:[%s593 + $0x5e8] sm:$0xff]
          %v1128 = vld [vmem:[%s593 + $0x5f0] sm:$0xff]
          %v1129 = vld [vmem:[%s593 + $0x5f8] sm:$0xff]
          %v1130 = vld [vmem:[%s593 + $0x600] sm:$0xff]
          %v1131 = vld [vmem:[%s593 + $0x608] sm:$0xff]
          %v1132 = vld [vmem:[%s593 + $0x610] sm:$0xff]
          %v1133 = vld [vmem:[%s593 + $0x618] sm:$0xff]
          %v1134 = vld [vmem:[%s593 + $0x620] sm:$0xff]
          %v1135 = vld [vmem:[%s593 + $0x628] sm:$0xff]
          %v1136 = vld [vmem:[%s593 + $0x630] sm:$0xff]
          %v1137 = vld [vmem:[%s593 + $0x638] sm:$0xff]
          %v1138 = vld [vmem:[%s593 + $0x640] sm:$0xff]
          %v1139 = vld [vmem:[%s593 + $0x648] sm:$0xff]
          %v1140 = vld [vmem:[%s593 + $0x650] sm:$0xff]
          %v1141 = vld [vmem:[%s593 + $0x658] sm:$0xff]
          %v1142 = vld [vmem:[%s593 + $0x660] sm:$0xff]
          %v1143 = vld [vmem:[%s593 + $0x668] sm:$0xff]
          %v1144 = vld [vmem:[%s593 + $0x670] sm:$0xff]
          %v1145 = vld [vmem:[%s593 + $0x678] sm:$0xff]
          %v1146 = vld [vmem:[%s593 + $0x680] sm:$0xff]
          %v1147 = vld [vmem:[%s593 + $0x688] sm:$0xff]
          %v1148 = vld [vmem:[%s593 + $0x690] sm:$0xff]
          %v1149 = vld [vmem:[%s593 + $0x698] sm:$0xff]
          %v1150 = vld [vmem:[%s593 + $0x6a0] sm:$0xff]
          %v1151 = vld [vmem:[%s593 + $0x6a8] sm:$0xff]
          %v1152 = vld [vmem:[%s593 + $0x6b0] sm:$0xff]
          %v1153 = vld [vmem:[%s593 + $0x6b8] sm:$0xff]
          %v1154 = vld [vmem:[%s593 + $0x6c0] sm:$0xff]
          %v1155 = vld [vmem:[%s593 + $0x6c8] sm:$0xff]
          %v1156 = vld [vmem:[%s593 + $0x6d0] sm:$0xff]
          %v1157 = vld [vmem:[%s593 + $0x6d8] sm:$0xff]
          %v1158 = vld [vmem:[%s593 + $0x6e0] sm:$0xff]
          %v1159 = vld [vmem:[%s593 + $0x6e8] sm:$0xff]
          %v1160 = vld [vmem:[%s593 + $0x6f0] sm:$0xff]
          %v1161 = vld [vmem:[%s593 + $0x6f8] sm:$0xff]
          %v1162 = vld [vmem:[%s593 + $0x700] sm:$0xff]
          %v1163 = vld [vmem:[%s593 + $0x708] sm:$0xff]
          %v1164 = vld [vmem:[%s593 + $0x710] sm:$0xff]
          %v1165 = vld [vmem:[%s593 + $0x718] sm:$0xff]
          %v1166 = vld [vmem:[%s593 + $0x720] sm:$0xff]
          %v1167 = vld [vmem:[%s593 + $0x728] sm:$0xff]
          %v1168 = vld [vmem:[%s593 + $0x730] sm:$0xff]
          %v1169 = vld [vmem:[%s593 + $0x738] sm:$0xff]
          %v1170 = vld [vmem:[%s593 + $0x740] sm:$0xff]
          %v1171 = vld [vmem:[%s593 + $0x748] sm:$0xff]
          %v1172 = vld [vmem:[%s593 + $0x750] sm:$0xff]
          %v1173 = vld [vmem:[%s593 + $0x758] sm:$0xff]
          %v1174 = vld [vmem:[%s593 + $0x760] sm:$0xff]
          %v1175 = vld [vmem:[%s593 + $0x768] sm:$0xff]
          %v1176 = vld [vmem:[%s593 + $0x770] sm:$0xff]
          %v1177 = vld [vmem:[%s593 + $0x778] sm:$0xff]
          %v1178 = vld [vmem:[%s593 + $0x780] sm:$0xff]
          %v1179 = vld [vmem:[%s593 + $0x788] sm:$0xff]
          %v1180 = vld [vmem:[%s593 + $0x790] sm:$0xff]
          %v1181 = vld [vmem:[%s593 + $0x798] sm:$0xff]
          %v1182 = vld [vmem:[%s593 + $0x7a0] sm:$0xff]
          %v1183 = vld [vmem:[%s593 + $0x7a8] sm:$0xff]
          %v1184 = vld [vmem:[%s593 + $0x7b0] sm:$0xff]
          %v1185 = vld [vmem:[%s593 + $0x7b8] sm:$0xff]
          %v1186 = vld [vmem:[%s593 + $0x7c0] sm:$0xff]
          %v1187 = vld [vmem:[%s593 + $0x7c8] sm:$0xff]
          %v1188 = vld [vmem:[%s593 + $0x7d0] sm:$0xff]
          %v1189 = vld [vmem:[%s593 + $0x7d8] sm:$0xff]
          %v1190 = vld [vmem:[%s593 + $0x7e0] sm:$0xff]
          %v1191 = vld [vmem:[%s593 + $0x7e8] sm:$0xff]
          %v1192 = vld [vmem:[%s593 + $0x7f0] sm:$0xff]
          %v1193 = vld [vmem:[%s593 + $0x7f8] sm:$0xff]
          %v1450 = vunpack.c.l.b16 %v938
          %v1451 = vunpack.c.h.b16 %v938
          %v1452 = vunpack.c.l.b16 %v939
          %v1453 = vunpack.c.h.b16 %v939
          %v1454 = vunpack.c.l.b16 %v940
          %v1455 = vunpack.c.h.b16 %v940
          %v1456 = vunpack.c.l.b16 %v941
          %v1457 = vunpack.c.h.b16 %v941
          %v1458 = vunpack.c.l.b16 %v942
          %v1459 = vunpack.c.h.b16 %v942
          %v1460 = vunpack.c.l.b16 %v943
          %v1461 = vunpack.c.h.b16 %v943
          %v1462 = vunpack.c.l.b16 %v944
          %v1463 = vunpack.c.h.b16 %v944
          %v1464 = vunpack.c.l.b16 %v945
          %v1465 = vunpack.c.h.b16 %v945
          %v1466 = vunpack.c.l.b16 %v946
          %v1467 = vunpack.c.h.b16 %v946
          %v1468 = vunpack.c.l.b16 %v947
          %v1469 = vunpack.c.h.b16 %v947
          %v1470 = vunpack.c.l.b16 %v948
          %v1471 = vunpack.c.h.b16 %v948
          %v1472 = vunpack.c.l.b16 %v949
          %v1473 = vunpack.c.h.b16 %v949
          %v1474 = vunpack.c.l.b16 %v950
          %v1475 = vunpack.c.h.b16 %v950
          %v1476 = vunpack.c.l.b16 %v951
          %v1477 = vunpack.c.h.b16 %v951
          %v1478 = vunpack.c.l.b16 %v952
          %v1479 = vunpack.c.h.b16 %v952
          %v1480 = vunpack.c.l.b16 %v953
          %v1481 = vunpack.c.h.b16 %v953
          %v1482 = vunpack.c.l.b16 %v954
          %v1483 = vunpack.c.h.b16 %v954
          %v1484 = vunpack.c.l.b16 %v955
          %v1485 = vunpack.c.h.b16 %v955
          %v1486 = vunpack.c.l.b16 %v956
          %v1487 = vunpack.c.h.b16 %v956
          %v1488 = vunpack.c.l.b16 %v957
          %v1489 = vunpack.c.h.b16 %v957
          %v1490 = vunpack.c.l.b16 %v958
          %v1491 = vunpack.c.h.b16 %v958
          %v1492 = vunpack.c.l.b16 %v959
          %v1493 = vunpack.c.h.b16 %v959
          %v1494 = vunpack.c.l.b16 %v960
          %v1495 = vunpack.c.h.b16 %v960
          %v1496 = vunpack.c.l.b16 %v961
          %v1497 = vunpack.c.h.b16 %v961
          %v1498 = vunpack.c.l.b16 %v962
          %v1499 = vunpack.c.h.b16 %v962
          %v1500 = vunpack.c.l.b16 %v963
          %v1501 = vunpack.c.h.b16 %v963
          %v1502 = vunpack.c.l.b16 %v964
          %v1503 = vunpack.c.h.b16 %v964
          %v1504 = vunpack.c.l.b16 %v965
          %v1505 = vunpack.c.h.b16 %v965
          %v1506 = vunpack.c.l.b16 %v966
          %v1507 = vunpack.c.h.b16 %v966
          %v1508 = vunpack.c.l.b16 %v967
          %v1509 = vunpack.c.h.b16 %v967
          %v1510 = vunpack.c.l.b16 %v968
          %v1511 = vunpack.c.h.b16 %v968
          %v1512 = vunpack.c.l.b16 %v969
          %v1513 = vunpack.c.h.b16 %v969
          %v1514 = vunpack.c.l.b16 %v970
          %v1515 = vunpack.c.h.b16 %v970
          %v1516 = vunpack.c.l.b16 %v971
          %v1517 = vunpack.c.h.b16 %v971
          %v1518 = vunpack.c.l.b16 %v972
          %v1519 = vunpack.c.h.b16 %v972
          %v1520 = vunpack.c.l.b16 %v973
          %v1521 = vunpack.c.h.b16 %v973
          %v1522 = vunpack.c.l.b16 %v974
          %v1523 = vunpack.c.h.b16 %v974
          %v1524 = vunpack.c.l.b16 %v975
          %v1525 = vunpack.c.h.b16 %v975
          %v1526 = vunpack.c.l.b16 %v976
          %v1527 = vunpack.c.h.b16 %v976
          %v1528 = vunpack.c.l.b16 %v977
          %v1529 = vunpack.c.h.b16 %v977
          %v1530 = vunpack.c.l.b16 %v978
          %v1531 = vunpack.c.h.b16 %v978
          %v1532 = vunpack.c.l.b16 %v979
          %v1533 = vunpack.c.h.b16 %v979
          %v1534 = vunpack.c.l.b16 %v980
          %v1535 = vunpack.c.h.b16 %v980
          %v1536 = vunpack.c.l.b16 %v981
          %v1537 = vunpack.c.h.b16 %v981
          %v1538 = vunpack.c.l.b16 %v982
          %v1539 = vunpack.c.h.b16 %v982
          %v1540 = vunpack.c.l.b16 %v983
          %v1541 = vunpack.c.h.b16 %v983
          %v1542 = vunpack.c.l.b16 %v984
          %v1543 = vunpack.c.h.b16 %v984
          %v1544 = vunpack.c.l.b16 %v985
          %v1545 = vunpack.c.h.b16 %v985
          %v1546 = vunpack.c.l.b16 %v986
          %v1547 = vunpack.c.h.b16 %v986
          %v1548 = vunpack.c.l.b16 %v987
          %v1549 = vunpack.c.h.b16 %v987
          %v1550 = vunpack.c.l.b16 %v988
          %v1551 = vunpack.c.h.b16 %v988
          %v1552 = vunpack.c.l.b16 %v989
          %v1553 = vunpack.c.h.b16 %v989
          %v1554 = vunpack.c.l.b16 %v990
          %v1555 = vunpack.c.h.b16 %v990
          %v1556 = vunpack.c.l.b16 %v991
          %v1557 = vunpack.c.h.b16 %v991
          %v1558 = vunpack.c.l.b16 %v992
          %v1559 = vunpack.c.h.b16 %v992
          %v1560 = vunpack.c.l.b16 %v993
          %v1561 = vunpack.c.h.b16 %v993
          %v1562 = vunpack.c.l.b16 %v994
          %v1563 = vunpack.c.h.b16 %v994
          %v1564 = vunpack.c.l.b16 %v995
          %v1565 = vunpack.c.h.b16 %v995
          %v1566 = vunpack.c.l.b16 %v996
          %v1567 = vunpack.c.h.b16 %v996
          %v1568 = vunpack.c.l.b16 %v997
          %v1569 = vunpack.c.h.b16 %v997
          %v1570 = vunpack.c.l.b16 %v998
          %v1571 = vunpack.c.h.b16 %v998
          %v1572 = vunpack.c.l.b16 %v999
          %v1573 = vunpack.c.h.b16 %v999
          %v1574 = vunpack.c.l.b16 %v1000
          %v1575 = vunpack.c.h.b16 %v1000
          %v1576 = vunpack.c.l.b16 %v1001
          %v1577 = vunpack.c.h.b16 %v1001
          %v1578 = vunpack.c.l.b16 %v1002
          %v1579 = vunpack.c.h.b16 %v1002
          %v1580 = vunpack.c.l.b16 %v1003
          %v1581 = vunpack.c.h.b16 %v1003
          %v1582 = vunpack.c.l.b16 %v1004
          %v1583 = vunpack.c.h.b16 %v1004
          %v1584 = vunpack.c.l.b16 %v1005
          %v1585 = vunpack.c.h.b16 %v1005
          %v1586 = vunpack.c.l.b16 %v1006
          %v1587 = vunpack.c.h.b16 %v1006
          %v1588 = vunpack.c.l.b16 %v1007
          %v1589 = vunpack.c.h.b16 %v1007
          %v1590 = vunpack.c.l.b16 %v1008
          %v1591 = vunpack.c.h.b16 %v1008
          %v1592 = vunpack.c.l.b16 %v1009
          %v1593 = vunpack.c.h.b16 %v1009
          %v1594 = vunpack.c.l.b16 %v1010
          %v1595 = vunpack.c.h.b16 %v1010
          %v1596 = vunpack.c.l.b16 %v1011
          %v1597 = vunpack.c.h.b16 %v1011
          %v1598 = vunpack.c.l.b16 %v1012
          %v1599 = vunpack.c.h.b16 %v1012
          %v1600 = vunpack.c.l.b16 %v1013
          %v1601 = vunpack.c.h.b16 %v1013
          %v1602 = vunpack.c.l.b16 %v1014
          %v1603 = vunpack.c.h.b16 %v1014
          %v1604 = vunpack.c.l.b16 %v1015
          %v1605 = vunpack.c.h.b16 %v1015
          %v1606 = vunpack.c.l.b16 %v1016
          %v1607 = vunpack.c.h.b16 %v1016
          %v1608 = vunpack.c.l.b16 %v1017
          %v1609 = vunpack.c.h.b16 %v1017
          %v1610 = vunpack.c.l.b16 %v1018
          %v1611 = vunpack.c.h.b16 %v1018
          %v1612 = vunpack.c.l.b16 %v1019
          %v1613 = vunpack.c.h.b16 %v1019
          %v1614 = vunpack.c.l.b16 %v1020
          %v1615 = vunpack.c.h.b16 %v1020
          %v1616 = vunpack.c.l.b16 %v1021
          %v1617 = vunpack.c.h.b16 %v1021
          %v1618 = vunpack.c.l.b16 %v1022
          %v1619 = vunpack.c.h.b16 %v1022
          %v1620 = vunpack.c.l.b16 %v1023
          %v1621 = vunpack.c.h.b16 %v1023
          %v1622 = vunpack.c.l.b16 %v1024
          %v1623 = vunpack.c.h.b16 %v1024
          %v1624 = vunpack.c.l.b16 %v1025
          %v1625 = vunpack.c.h.b16 %v1025
          %v1626 = vunpack.c.l.b16 %v1026
          %v1627 = vunpack.c.h.b16 %v1026
          %v1628 = vunpack.c.l.b16 %v1027
          %v1629 = vunpack.c.h.b16 %v1027
          %v1630 = vunpack.c.l.b16 %v1028
          %v1631 = vunpack.c.h.b16 %v1028
          %v1632 = vunpack.c.l.b16 %v1029
          %v1633 = vunpack.c.h.b16 %v1029
          %v1634 = vunpack.c.l.b16 %v1030
          %v1635 = vunpack.c.h.b16 %v1030
          %v1636 = vunpack.c.l.b16 %v1031
          %v1637 = vunpack.c.h.b16 %v1031
          %v1638 = vunpack.c.l.b16 %v1032
          %v1639 = vunpack.c.h.b16 %v1032
          %v1640 = vunpack.c.l.b16 %v1033
          %v1641 = vunpack.c.h.b16 %v1033
          %v1642 = vunpack.c.l.b16 %v1034
          %v1643 = vunpack.c.h.b16 %v1034
          %v1644 = vunpack.c.l.b16 %v1035
          %v1645 = vunpack.c.h.b16 %v1035
          %v1646 = vunpack.c.l.b16 %v1036
          %v1647 = vunpack.c.h.b16 %v1036
          %v1648 = vunpack.c.l.b16 %v1037
          %v1649 = vunpack.c.h.b16 %v1037
          %v1650 = vunpack.c.l.b16 %v1038
          %v1651 = vunpack.c.h.b16 %v1038
          %v1652 = vunpack.c.l.b16 %v1039
          %v1653 = vunpack.c.h.b16 %v1039
          %v1654 = vunpack.c.l.b16 %v1040
          %v1655 = vunpack.c.h.b16 %v1040
          %v1656 = vunpack.c.l.b16 %v1041
          %v1657 = vunpack.c.h.b16 %v1041
          %v1658 = vunpack.c.l.b16 %v1042
          %v1659 = vunpack.c.h.b16 %v1042
          %v1660 = vunpack.c.l.b16 %v1043
          %v1661 = vunpack.c.h.b16 %v1043
          %v1662 = vunpack.c.l.b16 %v1044
          %v1663 = vunpack.c.h.b16 %v1044
          %v1664 = vunpack.c.l.b16 %v1045
          %v1665 = vunpack.c.h.b16 %v1045
          %v1666 = vunpack.c.l.b16 %v1046
          %v1667 = vunpack.c.h.b16 %v1046
          %v1668 = vunpack.c.l.b16 %v1047
          %v1669 = vunpack.c.h.b16 %v1047
          %v1670 = vunpack.c.l.b16 %v1048
          %v1671 = vunpack.c.h.b16 %v1048
          %v1672 = vunpack.c.l.b16 %v1049
          %v1673 = vunpack.c.h.b16 %v1049
          %v1674 = vunpack.c.l.b16 %v1050
          %v1675 = vunpack.c.h.b16 %v1050
          %v1676 = vunpack.c.l.b16 %v1051
          %v1677 = vunpack.c.h.b16 %v1051
          %v1678 = vunpack.c.l.b16 %v1052
          %v1679 = vunpack.c.h.b16 %v1052
          %v1680 = vunpack.c.l.b16 %v1053
          %v1681 = vunpack.c.h.b16 %v1053
          %v1682 = vunpack.c.l.b16 %v1054
          %v1683 = vunpack.c.h.b16 %v1054
          %v1684 = vunpack.c.l.b16 %v1055
          %v1685 = vunpack.c.h.b16 %v1055
          %v1686 = vunpack.c.l.b16 %v1056
          %v1687 = vunpack.c.h.b16 %v1056
          %v1688 = vunpack.c.l.b16 %v1057
          %v1689 = vunpack.c.h.b16 %v1057
          %v1690 = vunpack.c.l.b16 %v1058
          %v1691 = vunpack.c.h.b16 %v1058
          %v1692 = vunpack.c.l.b16 %v1059
          %v1693 = vunpack.c.h.b16 %v1059
          %v1694 = vunpack.c.l.b16 %v1060
          %v1695 = vunpack.c.h.b16 %v1060
          %v1696 = vunpack.c.l.b16 %v1061
          %v1697 = vunpack.c.h.b16 %v1061
          %v1698 = vunpack.c.l.b16 %v1062
          %v1699 = vunpack.c.h.b16 %v1062
          %v1700 = vunpack.c.l.b16 %v1063
          %v1701 = vunpack.c.h.b16 %v1063
          %v1702 = vunpack.c.l.b16 %v1064
          %v1703 = vunpack.c.h.b16 %v1064
          %v1704 = vunpack.c.l.b16 %v1065
          %v1705 = vunpack.c.h.b16 %v1065
          %v1706 = vunpack.c.l.b16 %v1066
          %v1707 = vunpack.c.h.b16 %v1066
          %v1708 = vunpack.c.l.b16 %v1067
          %v1709 = vunpack.c.h.b16 %v1067
          %v1710 = vunpack.c.l.b16 %v1068
          %v1711 = vunpack.c.h.b16 %v1068
          %v1712 = vunpack.c.l.b16 %v1069
          %v1713 = vunpack.c.h.b16 %v1069
          %v1714 = vunpack.c.l.b16 %v1070
          %v1715 = vunpack.c.h.b16 %v1070
          %v1716 = vunpack.c.l.b16 %v1071
          %v1717 = vunpack.c.h.b16 %v1071
          %v1718 = vunpack.c.l.b16 %v1072
          %v1719 = vunpack.c.h.b16 %v1072
          %v1720 = vunpack.c.l.b16 %v1073
          %v1721 = vunpack.c.h.b16 %v1073
          %v1722 = vunpack.c.l.b16 %v1074
          %v1723 = vunpack.c.h.b16 %v1074
          %v1724 = vunpack.c.l.b16 %v1075
          %v1725 = vunpack.c.h.b16 %v1075
          %v1726 = vunpack.c.l.b16 %v1076
          %v1727 = vunpack.c.h.b16 %v1076
          %v1728 = vunpack.c.l.b16 %v1077
          %v1729 = vunpack.c.h.b16 %v1077
          %v1730 = vunpack.c.l.b16 %v1078
          %v1731 = vunpack.c.h.b16 %v1078
          %v1732 = vunpack.c.l.b16 %v1079
          %v1733 = vunpack.c.h.b16 %v1079
          %v1734 = vunpack.c.l.b16 %v1080
          %v1735 = vunpack.c.h.b16 %v1080
          %v1736 = vunpack.c.l.b16 %v1081
          %v1737 = vunpack.c.h.b16 %v1081
          %v1738 = vunpack.c.l.b16 %v1082
          %v1739 = vunpack.c.h.b16 %v1082
          %v1740 = vunpack.c.l.b16 %v1083
          %v1741 = vunpack.c.h.b16 %v1083
          %v1742 = vunpack.c.l.b16 %v1084
          %v1743 = vunpack.c.h.b16 %v1084
          %v1744 = vunpack.c.l.b16 %v1085
          %v1745 = vunpack.c.h.b16 %v1085
          %v1746 = vunpack.c.l.b16 %v1086
          %v1747 = vunpack.c.h.b16 %v1086
          %v1748 = vunpack.c.l.b16 %v1087
          %v1749 = vunpack.c.h.b16 %v1087
          %v1750 = vunpack.c.l.b16 %v1088
          %v1751 = vunpack.c.h.b16 %v1088
          %v1752 = vunpack.c.l.b16 %v1089
          %v1753 = vunpack.c.h.b16 %v1089
          %v1754 = vunpack.c.l.b16 %v1090
          %v1755 = vunpack.c.h.b16 %v1090
          %v1756 = vunpack.c.l.b16 %v1091
          %v1757 = vunpack.c.h.b16 %v1091
          %v1758 = vunpack.c.l.b16 %v1092
          %v1759 = vunpack.c.h.b16 %v1092
          %v1760 = vunpack.c.l.b16 %v1093
          %v1761 = vunpack.c.h.b16 %v1093
          %v1762 = vunpack.c.l.b16 %v1094
          %v1763 = vunpack.c.h.b16 %v1094
          %v1764 = vunpack.c.l.b16 %v1095
          %v1765 = vunpack.c.h.b16 %v1095
          %v1766 = vunpack.c.l.b16 %v1096
          %v1767 = vunpack.c.h.b16 %v1096
          %v1768 = vunpack.c.l.b16 %v1097
          %v1769 = vunpack.c.h.b16 %v1097
          %v1770 = vunpack.c.l.b16 %v1098
          %v1771 = vunpack.c.h.b16 %v1098
          %v1772 = vunpack.c.l.b16 %v1099
          %v1773 = vunpack.c.h.b16 %v1099
          %v1774 = vunpack.c.l.b16 %v1100
          %v1775 = vunpack.c.h.b16 %v1100
          %v1776 = vunpack.c.l.b16 %v1101
          %v1777 = vunpack.c.h.b16 %v1101
          %v1778 = vunpack.c.l.b16 %v1102
          %v1779 = vunpack.c.h.b16 %v1102
          %v1780 = vunpack.c.l.b16 %v1103
          %v1781 = vunpack.c.h.b16 %v1103
          %v1782 = vunpack.c.l.b16 %v1104
          %v1783 = vunpack.c.h.b16 %v1104
          %v1784 = vunpack.c.l.b16 %v1105
          %v1785 = vunpack.c.h.b16 %v1105
          %v1786 = vunpack.c.l.b16 %v1106
          %v1787 = vunpack.c.h.b16 %v1106
          %v1788 = vunpack.c.l.b16 %v1107
          %v1789 = vunpack.c.h.b16 %v1107
          %v1790 = vunpack.c.l.b16 %v1108
          %v1791 = vunpack.c.h.b16 %v1108
          %v1792 = vunpack.c.l.b16 %v1109
          %v1793 = vunpack.c.h.b16 %v1109
          %v1794 = vunpack.c.l.b16 %v1110
          %v1795 = vunpack.c.h.b16 %v1110
          %v1796 = vunpack.c.l.b16 %v1111
          %v1797 = vunpack.c.h.b16 %v1111
          %v1798 = vunpack.c.l.b16 %v1112
          %v1799 = vunpack.c.h.b16 %v1112
          %v1800 = vunpack.c.l.b16 %v1113
          %v1801 = vunpack.c.h.b16 %v1113
          %v1802 = vunpack.c.l.b16 %v1114
          %v1803 = vunpack.c.h.b16 %v1114
          %v1804 = vunpack.c.l.b16 %v1115
          %v1805 = vunpack.c.h.b16 %v1115
          %v1806 = vunpack.c.l.b16 %v1116
          %v1807 = vunpack.c.h.b16 %v1116
          %v1808 = vunpack.c.l.b16 %v1117
          %v1809 = vunpack.c.h.b16 %v1117
          %v1810 = vunpack.c.l.b16 %v1118
          %v1811 = vunpack.c.h.b16 %v1118
          %v1812 = vunpack.c.l.b16 %v1119
          %v1813 = vunpack.c.h.b16 %v1119
          %v1814 = vunpack.c.l.b16 %v1120
          %v1815 = vunpack.c.h.b16 %v1120
          %v1816 = vunpack.c.l.b16 %v1121
          %v1817 = vunpack.c.h.b16 %v1121
          %v1818 = vunpack.c.l.b16 %v1122
          %v1819 = vunpack.c.h.b16 %v1122
          %v1820 = vunpack.c.l.b16 %v1123
          %v1821 = vunpack.c.h.b16 %v1123
          %v1822 = vunpack.c.l.b16 %v1124
          %v1823 = vunpack.c.h.b16 %v1124
          %v1824 = vunpack.c.l.b16 %v1125
          %v1825 = vunpack.c.h.b16 %v1125
          %v1826 = vunpack.c.l.b16 %v1126
          %v1827 = vunpack.c.h.b16 %v1126
          %v1828 = vunpack.c.l.b16 %v1127
          %v1829 = vunpack.c.h.b16 %v1127
          %v1830 = vunpack.c.l.b16 %v1128
          %v1831 = vunpack.c.h.b16 %v1128
          %v1832 = vunpack.c.l.b16 %v1129
          %v1833 = vunpack.c.h.b16 %v1129
          %v1834 = vunpack.c.l.b16 %v1130
          %v1835 = vunpack.c.h.b16 %v1130
          %v1836 = vunpack.c.l.b16 %v1131
          %v1837 = vunpack.c.h.b16 %v1131
          %v1838 = vunpack.c.l.b16 %v1132
          %v1839 = vunpack.c.h.b16 %v1132
          %v1840 = vunpack.c.l.b16 %v1133
          %v1841 = vunpack.c.h.b16 %v1133
          %v1842 = vunpack.c.l.b16 %v1134
          %v1843 = vunpack.c.h.b16 %v1134
          %v1844 = vunpack.c.l.b16 %v1135
          %v1845 = vunpack.c.h.b16 %v1135
          %v1846 = vunpack.c.l.b16 %v1136
          %v1847 = vunpack.c.h.b16 %v1136
          %v1848 = vunpack.c.l.b16 %v1137
          %v1849 = vunpack.c.h.b16 %v1137
          %v1850 = vunpack.c.l.b16 %v1138
          %v1851 = vunpack.c.h.b16 %v1138
          %v1852 = vunpack.c.l.b16 %v1139
          %v1853 = vunpack.c.h.b16 %v1139
          %v1854 = vunpack.c.l.b16 %v1140
          %v1855 = vunpack.c.h.b16 %v1140
          %v1856 = vunpack.c.l.b16 %v1141
          %v1857 = vunpack.c.h.b16 %v1141
          %v1858 = vunpack.c.l.b16 %v1142
          %v1859 = vunpack.c.h.b16 %v1142
          %v1860 = vunpack.c.l.b16 %v1143
          %v1861 = vunpack.c.h.b16 %v1143
          %v1862 = vunpack.c.l.b16 %v1144
          %v1863 = vunpack.c.h.b16 %v1144
          %v1864 = vunpack.c.l.b16 %v1145
          %v1865 = vunpack.c.h.b16 %v1145
          %v1866 = vunpack.c.l.b16 %v1146
          %v1867 = vunpack.c.h.b16 %v1146
          %v1868 = vunpack.c.l.b16 %v1147
          %v1869 = vunpack.c.h.b16 %v1147
          %v1870 = vunpack.c.l.b16 %v1148
          %v1871 = vunpack.c.h.b16 %v1148
          %v1872 = vunpack.c.l.b16 %v1149
          %v1873 = vunpack.c.h.b16 %v1149
          %v1874 = vunpack.c.l.b16 %v1150
          %v1875 = vunpack.c.h.b16 %v1150
          %v1876 = vunpack.c.l.b16 %v1151
          %v1877 = vunpack.c.h.b16 %v1151
          %v1878 = vunpack.c.l.b16 %v1152
          %v1879 = vunpack.c.h.b16 %v1152
          %v1880 = vunpack.c.l.b16 %v1153
          %v1881 = vunpack.c.h.b16 %v1153
          %v1882 = vunpack.c.l.b16 %v1154
          %v1883 = vunpack.c.h.b16 %v1154
          %v1884 = vunpack.c.l.b16 %v1155
          %v1885 = vunpack.c.h.b16 %v1155
          %v1886 = vunpack.c.l.b16 %v1156
          %v1887 = vunpack.c.h.b16 %v1156
          %v1888 = vunpack.c.l.b16 %v1157
          %v1889 = vunpack.c.h.b16 %v1157
          %v1890 = vunpack.c.l.b16 %v1158
          %v1891 = vunpack.c.h.b16 %v1158
          %v1892 = vunpack.c.l.b16 %v1159
          %v1893 = vunpack.c.h.b16 %v1159
          %v1894 = vunpack.c.l.b16 %v1160
          %v1895 = vunpack.c.h.b16 %v1160
          %v1896 = vunpack.c.l.b16 %v1161
          %v1897 = vunpack.c.h.b16 %v1161
          %v1898 = vunpack.c.l.b16 %v1162
          %v1899 = vunpack.c.h.b16 %v1162
          %v1900 = vunpack.c.l.b16 %v1163
          %v1901 = vunpack.c.h.b16 %v1163
          %v1902 = vunpack.c.l.b16 %v1164
          %v1903 = vunpack.c.h.b16 %v1164
          %v1904 = vunpack.c.l.b16 %v1165
          %v1905 = vunpack.c.h.b16 %v1165
          %v1906 = vunpack.c.l.b16 %v1166
          %v1907 = vunpack.c.h.b16 %v1166
          %v1908 = vunpack.c.l.b16 %v1167
          %v1909 = vunpack.c.h.b16 %v1167
          %v1910 = vunpack.c.l.b16 %v1168
          %v1911 = vunpack.c.h.b16 %v1168
          %v1912 = vunpack.c.l.b16 %v1169
          %v1913 = vunpack.c.h.b16 %v1169
          %v1914 = vunpack.c.l.b16 %v1170
          %v1915 = vunpack.c.h.b16 %v1170
          %v1916 = vunpack.c.l.b16 %v1171
          %v1917 = vunpack.c.h.b16 %v1171
          %v1918 = vunpack.c.l.b16 %v1172
          %v1919 = vunpack.c.h.b16 %v1172
          %v1920 = vunpack.c.l.b16 %v1173
          %v1921 = vunpack.c.h.b16 %v1173
          %v1922 = vunpack.c.l.b16 %v1174
          %v1923 = vunpack.c.h.b16 %v1174
          %v1924 = vunpack.c.l.b16 %v1175
          %v1925 = vunpack.c.h.b16 %v1175
          %v1926 = vunpack.c.l.b16 %v1176
          %v1927 = vunpack.c.h.b16 %v1176
          %v1928 = vunpack.c.l.b16 %v1177
          %v1929 = vunpack.c.h.b16 %v1177
          %v1930 = vunpack.c.l.b16 %v1178
          %v1931 = vunpack.c.h.b16 %v1178
          %v1932 = vunpack.c.l.b16 %v1179
          %v1933 = vunpack.c.h.b16 %v1179
          %v1934 = vunpack.c.l.b16 %v1180
          %v1935 = vunpack.c.h.b16 %v1180
          %v1936 = vunpack.c.l.b16 %v1181
          %v1937 = vunpack.c.h.b16 %v1181
          %v1938 = vunpack.c.l.b16 %v1182
          %v1939 = vunpack.c.h.b16 %v1182
          %v1940 = vunpack.c.l.b16 %v1183
          %v1941 = vunpack.c.h.b16 %v1183
          %v1942 = vunpack.c.l.b16 %v1184
          %v1943 = vunpack.c.h.b16 %v1184
          %v1944 = vunpack.c.l.b16 %v1185
          %v1945 = vunpack.c.h.b16 %v1185
          %v1946 = vunpack.c.l.b16 %v1186
          %v1947 = vunpack.c.h.b16 %v1186
          %v1948 = vunpack.c.l.b16 %v1187
          %v1949 = vunpack.c.h.b16 %v1187
          %v1950 = vunpack.c.l.b16 %v1188
          %v1951 = vunpack.c.h.b16 %v1188
          %v1952 = vunpack.c.l.b16 %v1189
          %v1953 = vunpack.c.h.b16 %v1189
          %v1954 = vunpack.c.l.b16 %v1190
          %v1955 = vunpack.c.h.b16 %v1190
          %v1956 = vunpack.c.l.b16 %v1191
          %v1957 = vunpack.c.h.b16 %v1191
          %v1958 = vunpack.c.l.b16 %v1192
          %v1959 = vunpack.c.h.b16 %v1192
          %v1960 = vunpack.c.l.b16 %v1193
          %v1961 = vunpack.c.h.b16 %v1193
          %v1962 = vpack.c.b16 %v1458, %v1450
          %v1963 = vpack.c.b16 %v1459, %v1451
          %v1964 = vpack.c.b16 %v1460, %v1452
          %v1965 = vpack.c.b16 %v1461, %v1453
          %v1966 = vpack.c.b16 %v1462, %v1454
          %v1967 = vpack.c.b16 %v1463, %v1455
          %v1968 = vpack.c.b16 %v1464, %v1456
          %v1969 = vpack.c.b16 %v1465, %v1457
          %v1970 = vpack.c.b16 %v1474, %v1466
          %v1971 = vpack.c.b16 %v1475, %v1467
          %v1972 = vpack.c.b16 %v1476, %v1468
          %v1973 = vpack.c.b16 %v1477, %v1469
          %v1974 = vpack.c.b16 %v1478, %v1470
          %v1975 = vpack.c.b16 %v1479, %v1471
          %v1976 = vpack.c.b16 %v1480, %v1472
          %v1977 = vpack.c.b16 %v1481, %v1473
          %v1978 = vpack.c.b16 %v1490, %v1482
          %v1979 = vpack.c.b16 %v1491, %v1483
          %v1980 = vpack.c.b16 %v1492, %v1484
          %v1981 = vpack.c.b16 %v1493, %v1485
          %v1982 = vpack.c.b16 %v1494, %v1486
          %v1983 = vpack.c.b16 %v1495, %v1487
          %v1984 = vpack.c.b16 %v1496, %v1488
          %v1985 = vpack.c.b16 %v1497, %v1489
          %v1986 = vpack.c.b16 %v1506, %v1498
          %v1987 = vpack.c.b16 %v1507, %v1499
          %v1988 = vpack.c.b16 %v1508, %v1500
          %v1989 = vpack.c.b16 %v1509, %v1501
          %v1990 = vpack.c.b16 %v1510, %v1502
          %v1991 = vpack.c.b16 %v1511, %v1503
          %v1992 = vpack.c.b16 %v1512, %v1504
          %v1993 = vpack.c.b16 %v1513, %v1505
          %v1994 = vpack.c.b16 %v1522, %v1514
          %v1995 = vpack.c.b16 %v1523, %v1515
          %v1996 = vpack.c.b16 %v1524, %v1516
          %v1997 = vpack.c.b16 %v1525, %v1517
          %v1998 = vpack.c.b16 %v1526, %v1518
          %v1999 = vpack.c.b16 %v1527, %v1519
          %v2000 = vpack.c.b16 %v1528, %v1520
          %v2001 = vpack.c.b16 %v1529, %v1521
          %v2002 = vpack.c.b16 %v1538, %v1530
          %v2003 = vpack.c.b16 %v1539, %v1531
          %v2004 = vpack.c.b16 %v1540, %v1532
          %v2005 = vpack.c.b16 %v1541, %v1533
          %v2006 = vpack.c.b16 %v1542, %v1534
          %v2007 = vpack.c.b16 %v1543, %v1535
          %v2008 = vpack.c.b16 %v1544, %v1536
          %v2009 = vpack.c.b16 %v1545, %v1537
          %v2010 = vpack.c.b16 %v1554, %v1546
          %v2011 = vpack.c.b16 %v1555, %v1547
          %v2012 = vpack.c.b16 %v1556, %v1548
          %v2013 = vpack.c.b16 %v1557, %v1549
          %v2014 = vpack.c.b16 %v1558, %v1550
          %v2015 = vpack.c.b16 %v1559, %v1551
          %v2016 = vpack.c.b16 %v1560, %v1552
          %v2017 = vpack.c.b16 %v1561, %v1553
          %v2018 = vpack.c.b16 %v1570, %v1562
          %v2019 = vpack.c.b16 %v1571, %v1563
          %v2020 = vpack.c.b16 %v1572, %v1564
          %v2021 = vpack.c.b16 %v1573, %v1565
          %v2022 = vpack.c.b16 %v1574, %v1566
          %v2023 = vpack.c.b16 %v1575, %v1567
          %v2024 = vpack.c.b16 %v1576, %v1568
          %v2025 = vpack.c.b16 %v1577, %v1569
          %v2026 = vpack.c.b16 %v1586, %v1578
          %v2027 = vpack.c.b16 %v1587, %v1579
          %v2028 = vpack.c.b16 %v1588, %v1580
          %v2029 = vpack.c.b16 %v1589, %v1581
          %v2030 = vpack.c.b16 %v1590, %v1582
          %v2031 = vpack.c.b16 %v1591, %v1583
          %v2032 = vpack.c.b16 %v1592, %v1584
          %v2033 = vpack.c.b16 %v1593, %v1585
          %v2034 = vpack.c.b16 %v1602, %v1594
          %v2035 = vpack.c.b16 %v1603, %v1595
          %v2036 = vpack.c.b16 %v1604, %v1596
          %v2037 = vpack.c.b16 %v1605, %v1597
          %v2038 = vpack.c.b16 %v1606, %v1598
          %v2039 = vpack.c.b16 %v1607, %v1599
          %v2040 = vpack.c.b16 %v1608, %v1600
          %v2041 = vpack.c.b16 %v1609, %v1601
          %v2042 = vpack.c.b16 %v1618, %v1610
          %v2043 = vpack.c.b16 %v1619, %v1611
          %v2044 = vpack.c.b16 %v1620, %v1612
          %v2045 = vpack.c.b16 %v1621, %v1613
          %v2046 = vpack.c.b16 %v1622, %v1614
          %v2047 = vpack.c.b16 %v1623, %v1615
          %v2048 = vpack.c.b16 %v1624, %v1616
          %v2049 = vpack.c.b16 %v1625, %v1617
          %v2050 = vpack.c.b16 %v1634, %v1626
          %v2051 = vpack.c.b16 %v1635, %v1627
          %v2052 = vpack.c.b16 %v1636, %v1628
          %v2053 = vpack.c.b16 %v1637, %v1629
          %v2054 = vpack.c.b16 %v1638, %v1630
          %v2055 = vpack.c.b16 %v1639, %v1631
          %v2056 = vpack.c.b16 %v1640, %v1632
          %v2057 = vpack.c.b16 %v1641, %v1633
          %v2058 = vpack.c.b16 %v1650, %v1642
          %v2059 = vpack.c.b16 %v1651, %v1643
          %v2060 = vpack.c.b16 %v1652, %v1644
          %v2061 = vpack.c.b16 %v1653, %v1645
          %v2062 = vpack.c.b16 %v1654, %v1646
          %v2063 = vpack.c.b16 %v1655, %v1647
          %v2064 = vpack.c.b16 %v1656, %v1648
          %v2065 = vpack.c.b16 %v1657, %v1649
          %v2066 = vpack.c.b16 %v1666, %v1658
          %v2067 = vpack.c.b16 %v1667, %v1659
          %v2068 = vpack.c.b16 %v1668, %v1660
          %v2069 = vpack.c.b16 %v1669, %v1661
          %v2070 = vpack.c.b16 %v1670, %v1662
          %v2071 = vpack.c.b16 %v1671, %v1663
          %v2072 = vpack.c.b16 %v1672, %v1664
          %v2073 = vpack.c.b16 %v1673, %v1665
          %v2074 = vpack.c.b16 %v1682, %v1674
          %v2075 = vpack.c.b16 %v1683, %v1675
          %v2076 = vpack.c.b16 %v1684, %v1676
          %v2077 = vpack.c.b16 %v1685, %v1677
          %v2078 = vpack.c.b16 %v1686, %v1678
          %v2079 = vpack.c.b16 %v1687, %v1679
          %v2080 = vpack.c.b16 %v1688, %v1680
          %v2081 = vpack.c.b16 %v1689, %v1681
          %v2082 = vpack.c.b16 %v1698, %v1690
          %v2083 = vpack.c.b16 %v1699, %v1691
          %v2084 = vpack.c.b16 %v1700, %v1692
          %v2085 = vpack.c.b16 %v1701, %v1693
          %v2086 = vpack.c.b16 %v1702, %v1694
          %v2087 = vpack.c.b16 %v1703, %v1695
          %v2088 = vpack.c.b16 %v1704, %v1696
          %v2089 = vpack.c.b16 %v1705, %v1697
          %v2090 = vpack.c.b16 %v1714, %v1706
          %v2091 = vpack.c.b16 %v1715, %v1707
          %v2092 = vpack.c.b16 %v1716, %v1708
          %v2093 = vpack.c.b16 %v1717, %v1709
          %v2094 = vpack.c.b16 %v1718, %v1710
          %v2095 = vpack.c.b16 %v1719, %v1711
          %v2096 = vpack.c.b16 %v1720, %v1712
          %v2097 = vpack.c.b16 %v1721, %v1713
          %v2098 = vpack.c.b16 %v1730, %v1722
          %v2099 = vpack.c.b16 %v1731, %v1723
          %v2100 = vpack.c.b16 %v1732, %v1724
          %v2101 = vpack.c.b16 %v1733, %v1725
          %v2102 = vpack.c.b16 %v1734, %v1726
          %v2103 = vpack.c.b16 %v1735, %v1727
          %v2104 = vpack.c.b16 %v1736, %v1728
          %v2105 = vpack.c.b16 %v1737, %v1729
          %v2106 = vpack.c.b16 %v1746, %v1738
          %v2107 = vpack.c.b16 %v1747, %v1739
          %v2108 = vpack.c.b16 %v1748, %v1740
          %v2109 = vpack.c.b16 %v1749, %v1741
          %v2110 = vpack.c.b16 %v1750, %v1742
          %v2111 = vpack.c.b16 %v1751, %v1743
          %v2112 = vpack.c.b16 %v1752, %v1744
          %v2113 = vpack.c.b16 %v1753, %v1745
          %v2114 = vpack.c.b16 %v1762, %v1754
          %v2115 = vpack.c.b16 %v1763, %v1755
          %v2116 = vpack.c.b16 %v1764, %v1756
          %v2117 = vpack.c.b16 %v1765, %v1757
          %v2118 = vpack.c.b16 %v1766, %v1758
          %v2119 = vpack.c.b16 %v1767, %v1759
          %v2120 = vpack.c.b16 %v1768, %v1760
          %v2121 = vpack.c.b16 %v1769, %v1761
          %v2122 = vpack.c.b16 %v1778, %v1770
          %v2123 = vpack.c.b16 %v1779, %v1771
          %v2124 = vpack.c.b16 %v1780, %v1772
          %v2125 = vpack.c.b16 %v1781, %v1773
          %v2126 = vpack.c.b16 %v1782, %v1774
          %v2127 = vpack.c.b16 %v1783, %v1775
          %v2128 = vpack.c.b16 %v1784, %v1776
          %v2129 = vpack.c.b16 %v1785, %v1777
          %v2130 = vpack.c.b16 %v1794, %v1786
          %v2131 = vpack.c.b16 %v1795, %v1787
          %v2132 = vpack.c.b16 %v1796, %v1788
          %v2133 = vpack.c.b16 %v1797, %v1789
          %v2134 = vpack.c.b16 %v1798, %v1790
          %v2135 = vpack.c.b16 %v1799, %v1791
          %v2136 = vpack.c.b16 %v1800, %v1792
          %v2137 = vpack.c.b16 %v1801, %v1793
          %v2138 = vpack.c.b16 %v1810, %v1802
          %v2139 = vpack.c.b16 %v1811, %v1803
          %v2140 = vpack.c.b16 %v1812, %v1804
          %v2141 = vpack.c.b16 %v1813, %v1805
          %v2142 = vpack.c.b16 %v1814, %v1806
          %v2143 = vpack.c.b16 %v1815, %v1807
          %v2144 = vpack.c.b16 %v1816, %v1808
          %v2145 = vpack.c.b16 %v1817, %v1809
          %v2146 = vpack.c.b16 %v1826, %v1818
          %v2147 = vpack.c.b16 %v1827, %v1819
          %v2148 = vpack.c.b16 %v1828, %v1820
          %v2149 = vpack.c.b16 %v1829, %v1821
          %v2150 = vpack.c.b16 %v1830, %v1822
          %v2151 = vpack.c.b16 %v1831, %v1823
          %v2152 = vpack.c.b16 %v1832, %v1824
          %v2153 = vpack.c.b16 %v1833, %v1825
          %v2154 = vpack.c.b16 %v1842, %v1834
          %v2155 = vpack.c.b16 %v1843, %v1835
          %v2156 = vpack.c.b16 %v1844, %v1836
          %v2157 = vpack.c.b16 %v1845, %v1837
          %v2158 = vpack.c.b16 %v1846, %v1838
          %v2159 = vpack.c.b16 %v1847, %v1839
          %v2160 = vpack.c.b16 %v1848, %v1840
          %v2161 = vpack.c.b16 %v1849, %v1841
          %v2162 = vpack.c.b16 %v1858, %v1850
          %v2163 = vpack.c.b16 %v1859, %v1851
          %v2164 = vpack.c.b16 %v1860, %v1852
          %v2165 = vpack.c.b16 %v1861, %v1853
          %v2166 = vpack.c.b16 %v1862, %v1854
          %v2167 = vpack.c.b16 %v1863, %v1855
          %v2168 = vpack.c.b16 %v1864, %v1856
          %v2169 = vpack.c.b16 %v1865, %v1857
          %v2170 = vpack.c.b16 %v1874, %v1866
          %v2171 = vpack.c.b16 %v1875, %v1867
          %v2172 = vpack.c.b16 %v1876, %v1868
          %v2173 = vpack.c.b16 %v1877, %v1869
          %v2174 = vpack.c.b16 %v1878, %v1870
          %v2175 = vpack.c.b16 %v1879, %v1871
          %v2176 = vpack.c.b16 %v1880, %v1872
          %v2177 = vpack.c.b16 %v1881, %v1873
          %v2178 = vpack.c.b16 %v1890, %v1882
          %v2179 = vpack.c.b16 %v1891, %v1883
          %v2180 = vpack.c.b16 %v1892, %v1884
          %v2181 = vpack.c.b16 %v1893, %v1885
          %v2182 = vpack.c.b16 %v1894, %v1886
          %v2183 = vpack.c.b16 %v1895, %v1887
          %v2184 = vpack.c.b16 %v1896, %v1888
          %v2185 = vpack.c.b16 %v1897, %v1889
          %v2186 = vpack.c.b16 %v1906, %v1898
          %v2187 = vpack.c.b16 %v1907, %v1899
          %v2188 = vpack.c.b16 %v1908, %v1900
          %v2189 = vpack.c.b16 %v1909, %v1901
          %v2190 = vpack.c.b16 %v1910, %v1902
          %v2191 = vpack.c.b16 %v1911, %v1903
          %v2192 = vpack.c.b16 %v1912, %v1904
          %v2193 = vpack.c.b16 %v1913, %v1905
          %v2194 = vpack.c.b16 %v1922, %v1914
          %v2195 = vpack.c.b16 %v1923, %v1915
          %v2196 = vpack.c.b16 %v1924, %v1916
          %v2197 = vpack.c.b16 %v1925, %v1917
          %v2198 = vpack.c.b16 %v1926, %v1918
          %v2199 = vpack.c.b16 %v1927, %v1919
          %v2200 = vpack.c.b16 %v1928, %v1920
          %v2201 = vpack.c.b16 %v1929, %v1921
          %v2202 = vpack.c.b16 %v1938, %v1930
          %v2203 = vpack.c.b16 %v1939, %v1931
          %v2204 = vpack.c.b16 %v1940, %v1932
          %v2205 = vpack.c.b16 %v1941, %v1933
          %v2206 = vpack.c.b16 %v1942, %v1934
          %v2207 = vpack.c.b16 %v1943, %v1935
          %v2208 = vpack.c.b16 %v1944, %v1936
          %v2209 = vpack.c.b16 %v1945, %v1937
          %v2210 = vpack.c.b16 %v1954, %v1946
          %v2211 = vpack.c.b16 %v1955, %v1947
          %v2212 = vpack.c.b16 %v1956, %v1948
          %v2213 = vpack.c.b16 %v1957, %v1949
          %v2214 = vpack.c.b16 %v1958, %v1950
          %v2215 = vpack.c.b16 %v1959, %v1951
          %v2216 = vpack.c.b16 %v1960, %v1952
          %v2217 = vpack.c.b16 %v1961, %v1953
          %2474 = vmatprep.subr.bf16.mxu0 %v1963
          %2475 = vmatpush1.bf16.msra.mxu0 %v1962
          %2476 = vmatprep.subr.bf16.mxu0 %v1971
          %2477 = vmatpush1.bf16.msra.mxu0 %v1970
          %2478 = vmatprep.subr.bf16.mxu0 %v1979
          %2479 = vmatpush1.bf16.msra.mxu0 %v1978
          %2480 = vmatprep.subr.bf16.mxu0 %v1987
          %2481 = vmatpush1.bf16.msra.mxu0 %v1986
          %2482 = vmatprep.subr.bf16.mxu0 %v1995
          %2483 = vmatpush1.bf16.msra.mxu0 %v1994
          %2484 = vmatprep.subr.bf16.mxu0 %v2003
          %2485 = vmatpush1.bf16.msra.mxu0 %v2002
          %2486 = vmatprep.subr.bf16.mxu0 %v2011
          %2487 = vmatpush1.bf16.msra.mxu0 %v2010
          %2488 = vmatprep.subr.bf16.mxu0 %v2019
          %2489 = vmatpush1.bf16.msra.mxu0 %v2018
          %2490 = vmatprep.subr.bf16.mxu0 %v2027
          %2491 = vmatpush1.bf16.msra.mxu0 %v2026
          %2492 = vmatprep.subr.bf16.mxu0 %v2035
          %2493 = vmatpush1.bf16.msra.mxu0 %v2034
          %2494 = vmatprep.subr.bf16.mxu0 %v2043
          %2495 = vmatpush1.bf16.msra.mxu0 %v2042
          %2496 = vmatprep.subr.bf16.mxu0 %v2051
          %2497 = vmatpush1.bf16.msra.mxu0 %v2050
          %2498 = vmatprep.subr.bf16.mxu0 %v2059
          %2499 = vmatpush1.bf16.msra.mxu0 %v2058
          %2500 = vmatprep.subr.bf16.mxu0 %v2067
          %2501 = vmatpush1.bf16.msra.mxu0 %v2066
          %2502 = vmatprep.subr.bf16.mxu0 %v2075
          %2503 = vmatpush1.bf16.msra.mxu0 %v2074
          %2504 = vmatprep.subr.bf16.mxu0 %v2083
          %2505 = vmatpush1.bf16.msra.mxu0 %v2082
          %2506 = vmatprep.mubr.bf16.mxu0 %v935
          %2507 = vmatmul.mubr.bf16.gmra.mrb[0].mxu0 %v934
          %v2508 = vpop.f32.mrb[0].mxu0
          %v2509 = vadd.f32 0.0, %v2508
          %v2510 = vpop.f32.mrb[0].mxu0
          %v2511 = vadd.f32 0.0, %v2510
          %v2512 = vpop.f32.mrb[0].mxu0
          %v2513 = vpop.f32.mrb[0].mxu0
          %2514 = vdwg.mxu0
          %2515 = vmatprep.subr.bf16.mxu0 %v2091
          %2516 = vmatpush1.bf16.msra.mxu0 %v2090
          %2517 = vmatprep.subr.bf16.mxu0 %v2099
          %2518 = vmatpush1.bf16.msra.mxu0 %v2098
          %2519 = vmatprep.subr.bf16.mxu0 %v2107
          %2520 = vmatpush1.bf16.msra.mxu0 %v2106
          %2521 = vmatprep.subr.bf16.mxu0 %v2115
          %2522 = vmatpush1.bf16.msra.mxu0 %v2114
          %2523 = vmatprep.subr.bf16.mxu0 %v2123
          %2524 = vmatpush1.bf16.msra.mxu0 %v2122
          %2525 = vmatprep.subr.bf16.mxu0 %v2131
          %2526 = vmatpush1.bf16.msra.mxu0 %v2130
          %2527 = vmatprep.subr.bf16.mxu0 %v2139
          %2528 = vmatpush1.bf16.msra.mxu0 %v2138
          %2529 = vmatprep.subr.bf16.mxu0 %v2147
          %2530 = vmatpush1.bf16.msra.mxu0 %v2146
          %2531 = vmatprep.subr.bf16.mxu0 %v2155
          %2532 = vmatpush1.bf16.msra.mxu0 %v2154
          %2533 = vmatprep.subr.bf16.mxu0 %v2163
          %2534 = vmatpush1.bf16.msra.mxu0 %v2162
          %2535 = vmatprep.subr.bf16.mxu0 %v2171
          %2536 = vmatpush1.bf16.msra.mxu0 %v2170
          %2537 = vmatprep.subr.bf16.mxu0 %v2179
          %2538 = vmatpush1.bf16.msra.mxu0 %v2178
          %2539 = vmatprep.subr.bf16.mxu0 %v2187
          %2540 = vmatpush1.bf16.msra.mxu0 %v2186
          %2541 = vmatprep.subr.bf16.mxu0 %v2195
          %2542 = vmatpush1.bf16.msra.mxu0 %v2194
          %2543 = vmatprep.subr.bf16.mxu0 %v2203
          %2544 = vmatpush1.bf16.msra.mxu0 %v2202
          %2545 = vmatprep.subr.bf16.mxu0 %v2211
          %2546 = vmatpush1.bf16.msra.mxu0 %v2210
          %2547 = vmatprep.mubr.bf16.mxu0 %v937
          %2548 = vmatmul.mubr.bf16.gmra.mrb[0].mxu0 %v936
          %v2549 = vpop.f32.mrb[0].mxu0
          %v2550 = vadd.f32 %v2509, %v2549
          %v2551 = vpop.f32.mrb[0].mxu0
          %v2552 = vadd.f32 %v2511, %v2551
          %v2553 = vpop.f32.mrb[0].mxu0
          %v2554 = vpop.f32.mrb[0].mxu0
          %2555 = vdwg.mxu0
          %2556 = vmatprep.subr.bf16.mxu0 %v1965
          %2557 = vmatpush1.bf16.msra.mxu0 %v1964
          %2558 = vmatprep.subr.bf16.mxu0 %v1973
          %2559 = vmatpush1.bf16.msra.mxu0 %v1972
          %2560 = vmatprep.subr.bf16.mxu0 %v1981
          %2561 = vmatpush1.bf16.msra.mxu0 %v1980
          %2562 = vmatprep.subr.bf16.mxu0 %v1989
          %2563 = vmatpush1.bf16.msra.mxu0 %v1988
          %2564 = vmatprep.subr.bf16.mxu0 %v1997
          %2565 = vmatpush1.bf16.msra.mxu0 %v1996
          %2566 = vmatprep.subr.bf16.mxu0 %v2005
          %2567 = vmatpush1.bf16.msra.mxu0 %v2004
          %2568 = vmatprep.subr.bf16.mxu0 %v2013
          %2569 = vmatpush1.bf16.msra.mxu0 %v2012
          %2570 = vmatprep.subr.bf16.mxu0 %v2021
          %2571 = vmatpush1.bf16.msra.mxu0 %v2020
          %2572 = vmatprep.subr.bf16.mxu0 %v2029
          %2573 = vmatpush1.bf16.msra.mxu0 %v2028
          %2574 = vmatprep.subr.bf16.mxu0 %v2037
          %2575 = vmatpush1.bf16.msra.mxu0 %v2036
          %2576 = vmatprep.subr.bf16.mxu0 %v2045
          %2577 = vmatpush1.bf16.msra.mxu0 %v2044
          %2578 = vmatprep.subr.bf16.mxu0 %v2053
          %2579 = vmatpush1.bf16.msra.mxu0 %v2052
          %2580 = vmatprep.subr.bf16.mxu0 %v2061
          %2581 = vmatpush1.bf16.msra.mxu0 %v2060
          %2582 = vmatprep.subr.bf16.mxu0 %v2069
          %2583 = vmatpush1.bf16.msra.mxu0 %v2068
          %2584 = vmatprep.subr.bf16.mxu0 %v2077
          %2585 = vmatpush1.bf16.msra.mxu0 %v2076
          %2586 = vmatprep.subr.bf16.mxu0 %v2085
          %2587 = vmatpush1.bf16.msra.mxu0 %v2084
          %2588 = vmatprep.mubr.bf16.mxu0 %v935
          %2589 = vmatmul.mubr.bf16.gmra.mrb[0].mxu0 %v934
          %v2590 = vpop.f32.mrb[0].mxu0
          %v2591 = vadd.f32 0.0, %v2590
          %v2592 = vpop.f32.mrb[0].mxu0
          %v2593 = vadd.f32 0.0, %v2592
          %v2594 = vpop.f32.mrb[0].mxu0
          %v2595 = vpop.f32.mrb[0].mxu0
          %2596 = vdwg.mxu0
          %2597 = vmatprep.subr.bf16.mxu0 %v2093
          %2598 = vmatpush1.bf16.msra.mxu0 %v2092
          %2599 = vmatprep.subr.bf16.mxu0 %v2101
          %2600 = vmatpush1.bf16.msra.mxu0 %v2100
          %2601 = vmatprep.subr.bf16.mxu0 %v2109
          %2602 = vmatpush1.bf16.msra.mxu0 %v2108
          %2603 = vmatprep.subr.bf16.mxu0 %v2117
          %2604 = vmatpush1.bf16.msra.mxu0 %v2116
          %2605 = vmatprep.subr.bf16.mxu0 %v2125
          %2606 = vmatpush1.bf16.msra.mxu0 %v2124
          %2607 = vmatprep.subr.bf16.mxu0 %v2133
          %2608 = vmatpush1.bf16.msra.mxu0 %v2132
          %2609 = vmatprep.subr.bf16.mxu0 %v2141
          %2610 = vmatpush1.bf16.msra.mxu0 %v2140
          %2611 = vmatprep.subr.bf16.mxu0 %v2149
          %2612 = vmatpush1.bf16.msra.mxu0 %v2148
          %2613 = vmatprep.subr.bf16.mxu0 %v2157
          %2614 = vmatpush1.bf16.msra.mxu0 %v2156
          %2615 = vmatprep.subr.bf16.mxu0 %v2165
          %2616 = vmatpush1.bf16.msra.mxu0 %v2164
          %2617 = vmatprep.subr.bf16.mxu0 %v2173
          %2618 = vmatpush1.bf16.msra.mxu0 %v2172
          %2619 = vmatprep.subr.bf16.mxu0 %v2181
          %2620 = vmatpush1.bf16.msra.mxu0 %v2180
          %2621 = vmatprep.subr.bf16.mxu0 %v2189
          %2622 = vmatpush1.bf16.msra.mxu0 %v2188
          %2623 = vmatprep.subr.bf16.mxu0 %v2197
          %2624 = vmatpush1.bf16.msra.mxu0 %v2196
          %2625 = vmatprep.subr.bf16.mxu0 %v2205
          %2626 = vmatpush1.bf16.msra.mxu0 %v2204
          %2627 = vmatprep.subr.bf16.mxu0 %v2213
          %2628 = vmatpush1.bf16.msra.mxu0 %v2212
          %2629 = vmatprep.mubr.bf16.mxu0 %v937
          %2630 = vmatmul.mubr.bf16.gmra.mrb[0].mxu0 %v936
          %v2631 = vpop.f32.mrb[0].mxu0
          %v2632 = vadd.f32 %v2591, %v2631
          %v2633 = vpop.f32.mrb[0].mxu0
          %v2634 = vadd.f32 %v2593, %v2633
          %v2635 = vpop.f32.mrb[0].mxu0
          %v2636 = vpop.f32.mrb[0].mxu0
          %2637 = vdwg.mxu0
          %2638 = vmatprep.subr.bf16.mxu0 %v1967
          %2639 = vmatpush1.bf16.msra.mxu0 %v1966
          %2640 = vmatprep.subr.bf16.mxu0 %v1975
          %2641 = vmatpush1.bf16.msra.mxu0 %v1974
          %2642 = vmatprep.subr.bf16.mxu0 %v1983
          %2643 = vmatpush1.bf16.msra.mxu0 %v1982
          %2644 = vmatprep.subr.bf16.mxu0 %v1991
          %2645 = vmatpush1.bf16.msra.mxu0 %v1990
          %2646 = vmatprep.subr.bf16.mxu0 %v1999
          %2647 = vmatpush1.bf16.msra.mxu0 %v1998
          %2648 = vmatprep.subr.bf16.mxu0 %v2007
          %2649 = vmatpush1.bf16.msra.mxu0 %v2006
          %2650 = vmatprep.subr.bf16.mxu0 %v2015
          %2651 = vmatpush1.bf16.msra.mxu0 %v2014
          %2652 = vmatprep.subr.bf16.mxu0 %v2023
          %2653 = vmatpush1.bf16.msra.mxu0 %v2022
          %2654 = vmatprep.subr.bf16.mxu0 %v2031
          %2655 = vmatpush1.bf16.msra.mxu0 %v2030
          %2656 = vmatprep.subr.bf16.mxu0 %v2039
          %2657 = vmatpush1.bf16.msra.mxu0 %v2038
          %2658 = vmatprep.subr.bf16.mxu0 %v2047
          %2659 = vmatpush1.bf16.msra.mxu0 %v2046
          %2660 = vmatprep.subr.bf16.mxu0 %v2055
          %2661 = vmatpush1.bf16.msra.mxu0 %v2054
          %2662 = vmatprep.subr.bf16.mxu0 %v2063
          %2663 = vmatpush1.bf16.msra.mxu0 %v2062
          %2664 = vmatprep.subr.bf16.mxu0 %v2071
          %2665 = vmatpush1.bf16.msra.mxu0 %v2070
          %2666 = vmatprep.subr.bf16.mxu0 %v2079
          %2667 = vmatpush1.bf16.msra.mxu0 %v2078
          %2668 = vmatprep.subr.bf16.mxu0 %v2087
          %2669 = vmatpush1.bf16.msra.mxu0 %v2086
          %2670 = vmatprep.mubr.bf16.mxu0 %v935
          %2671 = vmatmul.mubr.bf16.gmra.mrb[0].mxu0 %v934
          %v2672 = vpop.f32.mrb[0].mxu0
          %v2673 = vadd.f32 0.0, %v2672
          %v2674 = vpop.f32.mrb[0].mxu0
          %v2675 = vadd.f32 0.0, %v2674
          %v2676 = vpop.f32.mrb[0].mxu0
          %v2677 = vpop.f32.mrb[0].mxu0
          %2678 = vdwg.mxu0
          %2679 = vmatprep.subr.bf16.mxu0 %v2095
          %2680 = vmatpush1.bf16.msra.mxu0 %v2094
          %2681 = vmatprep.subr.bf16.mxu0 %v2103
          %2682 = vmatpush1.bf16.msra.mxu0 %v2102
          %2683 = vmatprep.subr.bf16.mxu0 %v2111
          %2684 = vmatpush1.bf16.msra.mxu0 %v2110
          %2685 = vmatprep.subr.bf16.mxu0 %v2119
          %2686 = vmatpush1.bf16.msra.mxu0 %v2118
          %2687 = vmatprep.subr.bf16.mxu0 %v2127
          %2688 = vmatpush1.bf16.msra.mxu0 %v2126
          %2689 = vmatprep.subr.bf16.mxu0 %v2135
          %2690 = vmatpush1.bf16.msra.mxu0 %v2134
          %2691 = vmatprep.subr.bf16.mxu0 %v2143
          %2692 = vmatpush1.bf16.msra.mxu0 %v2142
          %2693 = vmatprep.subr.bf16.mxu0 %v2151
          %2694 = vmatpush1.bf16.msra.mxu0 %v2150
          %2695 = vmatprep.subr.bf16.mxu0 %v2159
          %2696 = vmatpush1.bf16.msra.mxu0 %v2158
          %2697 = vmatprep.subr.bf16.mxu0 %v2167
          %2698 = vmatpush1.bf16.msra.mxu0 %v2166
          %2699 = vmatprep.subr.bf16.mxu0 %v2175
          %2700 = vmatpush1.bf16.msra.mxu0 %v2174
          %2701 = vmatprep.subr.bf16.mxu0 %v2183
          %2702 = vmatpush1.bf16.msra.mxu0 %v2182
          %2703 = vmatprep.subr.bf16.mxu0 %v2191
          %2704 = vmatpush1.bf16.msra.mxu0 %v2190
          %2705 = vmatprep.subr.bf16.mxu0 %v2199
          %2706 = vmatpush1.bf16.msra.mxu0 %v2198
          %2707 = vmatprep.subr.bf16.mxu0 %v2207
          %2708 = vmatpush1.bf16.msra.mxu0 %v2206
          %2709 = vmatprep.subr.bf16.mxu0 %v2215
          %2710 = vmatpush1.bf16.msra.mxu0 %v2214
          %2711 = vmatprep.mubr.bf16.mxu0 %v937
          %2712 = vmatmul.mubr.bf16.gmra.mrb[0].mxu0 %v936
          %v2713 = vpop.f32.mrb[0].mxu0
          %v2714 = vadd.f32 %v2673, %v2713
          %v2715 = vpop.f32.mrb[0].mxu0
          %v2716 = vadd.f32 %v2675, %v2715
          %v2717 = vpop.f32.mrb[0].mxu0
          %v2718 = vpop.f32.mrb[0].mxu0
          %2719 = vdwg.mxu0
          %2720 = vmatprep.subr.bf16.mxu0 %v1969
          %2721 = vmatpush1.bf16.msra.mxu0 %v1968
          %2722 = vmatprep.subr.bf16.mxu0 %v1977
          %2723 = vmatpush1.bf16.msra.mxu0 %v1976
          %2724 = vmatprep.subr.bf16.mxu0 %v1985
          %2725 = vmatpush1.bf16.msra.mxu0 %v1984
          %2726 = vmatprep.subr.bf16.mxu0 %v1993
          %2727 = vmatpush1.bf16.msra.mxu0 %v1992
          %2728 = vmatprep.subr.bf16.mxu0 %v2001
          %2729 = vmatpush1.bf16.msra.mxu0 %v2000
          %2730 = vmatprep.subr.bf16.mxu0 %v2009
          %2731 = vmatpush1.bf16.msra.mxu0 %v2008
          %2732 = vmatprep.subr.bf16.mxu0 %v2017
          %2733 = vmatpush1.bf16.msra.mxu0 %v2016
          %2734 = vmatprep.subr.bf16.mxu0 %v2025
          %2735 = vmatpush1.bf16.msra.mxu0 %v2024
          %2736 = vmatprep.subr.bf16.mxu0 %v2033
          %2737 = vmatpush1.bf16.msra.mxu0 %v2032
          %2738 = vmatprep.subr.bf16.mxu0 %v2041
          %2739 = vmatpush1.bf16.msra.mxu0 %v2040
          %2740 = vmatprep.subr.bf16.mxu0 %v2049
          %2741 = vmatpush1.bf16.msra.mxu0 %v2048
          %2742 = vmatprep.subr.bf16.mxu0 %v2057
          %2743 = vmatpush1.bf16.msra.mxu0 %v2056
          %2744 = vmatprep.subr.bf16.mxu0 %v2065
          %2745 = vmatpush1.bf16.msra.mxu0 %v2064
          %2746 = vmatprep.subr.bf16.mxu0 %v2073
          %2747 = vmatpush1.bf16.msra.mxu0 %v2072
          %2748 = vmatprep.subr.bf16.mxu0 %v2081
          %2749 = vmatpush1.bf16.msra.mxu0 %v2080
          %2750 = vmatprep.subr.bf16.mxu0 %v2089
          %2751 = vmatpush1.bf16.msra.mxu0 %v2088
          %2752 = vmatprep.mubr.bf16.mxu0 %v935
          %2753 = vmatmul.mubr.bf16.gmra.mrb[0].mxu0 %v934
          %v2754 = vpop.f32.mrb[0].mxu0
          %v2755 = vadd.f32 0.0, %v2754
          %v2756 = vpop.f32.mrb[0].mxu0
          %v2757 = vadd.f32 0.0, %v2756
          %v2758 = vpop.f32.mrb[0].mxu0
          %v2759 = vpop.f32.mrb[0].mxu0
          %2760 = vdwg.mxu0
          %2761 = vmatprep.subr.bf16.mxu0 %v2097
          %2762 = vmatpush1.bf16.msra.mxu0 %v2096
          %2763 = vmatprep.subr.bf16.mxu0 %v2105
          %2764 = vmatpush1.bf16.msra.mxu0 %v2104
          %2765 = vmatprep.subr.bf16.mxu0 %v2113
          %2766 = vmatpush1.bf16.msra.mxu0 %v2112
          %2767 = vmatprep.subr.bf16.mxu0 %v2121
          %2768 = vmatpush1.bf16.msra.mxu0 %v2120
          %2769 = vmatprep.subr.bf16.mxu0 %v2129
          %2770 = vmatpush1.bf16.msra.mxu0 %v2128
          %2771 = vmatprep.subr.bf16.mxu0 %v2137
          %2772 = vmatpush1.bf16.msra.mxu0 %v2136
          %2773 = vmatprep.subr.bf16.mxu0 %v2145
          %2774 = vmatpush1.bf16.msra.mxu0 %v2144
          %2775 = vmatprep.subr.bf16.mxu0 %v2153
          %2776 = vmatpush1.bf16.msra.mxu0 %v2152
          %2777 = vmatprep.subr.bf16.mxu0 %v2161
          %2778 = vmatpush1.bf16.msra.mxu0 %v2160
          %2779 = vmatprep.subr.bf16.mxu0 %v2169
          %2780 = vmatpush1.bf16.msra.mxu0 %v2168
          %2781 = vmatprep.subr.bf16.mxu0 %v2177
          %2782 = vmatpush1.bf16.msra.mxu0 %v2176
          %2783 = vmatprep.subr.bf16.mxu0 %v2185
          %2784 = vmatpush1.bf16.msra.mxu0 %v2184
          %2785 = vmatprep.subr.bf16.mxu0 %v2193
          %2786 = vmatpush1.bf16.msra.mxu0 %v2192
          %2787 = vmatprep.subr.bf16.mxu0 %v2201
          %2788 = vmatpush1.bf16.msra.mxu0 %v2200
          %2789 = vmatprep.subr.bf16.mxu0 %v2209
          %2790 = vmatpush1.bf16.msra.mxu0 %v2208
          %2791 = vmatprep.subr.bf16.mxu0 %v2217
          %2792 = vmatpush1.bf16.msra.mxu0 %v2216
          %2793 = vmatprep.mubr.bf16.mxu0 %v937
          %2794 = vmatmul.mubr.bf16.gmra.mrb[0].mxu0 %v936
          %v2795 = vpop.f32.mrb[0].mxu0
          %v2796 = vadd.f32 %v2755, %v2795
          %v2797 = vpop.f32.mrb[0].mxu0
          %v2798 = vadd.f32 %v2757, %v2797
          %v2799 = vpop.f32.mrb[0].mxu0
          %v2800 = vpop.f32.mrb[0].mxu0
          %2801 = vdwg.mxu0
          %v2802 = vadd.f32 %v926, %v2550
          %v2803 = vadd.f32 %v927, %v2552
          %v2804 = vadd.f32 %v928, %v2632
          %v2805 = vadd.f32 %v929, %v2634
          %v2806 = vadd.f32 %v930, %v2714
          %v2807 = vadd.f32 %v931, %v2716
          %v2808 = vadd.f32 %v932, %v2796
          %v2809 = vadd.f32 %v933, %v2798
          %2810 = vst [vmem:[#allocation2] sm:$0xff] %v2802
          %2811 = vst [vmem:[#allocation2 + $0x8] sm:$0xff] %v2803
          %2812 = vst [vmem:[#allocation2 + $0x10] sm:$0xff] %v2804
          %2813 = vst [vmem:[#allocation2 + $0x18] sm:$0xff] %v2805
          %2814 = vst [vmem:[#allocation2 + $0x20] sm:$0xff] %v2806
          %2815 = vst [vmem:[#allocation2 + $0x28] sm:$0xff] %v2807
          %2816 = vst [vmem:[#allocation2 + $0x30] sm:$0xff] %v2808
          %2817 = vst [vmem:[#allocation2 + $0x38] sm:$0xff] %v2809
          %p2818 = scmp.eq.s32.totalorder %s39, 3
          // Predicated region
          $region109: #{autoencoder_forward.1} parent=103 // pred_check
            %p2819 = pneg %p2818
          $region110: #{autoencoder_forward.1} parent=103 // pred_check_branch
            %2821 = sbr.rel (%p2819) target = $region112
          $region111: #{autoencoder_forward.1} parent=103 // pred_region
            %v2822 = vld [vmem:[#allocation2] sm:$0xff]
            %v2823 = vld [vmem:[#allocation2 + $0x8] sm:$0xff]
            %v2824 = vld [vmem:[#allocation2 + $0x10] sm:$0xff]
            %v2825 = vld [vmem:[#allocation2 + $0x18] sm:$0xff]
            %v2826 = vld [vmem:[#allocation2 + $0x20] sm:$0xff]
            %v2827 = vld [vmem:[#allocation2 + $0x28] sm:$0xff]
            %v2828 = vld [vmem:[#allocation2 + $0x30] sm:$0xff]
            %v2829 = vld [vmem:[#allocation2 + $0x38] sm:$0xff]
            %v2830 = vld [vmem:[#allocation9] sm:$0xff]
            %v2832 = vlaneseq
            %v2833 = vshrl.u32 %v2832, 7
            %v2834 = vsub.s32 0, %v2833
            %v2835 = vrot.slane %v2830, %v2834
            %v2836 = vlaneseq
            %v2837 = vshrl.u32 %v2836, 7
            %v2838 = vsub.s32 1, %v2837
            %v2839 = vrot.slane %v2830, %v2838
            %v2840 = vlaneseq
            %v2841 = vshrl.u32 %v2840, 7
            %v2842 = vsub.s32 2, %v2841
            %v2843 = vrot.slane %v2830, %v2842
            %v2844 = vlaneseq
            %v2845 = vshrl.u32 %v2844, 7
            %v2846 = vsub.s32 3, %v2845
            %v2847 = vrot.slane %v2830, %v2846
            %v2848 = vlaneseq
            %v2849 = vshrl.u32 %v2848, 7
            %v2850 = vsub.s32 4, %v2849
            %v2851 = vrot.slane %v2830, %v2850
            %v2852 = vlaneseq
            %v2853 = vshrl.u32 %v2852, 7
            %v2854 = vsub.s32 5, %v2853
            %v2855 = vrot.slane %v2830, %v2854
            %v2856 = vlaneseq
            %v2857 = vshrl.u32 %v2856, 7
            %v2858 = vsub.s32 6, %v2857
            %v2859 = vrot.slane %v2830, %v2858
            %v2860 = vlaneseq
            %v2861 = vshrl.u32 %v2860, 7
            %v2862 = vsub.s32 7, %v2861
            %v2863 = vrot.slane %v2830, %v2862
            %v2872 = vadd.f32 %v2822, %v2835
            %v2873 = vadd.f32 %v2823, %v2839
            %v2874 = vadd.f32 %v2824, %v2843
            %v2875 = vadd.f32 %v2825, %v2847
            %v2876 = vadd.f32 %v2826, %v2851
            %v2877 = vadd.f32 %v2827, %v2855
            %v2878 = vadd.f32 %v2828, %v2859
            %v2879 = vadd.f32 %v2829, %v2863
            %v2880 = vmax.f32 %v2872, 0.0
            %v2881 = vmax.f32 %v2873, 0.0
            %v2882 = vmax.f32 %v2874, 0.0
            %v2883 = vmax.f32 %v2875, 0.0
            %v2884 = vmax.f32 %v2876, 0.0
            %v2885 = vmax.f32 %v2877, 0.0
            %v2886 = vmax.f32 %v2878, 0.0
            %v2887 = vmax.f32 %v2879, 0.0
            %v2888 = vld [vmem:[%s5] sm:$0xff]
            %v2889 = vld [vmem:[%s5 + $0x8] sm:$0xff]
            %v2890 = vld [vmem:[%s5 + $0x10] sm:$0xff]
            %v2891 = vld [vmem:[%s5 + $0x18] sm:$0xff]
            %v2892 = vld [vmem:[%s5 + $0x20] sm:$0xff]
            %v2893 = vld [vmem:[%s5 + $0x28] sm:$0xff]
            %v2894 = vld [vmem:[%s5 + $0x30] sm:$0xff]
            %v2895 = vld [vmem:[%s5 + $0x38] sm:$0xff]
            %v2896 = vld [vmem:[%s5 + $0x40] sm:$0xff]
            %v2897 = vld [vmem:[%s5 + $0x48] sm:$0xff]
            %v2898 = vld [vmem:[%s5 + $0x50] sm:$0xff]
            %v2899 = vld [vmem:[%s5 + $0x58] sm:$0xff]
            %v2900 = vld [vmem:[%s5 + $0x60] sm:$0xff]
            %v2901 = vld [vmem:[%s5 + $0x68] sm:$0xff]
            %v2902 = vld [vmem:[%s5 + $0x70] sm:$0xff]
            %v2903 = vld [vmem:[%s5 + $0x78] sm:$0xff]
            %v2904 = vld [vmem:[%s5 + $0x80] sm:$0xff]
            %v2905 = vld [vmem:[%s5 + $0x88] sm:$0xff]
            %v2906 = vld [vmem:[%s5 + $0x90] sm:$0xff]
            %v2907 = vld [vmem:[%s5 + $0x98] sm:$0xff]
            %v2908 = vld [vmem:[%s5 + $0xa0] sm:$0xff]
            %v2909 = vld [vmem:[%s5 + $0xa8] sm:$0xff]
            %v2910 = vld [vmem:[%s5 + $0xb0] sm:$0xff]
            %v2911 = vld [vmem:[%s5 + $0xb8] sm:$0xff]
            %v2912 = vld [vmem:[%s5 + $0xc0] sm:$0xff]
            %v2913 = vld [vmem:[%s5 + $0xc8] sm:$0xff]
            %v2914 = vld [vmem:[%s5 + $0xd0] sm:$0xff]
            %v2915 = vld [vmem:[%s5 + $0xd8] sm:$0xff]
            %v2916 = vld [vmem:[%s5 + $0xe0] sm:$0xff]
            %v2917 = vld [vmem:[%s5 + $0xe8] sm:$0xff]
            %v2918 = vld [vmem:[%s5 + $0xf0] sm:$0xff]
            %v2919 = vld [vmem:[%s5 + $0xf8] sm:$0xff]
            %v2920 = vld [vmem:[%s5 + $0x100] sm:$0xff]
            %v2921 = vld [vmem:[%s5 + $0x108] sm:$0xff]
            %v2922 = vld [vmem:[%s5 + $0x110] sm:$0xff]
            %v2923 = vld [vmem:[%s5 + $0x118] sm:$0xff]
            %v2924 = vld [vmem:[%s5 + $0x120] sm:$0xff]
            %v2925 = vld [vmem:[%s5 + $0x128] sm:$0xff]
            %v2926 = vld [vmem:[%s5 + $0x130] sm:$0xff]
            %v2927 = vld [vmem:[%s5 + $0x138] sm:$0xff]
            %v2928 = vld [vmem:[%s5 + $0x140] sm:$0xff]
            %v2929 = vld [vmem:[%s5 + $0x148] sm:$0xff]
            %v2930 = vld [vmem:[%s5 + $0x150] sm:$0xff]
            %v2931 = vld [vmem:[%s5 + $0x158] sm:$0xff]
            %v2932 = vld [vmem:[%s5 + $0x160] sm:$0xff]
            %v2933 = vld [vmem:[%s5 + $0x168] sm:$0xff]
            %v2934 = vld [vmem:[%s5 + $0x170] sm:$0xff]
            %v2935 = vld [vmem:[%s5 + $0x178] sm:$0xff]
            %v2936 = vld [vmem:[%s5 + $0x180] sm:$0xff]
            %v2937 = vld [vmem:[%s5 + $0x188] sm:$0xff]
            %v2938 = vld [vmem:[%s5 + $0x190] sm:$0xff]
            %v2939 = vld [vmem:[%s5 + $0x198] sm:$0xff]
            %v2940 = vld [vmem:[%s5 + $0x1a0] sm:$0xff]
            %v2941 = vld [vmem:[%s5 + $0x1a8] sm:$0xff]
            %v2942 = vld [vmem:[%s5 + $0x1b0] sm:$0xff]
            %v2943 = vld [vmem:[%s5 + $0x1b8] sm:$0xff]
            %v2944 = vld [vmem:[%s5 + $0x1c0] sm:$0xff]
            %v2945 = vld [vmem:[%s5 + $0x1c8] sm:$0xff]
            %v2946 = vld [vmem:[%s5 + $0x1d0] sm:$0xff]
            %v2947 = vld [vmem:[%s5 + $0x1d8] sm:$0xff]
            %v2948 = vld [vmem:[%s5 + $0x1e0] sm:$0xff]
            %v2949 = vld [vmem:[%s5 + $0x1e8] sm:$0xff]
            %v2950 = vld [vmem:[%s5 + $0x1f0] sm:$0xff]
            %v2951 = vld [vmem:[%s5 + $0x1f8] sm:$0xff]
            %v2952 = vld [vmem:[%s5 + $0x200] sm:$0xff]
            %v2953 = vld [vmem:[%s5 + $0x208] sm:$0xff]
            %v2954 = vld [vmem:[%s5 + $0x210] sm:$0xff]
            %v2955 = vld [vmem:[%s5 + $0x218] sm:$0xff]
            %v2956 = vld [vmem:[%s5 + $0x220] sm:$0xff]
            %v2957 = vld [vmem:[%s5 + $0x228] sm:$0xff]
            %v2958 = vld [vmem:[%s5 + $0x230] sm:$0xff]
            %v2959 = vld [vmem:[%s5 + $0x238] sm:$0xff]
            %v2960 = vld [vmem:[%s5 + $0x240] sm:$0xff]
            %v2961 = vld [vmem:[%s5 + $0x248] sm:$0xff]
            %v2962 = vld [vmem:[%s5 + $0x250] sm:$0xff]
            %v2963 = vld [vmem:[%s5 + $0x258] sm:$0xff]
            %v2964 = vld [vmem:[%s5 + $0x260] sm:$0xff]
            %v2965 = vld [vmem:[%s5 + $0x268] sm:$0xff]
            %v2966 = vld [vmem:[%s5 + $0x270] sm:$0xff]
            %v2967 = vld [vmem:[%s5 + $0x278] sm:$0xff]
            %v2968 = vld [vmem:[%s5 + $0x280] sm:$0xff]
            %v2969 = vld [vmem:[%s5 + $0x288] sm:$0xff]
            %v2970 = vld [vmem:[%s5 + $0x290] sm:$0xff]
            %v2971 = vld [vmem:[%s5 + $0x298] sm:$0xff]
            %v2972 = vld [vmem:[%s5 + $0x2a0] sm:$0xff]
            %v2973 = vld [vmem:[%s5 + $0x2a8] sm:$0xff]
            %v2974 = vld [vmem:[%s5 + $0x2b0] sm:$0xff]
            %v2975 = vld [vmem:[%s5 + $0x2b8] sm:$0xff]
            %v2976 = vld [vmem:[%s5 + $0x2c0] sm:$0xff]
            %v2977 = vld [vmem:[%s5 + $0x2c8] sm:$0xff]
            %v2978 = vld [vmem:[%s5 + $0x2d0] sm:$0xff]
            %v2979 = vld [vmem:[%s5 + $0x2d8] sm:$0xff]
            %v2980 = vld [vmem:[%s5 + $0x2e0] sm:$0xff]
            %v2981 = vld [vmem:[%s5 + $0x2e8] sm:$0xff]
            %v2982 = vld [vmem:[%s5 + $0x2f0] sm:$0xff]
            %v2983 = vld [vmem:[%s5 + $0x2f8] sm:$0xff]
            %v2984 = vld [vmem:[%s5 + $0x300] sm:$0xff]
            %v2985 = vld [vmem:[%s5 + $0x308] sm:$0xff]
            %v2986 = vld [vmem:[%s5 + $0x310] sm:$0xff]
            %v2987 = vld [vmem:[%s5 + $0x318] sm:$0xff]
            %v2988 = vld [vmem:[%s5 + $0x320] sm:$0xff]
            %v2989 = vld [vmem:[%s5 + $0x328] sm:$0xff]
            %v2990 = vld [vmem:[%s5 + $0x330] sm:$0xff]
            %v2991 = vld [vmem:[%s5 + $0x338] sm:$0xff]
            %v2992 = vld [vmem:[%s5 + $0x340] sm:$0xff]
            %v2993 = vld [vmem:[%s5 + $0x348] sm:$0xff]
            %v2994 = vld [vmem:[%s5 + $0x350] sm:$0xff]
            %v2995 = vld [vmem:[%s5 + $0x358] sm:$0xff]
            %v2996 = vld [vmem:[%s5 + $0x360] sm:$0xff]
            %v2997 = vld [vmem:[%s5 + $0x368] sm:$0xff]
            %v2998 = vld [vmem:[%s5 + $0x370] sm:$0xff]
            %v2999 = vld [vmem:[%s5 + $0x378] sm:$0xff]
            %v3000 = vld [vmem:[%s5 + $0x380] sm:$0xff]
            %v3001 = vld [vmem:[%s5 + $0x388] sm:$0xff]
            %v3002 = vld [vmem:[%s5 + $0x390] sm:$0xff]
            %v3003 = vld [vmem:[%s5 + $0x398] sm:$0xff]
            %v3004 = vld [vmem:[%s5 + $0x3a0] sm:$0xff]
            %v3005 = vld [vmem:[%s5 + $0x3a8] sm:$0xff]
            %v3006 = vld [vmem:[%s5 + $0x3b0] sm:$0xff]
            %v3007 = vld [vmem:[%s5 + $0x3b8] sm:$0xff]
            %v3008 = vld [vmem:[%s5 + $0x3c0] sm:$0xff]
            %v3009 = vld [vmem:[%s5 + $0x3c8] sm:$0xff]
            %v3010 = vld [vmem:[%s5 + $0x3d0] sm:$0xff]
            %v3011 = vld [vmem:[%s5 + $0x3d8] sm:$0xff]
            %v3012 = vld [vmem:[%s5 + $0x3e0] sm:$0xff]
            %v3013 = vld [vmem:[%s5 + $0x3e8] sm:$0xff]
            %v3014 = vld [vmem:[%s5 + $0x3f0] sm:$0xff]
            %v3015 = vld [vmem:[%s5 + $0x3f8] sm:$0xff]
            %3016 = vmatprep.subr.mxu0 0.0
            %3017 = vmatpush1.msra.mxu0 %v2888
            %3018 = vmatprep.subr.mxu0 0.0
            %3019 = vmatpush1.msra.mxu0 %v2889
            %3020 = vmatprep.subr.mxu0 0.0
            %3021 = vmatpush1.msra.mxu0 %v2890
            %3022 = vmatprep.subr.mxu0 0.0
            %3023 = vmatpush1.msra.mxu0 %v2891
            %3024 = vmatprep.subr.mxu0 0.0
            %3025 = vmatpush1.msra.mxu0 %v2892
            %3026 = vmatprep.subr.mxu0 0.0
            %3027 = vmatpush1.msra.mxu0 %v2893
            %3028 = vmatprep.subr.mxu0 0.0
            %3029 = vmatpush1.msra.mxu0 %v2894
            %3030 = vmatprep.subr.mxu0 0.0
            %3031 = vmatpush1.msra.mxu0 %v2895
            %3032 = vmatprep.subr.mxu0 0.0
            %3033 = vmatpush1.msra.mxu0 %v2896
            %3034 = vmatprep.subr.mxu0 0.0
            %3035 = vmatpush1.msra.mxu0 %v2897
            %3036 = vmatprep.subr.mxu0 0.0
            %3037 = vmatpush1.msra.mxu0 %v2898
            %3038 = vmatprep.subr.mxu0 0.0
            %3039 = vmatpush1.msra.mxu0 %v2899
            %3040 = vmatprep.subr.mxu0 0.0
            %3041 = vmatpush1.msra.mxu0 %v2900
            %3042 = vmatprep.subr.mxu0 0.0
            %3043 = vmatpush1.msra.mxu0 %v2901
            %3044 = vmatprep.subr.mxu0 0.0
            %3045 = vmatpush1.msra.mxu0 %v2902
            %3046 = vmatprep.subr.mxu0 0.0
            %3047 = vmatpush1.msra.mxu0 %v2903
            %3048 = vmatprep.subr.mxu0 0.0
            %3049 = vmatpush1.msra.mxu0 %v2904
            %3050 = vmatprep.subr.mxu0 0.0
            %3051 = vmatpush1.msra.mxu0 %v2905
            %3052 = vmatprep.subr.mxu0 0.0
            %3053 = vmatpush1.msra.mxu0 %v2906
            %3054 = vmatprep.subr.mxu0 0.0
            %3055 = vmatpush1.msra.mxu0 %v2907
            %3056 = vmatprep.subr.mxu0 0.0
            %3057 = vmatpush1.msra.mxu0 %v2908
            %3058 = vmatprep.subr.mxu0 0.0
            %3059 = vmatpush1.msra.mxu0 %v2909
            %3060 = vmatprep.subr.mxu0 0.0
            %3061 = vmatpush1.msra.mxu0 %v2910
            %3062 = vmatprep.subr.mxu0 0.0
            %3063 = vmatpush1.msra.mxu0 %v2911
            %3064 = vmatprep.subr.mxu0 0.0
            %3065 = vmatpush1.msra.mxu0 %v2912
            %3066 = vmatprep.subr.mxu0 0.0
            %3067 = vmatpush1.msra.mxu0 %v2913
            %3068 = vmatprep.subr.mxu0 0.0
            %3069 = vmatpush1.msra.mxu0 %v2914
            %3070 = vmatprep.subr.mxu0 0.0
            %3071 = vmatpush1.msra.mxu0 %v2915
            %3072 = vmatprep.subr.mxu0 0.0
            %3073 = vmatpush1.msra.mxu0 %v2916
            %3074 = vmatprep.subr.mxu0 0.0
            %3075 = vmatpush1.msra.mxu0 %v2917
            %3076 = vmatprep.subr.mxu0 0.0
            %3077 = vmatpush1.msra.mxu0 %v2918
            %3078 = vmatprep.subr.mxu0 0.0
            %3079 = vmatpush1.msra.mxu0 %v2919
            %3080 = vmatprep.mubr.f32.mxu0 %v2881
            %3081 = vmatmul.mubr.f32.gmra.mrb[0].mxu0 %v2880
            %v3082 = vpop.f32.mrb[0].mxu0
            %v3083 = vadd.f32 0.0, %v3082
            %v3084 = vpop.f32.mrb[0].mxu0
            %3085 = vdwg.mxu0
            %3086 = vmatprep.subr.mxu0 0.0
            %3087 = vmatpush1.msra.mxu0 %v2920
            %3088 = vmatprep.subr.mxu0 0.0
            %3089 = vmatpush1.msra.mxu0 %v2921
            %3090 = vmatprep.subr.mxu0 0.0
            %3091 = vmatpush1.msra.mxu0 %v2922
            %3092 = vmatprep.subr.mxu0 0.0
            %3093 = vmatpush1.msra.mxu0 %v2923
            %3094 = vmatprep.subr.mxu0 0.0
            %3095 = vmatpush1.msra.mxu0 %v2924
            %3096 = vmatprep.subr.mxu0 0.0
            %3097 = vmatpush1.msra.mxu0 %v2925
            %3098 = vmatprep.subr.mxu0 0.0
            %3099 = vmatpush1.msra.mxu0 %v2926
            %3100 = vmatprep.subr.mxu0 0.0
            %3101 = vmatpush1.msra.mxu0 %v2927
            %3102 = vmatprep.subr.mxu0 0.0
            %3103 = vmatpush1.msra.mxu0 %v2928
            %3104 = vmatprep.subr.mxu0 0.0
            %3105 = vmatpush1.msra.mxu0 %v2929
            %3106 = vmatprep.subr.mxu0 0.0
            %3107 = vmatpush1.msra.mxu0 %v2930
            %3108 = vmatprep.subr.mxu0 0.0
            %3109 = vmatpush1.msra.mxu0 %v2931
            %3110 = vmatprep.subr.mxu0 0.0
            %3111 = vmatpush1.msra.mxu0 %v2932
            %3112 = vmatprep.subr.mxu0 0.0
            %3113 = vmatpush1.msra.mxu0 %v2933
            %3114 = vmatprep.subr.mxu0 0.0
            %3115 = vmatpush1.msra.mxu0 %v2934
            %3116 = vmatprep.subr.mxu0 0.0
            %3117 = vmatpush1.msra.mxu0 %v2935
            %3118 = vmatprep.subr.mxu0 0.0
            %3119 = vmatpush1.msra.mxu0 %v2936
            %3120 = vmatprep.subr.mxu0 0.0
            %3121 = vmatpush1.msra.mxu0 %v2937
            %3122 = vmatprep.subr.mxu0 0.0
            %3123 = vmatpush1.msra.mxu0 %v2938
            %3124 = vmatprep.subr.mxu0 0.0
            %3125 = vmatpush1.msra.mxu0 %v2939
            %3126 = vmatprep.subr.mxu0 0.0
            %3127 = vmatpush1.msra.mxu0 %v2940
            %3128 = vmatprep.subr.mxu0 0.0
            %3129 = vmatpush1.msra.mxu0 %v2941
            %3130 = vmatprep.subr.mxu0 0.0
            %3131 = vmatpush1.msra.mxu0 %v2942
            %3132 = vmatprep.subr.mxu0 0.0
            %3133 = vmatpush1.msra.mxu0 %v2943
            %3134 = vmatprep.subr.mxu0 0.0
            %3135 = vmatpush1.msra.mxu0 %v2944
            %3136 = vmatprep.subr.mxu0 0.0
            %3137 = vmatpush1.msra.mxu0 %v2945
            %3138 = vmatprep.subr.mxu0 0.0
            %3139 = vmatpush1.msra.mxu0 %v2946
            %3140 = vmatprep.subr.mxu0 0.0
            %3141 = vmatpush1.msra.mxu0 %v2947
            %3142 = vmatprep.subr.mxu0 0.0
            %3143 = vmatpush1.msra.mxu0 %v2948
            %3144 = vmatprep.subr.mxu0 0.0
            %3145 = vmatpush1.msra.mxu0 %v2949
            %3146 = vmatprep.subr.mxu0 0.0
            %3147 = vmatpush1.msra.mxu0 %v2950
            %3148 = vmatprep.subr.mxu0 0.0
            %3149 = vmatpush1.msra.mxu0 %v2951
            %3150 = vmatprep.mubr.f32.mxu0 %v2883
            %3151 = vmatmul.mubr.f32.gmra.mrb[0].mxu0 %v2882
            %v3152 = vpop.f32.mrb[0].mxu0
            %v3153 = vadd.f32 %v3083, %v3152
            %v3154 = vpop.f32.mrb[0].mxu0
            %3155 = vdwg.mxu0
            %3156 = vmatprep.subr.mxu0 0.0
            %3157 = vmatpush1.msra.mxu0 %v2952
            %3158 = vmatprep.subr.mxu0 0.0
            %3159 = vmatpush1.msra.mxu0 %v2953
            %3160 = vmatprep.subr.mxu0 0.0
            %3161 = vmatpush1.msra.mxu0 %v2954
            %3162 = vmatprep.subr.mxu0 0.0
            %3163 = vmatpush1.msra.mxu0 %v2955
            %3164 = vmatprep.subr.mxu0 0.0
            %3165 = vmatpush1.msra.mxu0 %v2956
            %3166 = vmatprep.subr.mxu0 0.0
            %3167 = vmatpush1.msra.mxu0 %v2957
            %3168 = vmatprep.subr.mxu0 0.0
            %3169 = vmatpush1.msra.mxu0 %v2958
            %3170 = vmatprep.subr.mxu0 0.0
            %3171 = vmatpush1.msra.mxu0 %v2959
            %3172 = vmatprep.subr.mxu0 0.0
            %3173 = vmatpush1.msra.mxu0 %v2960
            %3174 = vmatprep.subr.mxu0 0.0
            %3175 = vmatpush1.msra.mxu0 %v2961
            %3176 = vmatprep.subr.mxu0 0.0
            %3177 = vmatpush1.msra.mxu0 %v2962
            %3178 = vmatprep.subr.mxu0 0.0
            %3179 = vmatpush1.msra.mxu0 %v2963
            %3180 = vmatprep.subr.mxu0 0.0
            %3181 = vmatpush1.msra.mxu0 %v2964
            %3182 = vmatprep.subr.mxu0 0.0
            %3183 = vmatpush1.msra.mxu0 %v2965
            %3184 = vmatprep.subr.mxu0 0.0
            %3185 = vmatpush1.msra.mxu0 %v2966
            %3186 = vmatprep.subr.mxu0 0.0
            %3187 = vmatpush1.msra.mxu0 %v2967
            %3188 = vmatprep.subr.mxu0 0.0
            %3189 = vmatpush1.msra.mxu0 %v2968
            %3190 = vmatprep.subr.mxu0 0.0
            %3191 = vmatpush1.msra.mxu0 %v2969
            %3192 = vmatprep.subr.mxu0 0.0
            %3193 = vmatpush1.msra.mxu0 %v2970
            %3194 = vmatprep.subr.mxu0 0.0
            %3195 = vmatpush1.msra.mxu0 %v2971
            %3196 = vmatprep.subr.mxu0 0.0
            %3197 = vmatpush1.msra.mxu0 %v2972
            %3198 = vmatprep.subr.mxu0 0.0
            %3199 = vmatpush1.msra.mxu0 %v2973
            %3200 = vmatprep.subr.mxu0 0.0
            %3201 = vmatpush1.msra.mxu0 %v2974
            %3202 = vmatprep.subr.mxu0 0.0
            %3203 = vmatpush1.msra.mxu0 %v2975
            %3204 = vmatprep.subr.mxu0 0.0
            %3205 = vmatpush1.msra.mxu0 %v2976
            %3206 = vmatprep.subr.mxu0 0.0
            %3207 = vmatpush1.msra.mxu0 %v2977
            %3208 = vmatprep.subr.mxu0 0.0
            %3209 = vmatpush1.msra.mxu0 %v2978
            %3210 = vmatprep.subr.mxu0 0.0
            %3211 = vmatpush1.msra.mxu0 %v2979
            %3212 = vmatprep.subr.mxu0 0.0
            %3213 = vmatpush1.msra.mxu0 %v2980
            %3214 = vmatprep.subr.mxu0 0.0
            %3215 = vmatpush1.msra.mxu0 %v2981
            %3216 = vmatprep.subr.mxu0 0.0
            %3217 = vmatpush1.msra.mxu0 %v2982
            %3218 = vmatprep.subr.mxu0 0.0
            %3219 = vmatpush1.msra.mxu0 %v2983
            %3220 = vmatprep.mubr.f32.mxu0 %v2885
            %3221 = vmatmul.mubr.f32.gmra.mrb[0].mxu0 %v2884
            %v3222 = vpop.f32.mrb[0].mxu0
            %v3223 = vadd.f32 %v3153, %v3222
            %v3224 = vpop.f32.mrb[0].mxu0
            %3225 = vdwg.mxu0
            %3226 = vmatprep.subr.mxu0 0.0
            %3227 = vmatpush1.msra.mxu0 %v2984
            %3228 = vmatprep.subr.mxu0 0.0
            %3229 = vmatpush1.msra.mxu0 %v2985
            %3230 = vmatprep.subr.mxu0 0.0
            %3231 = vmatpush1.msra.mxu0 %v2986
            %3232 = vmatprep.subr.mxu0 0.0
            %3233 = vmatpush1.msra.mxu0 %v2987
            %3234 = vmatprep.subr.mxu0 0.0
            %3235 = vmatpush1.msra.mxu0 %v2988
            %3236 = vmatprep.subr.mxu0 0.0
            %3237 = vmatpush1.msra.mxu0 %v2989
            %3238 = vmatprep.subr.mxu0 0.0
            %3239 = vmatpush1.msra.mxu0 %v2990
            %3240 = vmatprep.subr.mxu0 0.0
            %3241 = vmatpush1.msra.mxu0 %v2991
            %3242 = vmatprep.subr.mxu0 0.0
            %3243 = vmatpush1.msra.mxu0 %v2992
            %3244 = vmatprep.subr.mxu0 0.0
            %3245 = vmatpush1.msra.mxu0 %v2993
            %3246 = vmatprep.subr.mxu0 0.0
            %3247 = vmatpush1.msra.mxu0 %v2994
            %3248 = vmatprep.subr.mxu0 0.0
            %3249 = vmatpush1.msra.mxu0 %v2995
            %3250 = vmatprep.subr.mxu0 0.0
            %3251 = vmatpush1.msra.mxu0 %v2996
            %3252 = vmatprep.subr.mxu0 0.0
            %3253 = vmatpush1.msra.mxu0 %v2997
            %3254 = vmatprep.subr.mxu0 0.0
            %3255 = vmatpush1.msra.mxu0 %v2998
            %3256 = vmatprep.subr.mxu0 0.0
            %3257 = vmatpush1.msra.mxu0 %v2999
            %3258 = vmatprep.subr.mxu0 0.0
            %3259 = vmatpush1.msra.mxu0 %v3000
            %3260 = vmatprep.subr.mxu0 0.0
            %3261 = vmatpush1.msra.mxu0 %v3001
            %3262 = vmatprep.subr.mxu0 0.0
            %3263 = vmatpush1.msra.mxu0 %v3002
            %3264 = vmatprep.subr.mxu0 0.0
            %3265 = vmatpush1.msra.mxu0 %v3003
            %3266 = vmatprep.subr.mxu0 0.0
            %3267 = vmatpush1.msra.mxu0 %v3004
            %3268 = vmatprep.subr.mxu0 0.0
            %3269 = vmatpush1.msra.mxu0 %v3005
            %3270 = vmatprep.subr.mxu0 0.0
            %3271 = vmatpush1.msra.mxu0 %v3006
            %3272 = vmatprep.subr.mxu0 0.0
            %3273 = vmatpush1.msra.mxu0 %v3007
            %3274 = vmatprep.subr.mxu0 0.0
            %3275 = vmatpush1.msra.mxu0 %v3008
            %3276 = vmatprep.subr.mxu0 0.0
            %3277 = vmatpush1.msra.mxu0 %v3009
            %3278 = vmatprep.subr.mxu0 0.0
            %3279 = vmatpush1.msra.mxu0 %v3010
            %3280 = vmatprep.subr.mxu0 0.0
            %3281 = vmatpush1.msra.mxu0 %v3011
            %3282 = vmatprep.subr.mxu0 0.0
            %3283 = vmatpush1.msra.mxu0 %v3012
            %3284 = vmatprep.subr.mxu0 0.0
            %3285 = vmatpush1.msra.mxu0 %v3013
            %3286 = vmatprep.subr.mxu0 0.0
            %3287 = vmatpush1.msra.mxu0 %v3014
            %3288 = vmatprep.subr.mxu0 0.0
            %3289 = vmatpush1.msra.mxu0 %v3015
            %3290 = vmatprep.mubr.f32.mxu0 %v2887
            %3291 = vmatmul.mubr.f32.gmra.mrb[0].mxu0 %v2886
            %v3292 = vpop.f32.mrb[0].mxu0
            %v3293 = vadd.f32 %v3223, %v3292
            %v3294 = vpop.f32.mrb[0].mxu0
            %3295 = vdwg.mxu0
            %v3296 = vld [vmem:[%s6] sm:$0xff]
            %v3297 = vld [vmem:[%s6 + $0x8] sm:$0xff]
            %v3298 = vld [vmem:[%s6 + $0x10] sm:$0xff]
            %v3299 = vld [vmem:[%s6 + $0x18] sm:$0xff]
            %v3300 = vld [vmem:[%s6 + $0x20] sm:$0xff]
            %v3301 = vld [vmem:[%s6 + $0x28] sm:$0xff]
            %v3302 = vld [vmem:[%s6 + $0x30] sm:$0xff]
            %v3303 = vld [vmem:[%s6 + $0x38] sm:$0xff]
            %v3304 = vld [vmem:[%s6 + $0x40] sm:$0x3]
            %v3305 = vld [vmem:[%s6 + $0x48] sm:$0x3]
            %v3306 = vld [vmem:[%s6 + $0x50] sm:$0x3]
            %v3307 = vld [vmem:[%s6 + $0x58] sm:$0x3]
            %v3308 = vld [vmem:[%s6 + $0x60] sm:$0x3]
            %v3309 = vld [vmem:[%s6 + $0x68] sm:$0x3]
            %v3310 = vld [vmem:[%s6 + $0x70] sm:$0x3]
            %v3311 = vld [vmem:[%s6 + $0x78] sm:$0x3]
            %v3312 = vld [vmem:[#allocation11] sm:$0xff]
            %v3314 = vlaneseq
            %v3315 = vshrl.u32 %v3314, 7
            %v3316 = vsub.s32 0, %v3315
            %v3317 = vrot.slane %v3312, %v3316
            %v3318 = vlaneseq
            %v3319 = vshrl.u32 %v3318, 7
            %v3320 = vsub.s32 1, %v3319
            %v3321 = vrot.slane %v3312, %v3320
            %v3322 = vlaneseq
            %v3323 = vshrl.u32 %v3322, 7
            %v3324 = vsub.s32 2, %v3323
            %v3325 = vrot.slane %v3312, %v3324
            %v3326 = vlaneseq
            %v3327 = vshrl.u32 %v3326, 7
            %v3328 = vsub.s32 3, %v3327
            %v3329 = vrot.slane %v3312, %v3328
            %v3330 = vlaneseq
            %v3331 = vshrl.u32 %v3330, 7
            %v3332 = vsub.s32 4, %v3331
            %v3333 = vrot.slane %v3312, %v3332
            %v3334 = vlaneseq
            %v3335 = vshrl.u32 %v3334, 7
            %v3336 = vsub.s32 5, %v3335
            %v3337 = vrot.slane %v3312, %v3336
            %v3338 = vlaneseq
            %v3339 = vshrl.u32 %v3338, 7
            %v3340 = vsub.s32 6, %v3339
            %v3341 = vrot.slane %v3312, %v3340
            %v3342 = vlaneseq
            %v3343 = vshrl.u32 %v3342, 7
            %v3344 = vsub.s32 7, %v3343
            %v3345 = vrot.slane %v3312, %v3344
            %vm3354 = vcmask 80896
            %v3356 = vsel %vm3354, %v3293, 0
            %vm3358 = vcmask 1041408
            %v3360 = vsel %vm3358, %v3304, 0
            %v3363 = vsel %vm3358, %v3305, 0
            %v3366 = vsel %vm3358, %v3306, 0
            %v3369 = vsel %vm3358, %v3307, 0
            %v3372 = vsel %vm3358, %v3308, 0
            %v3375 = vsel %vm3358, %v3309, 0
            %v3378 = vsel %vm3358, %v3310, 0
            %v3381 = vsel %vm3358, %v3311, 0
            %3383 = vmatprep.subr.mxu0 %v3297
            %3384 = vmatpush1.msra.mxu0 %v3296
            %3385 = vmatprep.subr.mxu0 %v3363
            %3386 = vmatpush1.msra.mxu0 %v3360
            %3387 = vmatprep.subr.mxu0 0.0
            %3388 = vmatpush1.msra.mxu0 0.0
            %3389 = vmatprep.subr.mxu0 0.0
            %3390 = vmatpush1.msra.mxu0 0.0
            %3391 = vmatprep.subr.mxu0 0.0
            %3392 = vmatpush1.msra.mxu0 0.0
            %3393 = vmatprep.subr.mxu0 0.0
            %3394 = vmatpush1.msra.mxu0 0.0
            %3395 = vmatprep.subr.mxu0 0.0
            %3396 = vmatpush1.msra.mxu0 0.0
            %3397 = vmatprep.subr.mxu0 0.0
            %3398 = vmatpush1.msra.mxu0 0.0
            %3399 = vmatprep.subr.mxu0 0.0
            %3400 = vmatpush1.msra.mxu0 0.0
            %3401 = vmatprep.subr.mxu0 0.0
            %3402 = vmatpush1.msra.mxu0 0.0
            %3403 = vmatprep.subr.mxu0 0.0
            %3404 = vmatpush1.msra.mxu0 0.0
            %3405 = vmatprep.subr.mxu0 0.0
            %3406 = vmatpush1.msra.mxu0 0.0
            %3407 = vmatprep.subr.mxu0 0.0
            %3408 = vmatpush1.msra.mxu0 0.0
            %3409 = vmatprep.subr.mxu0 0.0
            %3410 = vmatpush1.msra.mxu0 0.0
            %3411 = vmatprep.subr.mxu0 0.0
            %3412 = vmatpush1.msra.mxu0 0.0
            %3413 = vmatprep.subr.mxu0 0.0
            %3414 = vmatpush1.msra.mxu0 0.0
            %3415 = vmatprep.subr.mxu0 0.0
            %3416 = vmatpush1.msra.mxu0 0.0
            %3417 = vmatprep.subr.mxu0 0.0
            %3418 = vmatpush1.msra.mxu0 0.0
            %3419 = vmatprep.subr.mxu0 0.0
            %3420 = vmatpush1.msra.mxu0 0.0
            %3421 = vmatprep.subr.mxu0 0.0
            %3422 = vmatpush1.msra.mxu0 0.0
            %3423 = vmatprep.subr.mxu0 0.0
            %3424 = vmatpush1.msra.mxu0 0.0
            %3425 = vmatprep.subr.mxu0 0.0
            %3426 = vmatpush1.msra.mxu0 0.0
            %3427 = vmatprep.subr.mxu0 0.0
            %3428 = vmatpush1.msra.mxu0 0.0
            %3429 = vmatprep.subr.mxu0 0.0
            %3430 = vmatpush1.msra.mxu0 0.0
            %3431 = vmatprep.subr.mxu0 0.0
            %3432 = vmatpush1.msra.mxu0 0.0
            %3433 = vmatprep.subr.mxu0 0.0
            %3434 = vmatpush1.msra.mxu0 0.0
            %3435 = vmatprep.subr.mxu0 0.0
            %3436 = vmatpush1.msra.mxu0 0.0
            %3437 = vmatprep.subr.mxu0 0.0
            %3438 = vmatpush1.msra.mxu0 0.0
            %3439 = vmatprep.subr.mxu0 0.0
            %3440 = vmatpush1.msra.mxu0 0.0
            %3441 = vmatprep.subr.mxu0 0.0
            %3442 = vmatpush1.msra.mxu0 0.0
            %3443 = vmatprep.subr.mxu0 0.0
            %3444 = vmatpush1.msra.mxu0 0.0
            %3445 = vmatprep.subr.mxu0 0.0
            %3446 = vmatpush1.msra.mxu0 0.0
            %3447 = vmatprep.mubr.f32.mxu0 0.0
            %3448 = vmatmul.mubr.f32.gmra.mrb[0].mxu0 %v3356
            %v3449 = vpop.f32.mrb[0].mxu0
            %v3450 = vadd.f32 %v3317, %v3449
            %v3451 = vpop.f32.mrb[0].mxu0
            %v3452 = vadd.f32 %v3321, %v3451
            %3453 = vdwg.mxu0
            %3454 = vmatprep.subr.mxu0 %v3299
            %3455 = vmatpush1.msra.mxu0 %v3298
            %3456 = vmatprep.subr.mxu0 %v3369
            %3457 = vmatpush1.msra.mxu0 %v3366
            %3458 = vmatprep.subr.mxu0 0.0
            %3459 = vmatpush1.msra.mxu0 0.0
            %3460 = vmatprep.subr.mxu0 0.0
            %3461 = vmatpush1.msra.mxu0 0.0
            %3462 = vmatprep.subr.mxu0 0.0
            %3463 = vmatpush1.msra.mxu0 0.0
            %3464 = vmatprep.subr.mxu0 0.0
            %3465 = vmatpush1.msra.mxu0 0.0
            %3466 = vmatprep.subr.mxu0 0.0
            %3467 = vmatpush1.msra.mxu0 0.0
            %3468 = vmatprep.subr.mxu0 0.0
            %3469 = vmatpush1.msra.mxu0 0.0
            %3470 = vmatprep.subr.mxu0 0.0
            %3471 = vmatpush1.msra.mxu0 0.0
            %3472 = vmatprep.subr.mxu0 0.0
            %3473 = vmatpush1.msra.mxu0 0.0
            %3474 = vmatprep.subr.mxu0 0.0
            %3475 = vmatpush1.msra.mxu0 0.0
            %3476 = vmatprep.subr.mxu0 0.0
            %3477 = vmatpush1.msra.mxu0 0.0
            %3478 = vmatprep.subr.mxu0 0.0
            %3479 = vmatpush1.msra.mxu0 0.0
            %3480 = vmatprep.subr.mxu0 0.0
            %3481 = vmatpush1.msra.mxu0 0.0
            %3482 = vmatprep.subr.mxu0 0.0
            %3483 = vmatpush1.msra.mxu0 0.0
            %3484 = vmatprep.subr.mxu0 0.0
            %3485 = vmatpush1.msra.mxu0 0.0
            %3486 = vmatprep.subr.mxu0 0.0
            %3487 = vmatpush1.msra.mxu0 0.0
            %3488 = vmatprep.subr.mxu0 0.0
            %3489 = vmatpush1.msra.mxu0 0.0
            %3490 = vmatprep.subr.mxu0 0.0
            %3491 = vmatpush1.msra.mxu0 0.0
            %3492 = vmatprep.subr.mxu0 0.0
            %3493 = vmatpush1.msra.mxu0 0.0
            %3494 = vmatprep.subr.mxu0 0.0
            %3495 = vmatpush1.msra.mxu0 0.0
            %3496 = vmatprep.subr.mxu0 0.0
            %3497 = vmatpush1.msra.mxu0 0.0
            %3498 = vmatprep.subr.mxu0 0.0
            %3499 = vmatpush1.msra.mxu0 0.0
            %3500 = vmatprep.subr.mxu0 0.0
            %3501 = vmatpush1.msra.mxu0 0.0
            %3502 = vmatprep.subr.mxu0 0.0
            %3503 = vmatpush1.msra.mxu0 0.0
            %3504 = vmatprep.subr.mxu0 0.0
            %3505 = vmatpush1.msra.mxu0 0.0
            %3506 = vmatprep.subr.mxu0 0.0
            %3507 = vmatpush1.msra.mxu0 0.0
            %3508 = vmatprep.subr.mxu0 0.0
            %3509 = vmatpush1.msra.mxu0 0.0
            %3510 = vmatprep.subr.mxu0 0.0
            %3511 = vmatpush1.msra.mxu0 0.0
            %3512 = vmatprep.subr.mxu0 0.0
            %3513 = vmatpush1.msra.mxu0 0.0
            %3514 = vmatprep.subr.mxu0 0.0
            %3515 = vmatpush1.msra.mxu0 0.0
            %3516 = vmatprep.subr.mxu0 0.0
            %3517 = vmatpush1.msra.mxu0 0.0
            %3518 = vmatprep.mubr.f32.mxu0 0.0
            %3519 = vmatmul.mubr.f32.gmra.mrb[0].mxu0 %v3356
            %v3520 = vpop.f32.mrb[0].mxu0
            %v3521 = vadd.f32 %v3325, %v3520
            %v3522 = vpop.f32.mrb[0].mxu0
            %v3523 = vadd.f32 %v3329, %v3522
            %3524 = vdwg.mxu0
            %3525 = vmatprep.subr.mxu0 %v3301
            %3526 = vmatpush1.msra.mxu0 %v3300
            %3527 = vmatprep.subr.mxu0 %v3375
            %3528 = vmatpush1.msra.mxu0 %v3372
            %3529 = vmatprep.subr.mxu0 0.0
            %3530 = vmatpush1.msra.mxu0 0.0
            %3531 = vmatprep.subr.mxu0 0.0
            %3532 = vmatpush1.msra.mxu0 0.0
            %3533 = vmatprep.subr.mxu0 0.0
            %3534 = vmatpush1.msra.mxu0 0.0
            %3535 = vmatprep.subr.mxu0 0.0
            %3536 = vmatpush1.msra.mxu0 0.0
            %3537 = vmatprep.subr.mxu0 0.0
            %3538 = vmatpush1.msra.mxu0 0.0
            %3539 = vmatprep.subr.mxu0 0.0
            %3540 = vmatpush1.msra.mxu0 0.0
            %3541 = vmatprep.subr.mxu0 0.0
            %3542 = vmatpush1.msra.mxu0 0.0
            %3543 = vmatprep.subr.mxu0 0.0
            %3544 = vmatpush1.msra.mxu0 0.0
            %3545 = vmatprep.subr.mxu0 0.0
            %3546 = vmatpush1.msra.mxu0 0.0
            %3547 = vmatprep.subr.mxu0 0.0
            %3548 = vmatpush1.msra.mxu0 0.0
            %3549 = vmatprep.subr.mxu0 0.0
            %3550 = vmatpush1.msra.mxu0 0.0
            %3551 = vmatprep.subr.mxu0 0.0
            %3552 = vmatpush1.msra.mxu0 0.0
            %3553 = vmatprep.subr.mxu0 0.0
            %3554 = vmatpush1.msra.mxu0 0.0
            %3555 = vmatprep.subr.mxu0 0.0
            %3556 = vmatpush1.msra.mxu0 0.0
            %3557 = vmatprep.subr.mxu0 0.0
            %3558 = vmatpush1.msra.mxu0 0.0
            %3559 = vmatprep.subr.mxu0 0.0
            %3560 = vmatpush1.msra.mxu0 0.0
            %3561 = vmatprep.subr.mxu0 0.0
            %3562 = vmatpush1.msra.mxu0 0.0
            %3563 = vmatprep.subr.mxu0 0.0
            %3564 = vmatpush1.msra.mxu0 0.0
            %3565 = vmatprep.subr.mxu0 0.0
            %3566 = vmatpush1.msra.mxu0 0.0
            %3567 = vmatprep.subr.mxu0 0.0
            %3568 = vmatpush1.msra.mxu0 0.0
            %3569 = vmatprep.subr.mxu0 0.0
            %3570 = vmatpush1.msra.mxu0 0.0
            %3571 = vmatprep.subr.mxu0 0.0
            %3572 = vmatpush1.msra.mxu0 0.0
            %3573 = vmatprep.subr.mxu0 0.0
            %3574 = vmatpush1.msra.mxu0 0.0
            %3575 = vmatprep.subr.mxu0 0.0
            %3576 = vmatpush1.msra.mxu0 0.0
            %3577 = vmatprep.subr.mxu0 0.0
            %3578 = vmatpush1.msra.mxu0 0.0
            %3579 = vmatprep.subr.mxu0 0.0
            %3580 = vmatpush1.msra.mxu0 0.0
            %3581 = vmatprep.subr.mxu0 0.0
            %3582 = vmatpush1.msra.mxu0 0.0
            %3583 = vmatprep.subr.mxu0 0.0
            %3584 = vmatpush1.msra.mxu0 0.0
            %3585 = vmatprep.subr.mxu0 0.0
            %3586 = vmatpush1.msra.mxu0 0.0
            %3587 = vmatprep.subr.mxu0 0.0
            %3588 = vmatpush1.msra.mxu0 0.0
            %3589 = vmatprep.mubr.f32.mxu0 0.0
            %3590 = vmatmul.mubr.f32.gmra.mrb[0].mxu0 %v3356
            %v3591 = vpop.f32.mrb[0].mxu0
            %v3592 = vadd.f32 %v3333, %v3591
            %v3593 = vpop.f32.mrb[0].mxu0
            %v3594 = vadd.f32 %v3337, %v3593
            %3595 = vdwg.mxu0
            %3596 = vmatprep.subr.mxu0 %v3303
            %3597 = vmatpush1.msra.mxu0 %v3302
            %3598 = vmatprep.subr.mxu0 %v3381
            %3599 = vmatpush1.msra.mxu0 %v3378
            %3600 = vmatprep.subr.mxu0 0.0
            %3601 = vmatpush1.msra.mxu0 0.0
            %3602 = vmatprep.subr.mxu0 0.0
            %3603 = vmatpush1.msra.mxu0 0.0
            %3604 = vmatprep.subr.mxu0 0.0
            %3605 = vmatpush1.msra.mxu0 0.0
            %3606 = vmatprep.subr.mxu0 0.0
            %3607 = vmatpush1.msra.mxu0 0.0
            %3608 = vmatprep.subr.mxu0 0.0
            %3609 = vmatpush1.msra.mxu0 0.0
            %3610 = vmatprep.subr.mxu0 0.0
            %3611 = vmatpush1.msra.mxu0 0.0
            %3612 = vmatprep.subr.mxu0 0.0
            %3613 = vmatpush1.msra.mxu0 0.0
            %3614 = vmatprep.subr.mxu0 0.0
            %3615 = vmatpush1.msra.mxu0 0.0
            %3616 = vmatprep.subr.mxu0 0.0
            %3617 = vmatpush1.msra.mxu0 0.0
            %3618 = vmatprep.subr.mxu0 0.0
            %3619 = vmatpush1.msra.mxu0 0.0
            %3620 = vmatprep.subr.mxu0 0.0
            %3621 = vmatpush1.msra.mxu0 0.0
            %3622 = vmatprep.subr.mxu0 0.0
            %3623 = vmatpush1.msra.mxu0 0.0
            %3624 = vmatprep.subr.mxu0 0.0
            %3625 = vmatpush1.msra.mxu0 0.0
            %3626 = vmatprep.subr.mxu0 0.0
            %3627 = vmatpush1.msra.mxu0 0.0
            %3628 = vmatprep.subr.mxu0 0.0
            %3629 = vmatpush1.msra.mxu0 0.0
            %3630 = vmatprep.subr.mxu0 0.0
            %3631 = vmatpush1.msra.mxu0 0.0
            %3632 = vmatprep.subr.mxu0 0.0
            %3633 = vmatpush1.msra.mxu0 0.0
            %3634 = vmatprep.subr.mxu0 0.0
            %3635 = vmatpush1.msra.mxu0 0.0
            %3636 = vmatprep.subr.mxu0 0.0
            %3637 = vmatpush1.msra.mxu0 0.0
            %3638 = vmatprep.subr.mxu0 0.0
            %3639 = vmatpush1.msra.mxu0 0.0
            %3640 = vmatprep.subr.mxu0 0.0
            %3641 = vmatpush1.msra.mxu0 0.0
            %3642 = vmatprep.subr.mxu0 0.0
            %3643 = vmatpush1.msra.mxu0 0.0
            %3644 = vmatprep.subr.mxu0 0.0
            %3645 = vmatpush1.msra.mxu0 0.0
            %3646 = vmatprep.subr.mxu0 0.0
            %3647 = vmatpush1.msra.mxu0 0.0
            %3648 = vmatprep.subr.mxu0 0.0
            %3649 = vmatpush1.msra.mxu0 0.0
            %3650 = vmatprep.subr.mxu0 0.0
            %3651 = vmatpush1.msra.mxu0 0.0
            %3652 = vmatprep.subr.mxu0 0.0
            %3653 = vmatpush1.msra.mxu0 0.0
            %3654 = vmatprep.subr.mxu0 0.0
            %3655 = vmatpush1.msra.mxu0 0.0
            %3656 = vmatprep.subr.mxu0 0.0
            %3657 = vmatpush1.msra.mxu0 0.0
            %3658 = vmatprep.subr.mxu0 0.0
            %3659 = vmatpush1.msra.mxu0 0.0
            %3660 = vmatprep.mubr.f32.mxu0 0.0
            %3661 = vmatmul.mubr.f32.gmra.mrb[0].mxu0 %v3356
            %v3662 = vpop.f32.mrb[0].mxu0
            %v3663 = vadd.f32 %v3341, %v3662
            %v3664 = vpop.f32.mrb[0].mxu0
            %v3665 = vadd.f32 %v3345, %v3664
            %3666 = vdwg.mxu0
            %v3667 = vmax.f32 %v3450, 0.0
            %v3668 = vmax.f32 %v3452, 0.0
            %v3669 = vmax.f32 %v3521, 0.0
            %v3670 = vmax.f32 %v3523, 0.0
            %v3671 = vmax.f32 %v3592, 0.0
            %v3672 = vmax.f32 %v3594, 0.0
            %v3673 = vmax.f32 %v3663, 0.0
            %v3674 = vmax.f32 %v3665, 0.0
            %3675 = vst [vmem:[#allocation3] sm:$0xff] %v3667
            %3676 = vst [vmem:[#allocation3 + $0x8] sm:$0xff] %v3668
            %3677 = vst [vmem:[#allocation3 + $0x10] sm:$0xff] %v3669
            %3678 = vst [vmem:[#allocation3 + $0x18] sm:$0xff] %v3670
            %3679 = vst [vmem:[#allocation3 + $0x20] sm:$0xff] %v3671
            %3680 = vst [vmem:[#allocation3 + $0x28] sm:$0xff] %v3672
            %3681 = vst [vmem:[#allocation3 + $0x30] sm:$0xff] %v3673
            %3682 = vst [vmem:[#allocation3 + $0x38] sm:$0xff] %v3674
            %s3683 = scalar_lea.vmem %s6, 128
            %v3684 = vld [vmem:[%s3683] sm:$0xff]
            %v3685 = vld [vmem:[%s3683 + $0x8] sm:$0xff]
            %v3686 = vld [vmem:[%s3683 + $0x10] sm:$0xff]
            %v3687 = vld [vmem:[%s3683 + $0x18] sm:$0xff]
            %v3688 = vld [vmem:[%s3683 + $0x20] sm:$0xff]
            %v3689 = vld [vmem:[%s3683 + $0x28] sm:$0xff]
            %v3690 = vld [vmem:[%s3683 + $0x30] sm:$0xff]
            %v3691 = vld [vmem:[%s3683 + $0x38] sm:$0xff]
            %v3692 = vld [vmem:[%s3683 + $0x40] sm:$0x3]
            %v3693 = vld [vmem:[%s3683 + $0x48] sm:$0x3]
            %v3694 = vld [vmem:[%s3683 + $0x50] sm:$0x3]
            %v3695 = vld [vmem:[%s3683 + $0x58] sm:$0x3]
            %v3696 = vld [vmem:[%s3683 + $0x60] sm:$0x3]
            %v3697 = vld [vmem:[%s3683 + $0x68] sm:$0x3]
            %v3698 = vld [vmem:[%s3683 + $0x70] sm:$0x3]
            %v3699 = vld [vmem:[%s3683 + $0x78] sm:$0x3]
            %s3700 = scalar_lea.vmem [#allocation11], 8
            %v3701 = vld [vmem:[%s3700] sm:$0xff]
            %v3703 = vlaneseq
            %v3704 = vshrl.u32 %v3703, 7
            %v3705 = vsub.s32 0, %v3704
            %v3706 = vrot.slane %v3701, %v3705
            %v3707 = vlaneseq
            %v3708 = vshrl.u32 %v3707, 7
            %v3709 = vsub.s32 1, %v3708
            %v3710 = vrot.slane %v3701, %v3709
            %v3711 = vlaneseq
            %v3712 = vshrl.u32 %v3711, 7
            %v3713 = vsub.s32 2, %v3712
            %v3714 = vrot.slane %v3701, %v3713
            %v3715 = vlaneseq
            %v3716 = vshrl.u32 %v3715, 7
            %v3717 = vsub.s32 3, %v3716
            %v3718 = vrot.slane %v3701, %v3717
            %v3719 = vlaneseq
            %v3720 = vshrl.u32 %v3719, 7
            %v3721 = vsub.s32 4, %v3720
            %v3722 = vrot.slane %v3701, %v3721
            %v3723 = vlaneseq
            %v3724 = vshrl.u32 %v3723, 7
            %v3725 = vsub.s32 5, %v3724
            %v3726 = vrot.slane %v3701, %v3725
            %v3727 = vlaneseq
            %v3728 = vshrl.u32 %v3727, 7
            %v3729 = vsub.s32 6, %v3728
            %v3730 = vrot.slane %v3701, %v3729
            %v3731 = vlaneseq
            %v3732 = vshrl.u32 %v3731, 7
            %v3733 = vsub.s32 7, %v3732
            %v3734 = vrot.slane %v3701, %v3733
            %v3744 = vsel %vm3358, %v3692, 0
            %v3747 = vsel %vm3358, %v3693, 0
            %v3750 = vsel %vm3358, %v3694, 0
            %v3753 = vsel %vm3358, %v3695, 0
            %v3756 = vsel %vm3358, %v3696, 0
            %v3759 = vsel %vm3358, %v3697, 0
            %v3762 = vsel %vm3358, %v3698, 0
            %v3765 = vsel %vm3358, %v3699, 0
            %3767 = vmatprep.subr.mxu0 %v3685
            %3768 = vmatpush1.msra.mxu0 %v3684
            %3769 = vmatprep.subr.mxu0 %v3747
            %3770 = vmatpush1.msra.mxu0 %v3744
            %3771 = vmatprep.subr.mxu0 0.0
            %3772 = vmatpush1.msra.mxu0 0.0
            %3773 = vmatprep.subr.mxu0 0.0
            %3774 = vmatpush1.msra.mxu0 0.0
            %3775 = vmatprep.subr.mxu0 0.0
            %3776 = vmatpush1.msra.mxu0 0.0
            %3777 = vmatprep.subr.mxu0 0.0
            %3778 = vmatpush1.msra.mxu0 0.0
            %3779 = vmatprep.subr.mxu0 0.0
            %3780 = vmatpush1.msra.mxu0 0.0
            %3781 = vmatprep.subr.mxu0 0.0
            %3782 = vmatpush1.msra.mxu0 0.0
            %3783 = vmatprep.subr.mxu0 0.0
            %3784 = vmatpush1.msra.mxu0 0.0
            %3785 = vmatprep.subr.mxu0 0.0
            %3786 = vmatpush1.msra.mxu0 0.0
            %3787 = vmatprep.subr.mxu0 0.0
            %3788 = vmatpush1.msra.mxu0 0.0
            %3789 = vmatprep.subr.mxu0 0.0
            %3790 = vmatpush1.msra.mxu0 0.0
            %3791 = vmatprep.subr.mxu0 0.0
            %3792 = vmatpush1.msra.mxu0 0.0
            %3793 = vmatprep.subr.mxu0 0.0
            %3794 = vmatpush1.msra.mxu0 0.0
            %3795 = vmatprep.subr.mxu0 0.0
            %3796 = vmatpush1.msra.mxu0 0.0
            %3797 = vmatprep.subr.mxu0 0.0
            %3798 = vmatpush1.msra.mxu0 0.0
            %3799 = vmatprep.subr.mxu0 0.0
            %3800 = vmatpush1.msra.mxu0 0.0
            %3801 = vmatprep.subr.mxu0 0.0
            %3802 = vmatpush1.msra.mxu0 0.0
            %3803 = vmatprep.subr.mxu0 0.0
            %3804 = vmatpush1.msra.mxu0 0.0
            %3805 = vmatprep.subr.mxu0 0.0
            %3806 = vmatpush1.msra.mxu0 0.0
            %3807 = vmatprep.subr.mxu0 0.0
            %3808 = vmatpush1.msra.mxu0 0.0
            %3809 = vmatprep.subr.mxu0 0.0
            %3810 = vmatpush1.msra.mxu0 0.0
            %3811 = vmatprep.subr.mxu0 0.0
            %3812 = vmatpush1.msra.mxu0 0.0
            %3813 = vmatprep.subr.mxu0 0.0
            %3814 = vmatpush1.msra.mxu0 0.0
            %3815 = vmatprep.subr.mxu0 0.0
            %3816 = vmatpush1.msra.mxu0 0.0
            %3817 = vmatprep.subr.mxu0 0.0
            %3818 = vmatpush1.msra.mxu0 0.0
            %3819 = vmatprep.subr.mxu0 0.0
            %3820 = vmatpush1.msra.mxu0 0.0
            %3821 = vmatprep.subr.mxu0 0.0
            %3822 = vmatpush1.msra.mxu0 0.0
            %3823 = vmatprep.subr.mxu0 0.0
            %3824 = vmatpush1.msra.mxu0 0.0
            %3825 = vmatprep.subr.mxu0 0.0
            %3826 = vmatpush1.msra.mxu0 0.0
            %3827 = vmatprep.subr.mxu0 0.0
            %3828 = vmatpush1.msra.mxu0 0.0
            %3829 = vmatprep.subr.mxu0 0.0
            %3830 = vmatpush1.msra.mxu0 0.0
            %3831 = vmatprep.mubr.f32.mxu0 0.0
            %3832 = vmatmul.mubr.f32.gmra.mrb[0].mxu0 %v3356
            %v3833 = vpop.f32.mrb[0].mxu0
            %v3834 = vadd.f32 %v3706, %v3833
            %v3835 = vpop.f32.mrb[0].mxu0
            %v3836 = vadd.f32 %v3710, %v3835
            %3837 = vdwg.mxu0
            %3838 = vmatprep.subr.mxu0 %v3687
            %3839 = vmatpush1.msra.mxu0 %v3686
            %3840 = vmatprep.subr.mxu0 %v3753
            %3841 = vmatpush1.msra.mxu0 %v3750
            %3842 = vmatprep.subr.mxu0 0.0
            %3843 = vmatpush1.msra.mxu0 0.0
            %3844 = vmatprep.subr.mxu0 0.0
            %3845 = vmatpush1.msra.mxu0 0.0
            %3846 = vmatprep.subr.mxu0 0.0
            %3847 = vmatpush1.msra.mxu0 0.0
            %3848 = vmatprep.subr.mxu0 0.0
            %3849 = vmatpush1.msra.mxu0 0.0
            %3850 = vmatprep.subr.mxu0 0.0
            %3851 = vmatpush1.msra.mxu0 0.0
            %3852 = vmatprep.subr.mxu0 0.0
            %3853 = vmatpush1.msra.mxu0 0.0
            %3854 = vmatprep.subr.mxu0 0.0
            %3855 = vmatpush1.msra.mxu0 0.0
            %3856 = vmatprep.subr.mxu0 0.0
            %3857 = vmatpush1.msra.mxu0 0.0
            %3858 = vmatprep.subr.mxu0 0.0
            %3859 = vmatpush1.msra.mxu0 0.0
            %3860 = vmatprep.subr.mxu0 0.0
            %3861 = vmatpush1.msra.mxu0 0.0
            %3862 = vmatprep.subr.mxu0 0.0
            %3863 = vmatpush1.msra.mxu0 0.0
            %3864 = vmatprep.subr.mxu0 0.0
            %3865 = vmatpush1.msra.mxu0 0.0
            %3866 = vmatprep.subr.mxu0 0.0
            %3867 = vmatpush1.msra.mxu0 0.0
            %3868 = vmatprep.subr.mxu0 0.0
            %3869 = vmatpush1.msra.mxu0 0.0
            %3870 = vmatprep.subr.mxu0 0.0
            %3871 = vmatpush1.msra.mxu0 0.0
            %3872 = vmatprep.subr.mxu0 0.0
            %3873 = vmatpush1.msra.mxu0 0.0
            %3874 = vmatprep.subr.mxu0 0.0
            %3875 = vmatpush1.msra.mxu0 0.0
            %3876 = vmatprep.subr.mxu0 0.0
            %3877 = vmatpush1.msra.mxu0 0.0
            %3878 = vmatprep.subr.mxu0 0.0
            %3879 = vmatpush1.msra.mxu0 0.0
            %3880 = vmatprep.subr.mxu0 0.0
            %3881 = vmatpush1.msra.mxu0 0.0
            %3882 = vmatprep.subr.mxu0 0.0
            %3883 = vmatpush1.msra.mxu0 0.0
            %3884 = vmatprep.subr.mxu0 0.0
            %3885 = vmatpush1.msra.mxu0 0.0
            %3886 = vmatprep.subr.mxu0 0.0
            %3887 = vmatpush1.msra.mxu0 0.0
            %3888 = vmatprep.subr.mxu0 0.0
            %3889 = vmatpush1.msra.mxu0 0.0
            %3890 = vmatprep.subr.mxu0 0.0
            %3891 = vmatpush1.msra.mxu0 0.0
            %3892 = vmatprep.subr.mxu0 0.0
            %3893 = vmatpush1.msra.mxu0 0.0
            %3894 = vmatprep.subr.mxu0 0.0
            %3895 = vmatpush1.msra.mxu0 0.0
            %3896 = vmatprep.subr.mxu0 0.0
            %3897 = vmatpush1.msra.mxu0 0.0
            %3898 = vmatprep.subr.mxu0 0.0
            %3899 = vmatpush1.msra.mxu0 0.0
            %3900 = vmatprep.subr.mxu0 0.0
            %3901 = vmatpush1.msra.mxu0 0.0
            %3902 = vmatprep.mubr.f32.mxu0 0.0
            %3903 = vmatmul.mubr.f32.gmra.mrb[0].mxu0 %v3356
            %v3904 = vpop.f32.mrb[0].mxu0
            %v3905 = vadd.f32 %v3714, %v3904
            %v3906 = vpop.f32.mrb[0].mxu0
            %v3907 = vadd.f32 %v3718, %v3906
            %3908 = vdwg.mxu0
            %3909 = vmatprep.subr.mxu0 %v3689
            %3910 = vmatpush1.msra.mxu0 %v3688
            %3911 = vmatprep.subr.mxu0 %v3759
            %3912 = vmatpush1.msra.mxu0 %v3756
            %3913 = vmatprep.subr.mxu0 0.0
            %3914 = vmatpush1.msra.mxu0 0.0
            %3915 = vmatprep.subr.mxu0 0.0
            %3916 = vmatpush1.msra.mxu0 0.0
            %3917 = vmatprep.subr.mxu0 0.0
            %3918 = vmatpush1.msra.mxu0 0.0
            %3919 = vmatprep.subr.mxu0 0.0
            %3920 = vmatpush1.msra.mxu0 0.0
            %3921 = vmatprep.subr.mxu0 0.0
            %3922 = vmatpush1.msra.mxu0 0.0
            %3923 = vmatprep.subr.mxu0 0.0
            %3924 = vmatpush1.msra.mxu0 0.0
            %3925 = vmatprep.subr.mxu0 0.0
            %3926 = vmatpush1.msra.mxu0 0.0
            %3927 = vmatprep.subr.mxu0 0.0
            %3928 = vmatpush1.msra.mxu0 0.0
            %3929 = vmatprep.subr.mxu0 0.0
            %3930 = vmatpush1.msra.mxu0 0.0
            %3931 = vmatprep.subr.mxu0 0.0
            %3932 = vmatpush1.msra.mxu0 0.0
            %3933 = vmatprep.subr.mxu0 0.0
            %3934 = vmatpush1.msra.mxu0 0.0
            %3935 = vmatprep.subr.mxu0 0.0
            %3936 = vmatpush1.msra.mxu0 0.0
            %3937 = vmatprep.subr.mxu0 0.0
            %3938 = vmatpush1.msra.mxu0 0.0
            %3939 = vmatprep.subr.mxu0 0.0
            %3940 = vmatpush1.msra.mxu0 0.0
            %3941 = vmatprep.subr.mxu0 0.0
            %3942 = vmatpush1.msra.mxu0 0.0
            %3943 = vmatprep.subr.mxu0 0.0
            %3944 = vmatpush1.msra.mxu0 0.0
            %3945 = vmatprep.subr.mxu0 0.0
            %3946 = vmatpush1.msra.mxu0 0.0
            %3947 = vmatprep.subr.mxu0 0.0
            %3948 = vmatpush1.msra.mxu0 0.0
            %3949 = vmatprep.subr.mxu0 0.0
            %3950 = vmatpush1.msra.mxu0 0.0
            %3951 = vmatprep.subr.mxu0 0.0
            %3952 = vmatpush1.msra.mxu0 0.0
            %3953 = vmatprep.subr.mxu0 0.0
            %3954 = vmatpush1.msra.mxu0 0.0
            %3955 = vmatprep.subr.mxu0 0.0
            %3956 = vmatpush1.msra.mxu0 0.0
            %3957 = vmatprep.subr.mxu0 0.0
            %3958 = vmatpush1.msra.mxu0 0.0
            %3959 = vmatprep.subr.mxu0 0.0
            %3960 = vmatpush1.msra.mxu0 0.0
            %3961 = vmatprep.subr.mxu0 0.0
            %3962 = vmatpush1.msra.mxu0 0.0
            %3963 = vmatprep.subr.mxu0 0.0
            %3964 = vmatpush1.msra.mxu0 0.0
            %3965 = vmatprep.subr.mxu0 0.0
            %3966 = vmatpush1.msra.mxu0 0.0
            %3967 = vmatprep.subr.mxu0 0.0
            %3968 = vmatpush1.msra.mxu0 0.0
            %3969 = vmatprep.subr.mxu0 0.0
            %3970 = vmatpush1.msra.mxu0 0.0
            %3971 = vmatprep.subr.mxu0 0.0
            %3972 = vmatpush1.msra.mxu0 0.0
            %3973 = vmatprep.mubr.f32.mxu0 0.0
            %3974 = vmatmul.mubr.f32.gmra.mrb[0].mxu0 %v3356
            %v3975 = vpop.f32.mrb[0].mxu0
            %v3976 = vadd.f32 %v3722, %v3975
            %v3977 = vpop.f32.mrb[0].mxu0
            %v3978 = vadd.f32 %v3726, %v3977
            %3979 = vdwg.mxu0
            %3980 = vmatprep.subr.mxu0 %v3691
            %3981 = vmatpush1.msra.mxu0 %v3690
            %3982 = vmatprep.subr.mxu0 %v3765
            %3983 = vmatpush1.msra.mxu0 %v3762
            %3984 = vmatprep.subr.mxu0 0.0
            %3985 = vmatpush1.msra.mxu0 0.0
            %3986 = vmatprep.subr.mxu0 0.0
            %3987 = vmatpush1.msra.mxu0 0.0
            %3988 = vmatprep.subr.mxu0 0.0
            %3989 = vmatpush1.msra.mxu0 0.0
            %3990 = vmatprep.subr.mxu0 0.0
            %3991 = vmatpush1.msra.mxu0 0.0
            %3992 = vmatprep.subr.mxu0 0.0
            %3993 = vmatpush1.msra.mxu0 0.0
            %3994 = vmatprep.subr.mxu0 0.0
            %3995 = vmatpush1.msra.mxu0 0.0
            %3996 = vmatprep.subr.mxu0 0.0
            %3997 = vmatpush1.msra.mxu0 0.0
            %3998 = vmatprep.subr.mxu0 0.0
            %3999 = vmatpush1.msra.mxu0 0.0
            %4000 = vmatprep.subr.mxu0 0.0
            %4001 = vmatpush1.msra.mxu0 0.0
            %4002 = vmatprep.subr.mxu0 0.0
            %4003 = vmatpush1.msra.mxu0 0.0
            %4004 = vmatprep.subr.mxu0 0.0
            %4005 = vmatpush1.msra.mxu0 0.0
            %4006 = vmatprep.subr.mxu0 0.0
            %4007 = vmatpush1.msra.mxu0 0.0
            %4008 = vmatprep.subr.mxu0 0.0
            %4009 = vmatpush1.msra.mxu0 0.0
            %4010 = vmatprep.subr.mxu0 0.0
            %4011 = vmatpush1.msra.mxu0 0.0
            %4012 = vmatprep.subr.mxu0 0.0
            %4013 = vmatpush1.msra.mxu0 0.0
            %4014 = vmatprep.subr.mxu0 0.0
            %4015 = vmatpush1.msra.mxu0 0.0
            %4016 = vmatprep.subr.mxu0 0.0
            %4017 = vmatpush1.msra.mxu0 0.0
            %4018 = vmatprep.subr.mxu0 0.0
            %4019 = vmatpush1.msra.mxu0 0.0
            %4020 = vmatprep.subr.mxu0 0.0
            %4021 = vmatpush1.msra.mxu0 0.0
            %4022 = vmatprep.subr.mxu0 0.0
            %4023 = vmatpush1.msra.mxu0 0.0
            %4024 = vmatprep.subr.mxu0 0.0
            %4025 = vmatpush1.msra.mxu0 0.0
            %4026 = vmatprep.subr.mxu0 0.0
            %4027 = vmatpush1.msra.mxu0 0.0
            %4028 = vmatprep.subr.mxu0 0.0
            %4029 = vmatpush1.msra.mxu0 0.0
            %4030 = vmatprep.subr.mxu0 0.0
            %4031 = vmatpush1.msra.mxu0 0.0
            %4032 = vmatprep.subr.mxu0 0.0
            %4033 = vmatpush1.msra.mxu0 0.0
            %4034 = vmatprep.subr.mxu0 0.0
            %4035 = vmatpush1.msra.mxu0 0.0
            %4036 = vmatprep.subr.mxu0 0.0
            %4037 = vmatpush1.msra.mxu0 0.0
            %4038 = vmatprep.subr.mxu0 0.0
            %4039 = vmatpush1.msra.mxu0 0.0
            %4040 = vmatprep.subr.mxu0 0.0
            %4041 = vmatpush1.msra.mxu0 0.0
            %4042 = vmatprep.subr.mxu0 0.0
            %4043 = vmatpush1.msra.mxu0 0.0
            %4044 = vmatprep.mubr.f32.mxu0 0.0
            %4045 = vmatmul.mubr.f32.gmra.mrb[0].mxu0 %v3356
            %v4046 = vpop.f32.mrb[0].mxu0
            %v4047 = vadd.f32 %v3730, %v4046
            %v4048 = vpop.f32.mrb[0].mxu0
            %v4049 = vadd.f32 %v3734, %v4048
            %4050 = vdwg.mxu0
            %v4051 = vmax.f32 %v3834, 0.0
            %v4052 = vmax.f32 %v3836, 0.0
            %v4053 = vmax.f32 %v3905, 0.0
            %v4054 = vmax.f32 %v3907, 0.0
            %v4055 = vmax.f32 %v3976, 0.0
            %v4056 = vmax.f32 %v3978, 0.0
            %v4057 = vmax.f32 %v4047, 0.0
            %v4058 = vmax.f32 %v4049, 0.0
            %4059 = vst [vmem:[#allocation3 + $0x40] sm:$0xff] %v4051
            %4060 = vst [vmem:[#allocation3 + $0x48] sm:$0xff] %v4052
            %4061 = vst [vmem:[#allocation3 + $0x50] sm:$0xff] %v4053
            %4062 = vst [vmem:[#allocation3 + $0x58] sm:$0xff] %v4054
            %4063 = vst [vmem:[#allocation3 + $0x60] sm:$0xff] %v4055
            %4064 = vst [vmem:[#allocation3 + $0x68] sm:$0xff] %v4056
            %4065 = vst [vmem:[#allocation3 + $0x70] sm:$0xff] %v4057
            %4066 = vst [vmem:[#allocation3 + $0x78] sm:$0xff] %v4058
            %s4067 = scalar_lea.vmem %s6, 256
            %v4068 = vld [vmem:[%s4067] sm:$0xff]
            %v4069 = vld [vmem:[%s4067 + $0x8] sm:$0xff]
            %v4070 = vld [vmem:[%s4067 + $0x10] sm:$0xff]
            %v4071 = vld [vmem:[%s4067 + $0x18] sm:$0xff]
            %v4072 = vld [vmem:[%s4067 + $0x20] sm:$0xff]
            %v4073 = vld [vmem:[%s4067 + $0x28] sm:$0xff]
            %v4074 = vld [vmem:[%s4067 + $0x30] sm:$0xff]
            %v4075 = vld [vmem:[%s4067 + $0x38] sm:$0xff]
            %v4076 = vld [vmem:[%s4067 + $0x40] sm:$0x3]
            %v4077 = vld [vmem:[%s4067 + $0x48] sm:$0x3]
            %v4078 = vld [vmem:[%s4067 + $0x50] sm:$0x3]
            %v4079 = vld [vmem:[%s4067 + $0x58] sm:$0x3]
            %v4080 = vld [vmem:[%s4067 + $0x60] sm:$0x3]
            %v4081 = vld [vmem:[%s4067 + $0x68] sm:$0x3]
            %v4082 = vld [vmem:[%s4067 + $0x70] sm:$0x3]
            %v4083 = vld [vmem:[%s4067 + $0x78] sm:$0x3]
            %s4084 = scalar_lea.vmem [#allocation11], 16
            %v4085 = vld [vmem:[%s4084] sm:$0xff]
            %v4087 = vlaneseq
            %v4088 = vshrl.u32 %v4087, 7
            %v4089 = vsub.s32 0, %v4088
            %v4090 = vrot.slane %v4085, %v4089
            %v4091 = vlaneseq
            %v4092 = vshrl.u32 %v4091, 7
            %v4093 = vsub.s32 1, %v4092
            %v4094 = vrot.slane %v4085, %v4093
            %v4095 = vlaneseq
            %v4096 = vshrl.u32 %v4095, 7
            %v4097 = vsub.s32 2, %v4096
            %v4098 = vrot.slane %v4085, %v4097
            %v4099 = vlaneseq
            %v4100 = vshrl.u32 %v4099, 7
            %v4101 = vsub.s32 3, %v4100
            %v4102 = vrot.slane %v4085, %v4101
            %v4103 = vlaneseq
            %v4104 = vshrl.u32 %v4103, 7
            %v4105 = vsub.s32 4, %v4104
            %v4106 = vrot.slane %v4085, %v4105
            %v4107 = vlaneseq
            %v4108 = vshrl.u32 %v4107, 7
            %v4109 = vsub.s32 5, %v4108
            %v4110 = vrot.slane %v4085, %v4109
            %v4111 = vlaneseq
            %v4112 = vshrl.u32 %v4111, 7
            %v4113 = vsub.s32 6, %v4112
            %v4114 = vrot.slane %v4085, %v4113
            %v4115 = vlaneseq
            %v4116 = vshrl.u32 %v4115, 7
            %v4117 = vsub.s32 7, %v4116
            %v4118 = vrot.slane %v4085, %v4117
            %v4128 = vsel %vm3358, %v4076, 0
            %v4131 = vsel %vm3358, %v4077, 0
            %v4134 = vsel %vm3358, %v4078, 0
            %v4137 = vsel %vm3358, %v4079, 0
            %v4140 = vsel %vm3358, %v4080, 0
            %v4143 = vsel %vm3358, %v4081, 0
            %v4146 = vsel %vm3358, %v4082, 0
            %v4149 = vsel %vm3358, %v4083, 0
            %4151 = vmatprep.subr.mxu0 %v4069
            %4152 = vmatpush1.msra.mxu0 %v4068
            %4153 = vmatprep.subr.mxu0 %v4131
            %4154 = vmatpush1.msra.mxu0 %v4128
            %4155 = vmatprep.subr.mxu0 0.0
            %4156 = vmatpush1.msra.mxu0 0.0
            %4157 = vmatprep.subr.mxu0 0.0
            %4158 = vmatpush1.msra.mxu0 0.0
            %4159 = vmatprep.subr.mxu0 0.0
            %4160 = vmatpush1.msra.mxu0 0.0
            %4161 = vmatprep.subr.mxu0 0.0
            %4162 = vmatpush1.msra.mxu0 0.0
            %4163 = vmatprep.subr.mxu0 0.0
            %4164 = vmatpush1.msra.mxu0 0.0
            %4165 = vmatprep.subr.mxu0 0.0
            %4166 = vmatpush1.msra.mxu0 0.0
            %4167 = vmatprep.subr.mxu0 0.0
            %4168 = vmatpush1.msra.mxu0 0.0
            %4169 = vmatprep.subr.mxu0 0.0
            %4170 = vmatpush1.msra.mxu0 0.0
            %4171 = vmatprep.subr.mxu0 0.0
            %4172 = vmatpush1.msra.mxu0 0.0
            %4173 = vmatprep.subr.mxu0 0.0
            %4174 = vmatpush1.msra.mxu0 0.0
            %4175 = vmatprep.subr.mxu0 0.0
            %4176 = vmatpush1.msra.mxu0 0.0
            %4177 = vmatprep.subr.mxu0 0.0
            %4178 = vmatpush1.msra.mxu0 0.0
            %4179 = vmatprep.subr.mxu0 0.0
            %4180 = vmatpush1.msra.mxu0 0.0
            %4181 = vmatprep.subr.mxu0 0.0
            %4182 = vmatpush1.msra.mxu0 0.0
            %4183 = vmatprep.subr.mxu0 0.0
            %4184 = vmatpush1.msra.mxu0 0.0
            %4185 = vmatprep.subr.mxu0 0.0
            %4186 = vmatpush1.msra.mxu0 0.0
            %4187 = vmatprep.subr.mxu0 0.0
            %4188 = vmatpush1.msra.mxu0 0.0
            %4189 = vmatprep.subr.mxu0 0.0
            %4190 = vmatpush1.msra.mxu0 0.0
            %4191 = vmatprep.subr.mxu0 0.0
            %4192 = vmatpush1.msra.mxu0 0.0
            %4193 = vmatprep.subr.mxu0 0.0
            %4194 = vmatpush1.msra.mxu0 0.0
            %4195 = vmatprep.subr.mxu0 0.0
            %4196 = vmatpush1.msra.mxu0 0.0
            %4197 = vmatprep.subr.mxu0 0.0
            %4198 = vmatpush1.msra.mxu0 0.0
            %4199 = vmatprep.subr.mxu0 0.0
            %4200 = vmatpush1.msra.mxu0 0.0
            %4201 = vmatprep.subr.mxu0 0.0
            %4202 = vmatpush1.msra.mxu0 0.0
            %4203 = vmatprep.subr.mxu0 0.0
            %4204 = vmatpush1.msra.mxu0 0.0
            %4205 = vmatprep.subr.mxu0 0.0
            %4206 = vmatpush1.msra.mxu0 0.0
            %4207 = vmatprep.subr.mxu0 0.0
            %4208 = vmatpush1.msra.mxu0 0.0
            %4209 = vmatprep.subr.mxu0 0.0
            %4210 = vmatpush1.msra.mxu0 0.0
            %4211 = vmatprep.subr.mxu0 0.0
            %4212 = vmatpush1.msra.mxu0 0.0
            %4213 = vmatprep.subr.mxu0 0.0
            %4214 = vmatpush1.msra.mxu0 0.0
            %4215 = vmatprep.mubr.f32.mxu0 0.0
            %4216 = vmatmul.mubr.f32.gmra.mrb[0].mxu0 %v3356
            %v4217 = vpop.f32.mrb[0].mxu0
            %v4218 = vadd.f32 %v4090, %v4217
            %v4219 = vpop.f32.mrb[0].mxu0
            %v4220 = vadd.f32 %v4094, %v4219
            %4221 = vdwg.mxu0
            %4222 = vmatprep.subr.mxu0 %v4071
            %4223 = vmatpush1.msra.mxu0 %v4070
            %4224 = vmatprep.subr.mxu0 %v4137
            %4225 = vmatpush1.msra.mxu0 %v4134
            %4226 = vmatprep.subr.mxu0 0.0
            %4227 = vmatpush1.msra.mxu0 0.0
            %4228 = vmatprep.subr.mxu0 0.0
            %4229 = vmatpush1.msra.mxu0 0.0
            %4230 = vmatprep.subr.mxu0 0.0
            %4231 = vmatpush1.msra.mxu0 0.0
            %4232 = vmatprep.subr.mxu0 0.0
            %4233 = vmatpush1.msra.mxu0 0.0
            %4234 = vmatprep.subr.mxu0 0.0
            %4235 = vmatpush1.msra.mxu0 0.0
            %4236 = vmatprep.subr.mxu0 0.0
            %4237 = vmatpush1.msra.mxu0 0.0
            %4238 = vmatprep.subr.mxu0 0.0
            %4239 = vmatpush1.msra.mxu0 0.0
            %4240 = vmatprep.subr.mxu0 0.0
            %4241 = vmatpush1.msra.mxu0 0.0
            %4242 = vmatprep.subr.mxu0 0.0
            %4243 = vmatpush1.msra.mxu0 0.0
            %4244 = vmatprep.subr.mxu0 0.0
            %4245 = vmatpush1.msra.mxu0 0.0
            %4246 = vmatprep.subr.mxu0 0.0
            %4247 = vmatpush1.msra.mxu0 0.0
            %4248 = vmatprep.subr.mxu0 0.0
            %4249 = vmatpush1.msra.mxu0 0.0
            %4250 = vmatprep.subr.mxu0 0.0
            %4251 = vmatpush1.msra.mxu0 0.0
            %4252 = vmatprep.subr.mxu0 0.0
            %4253 = vmatpush1.msra.mxu0 0.0
            %4254 = vmatprep.subr.mxu0 0.0
            %4255 = vmatpush1.msra.mxu0 0.0
            %4256 = vmatprep.subr.mxu0 0.0
            %4257 = vmatpush1.msra.mxu0 0.0
            %4258 = vmatprep.subr.mxu0 0.0
            %4259 = vmatpush1.msra.mxu0 0.0
            %4260 = vmatprep.subr.mxu0 0.0
            %4261 = vmatpush1.msra.mxu0 0.0
            %4262 = vmatprep.subr.mxu0 0.0
            %4263 = vmatpush1.msra.mxu0 0.0
            %4264 = vmatprep.subr.mxu0 0.0
            %4265 = vmatpush1.msra.mxu0 0.0
            %4266 = vmatprep.subr.mxu0 0.0
            %4267 = vmatpush1.msra.mxu0 0.0
            %4268 = vmatprep.subr.mxu0 0.0
            %4269 = vmatpush1.msra.mxu0 0.0
            %4270 = vmatprep.subr.mxu0 0.0
            %4271 = vmatpush1.msra.mxu0 0.0
            %4272 = vmatprep.subr.mxu0 0.0
            %4273 = vmatpush1.msra.mxu0 0.0
            %4274 = vmatprep.subr.mxu0 0.0
            %4275 = vmatpush1.msra.mxu0 0.0
            %4276 = vmatprep.subr.mxu0 0.0
            %4277 = vmatpush1.msra.mxu0 0.0
            %4278 = vmatprep.subr.mxu0 0.0
            %4279 = vmatpush1.msra.mxu0 0.0
            %4280 = vmatprep.subr.mxu0 0.0
            %4281 = vmatpush1.msra.mxu0 0.0
            %4282 = vmatprep.subr.mxu0 0.0
            %4283 = vmatpush1.msra.mxu0 0.0
            %4284 = vmatprep.subr.mxu0 0.0
            %4285 = vmatpush1.msra.mxu0 0.0
            %4286 = vmatprep.mubr.f32.mxu0 0.0
            %4287 = vmatmul.mubr.f32.gmra.mrb[0].mxu0 %v3356
            %v4288 = vpop.f32.mrb[0].mxu0
            %v4289 = vadd.f32 %v4098, %v4288
            %v4290 = vpop.f32.mrb[0].mxu0
            %v4291 = vadd.f32 %v4102, %v4290
            %4292 = vdwg.mxu0
            %4293 = vmatprep.subr.mxu0 %v4073
            %4294 = vmatpush1.msra.mxu0 %v4072
            %4295 = vmatprep.subr.mxu0 %v4143
            %4296 = vmatpush1.msra.mxu0 %v4140
            %4297 = vmatprep.subr.mxu0 0.0
            %4298 = vmatpush1.msra.mxu0 0.0
            %4299 = vmatprep.subr.mxu0 0.0
            %4300 = vmatpush1.msra.mxu0 0.0
            %4301 = vmatprep.subr.mxu0 0.0
            %4302 = vmatpush1.msra.mxu0 0.0
            %4303 = vmatprep.subr.mxu0 0.0
            %4304 = vmatpush1.msra.mxu0 0.0
            %4305 = vmatprep.subr.mxu0 0.0
            %4306 = vmatpush1.msra.mxu0 0.0
            %4307 = vmatprep.subr.mxu0 0.0
            %4308 = vmatpush1.msra.mxu0 0.0
            %4309 = vmatprep.subr.mxu0 0.0
            %4310 = vmatpush1.msra.mxu0 0.0
            %4311 = vmatprep.subr.mxu0 0.0
            %4312 = vmatpush1.msra.mxu0 0.0
            %4313 = vmatprep.subr.mxu0 0.0
            %4314 = vmatpush1.msra.mxu0 0.0
            %4315 = vmatprep.subr.mxu0 0.0
            %4316 = vmatpush1.msra.mxu0 0.0
            %4317 = vmatprep.subr.mxu0 0.0
            %4318 = vmatpush1.msra.mxu0 0.0
            %4319 = vmatprep.subr.mxu0 0.0
            %4320 = vmatpush1.msra.mxu0 0.0
            %4321 = vmatprep.subr.mxu0 0.0
            %4322 = vmatpush1.msra.mxu0 0.0
            %4323 = vmatprep.subr.mxu0 0.0
            %4324 = vmatpush1.msra.mxu0 0.0
            %4325 = vmatprep.subr.mxu0 0.0
            %4326 = vmatpush1.msra.mxu0 0.0
            %4327 = vmatprep.subr.mxu0 0.0
            %4328 = vmatpush1.msra.mxu0 0.0
            %4329 = vmatprep.subr.mxu0 0.0
            %4330 = vmatpush1.msra.mxu0 0.0
            %4331 = vmatprep.subr.mxu0 0.0
            %4332 = vmatpush1.msra.mxu0 0.0
            %4333 = vmatprep.subr.mxu0 0.0
            %4334 = vmatpush1.msra.mxu0 0.0
            %4335 = vmatprep.subr.mxu0 0.0
            %4336 = vmatpush1.msra.mxu0 0.0
            %4337 = vmatprep.subr.mxu0 0.0
            %4338 = vmatpush1.msra.mxu0 0.0
            %4339 = vmatprep.subr.mxu0 0.0
            %4340 = vmatpush1.msra.mxu0 0.0
            %4341 = vmatprep.subr.mxu0 0.0
            %4342 = vmatpush1.msra.mxu0 0.0
            %4343 = vmatprep.subr.mxu0 0.0
            %4344 = vmatpush1.msra.mxu0 0.0
            %4345 = vmatprep.subr.mxu0 0.0
            %4346 = vmatpush1.msra.mxu0 0.0
            %4347 = vmatprep.subr.mxu0 0.0
            %4348 = vmatpush1.msra.mxu0 0.0
            %4349 = vmatprep.subr.mxu0 0.0
            %4350 = vmatpush1.msra.mxu0 0.0
            %4351 = vmatprep.subr.mxu0 0.0
            %4352 = vmatpush1.msra.mxu0 0.0
            %4353 = vmatprep.subr.mxu0 0.0
            %4354 = vmatpush1.msra.mxu0 0.0
            %4355 = vmatprep.subr.mxu0 0.0
            %4356 = vmatpush1.msra.mxu0 0.0
            %4357 = vmatprep.mubr.f32.mxu0 0.0
            %4358 = vmatmul.mubr.f32.gmra.mrb[0].mxu0 %v3356
            %v4359 = vpop.f32.mrb[0].mxu0
            %v4360 = vadd.f32 %v4106, %v4359
            %v4361 = vpop.f32.mrb[0].mxu0
            %v4362 = vadd.f32 %v4110, %v4361
            %4363 = vdwg.mxu0
            %4364 = vmatprep.subr.mxu0 %v4075
            %4365 = vmatpush1.msra.mxu0 %v4074
            %4366 = vmatprep.subr.mxu0 %v4149
            %4367 = vmatpush1.msra.mxu0 %v4146
            %4368 = vmatprep.subr.mxu0 0.0
            %4369 = vmatpush1.msra.mxu0 0.0
            %4370 = vmatprep.subr.mxu0 0.0
            %4371 = vmatpush1.msra.mxu0 0.0
            %4372 = vmatprep.subr.mxu0 0.0
            %4373 = vmatpush1.msra.mxu0 0.0
            %4374 = vmatprep.subr.mxu0 0.0
            %4375 = vmatpush1.msra.mxu0 0.0
            %4376 = vmatprep.subr.mxu0 0.0
            %4377 = vmatpush1.msra.mxu0 0.0
            %4378 = vmatprep.subr.mxu0 0.0
            %4379 = vmatpush1.msra.mxu0 0.0
            %4380 = vmatprep.subr.mxu0 0.0
            %4381 = vmatpush1.msra.mxu0 0.0
            %4382 = vmatprep.subr.mxu0 0.0
            %4383 = vmatpush1.msra.mxu0 0.0
            %4384 = vmatprep.subr.mxu0 0.0
            %4385 = vmatpush1.msra.mxu0 0.0
            %4386 = vmatprep.subr.mxu0 0.0
            %4387 = vmatpush1.msra.mxu0 0.0
            %4388 = vmatprep.subr.mxu0 0.0
            %4389 = vmatpush1.msra.mxu0 0.0
            %4390 = vmatprep.subr.mxu0 0.0
            %4391 = vmatpush1.msra.mxu0 0.0
            %4392 = vmatprep.subr.mxu0 0.0
            %4393 = vmatpush1.msra.mxu0 0.0
            %4394 = vmatprep.subr.mxu0 0.0
            %4395 = vmatpush1.msra.mxu0 0.0
            %4396 = vmatprep.subr.mxu0 0.0
            %4397 = vmatpush1.msra.mxu0 0.0
            %4398 = vmatprep.subr.mxu0 0.0
            %4399 = vmatpush1.msra.mxu0 0.0
            %4400 = vmatprep.subr.mxu0 0.0
            %4401 = vmatpush1.msra.mxu0 0.0
            %4402 = vmatprep.subr.mxu0 0.0
            %4403 = vmatpush1.msra.mxu0 0.0
            %4404 = vmatprep.subr.mxu0 0.0
            %4405 = vmatpush1.msra.mxu0 0.0
            %4406 = vmatprep.subr.mxu0 0.0
            %4407 = vmatpush1.msra.mxu0 0.0
            %4408 = vmatprep.subr.mxu0 0.0
            %4409 = vmatpush1.msra.mxu0 0.0
            %4410 = vmatprep.subr.mxu0 0.0
            %4411 = vmatpush1.msra.mxu0 0.0
            %4412 = vmatprep.subr.mxu0 0.0
            %4413 = vmatpush1.msra.mxu0 0.0
            %4414 = vmatprep.subr.mxu0 0.0
            %4415 = vmatpush1.msra.mxu0 0.0
            %4416 = vmatprep.subr.mxu0 0.0
            %4417 = vmatpush1.msra.mxu0 0.0
            %4418 = vmatprep.subr.mxu0 0.0
            %4419 = vmatpush1.msra.mxu0 0.0
            %4420 = vmatprep.subr.mxu0 0.0
            %4421 = vmatpush1.msra.mxu0 0.0
            %4422 = vmatprep.subr.mxu0 0.0
            %4423 = vmatpush1.msra.mxu0 0.0
            %4424 = vmatprep.subr.mxu0 0.0
            %4425 = vmatpush1.msra.mxu0 0.0
            %4426 = vmatprep.subr.mxu0 0.0
            %4427 = vmatpush1.msra.mxu0 0.0
            %4428 = vmatprep.mubr.f32.mxu0 0.0
            %4429 = vmatmul.mubr.f32.gmra.mrb[0].mxu0 %v3356
            %v4430 = vpop.f32.mrb[0].mxu0
            %v4431 = vadd.f32 %v4114, %v4430
            %v4432 = vpop.f32.mrb[0].mxu0
            %v4433 = vadd.f32 %v4118, %v4432
            %4434 = vdwg.mxu0
            %v4435 = vmax.f32 %v4218, 0.0
            %v4436 = vmax.f32 %v4220, 0.0
            %v4437 = vmax.f32 %v4289, 0.0
            %v4438 = vmax.f32 %v4291, 0.0
            %v4439 = vmax.f32 %v4360, 0.0
            %v4440 = vmax.f32 %v4362, 0.0
            %v4441 = vmax.f32 %v4431, 0.0
            %v4442 = vmax.f32 %v4433, 0.0
            %4443 = vst [vmem:[#allocation3 + $0x80] sm:$0xff] %v4435
            %4444 = vst [vmem:[#allocation3 + $0x88] sm:$0xff] %v4436
            %4445 = vst [vmem:[#allocation3 + $0x90] sm:$0xff] %v4437
            %4446 = vst [vmem:[#allocation3 + $0x98] sm:$0xff] %v4438
            %4447 = vst [vmem:[#allocation3 + $0xa0] sm:$0xff] %v4439
            %4448 = vst [vmem:[#allocation3 + $0xa8] sm:$0xff] %v4440
            %4449 = vst [vmem:[#allocation3 + $0xb0] sm:$0xff] %v4441
            %4450 = vst [vmem:[#allocation3 + $0xb8] sm:$0xff] %v4442
            %s4451 = scalar_lea.vmem %s6, 384
            %v4452 = vld [vmem:[%s4451] sm:$0xff]
            %v4453 = vld [vmem:[%s4451 + $0x8] sm:$0xff]
            %v4454 = vld [vmem:[%s4451 + $0x10] sm:$0xff]
            %v4455 = vld [vmem:[%s4451 + $0x18] sm:$0xff]
            %v4456 = vld [vmem:[%s4451 + $0x20] sm:$0xff]
            %v4457 = vld [vmem:[%s4451 + $0x28] sm:$0xff]
            %v4458 = vld [vmem:[%s4451 + $0x30] sm:$0xff]
            %v4459 = vld [vmem:[%s4451 + $0x38] sm:$0xff]
            %v4460 = vld [vmem:[%s4451 + $0x40] sm:$0x3]
            %v4461 = vld [vmem:[%s4451 + $0x48] sm:$0x3]
            %v4462 = vld [vmem:[%s4451 + $0x50] sm:$0x3]
            %v4463 = vld [vmem:[%s4451 + $0x58] sm:$0x3]
            %v4464 = vld [vmem:[%s4451 + $0x60] sm:$0x3]
            %v4465 = vld [vmem:[%s4451 + $0x68] sm:$0x3]
            %v4466 = vld [vmem:[%s4451 + $0x70] sm:$0x3]
            %v4467 = vld [vmem:[%s4451 + $0x78] sm:$0x3]
            %s4468 = scalar_lea.vmem [#allocation11], 24
            %v4469 = vld [vmem:[%s4468] sm:$0xff]
            %v4471 = vlaneseq
            %v4472 = vshrl.u32 %v4471, 7
            %v4473 = vsub.s32 0, %v4472
            %v4474 = vrot.slane %v4469, %v4473
            %v4475 = vlaneseq
            %v4476 = vshrl.u32 %v4475, 7
            %v4477 = vsub.s32 1, %v4476
            %v4478 = vrot.slane %v4469, %v4477
            %v4479 = vlaneseq
            %v4480 = vshrl.u32 %v4479, 7
            %v4481 = vsub.s32 2, %v4480
            %v4482 = vrot.slane %v4469, %v4481
            %v4483 = vlaneseq
            %v4484 = vshrl.u32 %v4483, 7
            %v4485 = vsub.s32 3, %v4484
            %v4486 = vrot.slane %v4469, %v4485
            %v4487 = vlaneseq
            %v4488 = vshrl.u32 %v4487, 7
            %v4489 = vsub.s32 4, %v4488
            %v4490 = vrot.slane %v4469, %v4489
            %v4491 = vlaneseq
            %v4492 = vshrl.u32 %v4491, 7
            %v4493 = vsub.s32 5, %v4492
            %v4494 = vrot.slane %v4469, %v4493
            %v4495 = vlaneseq
            %v4496 = vshrl.u32 %v4495, 7
            %v4497 = vsub.s32 6, %v4496
            %v4498 = vrot.slane %v4469, %v4497
            %v4499 = vlaneseq
            %v4500 = vshrl.u32 %v4499, 7
            %v4501 = vsub.s32 7, %v4500
            %v4502 = vrot.slane %v4469, %v4501
            %v4512 = vsel %vm3358, %v4460, 0
            %v4515 = vsel %vm3358, %v4461, 0
            %v4518 = vsel %vm3358, %v4462, 0
            %v4521 = vsel %vm3358, %v4463, 0
            %v4524 = vsel %vm3358, %v4464, 0
            %v4527 = vsel %vm3358, %v4465, 0
            %v4530 = vsel %vm3358, %v4466, 0
            %v4533 = vsel %vm3358, %v4467, 0
            %4535 = vmatprep.subr.mxu0 %v4453
            %4536 = vmatpush1.msra.mxu0 %v4452
            %4537 = vmatprep.subr.mxu0 %v4515
            %4538 = vmatpush1.msra.mxu0 %v4512
            %4539 = vmatprep.subr.mxu0 0.0
            %4540 = vmatpush1.msra.mxu0 0.0
            %4541 = vmatprep.subr.mxu0 0.0
            %4542 = vmatpush1.msra.mxu0 0.0
            %4543 = vmatprep.subr.mxu0 0.0
            %4544 = vmatpush1.msra.mxu0 0.0
            %4545 = vmatprep.subr.mxu0 0.0
            %4546 = vmatpush1.msra.mxu0 0.0
            %4547 = vmatprep.subr.mxu0 0.0
            %4548 = vmatpush1.msra.mxu0 0.0
            %4549 = vmatprep.subr.mxu0 0.0
            %4550 = vmatpush1.msra.mxu0 0.0
            %4551 = vmatprep.subr.mxu0 0.0
            %4552 = vmatpush1.msra.mxu0 0.0
            %4553 = vmatprep.subr.mxu0 0.0
            %4554 = vmatpush1.msra.mxu0 0.0
            %4555 = vmatprep.subr.mxu0 0.0
            %4556 = vmatpush1.msra.mxu0 0.0
            %4557 = vmatprep.subr.mxu0 0.0
            %4558 = vmatpush1.msra.mxu0 0.0
            %4559 = vmatprep.subr.mxu0 0.0
            %4560 = vmatpush1.msra.mxu0 0.0
            %4561 = vmatprep.subr.mxu0 0.0
            %4562 = vmatpush1.msra.mxu0 0.0
            %4563 = vmatprep.subr.mxu0 0.0
            %4564 = vmatpush1.msra.mxu0 0.0
            %4565 = vmatprep.subr.mxu0 0.0
            %4566 = vmatpush1.msra.mxu0 0.0
            %4567 = vmatprep.subr.mxu0 0.0
            %4568 = vmatpush1.msra.mxu0 0.0
            %4569 = vmatprep.subr.mxu0 0.0
            %4570 = vmatpush1.msra.mxu0 0.0
            %4571 = vmatprep.subr.mxu0 0.0
            %4572 = vmatpush1.msra.mxu0 0.0
            %4573 = vmatprep.subr.mxu0 0.0
            %4574 = vmatpush1.msra.mxu0 0.0
            %4575 = vmatprep.subr.mxu0 0.0
            %4576 = vmatpush1.msra.mxu0 0.0
            %4577 = vmatprep.subr.mxu0 0.0
            %4578 = vmatpush1.msra.mxu0 0.0
            %4579 = vmatprep.subr.mxu0 0.0
            %4580 = vmatpush1.msra.mxu0 0.0
            %4581 = vmatprep.subr.mxu0 0.0
            %4582 = vmatpush1.msra.mxu0 0.0
            %4583 = vmatprep.subr.mxu0 0.0
            %4584 = vmatpush1.msra.mxu0 0.0
            %4585 = vmatprep.subr.mxu0 0.0
            %4586 = vmatpush1.msra.mxu0 0.0
            %4587 = vmatprep.subr.mxu0 0.0
            %4588 = vmatpush1.msra.mxu0 0.0
            %4589 = vmatprep.subr.mxu0 0.0
            %4590 = vmatpush1.msra.mxu0 0.0
            %4591 = vmatprep.subr.mxu0 0.0
            %4592 = vmatpush1.msra.mxu0 0.0
            %4593 = vmatprep.subr.mxu0 0.0
            %4594 = vmatpush1.msra.mxu0 0.0
            %4595 = vmatprep.subr.mxu0 0.0
            %4596 = vmatpush1.msra.mxu0 0.0
            %4597 = vmatprep.subr.mxu0 0.0
            %4598 = vmatpush1.msra.mxu0 0.0
            %4599 = vmatprep.mubr.f32.mxu0 0.0
            %4600 = vmatmul.mubr.f32.gmra.mrb[0].mxu0 %v3356
            %v4601 = vpop.f32.mrb[0].mxu0
            %v4602 = vadd.f32 %v4474, %v4601
            %v4603 = vpop.f32.mrb[0].mxu0
            %v4604 = vadd.f32 %v4478, %v4603
            %4605 = vdwg.mxu0
            %4606 = vmatprep.subr.mxu0 %v4455
            %4607 = vmatpush1.msra.mxu0 %v4454
            %4608 = vmatprep.subr.mxu0 %v4521
            %4609 = vmatpush1.msra.mxu0 %v4518
            %4610 = vmatprep.subr.mxu0 0.0
            %4611 = vmatpush1.msra.mxu0 0.0
            %4612 = vmatprep.subr.mxu0 0.0
            %4613 = vmatpush1.msra.mxu0 0.0
            %4614 = vmatprep.subr.mxu0 0.0
            %4615 = vmatpush1.msra.mxu0 0.0
            %4616 = vmatprep.subr.mxu0 0.0
            %4617 = vmatpush1.msra.mxu0 0.0
            %4618 = vmatprep.subr.mxu0 0.0
            %4619 = vmatpush1.msra.mxu0 0.0
            %4620 = vmatprep.subr.mxu0 0.0
            %4621 = vmatpush1.msra.mxu0 0.0
            %4622 = vmatprep.subr.mxu0 0.0
            %4623 = vmatpush1.msra.mxu0 0.0
            %4624 = vmatprep.subr.mxu0 0.0
            %4625 = vmatpush1.msra.mxu0 0.0
            %4626 = vmatprep.subr.mxu0 0.0
            %4627 = vmatpush1.msra.mxu0 0.0
            %4628 = vmatprep.subr.mxu0 0.0
            %4629 = vmatpush1.msra.mxu0 0.0
            %4630 = vmatprep.subr.mxu0 0.0
            %4631 = vmatpush1.msra.mxu0 0.0
            %4632 = vmatprep.subr.mxu0 0.0
            %4633 = vmatpush1.msra.mxu0 0.0
            %4634 = vmatprep.subr.mxu0 0.0
            %4635 = vmatpush1.msra.mxu0 0.0
            %4636 = vmatprep.subr.mxu0 0.0
            %4637 = vmatpush1.msra.mxu0 0.0
            %4638 = vmatprep.subr.mxu0 0.0
            %4639 = vmatpush1.msra.mxu0 0.0
            %4640 = vmatprep.subr.mxu0 0.0
            %4641 = vmatpush1.msra.mxu0 0.0
            %4642 = vmatprep.subr.mxu0 0.0
            %4643 = vmatpush1.msra.mxu0 0.0
            %4644 = vmatprep.subr.mxu0 0.0
            %4645 = vmatpush1.msra.mxu0 0.0
            %4646 = vmatprep.subr.mxu0 0.0
            %4647 = vmatpush1.msra.mxu0 0.0
            %4648 = vmatprep.subr.mxu0 0.0
            %4649 = vmatpush1.msra.mxu0 0.0
            %4650 = vmatprep.subr.mxu0 0.0
            %4651 = vmatpush1.msra.mxu0 0.0
            %4652 = vmatprep.subr.mxu0 0.0
            %4653 = vmatpush1.msra.mxu0 0.0
            %4654 = vmatprep.subr.mxu0 0.0
            %4655 = vmatpush1.msra.mxu0 0.0
            %4656 = vmatprep.subr.mxu0 0.0
            %4657 = vmatpush1.msra.mxu0 0.0
            %4658 = vmatprep.subr.mxu0 0.0
            %4659 = vmatpush1.msra.mxu0 0.0
            %4660 = vmatprep.subr.mxu0 0.0
            %4661 = vmatpush1.msra.mxu0 0.0
            %4662 = vmatprep.subr.mxu0 0.0
            %4663 = vmatpush1.msra.mxu0 0.0
            %4664 = vmatprep.subr.mxu0 0.0
            %4665 = vmatpush1.msra.mxu0 0.0
            %4666 = vmatprep.subr.mxu0 0.0
            %4667 = vmatpush1.msra.mxu0 0.0
            %4668 = vmatprep.subr.mxu0 0.0
            %4669 = vmatpush1.msra.mxu0 0.0
            %4670 = vmatprep.mubr.f32.mxu0 0.0
            %4671 = vmatmul.mubr.f32.gmra.mrb[0].mxu0 %v3356
            %v4672 = vpop.f32.mrb[0].mxu0
            %v4673 = vadd.f32 %v4482, %v4672
            %v4674 = vpop.f32.mrb[0].mxu0
            %v4675 = vadd.f32 %v4486, %v4674
            %4676 = vdwg.mxu0
            %4677 = vmatprep.subr.mxu0 %v4457
            %4678 = vmatpush1.msra.mxu0 %v4456
            %4679 = vmatprep.subr.mxu0 %v4527
            %4680 = vmatpush1.msra.mxu0 %v4524
            %4681 = vmatprep.subr.mxu0 0.0
            %4682 = vmatpush1.msra.mxu0 0.0
            %4683 = vmatprep.subr.mxu0 0.0
            %4684 = vmatpush1.msra.mxu0 0.0
            %4685 = vmatprep.subr.mxu0 0.0
            %4686 = vmatpush1.msra.mxu0 0.0
            %4687 = vmatprep.subr.mxu0 0.0
            %4688 = vmatpush1.msra.mxu0 0.0
            %4689 = vmatprep.subr.mxu0 0.0
            %4690 = vmatpush1.msra.mxu0 0.0
            %4691 = vmatprep.subr.mxu0 0.0
            %4692 = vmatpush1.msra.mxu0 0.0
            %4693 = vmatprep.subr.mxu0 0.0
            %4694 = vmatpush1.msra.mxu0 0.0
            %4695 = vmatprep.subr.mxu0 0.0
            %4696 = vmatpush1.msra.mxu0 0.0
            %4697 = vmatprep.subr.mxu0 0.0
            %4698 = vmatpush1.msra.mxu0 0.0
            %4699 = vmatprep.subr.mxu0 0.0
            %4700 = vmatpush1.msra.mxu0 0.0
            %4701 = vmatprep.subr.mxu0 0.0
            %4702 = vmatpush1.msra.mxu0 0.0
            %4703 = vmatprep.subr.mxu0 0.0
            %4704 = vmatpush1.msra.mxu0 0.0
            %4705 = vmatprep.subr.mxu0 0.0
            %4706 = vmatpush1.msra.mxu0 0.0
            %4707 = vmatprep.subr.mxu0 0.0
            %4708 = vmatpush1.msra.mxu0 0.0
            %4709 = vmatprep.subr.mxu0 0.0
            %4710 = vmatpush1.msra.mxu0 0.0
            %4711 = vmatprep.subr.mxu0 0.0
            %4712 = vmatpush1.msra.mxu0 0.0
            %4713 = vmatprep.subr.mxu0 0.0
            %4714 = vmatpush1.msra.mxu0 0.0
            %4715 = vmatprep.subr.mxu0 0.0
            %4716 = vmatpush1.msra.mxu0 0.0
            %4717 = vmatprep.subr.mxu0 0.0
            %4718 = vmatpush1.msra.mxu0 0.0
            %4719 = vmatprep.subr.mxu0 0.0
            %4720 = vmatpush1.msra.mxu0 0.0
            %4721 = vmatprep.subr.mxu0 0.0
            %4722 = vmatpush1.msra.mxu0 0.0
            %4723 = vmatprep.subr.mxu0 0.0
            %4724 = vmatpush1.msra.mxu0 0.0
            %4725 = vmatprep.subr.mxu0 0.0
            %4726 = vmatpush1.msra.mxu0 0.0
            %4727 = vmatprep.subr.mxu0 0.0
            %4728 = vmatpush1.msra.mxu0 0.0
            %4729 = vmatprep.subr.mxu0 0.0
            %4730 = vmatpush1.msra.mxu0 0.0
            %4731 = vmatprep.subr.mxu0 0.0
            %4732 = vmatpush1.msra.mxu0 0.0
            %4733 = vmatprep.subr.mxu0 0.0
            %4734 = vmatpush1.msra.mxu0 0.0
            %4735 = vmatprep.subr.mxu0 0.0
            %4736 = vmatpush1.msra.mxu0 0.0
            %4737 = vmatprep.subr.mxu0 0.0
            %4738 = vmatpush1.msra.mxu0 0.0
            %4739 = vmatprep.subr.mxu0 0.0
            %4740 = vmatpush1.msra.mxu0 0.0
            %4741 = vmatprep.mubr.f32.mxu0 0.0
            %4742 = vmatmul.mubr.f32.gmra.mrb[0].mxu0 %v3356
            %v4743 = vpop.f32.mrb[0].mxu0
            %v4744 = vadd.f32 %v4490, %v4743
            %v4745 = vpop.f32.mrb[0].mxu0
            %v4746 = vadd.f32 %v4494, %v4745
            %4747 = vdwg.mxu0
            %4748 = vmatprep.subr.mxu0 %v4459
            %4749 = vmatpush1.msra.mxu0 %v4458
            %4750 = vmatprep.subr.mxu0 %v4533
            %4751 = vmatpush1.msra.mxu0 %v4530
            %4752 = vmatprep.subr.mxu0 0.0
            %4753 = vmatpush1.msra.mxu0 0.0
            %4754 = vmatprep.subr.mxu0 0.0
            %4755 = vmatpush1.msra.mxu0 0.0
            %4756 = vmatprep.subr.mxu0 0.0
            %4757 = vmatpush1.msra.mxu0 0.0
            %4758 = vmatprep.subr.mxu0 0.0
            %4759 = vmatpush1.msra.mxu0 0.0
            %4760 = vmatprep.subr.mxu0 0.0
            %4761 = vmatpush1.msra.mxu0 0.0
            %4762 = vmatprep.subr.mxu0 0.0
            %4763 = vmatpush1.msra.mxu0 0.0
            %4764 = vmatprep.subr.mxu0 0.0
            %4765 = vmatpush1.msra.mxu0 0.0
            %4766 = vmatprep.subr.mxu0 0.0
            %4767 = vmatpush1.msra.mxu0 0.0
            %4768 = vmatprep.subr.mxu0 0.0
            %4769 = vmatpush1.msra.mxu0 0.0
            %4770 = vmatprep.subr.mxu0 0.0
            %4771 = vmatpush1.msra.mxu0 0.0
            %4772 = vmatprep.subr.mxu0 0.0
            %4773 = vmatpush1.msra.mxu0 0.0
            %4774 = vmatprep.subr.mxu0 0.0
            %4775 = vmatpush1.msra.mxu0 0.0
            %4776 = vmatprep.subr.mxu0 0.0
            %4777 = vmatpush1.msra.mxu0 0.0
            %4778 = vmatprep.subr.mxu0 0.0
            %4779 = vmatpush1.msra.mxu0 0.0
            %4780 = vmatprep.subr.mxu0 0.0
            %4781 = vmatpush1.msra.mxu0 0.0
            %4782 = vmatprep.subr.mxu0 0.0
            %4783 = vmatpush1.msra.mxu0 0.0
            %4784 = vmatprep.subr.mxu0 0.0
            %4785 = vmatpush1.msra.mxu0 0.0
            %4786 = vmatprep.subr.mxu0 0.0
            %4787 = vmatpush1.msra.mxu0 0.0
            %4788 = vmatprep.subr.mxu0 0.0
            %4789 = vmatpush1.msra.mxu0 0.0
            %4790 = vmatprep.subr.mxu0 0.0
            %4791 = vmatpush1.msra.mxu0 0.0
            %4792 = vmatprep.subr.mxu0 0.0
            %4793 = vmatpush1.msra.mxu0 0.0
            %4794 = vmatprep.subr.mxu0 0.0
            %4795 = vmatpush1.msra.mxu0 0.0
            %4796 = vmatprep.subr.mxu0 0.0
            %4797 = vmatpush1.msra.mxu0 0.0
            %4798 = vmatprep.subr.mxu0 0.0
            %4799 = vmatpush1.msra.mxu0 0.0
            %4800 = vmatprep.subr.mxu0 0.0
            %4801 = vmatpush1.msra.mxu0 0.0
            %4802 = vmatprep.subr.mxu0 0.0
            %4803 = vmatpush1.msra.mxu0 0.0
            %4804 = vmatprep.subr.mxu0 0.0
            %4805 = vmatpush1.msra.mxu0 0.0
            %4806 = vmatprep.subr.mxu0 0.0
            %4807 = vmatpush1.msra.mxu0 0.0
            %4808 = vmatprep.subr.mxu0 0.0
            %4809 = vmatpush1.msra.mxu0 0.0
            %4810 = vmatprep.subr.mxu0 0.0
            %4811 = vmatpush1.msra.mxu0 0.0
            %4812 = vmatprep.mubr.f32.mxu0 0.0
            %4813 = vmatmul.mubr.f32.gmra.mrb[0].mxu0 %v3356
            %v4814 = vpop.f32.mrb[0].mxu0
            %v4815 = vadd.f32 %v4498, %v4814
            %v4816 = vpop.f32.mrb[0].mxu0
            %v4817 = vadd.f32 %v4502, %v4816
            %4818 = vdwg.mxu0
            %v4819 = vmax.f32 %v4602, 0.0
            %v4820 = vmax.f32 %v4604, 0.0
            %v4821 = vmax.f32 %v4673, 0.0
            %v4822 = vmax.f32 %v4675, 0.0
            %v4823 = vmax.f32 %v4744, 0.0
            %v4824 = vmax.f32 %v4746, 0.0
            %v4825 = vmax.f32 %v4815, 0.0
            %v4826 = vmax.f32 %v4817, 0.0
            %4827 = vst [vmem:[#allocation3 + $0xc0] sm:$0xff] %v4819
            %4828 = vst [vmem:[#allocation3 + $0xc8] sm:$0xff] %v4820
            %4829 = vst [vmem:[#allocation3 + $0xd0] sm:$0xff] %v4821
            %4830 = vst [vmem:[#allocation3 + $0xd8] sm:$0xff] %v4822
            %4831 = vst [vmem:[#allocation3 + $0xe0] sm:$0xff] %v4823
            %4832 = vst [vmem:[#allocation3 + $0xe8] sm:$0xff] %v4824
            %4833 = vst [vmem:[#allocation3 + $0xf0] sm:$0xff] %v4825
            %4834 = vst [vmem:[#allocation3 + $0xf8] sm:$0xff] %v4826
          $region112: #{autoencoder_forward.1} parent=103 // pred_fallthru
            _
        $region104: #{autoencoder_forward.1} parent=67 // pred_fallthru
          _
        %p4835 = scmp.eq.s32.totalorder %s38, 1
        // Predicated region
        $region113: #{autoencoder_forward.1} parent=67 // pred_check
          %p4836 = pneg %p4835
        $region114: #{autoencoder_forward.1} parent=67 // pred_check_branch
          %4838 = sbr.rel (%p4836) target = $region116
        $region115: #{autoencoder_forward.1} parent=67 // pred_region
          %p4839 = scmp.eq.s32.totalorder %s39, 0
          // Predicated region
          $region117: #{autoencoder_forward.1} parent=115 // pred_check
            %p4840 = pneg %p4839
          $region118: #{autoencoder_forward.1} parent=115 // pred_check_branch
            %4842 = sbr.rel (%p4840) target = $region120
          $region119: #{autoencoder_forward.1} parent=115 // pred_region
            %v4843 = vld [vmem:[#allocation15] sm:$0x1]
            %v4845 = vlaneseq
            %v4846 = vshrl.u32 %v4845, 7
            %v4847 = vsub.s32 0, %v4846
            %v4848 = vrot.slane %v4843, %v4847
            %vm4850 = vcmask 15360
            %4851 = vst.msk [vmem:[%s12] sm:$0xff] %vm4850, %v4848
            %4852 = vst.msk [vmem:[%s12 + $0x8] sm:$0xff] %vm4850, %v4848
            %4853 = vst.msk [vmem:[%s12 + $0x10] sm:$0xff] %vm4850, %v4848
            %4854 = vst.msk [vmem:[%s12 + $0x18] sm:$0xff] %vm4850, %v4848
          $region120: #{autoencoder_forward.1} parent=115 // pred_fallthru
            _
          %v4855 = vld [vmem:[#allocation3] sm:$0xff]
          %v4856 = vld [vmem:[#allocation3 + $0x8] sm:$0xff]
          %v4857 = vld [vmem:[#allocation3 + $0x10] sm:$0xff]
          %v4858 = vld [vmem:[#allocation3 + $0x18] sm:$0xff]
          %v4859 = vld [vmem:[#allocation3 + $0x20] sm:$0xff]
          %v4860 = vld [vmem:[#allocation3 + $0x28] sm:$0xff]
          %v4861 = vld [vmem:[#allocation3 + $0x30] sm:$0xff]
          %v4862 = vld [vmem:[#allocation3 + $0x38] sm:$0xff]
          %v4863 = vld [vmem:[#allocation3 + $0x40] sm:$0xff]
          %v4864 = vld [vmem:[#allocation3 + $0x48] sm:$0xff]
          %v4865 = vld [vmem:[#allocation3 + $0x50] sm:$0xff]
          %v4866 = vld [vmem:[#allocation3 + $0x58] sm:$0xff]
          %v4867 = vld [vmem:[#allocation3 + $0x60] sm:$0xff]
          %v4868 = vld [vmem:[#allocation3 + $0x68] sm:$0xff]
          %v4869 = vld [vmem:[#allocation3 + $0x70] sm:$0xff]
          %v4870 = vld [vmem:[#allocation3 + $0x78] sm:$0xff]
          %v4871 = vld [vmem:[#allocation3 + $0x80] sm:$0xff]
          %v4872 = vld [vmem:[#allocation3 + $0x88] sm:$0xff]
          %v4873 = vld [vmem:[#allocation3 + $0x90] sm:$0xff]
          %v4874 = vld [vmem:[#allocation3 + $0x98] sm:$0xff]
          %v4875 = vld [vmem:[#allocation3 + $0xa0] sm:$0xff]
          %v4876 = vld [vmem:[#allocation3 + $0xa8] sm:$0xff]
          %v4877 = vld [vmem:[#allocation3 + $0xb0] sm:$0xff]
          %v4878 = vld [vmem:[#allocation3 + $0xb8] sm:$0xff]
          %v4879 = vld [vmem:[#allocation3 + $0xc0] sm:$0xff]
          %v4880 = vld [vmem:[#allocation3 + $0xc8] sm:$0xff]
          %v4881 = vld [vmem:[#allocation3 + $0xd0] sm:$0xff]
          %v4882 = vld [vmem:[#allocation3 + $0xd8] sm:$0xff]
          %v4883 = vld [vmem:[#allocation3 + $0xe0] sm:$0xff]
          %v4884 = vld [vmem:[#allocation3 + $0xe8] sm:$0xff]
          %v4885 = vld [vmem:[#allocation3 + $0xf0] sm:$0xff]
          %v4886 = vld [vmem:[#allocation3 + $0xf8] sm:$0xff]
          %v4887 = vpack.c.bf16 %v4863, %v4855
          %v4888 = vpack.c.bf16 %v4864, %v4856
          %v4889 = vpack.c.bf16 %v4865, %v4857
          %v4890 = vpack.c.bf16 %v4866, %v4858
          %v4891 = vpack.c.bf16 %v4867, %v4859
          %v4892 = vpack.c.bf16 %v4868, %v4860
          %v4893 = vpack.c.bf16 %v4869, %v4861
          %v4894 = vpack.c.bf16 %v4870, %v4862
          %v4895 = vpack.c.bf16 %v4879, %v4871
          %v4896 = vpack.c.bf16 %v4880, %v4872
          %v4897 = vpack.c.bf16 %v4881, %v4873
          %v4898 = vpack.c.bf16 %v4882, %v4874
          %v4899 = vpack.c.bf16 %v4883, %v4875
          %v4900 = vpack.c.bf16 %v4884, %v4876
          %v4901 = vpack.c.bf16 %v4885, %v4877
          %v4902 = vpack.c.bf16 %v4886, %v4878
          %v4903 = vld [vmem:[%s610] sm:$0xff]
          %v4904 = vld [vmem:[%s610 + $0x8] sm:$0xff]
          %v4905 = vld [vmem:[%s610 + $0x10] sm:$0xff]
          %v4906 = vld [vmem:[%s610 + $0x18] sm:$0xff]
          %v4907 = vld [vmem:[%s610 + $0x20] sm:$0xff]
          %v4908 = vld [vmem:[%s610 + $0x28] sm:$0xff]
          %v4909 = vld [vmem:[%s610 + $0x30] sm:$0xff]
          %v4910 = vld [vmem:[%s610 + $0x38] sm:$0xff]
          %v4911 = vld [vmem:[%s610 + $0x40] sm:$0xff]
          %v4912 = vld [vmem:[%s610 + $0x48] sm:$0xff]
          %v4913 = vld [vmem:[%s610 + $0x50] sm:$0xff]
          %v4914 = vld [vmem:[%s610 + $0x58] sm:$0xff]
          %v4915 = vld [vmem:[%s610 + $0x60] sm:$0xff]
          %v4916 = vld [vmem:[%s610 + $0x68] sm:$0xff]
          %v4917 = vld [vmem:[%s610 + $0x70] sm:$0xff]
          %v4918 = vld [vmem:[%s610 + $0x78] sm:$0xff]
          %v4919 = vld [vmem:[%s610 + $0x80] sm:$0xff]
          %v4920 = vld [vmem:[%s610 + $0x88] sm:$0xff]
          %v4921 = vld [vmem:[%s610 + $0x90] sm:$0xff]
          %v4922 = vld [vmem:[%s610 + $0x98] sm:$0xff]
          %v4923 = vld [vmem:[%s610 + $0xa0] sm:$0xff]
          %v4924 = vld [vmem:[%s610 + $0xa8] sm:$0xff]
          %v4925 = vld [vmem:[%s610 + $0xb0] sm:$0xff]
          %v4926 = vld [vmem:[%s610 + $0xb8] sm:$0xff]
          %v4927 = vld [vmem:[%s610 + $0xc0] sm:$0xff]
          %v4928 = vld [vmem:[%s610 + $0xc8] sm:$0xff]
          %v4929 = vld [vmem:[%s610 + $0xd0] sm:$0xff]
          %v4930 = vld [vmem:[%s610 + $0xd8] sm:$0xff]
          %v4931 = vld [vmem:[%s610 + $0xe0] sm:$0xff]
          %v4932 = vld [vmem:[%s610 + $0xe8] sm:$0xff]
          %v4933 = vld [vmem:[%s610 + $0xf0] sm:$0xff]
          %v4934 = vld [vmem:[%s610 + $0xf8] sm:$0xff]
          %v4935 = vld [vmem:[%s610 + $0x100] sm:$0xff]
          %v4936 = vld [vmem:[%s610 + $0x108] sm:$0xff]
          %v4937 = vld [vmem:[%s610 + $0x110] sm:$0xff]
          %v4938 = vld [vmem:[%s610 + $0x118] sm:$0xff]
          %v4939 = vld [vmem:[%s610 + $0x120] sm:$0xff]
          %v4940 = vld [vmem:[%s610 + $0x128] sm:$0xff]
          %v4941 = vld [vmem:[%s610 + $0x130] sm:$0xff]
          %v4942 = vld [vmem:[%s610 + $0x138] sm:$0xff]
          %v4943 = vld [vmem:[%s610 + $0x140] sm:$0xff]
          %v4944 = vld [vmem:[%s610 + $0x148] sm:$0xff]
          %v4945 = vld [vmem:[%s610 + $0x150] sm:$0xff]
          %v4946 = vld [vmem:[%s610 + $0x158] sm:$0xff]
          %v4947 = vld [vmem:[%s610 + $0x160] sm:$0xff]
          %v4948 = vld [vmem:[%s610 + $0x168] sm:$0xff]
          %v4949 = vld [vmem:[%s610 + $0x170] sm:$0xff]
          %v4950 = vld [vmem:[%s610 + $0x178] sm:$0xff]
          %v4951 = vld [vmem:[%s610 + $0x180] sm:$0xff]
          %v4952 = vld [vmem:[%s610 + $0x188] sm:$0xff]
          %v4953 = vld [vmem:[%s610 + $0x190] sm:$0xff]
          %v4954 = vld [vmem:[%s610 + $0x198] sm:$0xff]
          %v4955 = vld [vmem:[%s610 + $0x1a0] sm:$0xff]
          %v4956 = vld [vmem:[%s610 + $0x1a8] sm:$0xff]
          %v4957 = vld [vmem:[%s610 + $0x1b0] sm:$0xff]
          %v4958 = vld [vmem:[%s610 + $0x1b8] sm:$0xff]
          %v4959 = vld [vmem:[%s610 + $0x1c0] sm:$0xff]
          %v4960 = vld [vmem:[%s610 + $0x1c8] sm:$0xff]
          %v4961 = vld [vmem:[%s610 + $0x1d0] sm:$0xff]
          %v4962 = vld [vmem:[%s610 + $0x1d8] sm:$0xff]
          %v4963 = vld [vmem:[%s610 + $0x1e0] sm:$0xff]
          %v4964 = vld [vmem:[%s610 + $0x1e8] sm:$0xff]
          %v4965 = vld [vmem:[%s610 + $0x1f0] sm:$0xff]
          %v4966 = vld [vmem:[%s610 + $0x1f8] sm:$0xff]
          %v4967 = vld [vmem:[%s610 + $0x200] sm:$0xff]
          %v4968 = vld [vmem:[%s610 + $0x208] sm:$0xff]
          %v4969 = vld [vmem:[%s610 + $0x210] sm:$0xff]
          %v4970 = vld [vmem:[%s610 + $0x218] sm:$0xff]
          %v4971 = vld [vmem:[%s610 + $0x220] sm:$0xff]
          %v4972 = vld [vmem:[%s610 + $0x228] sm:$0xff]
          %v4973 = vld [vmem:[%s610 + $0x230] sm:$0xff]
          %v4974 = vld [vmem:[%s610 + $0x238] sm:$0xff]
          %v4975 = vld [vmem:[%s610 + $0x240] sm:$0xff]
          %v4976 = vld [vmem:[%s610 + $0x248] sm:$0xff]
          %v4977 = vld [vmem:[%s610 + $0x250] sm:$0xff]
          %v4978 = vld [vmem:[%s610 + $0x258] sm:$0xff]
          %v4979 = vld [vmem:[%s610 + $0x260] sm:$0xff]
          %v4980 = vld [vmem:[%s610 + $0x268] sm:$0xff]
          %v4981 = vld [vmem:[%s610 + $0x270] sm:$0xff]
          %v4982 = vld [vmem:[%s610 + $0x278] sm:$0xff]
          %v4983 = vld [vmem:[%s610 + $0x280] sm:$0xff]
          %v4984 = vld [vmem:[%s610 + $0x288] sm:$0xff]
          %v4985 = vld [vmem:[%s610 + $0x290] sm:$0xff]
          %v4986 = vld [vmem:[%s610 + $0x298] sm:$0xff]
          %v4987 = vld [vmem:[%s610 + $0x2a0] sm:$0xff]
          %v4988 = vld [vmem:[%s610 + $0x2a8] sm:$0xff]
          %v4989 = vld [vmem:[%s610 + $0x2b0] sm:$0xff]
          %v4990 = vld [vmem:[%s610 + $0x2b8] sm:$0xff]
          %v4991 = vld [vmem:[%s610 + $0x2c0] sm:$0xff]
          %v4992 = vld [vmem:[%s610 + $0x2c8] sm:$0xff]
          %v4993 = vld [vmem:[%s610 + $0x2d0] sm:$0xff]
          %v4994 = vld [vmem:[%s610 + $0x2d8] sm:$0xff]
          %v4995 = vld [vmem:[%s610 + $0x2e0] sm:$0xff]
          %v4996 = vld [vmem:[%s610 + $0x2e8] sm:$0xff]
          %v4997 = vld [vmem:[%s610 + $0x2f0] sm:$0xff]
          %v4998 = vld [vmem:[%s610 + $0x2f8] sm:$0xff]
          %v4999 = vld [vmem:[%s610 + $0x300] sm:$0xff]
          %v5000 = vld [vmem:[%s610 + $0x308] sm:$0xff]
          %v5001 = vld [vmem:[%s610 + $0x310] sm:$0xff]
          %v5002 = vld [vmem:[%s610 + $0x318] sm:$0xff]
          %v5003 = vld [vmem:[%s610 + $0x320] sm:$0xff]
          %v5004 = vld [vmem:[%s610 + $0x328] sm:$0xff]
          %v5005 = vld [vmem:[%s610 + $0x330] sm:$0xff]
          %v5006 = vld [vmem:[%s610 + $0x338] sm:$0xff]
          %v5007 = vld [vmem:[%s610 + $0x340] sm:$0xff]
          %v5008 = vld [vmem:[%s610 + $0x348] sm:$0xff]
          %v5009 = vld [vmem:[%s610 + $0x350] sm:$0xff]
          %v5010 = vld [vmem:[%s610 + $0x358] sm:$0xff]
          %v5011 = vld [vmem:[%s610 + $0x360] sm:$0xff]
          %v5012 = vld [vmem:[%s610 + $0x368] sm:$0xff]
          %v5013 = vld [vmem:[%s610 + $0x370] sm:$0xff]
          %v5014 = vld [vmem:[%s610 + $0x378] sm:$0xff]
          %v5015 = vld [vmem:[%s610 + $0x380] sm:$0xff]
          %v5016 = vld [vmem:[%s610 + $0x388] sm:$0xff]
          %v5017 = vld [vmem:[%s610 + $0x390] sm:$0xff]
          %v5018 = vld [vmem:[%s610 + $0x398] sm:$0xff]
          %v5019 = vld [vmem:[%s610 + $0x3a0] sm:$0xff]
          %v5020 = vld [vmem:[%s610 + $0x3a8] sm:$0xff]
          %v5021 = vld [vmem:[%s610 + $0x3b0] sm:$0xff]
          %v5022 = vld [vmem:[%s610 + $0x3b8] sm:$0xff]
          %v5023 = vld [vmem:[%s610 + $0x3c0] sm:$0xff]
          %v5024 = vld [vmem:[%s610 + $0x3c8] sm:$0xff]
          %v5025 = vld [vmem:[%s610 + $0x3d0] sm:$0xff]
          %v5026 = vld [vmem:[%s610 + $0x3d8] sm:$0xff]
          %v5027 = vld [vmem:[%s610 + $0x3e0] sm:$0xff]
          %v5028 = vld [vmem:[%s610 + $0x3e8] sm:$0xff]
          %v5029 = vld [vmem:[%s610 + $0x3f0] sm:$0xff]
          %v5030 = vld [vmem:[%s610 + $0x3f8] sm:$0xff]
          %v5031 = vld [vmem:[%s610 + $0x400] sm:$0xff]
          %v5032 = vld [vmem:[%s610 + $0x408] sm:$0xff]
          %v5033 = vld [vmem:[%s610 + $0x410] sm:$0xff]
          %v5034 = vld [vmem:[%s610 + $0x418] sm:$0xff]
          %v5035 = vld [vmem:[%s610 + $0x420] sm:$0xff]
          %v5036 = vld [vmem:[%s610 + $0x428] sm:$0xff]
          %v5037 = vld [vmem:[%s610 + $0x430] sm:$0xff]
          %v5038 = vld [vmem:[%s610 + $0x438] sm:$0xff]
          %v5039 = vld [vmem:[%s610 + $0x440] sm:$0xff]
          %v5040 = vld [vmem:[%s610 + $0x448] sm:$0xff]
          %v5041 = vld [vmem:[%s610 + $0x450] sm:$0xff]
          %v5042 = vld [vmem:[%s610 + $0x458] sm:$0xff]
          %v5043 = vld [vmem:[%s610 + $0x460] sm:$0xff]
          %v5044 = vld [vmem:[%s610 + $0x468] sm:$0xff]
          %v5045 = vld [vmem:[%s610 + $0x470] sm:$0xff]
          %v5046 = vld [vmem:[%s610 + $0x478] sm:$0xff]
          %v5047 = vld [vmem:[%s610 + $0x480] sm:$0xff]
          %v5048 = vld [vmem:[%s610 + $0x488] sm:$0xff]
          %v5049 = vld [vmem:[%s610 + $0x490] sm:$0xff]
          %v5050 = vld [vmem:[%s610 + $0x498] sm:$0xff]
          %v5051 = vld [vmem:[%s610 + $0x4a0] sm:$0xff]
          %v5052 = vld [vmem:[%s610 + $0x4a8] sm:$0xff]
          %v5053 = vld [vmem:[%s610 + $0x4b0] sm:$0xff]
          %v5054 = vld [vmem:[%s610 + $0x4b8] sm:$0xff]
          %v5055 = vld [vmem:[%s610 + $0x4c0] sm:$0xff]
          %v5056 = vld [vmem:[%s610 + $0x4c8] sm:$0xff]
          %v5057 = vld [vmem:[%s610 + $0x4d0] sm:$0xff]
          %v5058 = vld [vmem:[%s610 + $0x4d8] sm:$0xff]
          %v5059 = vld [vmem:[%s610 + $0x4e0] sm:$0xff]
          %v5060 = vld [vmem:[%s610 + $0x4e8] sm:$0xff]
          %v5061 = vld [vmem:[%s610 + $0x4f0] sm:$0xff]
          %v5062 = vld [vmem:[%s610 + $0x4f8] sm:$0xff]
          %v5063 = vld [vmem:[%s610 + $0x500] sm:$0xff]
          %v5064 = vld [vmem:[%s610 + $0x508] sm:$0xff]
          %v5065 = vld [vmem:[%s610 + $0x510] sm:$0xff]
          %v5066 = vld [vmem:[%s610 + $0x518] sm:$0xff]
          %v5067 = vld [vmem:[%s610 + $0x520] sm:$0xff]
          %v5068 = vld [vmem:[%s610 + $0x528] sm:$0xff]
          %v5069 = vld [vmem:[%s610 + $0x530] sm:$0xff]
          %v5070 = vld [vmem:[%s610 + $0x538] sm:$0xff]
          %v5071 = vld [vmem:[%s610 + $0x540] sm:$0xff]
          %v5072 = vld [vmem:[%s610 + $0x548] sm:$0xff]
          %v5073 = vld [vmem:[%s610 + $0x550] sm:$0xff]
          %v5074 = vld [vmem:[%s610 + $0x558] sm:$0xff]
          %v5075 = vld [vmem:[%s610 + $0x560] sm:$0xff]
          %v5076 = vld [vmem:[%s610 + $0x568] sm:$0xff]
          %v5077 = vld [vmem:[%s610 + $0x570] sm:$0xff]
          %v5078 = vld [vmem:[%s610 + $0x578] sm:$0xff]
          %v5079 = vld [vmem:[%s610 + $0x580] sm:$0xff]
          %v5080 = vld [vmem:[%s610 + $0x588] sm:$0xff]
          %v5081 = vld [vmem:[%s610 + $0x590] sm:$0xff]
          %v5082 = vld [vmem:[%s610 + $0x598] sm:$0xff]
          %v5083 = vld [vmem:[%s610 + $0x5a0] sm:$0xff]
          %v5084 = vld [vmem:[%s610 + $0x5a8] sm:$0xff]
          %v5085 = vld [vmem:[%s610 + $0x5b0] sm:$0xff]
          %v5086 = vld [vmem:[%s610 + $0x5b8] sm:$0xff]
          %v5087 = vld [vmem:[%s610 + $0x5c0] sm:$0xff]
          %v5088 = vld [vmem:[%s610 + $0x5c8] sm:$0xff]
          %v5089 = vld [vmem:[%s610 + $0x5d0] sm:$0xff]
          %v5090 = vld [vmem:[%s610 + $0x5d8] sm:$0xff]
          %v5091 = vld [vmem:[%s610 + $0x5e0] sm:$0xff]
          %v5092 = vld [vmem:[%s610 + $0x5e8] sm:$0xff]
          %v5093 = vld [vmem:[%s610 + $0x5f0] sm:$0xff]
          %v5094 = vld [vmem:[%s610 + $0x5f8] sm:$0xff]
          %v5095 = vld [vmem:[%s610 + $0x600] sm:$0xff]
          %v5096 = vld [vmem:[%s610 + $0x608] sm:$0xff]
          %v5097 = vld [vmem:[%s610 + $0x610] sm:$0xff]
          %v5098 = vld [vmem:[%s610 + $0x618] sm:$0xff]
          %v5099 = vld [vmem:[%s610 + $0x620] sm:$0xff]
          %v5100 = vld [vmem:[%s610 + $0x628] sm:$0xff]
          %v5101 = vld [vmem:[%s610 + $0x630] sm:$0xff]
          %v5102 = vld [vmem:[%s610 + $0x638] sm:$0xff]
          %v5103 = vld [vmem:[%s610 + $0x640] sm:$0xff]
          %v5104 = vld [vmem:[%s610 + $0x648] sm:$0xff]
          %v5105 = vld [vmem:[%s610 + $0x650] sm:$0xff]
          %v5106 = vld [vmem:[%s610 + $0x658] sm:$0xff]
          %v5107 = vld [vmem:[%s610 + $0x660] sm:$0xff]
          %v5108 = vld [vmem:[%s610 + $0x668] sm:$0xff]
          %v5109 = vld [vmem:[%s610 + $0x670] sm:$0xff]
          %v5110 = vld [vmem:[%s610 + $0x678] sm:$0xff]
          %v5111 = vld [vmem:[%s610 + $0x680] sm:$0xff]
          %v5112 = vld [vmem:[%s610 + $0x688] sm:$0xff]
          %v5113 = vld [vmem:[%s610 + $0x690] sm:$0xff]
          %v5114 = vld [vmem:[%s610 + $0x698] sm:$0xff]
          %v5115 = vld [vmem:[%s610 + $0x6a0] sm:$0xff]
          %v5116 = vld [vmem:[%s610 + $0x6a8] sm:$0xff]
          %v5117 = vld [vmem:[%s610 + $0x6b0] sm:$0xff]
          %v5118 = vld [vmem:[%s610 + $0x6b8] sm:$0xff]
          %v5119 = vld [vmem:[%s610 + $0x6c0] sm:$0xff]
          %v5120 = vld [vmem:[%s610 + $0x6c8] sm:$0xff]
          %v5121 = vld [vmem:[%s610 + $0x6d0] sm:$0xff]
          %v5122 = vld [vmem:[%s610 + $0x6d8] sm:$0xff]
          %v5123 = vld [vmem:[%s610 + $0x6e0] sm:$0xff]
          %v5124 = vld [vmem:[%s610 + $0x6e8] sm:$0xff]
          %v5125 = vld [vmem:[%s610 + $0x6f0] sm:$0xff]
          %v5126 = vld [vmem:[%s610 + $0x6f8] sm:$0xff]
          %v5127 = vld [vmem:[%s610 + $0x700] sm:$0xff]
          %v5128 = vld [vmem:[%s610 + $0x708] sm:$0xff]
          %v5129 = vld [vmem:[%s610 + $0x710] sm:$0xff]
          %v5130 = vld [vmem:[%s610 + $0x718] sm:$0xff]
          %v5131 = vld [vmem:[%s610 + $0x720] sm:$0xff]
          %v5132 = vld [vmem:[%s610 + $0x728] sm:$0xff]
          %v5133 = vld [vmem:[%s610 + $0x730] sm:$0xff]
          %v5134 = vld [vmem:[%s610 + $0x738] sm:$0xff]
          %v5135 = vld [vmem:[%s610 + $0x740] sm:$0xff]
          %v5136 = vld [vmem:[%s610 + $0x748] sm:$0xff]
          %v5137 = vld [vmem:[%s610 + $0x750] sm:$0xff]
          %v5138 = vld [vmem:[%s610 + $0x758] sm:$0xff]
          %v5139 = vld [vmem:[%s610 + $0x760] sm:$0xff]
          %v5140 = vld [vmem:[%s610 + $0x768] sm:$0xff]
          %v5141 = vld [vmem:[%s610 + $0x770] sm:$0xff]
          %v5142 = vld [vmem:[%s610 + $0x778] sm:$0xff]
          %v5143 = vld [vmem:[%s610 + $0x780] sm:$0xff]
          %v5144 = vld [vmem:[%s610 + $0x788] sm:$0xff]
          %v5145 = vld [vmem:[%s610 + $0x790] sm:$0xff]
          %v5146 = vld [vmem:[%s610 + $0x798] sm:$0xff]
          %v5147 = vld [vmem:[%s610 + $0x7a0] sm:$0xff]
          %v5148 = vld [vmem:[%s610 + $0x7a8] sm:$0xff]
          %v5149 = vld [vmem:[%s610 + $0x7b0] sm:$0xff]
          %v5150 = vld [vmem:[%s610 + $0x7b8] sm:$0xff]
          %v5151 = vld [vmem:[%s610 + $0x7c0] sm:$0xff]
          %v5152 = vld [vmem:[%s610 + $0x7c8] sm:$0xff]
          %v5153 = vld [vmem:[%s610 + $0x7d0] sm:$0xff]
          %v5154 = vld [vmem:[%s610 + $0x7d8] sm:$0xff]
          %v5155 = vld [vmem:[%s610 + $0x7e0] sm:$0xff]
          %v5156 = vld [vmem:[%s610 + $0x7e8] sm:$0xff]
          %v5157 = vld [vmem:[%s610 + $0x7f0] sm:$0xff]
          %v5158 = vld [vmem:[%s610 + $0x7f8] sm:$0xff]
          %v5159 = vld [vmem:[%s619] sm:$0xf]
          %v5161 = vlaneseq
          %v5162 = vshrl.u32 %v5161, 7
          %v5163 = vsub.s32 0, %v5162
          %v5164 = vrot.slane %v5159, %v5163
          %v5165 = vlaneseq
          %v5166 = vshrl.u32 %v5165, 7
          %v5167 = vsub.s32 1, %v5166
          %v5168 = vrot.slane %v5159, %v5167
          %v5169 = vlaneseq
          %v5170 = vshrl.u32 %v5169, 7
          %v5171 = vsub.s32 2, %v5170
          %v5172 = vrot.slane %v5159, %v5171
          %v5173 = vlaneseq
          %v5174 = vshrl.u32 %v5173, 7
          %v5175 = vsub.s32 3, %v5174
          %v5176 = vrot.slane %v5159, %v5175
          %v5437 = vunpack.c.l.b16 %v4903
          %v5438 = vunpack.c.h.b16 %v4903
          %v5439 = vunpack.c.l.b16 %v4904
          %v5440 = vunpack.c.h.b16 %v4904
          %v5441 = vunpack.c.l.b16 %v4905
          %v5442 = vunpack.c.h.b16 %v4905
          %v5443 = vunpack.c.l.b16 %v4906
          %v5444 = vunpack.c.h.b16 %v4906
          %v5445 = vunpack.c.l.b16 %v4907
          %v5446 = vunpack.c.h.b16 %v4907
          %v5447 = vunpack.c.l.b16 %v4908
          %v5448 = vunpack.c.h.b16 %v4908
          %v5449 = vunpack.c.l.b16 %v4909
          %v5450 = vunpack.c.h.b16 %v4909
          %v5451 = vunpack.c.l.b16 %v4910
          %v5452 = vunpack.c.h.b16 %v4910
          %v5453 = vunpack.c.l.b16 %v4911
          %v5454 = vunpack.c.h.b16 %v4911
          %v5455 = vunpack.c.l.b16 %v4912
          %v5456 = vunpack.c.h.b16 %v4912
          %v5457 = vunpack.c.l.b16 %v4913
          %v5458 = vunpack.c.h.b16 %v4913
          %v5459 = vunpack.c.l.b16 %v4914
          %v5460 = vunpack.c.h.b16 %v4914
          %v5461 = vunpack.c.l.b16 %v4915
          %v5462 = vunpack.c.h.b16 %v4915
          %v5463 = vunpack.c.l.b16 %v4916
          %v5464 = vunpack.c.h.b16 %v4916
          %v5465 = vunpack.c.l.b16 %v4917
          %v5466 = vunpack.c.h.b16 %v4917
          %v5467 = vunpack.c.l.b16 %v4918
          %v5468 = vunpack.c.h.b16 %v4918
          %v5469 = vunpack.c.l.b16 %v4919
          %v5470 = vunpack.c.h.b16 %v4919
          %v5471 = vunpack.c.l.b16 %v4920
          %v5472 = vunpack.c.h.b16 %v4920
          %v5473 = vunpack.c.l.b16 %v4921
          %v5474 = vunpack.c.h.b16 %v4921
          %v5475 = vunpack.c.l.b16 %v4922
          %v5476 = vunpack.c.h.b16 %v4922
          %v5477 = vunpack.c.l.b16 %v4923
          %v5478 = vunpack.c.h.b16 %v4923
          %v5479 = vunpack.c.l.b16 %v4924
          %v5480 = vunpack.c.h.b16 %v4924
          %v5481 = vunpack.c.l.b16 %v4925
          %v5482 = vunpack.c.h.b16 %v4925
          %v5483 = vunpack.c.l.b16 %v4926
          %v5484 = vunpack.c.h.b16 %v4926
          %v5485 = vunpack.c.l.b16 %v4927
          %v5486 = vunpack.c.h.b16 %v4927
          %v5487 = vunpack.c.l.b16 %v4928
          %v5488 = vunpack.c.h.b16 %v4928
          %v5489 = vunpack.c.l.b16 %v4929
          %v5490 = vunpack.c.h.b16 %v4929
          %v5491 = vunpack.c.l.b16 %v4930
          %v5492 = vunpack.c.h.b16 %v4930
          %v5493 = vunpack.c.l.b16 %v4931
          %v5494 = vunpack.c.h.b16 %v4931
          %v5495 = vunpack.c.l.b16 %v4932
          %v5496 = vunpack.c.h.b16 %v4932
          %v5497 = vunpack.c.l.b16 %v4933
          %v5498 = vunpack.c.h.b16 %v4933
          %v5499 = vunpack.c.l.b16 %v4934
          %v5500 = vunpack.c.h.b16 %v4934
          %v5501 = vunpack.c.l.b16 %v4935
          %v5502 = vunpack.c.h.b16 %v4935
          %v5503 = vunpack.c.l.b16 %v4936
          %v5504 = vunpack.c.h.b16 %v4936
          %v5505 = vunpack.c.l.b16 %v4937
          %v5506 = vunpack.c.h.b16 %v4937
          %v5507 = vunpack.c.l.b16 %v4938
          %v5508 = vunpack.c.h.b16 %v4938
          %v5509 = vunpack.c.l.b16 %v4939
          %v5510 = vunpack.c.h.b16 %v4939
          %v5511 = vunpack.c.l.b16 %v4940
          %v5512 = vunpack.c.h.b16 %v4940
          %v5513 = vunpack.c.l.b16 %v4941
          %v5514 = vunpack.c.h.b16 %v4941
          %v5515 = vunpack.c.l.b16 %v4942
          %v5516 = vunpack.c.h.b16 %v4942
          %v5517 = vunpack.c.l.b16 %v4943
          %v5518 = vunpack.c.h.b16 %v4943
          %v5519 = vunpack.c.l.b16 %v4944
          %v5520 = vunpack.c.h.b16 %v4944
          %v5521 = vunpack.c.l.b16 %v4945
          %v5522 = vunpack.c.h.b16 %v4945
          %v5523 = vunpack.c.l.b16 %v4946
          %v5524 = vunpack.c.h.b16 %v4946
          %v5525 = vunpack.c.l.b16 %v4947
          %v5526 = vunpack.c.h.b16 %v4947
          %v5527 = vunpack.c.l.b16 %v4948
          %v5528 = vunpack.c.h.b16 %v4948
          %v5529 = vunpack.c.l.b16 %v4949
          %v5530 = vunpack.c.h.b16 %v4949
          %v5531 = vunpack.c.l.b16 %v4950
          %v5532 = vunpack.c.h.b16 %v4950
          %v5533 = vunpack.c.l.b16 %v4951
          %v5534 = vunpack.c.h.b16 %v4951
          %v5535 = vunpack.c.l.b16 %v4952
          %v5536 = vunpack.c.h.b16 %v4952
          %v5537 = vunpack.c.l.b16 %v4953
          %v5538 = vunpack.c.h.b16 %v4953
          %v5539 = vunpack.c.l.b16 %v4954
          %v5540 = vunpack.c.h.b16 %v4954
          %v5541 = vunpack.c.l.b16 %v4955
          %v5542 = vunpack.c.h.b16 %v4955
          %v5543 = vunpack.c.l.b16 %v4956
          %v5544 = vunpack.c.h.b16 %v4956
          %v5545 = vunpack.c.l.b16 %v4957
          %v5546 = vunpack.c.h.b16 %v4957
          %v5547 = vunpack.c.l.b16 %v4958
          %v5548 = vunpack.c.h.b16 %v4958
          %v5549 = vunpack.c.l.b16 %v4959
          %v5550 = vunpack.c.h.b16 %v4959
          %v5551 = vunpack.c.l.b16 %v4960
          %v5552 = vunpack.c.h.b16 %v4960
          %v5553 = vunpack.c.l.b16 %v4961
          %v5554 = vunpack.c.h.b16 %v4961
          %v5555 = vunpack.c.l.b16 %v4962
          %v5556 = vunpack.c.h.b16 %v4962
          %v5557 = vunpack.c.l.b16 %v4963
          %v5558 = vunpack.c.h.b16 %v4963
          %v5559 = vunpack.c.l.b16 %v4964
          %v5560 = vunpack.c.h.b16 %v4964
          %v5561 = vunpack.c.l.b16 %v4965
          %v5562 = vunpack.c.h.b16 %v4965
          %v5563 = vunpack.c.l.b16 %v4966
          %v5564 = vunpack.c.h.b16 %v4966
          %v5565 = vunpack.c.l.b16 %v4967
          %v5566 = vunpack.c.h.b16 %v4967
          %v5567 = vunpack.c.l.b16 %v4968
          %v5568 = vunpack.c.h.b16 %v4968
          %v5569 = vunpack.c.l.b16 %v4969
          %v5570 = vunpack.c.h.b16 %v4969
          %v5571 = vunpack.c.l.b16 %v4970
          %v5572 = vunpack.c.h.b16 %v4970
          %v5573 = vunpack.c.l.b16 %v4971
          %v5574 = vunpack.c.h.b16 %v4971
          %v5575 = vunpack.c.l.b16 %v4972
          %v5576 = vunpack.c.h.b16 %v4972
          %v5577 = vunpack.c.l.b16 %v4973
          %v5578 = vunpack.c.h.b16 %v4973
          %v5579 = vunpack.c.l.b16 %v4974
          %v5580 = vunpack.c.h.b16 %v4974
          %v5581 = vunpack.c.l.b16 %v4975
          %v5582 = vunpack.c.h.b16 %v4975
          %v5583 = vunpack.c.l.b16 %v4976
          %v5584 = vunpack.c.h.b16 %v4976
          %v5585 = vunpack.c.l.b16 %v4977
          %v5586 = vunpack.c.h.b16 %v4977
          %v5587 = vunpack.c.l.b16 %v4978
          %v5588 = vunpack.c.h.b16 %v4978
          %v5589 = vunpack.c.l.b16 %v4979
          %v5590 = vunpack.c.h.b16 %v4979
          %v5591 = vunpack.c.l.b16 %v4980
          %v5592 = vunpack.c.h.b16 %v4980
          %v5593 = vunpack.c.l.b16 %v4981
          %v5594 = vunpack.c.h.b16 %v4981
          %v5595 = vunpack.c.l.b16 %v4982
          %v5596 = vunpack.c.h.b16 %v4982
          %v5597 = vunpack.c.l.b16 %v4983
          %v5598 = vunpack.c.h.b16 %v4983
          %v5599 = vunpack.c.l.b16 %v4984
          %v5600 = vunpack.c.h.b16 %v4984
          %v5601 = vunpack.c.l.b16 %v4985
          %v5602 = vunpack.c.h.b16 %v4985
          %v5603 = vunpack.c.l.b16 %v4986
          %v5604 = vunpack.c.h.b16 %v4986
          %v5605 = vunpack.c.l.b16 %v4987
          %v5606 = vunpack.c.h.b16 %v4987
          %v5607 = vunpack.c.l.b16 %v4988
          %v5608 = vunpack.c.h.b16 %v4988
          %v5609 = vunpack.c.l.b16 %v4989
          %v5610 = vunpack.c.h.b16 %v4989
          %v5611 = vunpack.c.l.b16 %v4990
          %v5612 = vunpack.c.h.b16 %v4990
          %v5613 = vunpack.c.l.b16 %v4991
          %v5614 = vunpack.c.h.b16 %v4991
          %v5615 = vunpack.c.l.b16 %v4992
          %v5616 = vunpack.c.h.b16 %v4992
          %v5617 = vunpack.c.l.b16 %v4993
          %v5618 = vunpack.c.h.b16 %v4993
          %v5619 = vunpack.c.l.b16 %v4994
          %v5620 = vunpack.c.h.b16 %v4994
          %v5621 = vunpack.c.l.b16 %v4995
          %v5622 = vunpack.c.h.b16 %v4995
          %v5623 = vunpack.c.l.b16 %v4996
          %v5624 = vunpack.c.h.b16 %v4996
          %v5625 = vunpack.c.l.b16 %v4997
          %v5626 = vunpack.c.h.b16 %v4997
          %v5627 = vunpack.c.l.b16 %v4998
          %v5628 = vunpack.c.h.b16 %v4998
          %v5629 = vunpack.c.l.b16 %v4999
          %v5630 = vunpack.c.h.b16 %v4999
          %v5631 = vunpack.c.l.b16 %v5000
          %v5632 = vunpack.c.h.b16 %v5000
          %v5633 = vunpack.c.l.b16 %v5001
          %v5634 = vunpack.c.h.b16 %v5001
          %v5635 = vunpack.c.l.b16 %v5002
          %v5636 = vunpack.c.h.b16 %v5002
          %v5637 = vunpack.c.l.b16 %v5003
          %v5638 = vunpack.c.h.b16 %v5003
          %v5639 = vunpack.c.l.b16 %v5004
          %v5640 = vunpack.c.h.b16 %v5004
          %v5641 = vunpack.c.l.b16 %v5005
          %v5642 = vunpack.c.h.b16 %v5005
          %v5643 = vunpack.c.l.b16 %v5006
          %v5644 = vunpack.c.h.b16 %v5006
          %v5645 = vunpack.c.l.b16 %v5007
          %v5646 = vunpack.c.h.b16 %v5007
          %v5647 = vunpack.c.l.b16 %v5008
          %v5648 = vunpack.c.h.b16 %v5008
          %v5649 = vunpack.c.l.b16 %v5009
          %v5650 = vunpack.c.h.b16 %v5009
          %v5651 = vunpack.c.l.b16 %v5010
          %v5652 = vunpack.c.h.b16 %v5010
          %v5653 = vunpack.c.l.b16 %v5011
          %v5654 = vunpack.c.h.b16 %v5011
          %v5655 = vunpack.c.l.b16 %v5012
          %v5656 = vunpack.c.h.b16 %v5012
          %v5657 = vunpack.c.l.b16 %v5013
          %v5658 = vunpack.c.h.b16 %v5013
          %v5659 = vunpack.c.l.b16 %v5014
          %v5660 = vunpack.c.h.b16 %v5014
          %v5661 = vunpack.c.l.b16 %v5015
          %v5662 = vunpack.c.h.b16 %v5015
          %v5663 = vunpack.c.l.b16 %v5016
          %v5664 = vunpack.c.h.b16 %v5016
          %v5665 = vunpack.c.l.b16 %v5017
          %v5666 = vunpack.c.h.b16 %v5017
          %v5667 = vunpack.c.l.b16 %v5018
          %v5668 = vunpack.c.h.b16 %v5018
          %v5669 = vunpack.c.l.b16 %v5019
          %v5670 = vunpack.c.h.b16 %v5019
          %v5671 = vunpack.c.l.b16 %v5020
          %v5672 = vunpack.c.h.b16 %v5020
          %v5673 = vunpack.c.l.b16 %v5021
          %v5674 = vunpack.c.h.b16 %v5021
          %v5675 = vunpack.c.l.b16 %v5022
          %v5676 = vunpack.c.h.b16 %v5022
          %v5677 = vunpack.c.l.b16 %v5023
          %v5678 = vunpack.c.h.b16 %v5023
          %v5679 = vunpack.c.l.b16 %v5024
          %v5680 = vunpack.c.h.b16 %v5024
          %v5681 = vunpack.c.l.b16 %v5025
          %v5682 = vunpack.c.h.b16 %v5025
          %v5683 = vunpack.c.l.b16 %v5026
          %v5684 = vunpack.c.h.b16 %v5026
          %v5685 = vunpack.c.l.b16 %v5027
          %v5686 = vunpack.c.h.b16 %v5027
          %v5687 = vunpack.c.l.b16 %v5028
          %v5688 = vunpack.c.h.b16 %v5028
          %v5689 = vunpack.c.l.b16 %v5029
          %v5690 = vunpack.c.h.b16 %v5029
          %v5691 = vunpack.c.l.b16 %v5030
          %v5692 = vunpack.c.h.b16 %v5030
          %v5693 = vunpack.c.l.b16 %v5031
          %v5694 = vunpack.c.h.b16 %v5031
          %v5695 = vunpack.c.l.b16 %v5032
          %v5696 = vunpack.c.h.b16 %v5032
          %v5697 = vunpack.c.l.b16 %v5033
          %v5698 = vunpack.c.h.b16 %v5033
          %v5699 = vunpack.c.l.b16 %v5034
          %v5700 = vunpack.c.h.b16 %v5034
          %v5701 = vunpack.c.l.b16 %v5035
          %v5702 = vunpack.c.h.b16 %v5035
          %v5703 = vunpack.c.l.b16 %v5036
          %v5704 = vunpack.c.h.b16 %v5036
          %v5705 = vunpack.c.l.b16 %v5037
          %v5706 = vunpack.c.h.b16 %v5037
          %v5707 = vunpack.c.l.b16 %v5038
          %v5708 = vunpack.c.h.b16 %v5038
          %v5709 = vunpack.c.l.b16 %v5039
          %v5710 = vunpack.c.h.b16 %v5039
          %v5711 = vunpack.c.l.b16 %v5040
          %v5712 = vunpack.c.h.b16 %v5040
          %v5713 = vunpack.c.l.b16 %v5041
          %v5714 = vunpack.c.h.b16 %v5041
          %v5715 = vunpack.c.l.b16 %v5042
          %v5716 = vunpack.c.h.b16 %v5042
          %v5717 = vunpack.c.l.b16 %v5043
          %v5718 = vunpack.c.h.b16 %v5043
          %v5719 = vunpack.c.l.b16 %v5044
          %v5720 = vunpack.c.h.b16 %v5044
          %v5721 = vunpack.c.l.b16 %v5045
          %v5722 = vunpack.c.h.b16 %v5045
          %v5723 = vunpack.c.l.b16 %v5046
          %v5724 = vunpack.c.h.b16 %v5046
          %v5725 = vunpack.c.l.b16 %v5047
          %v5726 = vunpack.c.h.b16 %v5047
          %v5727 = vunpack.c.l.b16 %v5048
          %v5728 = vunpack.c.h.b16 %v5048
          %v5729 = vunpack.c.l.b16 %v5049
          %v5730 = vunpack.c.h.b16 %v5049
          %v5731 = vunpack.c.l.b16 %v5050
          %v5732 = vunpack.c.h.b16 %v5050
          %v5733 = vunpack.c.l.b16 %v5051
          %v5734 = vunpack.c.h.b16 %v5051
          %v5735 = vunpack.c.l.b16 %v5052
          %v5736 = vunpack.c.h.b16 %v5052
          %v5737 = vunpack.c.l.b16 %v5053
          %v5738 = vunpack.c.h.b16 %v5053
          %v5739 = vunpack.c.l.b16 %v5054
          %v5740 = vunpack.c.h.b16 %v5054
          %v5741 = vunpack.c.l.b16 %v5055
          %v5742 = vunpack.c.h.b16 %v5055
          %v5743 = vunpack.c.l.b16 %v5056
          %v5744 = vunpack.c.h.b16 %v5056
          %v5745 = vunpack.c.l.b16 %v5057
          %v5746 = vunpack.c.h.b16 %v5057
          %v5747 = vunpack.c.l.b16 %v5058
          %v5748 = vunpack.c.h.b16 %v5058
          %v5749 = vunpack.c.l.b16 %v5059
          %v5750 = vunpack.c.h.b16 %v5059
          %v5751 = vunpack.c.l.b16 %v5060
          %v5752 = vunpack.c.h.b16 %v5060
          %v5753 = vunpack.c.l.b16 %v5061
          %v5754 = vunpack.c.h.b16 %v5061
          %v5755 = vunpack.c.l.b16 %v5062
          %v5756 = vunpack.c.h.b16 %v5062
          %v5757 = vunpack.c.l.b16 %v5063
          %v5758 = vunpack.c.h.b16 %v5063
          %v5759 = vunpack.c.l.b16 %v5064
          %v5760 = vunpack.c.h.b16 %v5064
          %v5761 = vunpack.c.l.b16 %v5065
          %v5762 = vunpack.c.h.b16 %v5065
          %v5763 = vunpack.c.l.b16 %v5066
          %v5764 = vunpack.c.h.b16 %v5066
          %v5765 = vunpack.c.l.b16 %v5067
          %v5766 = vunpack.c.h.b16 %v5067
          %v5767 = vunpack.c.l.b16 %v5068
          %v5768 = vunpack.c.h.b16 %v5068
          %v5769 = vunpack.c.l.b16 %v5069
          %v5770 = vunpack.c.h.b16 %v5069
          %v5771 = vunpack.c.l.b16 %v5070
          %v5772 = vunpack.c.h.b16 %v5070
          %v5773 = vunpack.c.l.b16 %v5071
          %v5774 = vunpack.c.h.b16 %v5071
          %v5775 = vunpack.c.l.b16 %v5072
          %v5776 = vunpack.c.h.b16 %v5072
          %v5777 = vunpack.c.l.b16 %v5073
          %v5778 = vunpack.c.h.b16 %v5073
          %v5779 = vunpack.c.l.b16 %v5074
          %v5780 = vunpack.c.h.b16 %v5074
          %v5781 = vunpack.c.l.b16 %v5075
          %v5782 = vunpack.c.h.b16 %v5075
          %v5783 = vunpack.c.l.b16 %v5076
          %v5784 = vunpack.c.h.b16 %v5076
          %v5785 = vunpack.c.l.b16 %v5077
          %v5786 = vunpack.c.h.b16 %v5077
          %v5787 = vunpack.c.l.b16 %v5078
          %v5788 = vunpack.c.h.b16 %v5078
          %v5789 = vunpack.c.l.b16 %v5079
          %v5790 = vunpack.c.h.b16 %v5079
          %v5791 = vunpack.c.l.b16 %v5080
          %v5792 = vunpack.c.h.b16 %v5080
          %v5793 = vunpack.c.l.b16 %v5081
          %v5794 = vunpack.c.h.b16 %v5081
          %v5795 = vunpack.c.l.b16 %v5082
          %v5796 = vunpack.c.h.b16 %v5082
          %v5797 = vunpack.c.l.b16 %v5083
          %v5798 = vunpack.c.h.b16 %v5083
          %v5799 = vunpack.c.l.b16 %v5084
          %v5800 = vunpack.c.h.b16 %v5084
          %v5801 = vunpack.c.l.b16 %v5085
          %v5802 = vunpack.c.h.b16 %v5085
          %v5803 = vunpack.c.l.b16 %v5086
          %v5804 = vunpack.c.h.b16 %v5086
          %v5805 = vunpack.c.l.b16 %v5087
          %v5806 = vunpack.c.h.b16 %v5087
          %v5807 = vunpack.c.l.b16 %v5088
          %v5808 = vunpack.c.h.b16 %v5088
          %v5809 = vunpack.c.l.b16 %v5089
          %v5810 = vunpack.c.h.b16 %v5089
          %v5811 = vunpack.c.l.b16 %v5090
          %v5812 = vunpack.c.h.b16 %v5090
          %v5813 = vunpack.c.l.b16 %v5091
          %v5814 = vunpack.c.h.b16 %v5091
          %v5815 = vunpack.c.l.b16 %v5092
          %v5816 = vunpack.c.h.b16 %v5092
          %v5817 = vunpack.c.l.b16 %v5093
          %v5818 = vunpack.c.h.b16 %v5093
          %v5819 = vunpack.c.l.b16 %v5094
          %v5820 = vunpack.c.h.b16 %v5094
          %v5821 = vunpack.c.l.b16 %v5095
          %v5822 = vunpack.c.h.b16 %v5095
          %v5823 = vunpack.c.l.b16 %v5096
          %v5824 = vunpack.c.h.b16 %v5096
          %v5825 = vunpack.c.l.b16 %v5097
          %v5826 = vunpack.c.h.b16 %v5097
          %v5827 = vunpack.c.l.b16 %v5098
          %v5828 = vunpack.c.h.b16 %v5098
          %v5829 = vunpack.c.l.b16 %v5099
          %v5830 = vunpack.c.h.b16 %v5099
          %v5831 = vunpack.c.l.b16 %v5100
          %v5832 = vunpack.c.h.b16 %v5100
          %v5833 = vunpack.c.l.b16 %v5101
          %v5834 = vunpack.c.h.b16 %v5101
          %v5835 = vunpack.c.l.b16 %v5102
          %v5836 = vunpack.c.h.b16 %v5102
          %v5837 = vunpack.c.l.b16 %v5103
          %v5838 = vunpack.c.h.b16 %v5103
          %v5839 = vunpack.c.l.b16 %v5104
          %v5840 = vunpack.c.h.b16 %v5104
          %v5841 = vunpack.c.l.b16 %v5105
          %v5842 = vunpack.c.h.b16 %v5105
          %v5843 = vunpack.c.l.b16 %v5106
          %v5844 = vunpack.c.h.b16 %v5106
          %v5845 = vunpack.c.l.b16 %v5107
          %v5846 = vunpack.c.h.b16 %v5107
          %v5847 = vunpack.c.l.b16 %v5108
          %v5848 = vunpack.c.h.b16 %v5108
          %v5849 = vunpack.c.l.b16 %v5109
          %v5850 = vunpack.c.h.b16 %v5109
          %v5851 = vunpack.c.l.b16 %v5110
          %v5852 = vunpack.c.h.b16 %v5110
          %v5853 = vunpack.c.l.b16 %v5111
          %v5854 = vunpack.c.h.b16 %v5111
          %v5855 = vunpack.c.l.b16 %v5112
          %v5856 = vunpack.c.h.b16 %v5112
          %v5857 = vunpack.c.l.b16 %v5113
          %v5858 = vunpack.c.h.b16 %v5113
          %v5859 = vunpack.c.l.b16 %v5114
          %v5860 = vunpack.c.h.b16 %v5114
          %v5861 = vunpack.c.l.b16 %v5115
          %v5862 = vunpack.c.h.b16 %v5115
          %v5863 = vunpack.c.l.b16 %v5116
          %v5864 = vunpack.c.h.b16 %v5116
          %v5865 = vunpack.c.l.b16 %v5117
          %v5866 = vunpack.c.h.b16 %v5117
          %v5867 = vunpack.c.l.b16 %v5118
          %v5868 = vunpack.c.h.b16 %v5118
          %v5869 = vunpack.c.l.b16 %v5119
          %v5870 = vunpack.c.h.b16 %v5119
          %v5871 = vunpack.c.l.b16 %v5120
          %v5872 = vunpack.c.h.b16 %v5120
          %v5873 = vunpack.c.l.b16 %v5121
          %v5874 = vunpack.c.h.b16 %v5121
          %v5875 = vunpack.c.l.b16 %v5122
          %v5876 = vunpack.c.h.b16 %v5122
          %v5877 = vunpack.c.l.b16 %v5123
          %v5878 = vunpack.c.h.b16 %v5123
          %v5879 = vunpack.c.l.b16 %v5124
          %v5880 = vunpack.c.h.b16 %v5124
          %v5881 = vunpack.c.l.b16 %v5125
          %v5882 = vunpack.c.h.b16 %v5125
          %v5883 = vunpack.c.l.b16 %v5126
          %v5884 = vunpack.c.h.b16 %v5126
          %v5885 = vunpack.c.l.b16 %v5127
          %v5886 = vunpack.c.h.b16 %v5127
          %v5887 = vunpack.c.l.b16 %v5128
          %v5888 = vunpack.c.h.b16 %v5128
          %v5889 = vunpack.c.l.b16 %v5129
          %v5890 = vunpack.c.h.b16 %v5129
          %v5891 = vunpack.c.l.b16 %v5130
          %v5892 = vunpack.c.h.b16 %v5130
          %v5893 = vunpack.c.l.b16 %v5131
          %v5894 = vunpack.c.h.b16 %v5131
          %v5895 = vunpack.c.l.b16 %v5132
          %v5896 = vunpack.c.h.b16 %v5132
          %v5897 = vunpack.c.l.b16 %v5133
          %v5898 = vunpack.c.h.b16 %v5133
          %v5899 = vunpack.c.l.b16 %v5134
          %v5900 = vunpack.c.h.b16 %v5134
          %v5901 = vunpack.c.l.b16 %v5135
          %v5902 = vunpack.c.h.b16 %v5135
          %v5903 = vunpack.c.l.b16 %v5136
          %v5904 = vunpack.c.h.b16 %v5136
          %v5905 = vunpack.c.l.b16 %v5137
          %v5906 = vunpack.c.h.b16 %v5137
          %v5907 = vunpack.c.l.b16 %v5138
          %v5908 = vunpack.c.h.b16 %v5138
          %v5909 = vunpack.c.l.b16 %v5139
          %v5910 = vunpack.c.h.b16 %v5139
          %v5911 = vunpack.c.l.b16 %v5140
          %v5912 = vunpack.c.h.b16 %v5140
          %v5913 = vunpack.c.l.b16 %v5141
          %v5914 = vunpack.c.h.b16 %v5141
          %v5915 = vunpack.c.l.b16 %v5142
          %v5916 = vunpack.c.h.b16 %v5142
          %v5917 = vunpack.c.l.b16 %v5143
          %v5918 = vunpack.c.h.b16 %v5143
          %v5919 = vunpack.c.l.b16 %v5144
          %v5920 = vunpack.c.h.b16 %v5144
          %v5921 = vunpack.c.l.b16 %v5145
          %v5922 = vunpack.c.h.b16 %v5145
          %v5923 = vunpack.c.l.b16 %v5146
          %v5924 = vunpack.c.h.b16 %v5146
          %v5925 = vunpack.c.l.b16 %v5147
          %v5926 = vunpack.c.h.b16 %v5147
          %v5927 = vunpack.c.l.b16 %v5148
          %v5928 = vunpack.c.h.b16 %v5148
          %v5929 = vunpack.c.l.b16 %v5149
          %v5930 = vunpack.c.h.b16 %v5149
          %v5931 = vunpack.c.l.b16 %v5150
          %v5932 = vunpack.c.h.b16 %v5150
          %v5933 = vunpack.c.l.b16 %v5151
          %v5934 = vunpack.c.h.b16 %v5151
          %v5935 = vunpack.c.l.b16 %v5152
          %v5936 = vunpack.c.h.b16 %v5152
          %v5937 = vunpack.c.l.b16 %v5153
          %v5938 = vunpack.c.h.b16 %v5153
          %v5939 = vunpack.c.l.b16 %v5154
          %v5940 = vunpack.c.h.b16 %v5154
          %v5941 = vunpack.c.l.b16 %v5155
          %v5942 = vunpack.c.h.b16 %v5155
          %v5943 = vunpack.c.l.b16 %v5156
          %v5944 = vunpack.c.h.b16 %v5156
          %v5945 = vunpack.c.l.b16 %v5157
          %v5946 = vunpack.c.h.b16 %v5157
          %v5947 = vunpack.c.l.b16 %v5158
          %v5948 = vunpack.c.h.b16 %v5158
          %v5949 = vpack.c.b16 %v5441, %v5437
          %v5950 = vpack.c.b16 %v5442, %v5438
          %v5951 = vpack.c.b16 %v5443, %v5439
          %v5952 = vpack.c.b16 %v5444, %v5440
          %v5953 = vpack.c.b16 %v5449, %v5445
          %v5954 = vpack.c.b16 %v5450, %v5446
          %v5955 = vpack.c.b16 %v5451, %v5447
          %v5956 = vpack.c.b16 %v5452, %v5448
          %v5957 = vpack.c.b16 %v5457, %v5453
          %v5958 = vpack.c.b16 %v5458, %v5454
          %v5959 = vpack.c.b16 %v5459, %v5455
          %v5960 = vpack.c.b16 %v5460, %v5456
          %v5961 = vpack.c.b16 %v5465, %v5461
          %v5962 = vpack.c.b16 %v5466, %v5462
          %v5963 = vpack.c.b16 %v5467, %v5463
          %v5964 = vpack.c.b16 %v5468, %v5464
          %v5965 = vpack.c.b16 %v5473, %v5469
          %v5966 = vpack.c.b16 %v5474, %v5470
          %v5967 = vpack.c.b16 %v5475, %v5471
          %v5968 = vpack.c.b16 %v5476, %v5472
          %v5969 = vpack.c.b16 %v5481, %v5477
          %v5970 = vpack.c.b16 %v5482, %v5478
          %v5971 = vpack.c.b16 %v5483, %v5479
          %v5972 = vpack.c.b16 %v5484, %v5480
          %v5973 = vpack.c.b16 %v5489, %v5485
          %v5974 = vpack.c.b16 %v5490, %v5486
          %v5975 = vpack.c.b16 %v5491, %v5487
          %v5976 = vpack.c.b16 %v5492, %v5488
          %v5977 = vpack.c.b16 %v5497, %v5493
          %v5978 = vpack.c.b16 %v5498, %v5494
          %v5979 = vpack.c.b16 %v5499, %v5495
          %v5980 = vpack.c.b16 %v5500, %v5496
          %v5981 = vpack.c.b16 %v5505, %v5501
          %v5982 = vpack.c.b16 %v5506, %v5502
          %v5983 = vpack.c.b16 %v5507, %v5503
          %v5984 = vpack.c.b16 %v5508, %v5504
          %v5985 = vpack.c.b16 %v5513, %v5509
          %v5986 = vpack.c.b16 %v5514, %v5510
          %v5987 = vpack.c.b16 %v5515, %v5511
          %v5988 = vpack.c.b16 %v5516, %v5512
          %v5989 = vpack.c.b16 %v5521, %v5517
          %v5990 = vpack.c.b16 %v5522, %v5518
          %v5991 = vpack.c.b16 %v5523, %v5519
          %v5992 = vpack.c.b16 %v5524, %v5520
          %v5993 = vpack.c.b16 %v5529, %v5525
          %v5994 = vpack.c.b16 %v5530, %v5526
          %v5995 = vpack.c.b16 %v5531, %v5527
          %v5996 = vpack.c.b16 %v5532, %v5528
          %v5997 = vpack.c.b16 %v5537, %v5533
          %v5998 = vpack.c.b16 %v5538, %v5534
          %v5999 = vpack.c.b16 %v5539, %v5535
          %v6000 = vpack.c.b16 %v5540, %v5536
          %v6001 = vpack.c.b16 %v5545, %v5541
          %v6002 = vpack.c.b16 %v5546, %v5542
          %v6003 = vpack.c.b16 %v5547, %v5543
          %v6004 = vpack.c.b16 %v5548, %v5544
          %v6005 = vpack.c.b16 %v5553, %v5549
          %v6006 = vpack.c.b16 %v5554, %v5550
          %v6007 = vpack.c.b16 %v5555, %v5551
          %v6008 = vpack.c.b16 %v5556, %v5552
          %v6009 = vpack.c.b16 %v5561, %v5557
          %v6010 = vpack.c.b16 %v5562, %v5558
          %v6011 = vpack.c.b16 %v5563, %v5559
          %v6012 = vpack.c.b16 %v5564, %v5560
          %v6013 = vpack.c.b16 %v5569, %v5565
          %v6014 = vpack.c.b16 %v5570, %v5566
          %v6015 = vpack.c.b16 %v5571, %v5567
          %v6016 = vpack.c.b16 %v5572, %v5568
          %v6017 = vpack.c.b16 %v5577, %v5573
          %v6018 = vpack.c.b16 %v5578, %v5574
          %v6019 = vpack.c.b16 %v5579, %v5575
          %v6020 = vpack.c.b16 %v5580, %v5576
          %v6021 = vpack.c.b16 %v5585, %v5581
          %v6022 = vpack.c.b16 %v5586, %v5582
          %v6023 = vpack.c.b16 %v5587, %v5583
          %v6024 = vpack.c.b16 %v5588, %v5584
          %v6025 = vpack.c.b16 %v5593, %v5589
          %v6026 = vpack.c.b16 %v5594, %v5590
          %v6027 = vpack.c.b16 %v5595, %v5591
          %v6028 = vpack.c.b16 %v5596, %v5592
          %v6029 = vpack.c.b16 %v5601, %v5597
          %v6030 = vpack.c.b16 %v5602, %v5598
          %v6031 = vpack.c.b16 %v5603, %v5599
          %v6032 = vpack.c.b16 %v5604, %v5600
          %v6033 = vpack.c.b16 %v5609, %v5605
          %v6034 = vpack.c.b16 %v5610, %v5606
          %v6035 = vpack.c.b16 %v5611, %v5607
          %v6036 = vpack.c.b16 %v5612, %v5608
          %v6037 = vpack.c.b16 %v5617, %v5613
          %v6038 = vpack.c.b16 %v5618, %v5614
          %v6039 = vpack.c.b16 %v5619, %v5615
          %v6040 = vpack.c.b16 %v5620, %v5616
          %v6041 = vpack.c.b16 %v5625, %v5621
          %v6042 = vpack.c.b16 %v5626, %v5622
          %v6043 = vpack.c.b16 %v5627, %v5623
          %v6044 = vpack.c.b16 %v5628, %v5624
          %v6045 = vpack.c.b16 %v5633, %v5629
          %v6046 = vpack.c.b16 %v5634, %v5630
          %v6047 = vpack.c.b16 %v5635, %v5631
          %v6048 = vpack.c.b16 %v5636, %v5632
          %v6049 = vpack.c.b16 %v5641, %v5637
          %v6050 = vpack.c.b16 %v5642, %v5638
          %v6051 = vpack.c.b16 %v5643, %v5639
          %v6052 = vpack.c.b16 %v5644, %v5640
          %v6053 = vpack.c.b16 %v5649, %v5645
          %v6054 = vpack.c.b16 %v5650, %v5646
          %v6055 = vpack.c.b16 %v5651, %v5647
          %v6056 = vpack.c.b16 %v5652, %v5648
          %v6057 = vpack.c.b16 %v5657, %v5653
          %v6058 = vpack.c.b16 %v5658, %v5654
          %v6059 = vpack.c.b16 %v5659, %v5655
          %v6060 = vpack.c.b16 %v5660, %v5656
          %v6061 = vpack.c.b16 %v5665, %v5661
          %v6062 = vpack.c.b16 %v5666, %v5662
          %v6063 = vpack.c.b16 %v5667, %v5663
          %v6064 = vpack.c.b16 %v5668, %v5664
          %v6065 = vpack.c.b16 %v5673, %v5669
          %v6066 = vpack.c.b16 %v5674, %v5670
          %v6067 = vpack.c.b16 %v5675, %v5671
          %v6068 = vpack.c.b16 %v5676, %v5672
          %v6069 = vpack.c.b16 %v5681, %v5677
          %v6070 = vpack.c.b16 %v5682, %v5678
          %v6071 = vpack.c.b16 %v5683, %v5679
          %v6072 = vpack.c.b16 %v5684, %v5680
          %v6073 = vpack.c.b16 %v5689, %v5685
          %v6074 = vpack.c.b16 %v5690, %v5686
          %v6075 = vpack.c.b16 %v5691, %v5687
          %v6076 = vpack.c.b16 %v5692, %v5688
          %v6077 = vpack.c.b16 %v5697, %v5693
          %v6078 = vpack.c.b16 %v5698, %v5694
          %v6079 = vpack.c.b16 %v5699, %v5695
          %v6080 = vpack.c.b16 %v5700, %v5696
          %v6081 = vpack.c.b16 %v5705, %v5701
          %v6082 = vpack.c.b16 %v5706, %v5702
          %v6083 = vpack.c.b16 %v5707, %v5703
          %v6084 = vpack.c.b16 %v5708, %v5704
          %v6085 = vpack.c.b16 %v5713, %v5709
          %v6086 = vpack.c.b16 %v5714, %v5710
          %v6087 = vpack.c.b16 %v5715, %v5711
          %v6088 = vpack.c.b16 %v5716, %v5712
          %v6089 = vpack.c.b16 %v5721, %v5717
          %v6090 = vpack.c.b16 %v5722, %v5718
          %v6091 = vpack.c.b16 %v5723, %v5719
          %v6092 = vpack.c.b16 %v5724, %v5720
          %v6093 = vpack.c.b16 %v5729, %v5725
          %v6094 = vpack.c.b16 %v5730, %v5726
          %v6095 = vpack.c.b16 %v5731, %v5727
          %v6096 = vpack.c.b16 %v5732, %v5728
          %v6097 = vpack.c.b16 %v5737, %v5733
          %v6098 = vpack.c.b16 %v5738, %v5734
          %v6099 = vpack.c.b16 %v5739, %v5735
          %v6100 = vpack.c.b16 %v5740, %v5736
          %v6101 = vpack.c.b16 %v5745, %v5741
          %v6102 = vpack.c.b16 %v5746, %v5742
          %v6103 = vpack.c.b16 %v5747, %v5743
          %v6104 = vpack.c.b16 %v5748, %v5744
          %v6105 = vpack.c.b16 %v5753, %v5749
          %v6106 = vpack.c.b16 %v5754, %v5750
          %v6107 = vpack.c.b16 %v5755, %v5751
          %v6108 = vpack.c.b16 %v5756, %v5752
          %v6109 = vpack.c.b16 %v5761, %v5757
          %v6110 = vpack.c.b16 %v5762, %v5758
          %v6111 = vpack.c.b16 %v5763, %v5759
          %v6112 = vpack.c.b16 %v5764, %v5760
          %v6113 = vpack.c.b16 %v5769, %v5765
          %v6114 = vpack.c.b16 %v5770, %v5766
          %v6115 = vpack.c.b16 %v5771, %v5767
          %v6116 = vpack.c.b16 %v5772, %v5768
          %v6117 = vpack.c.b16 %v5777, %v5773
          %v6118 = vpack.c.b16 %v5778, %v5774
          %v6119 = vpack.c.b16 %v5779, %v5775
          %v6120 = vpack.c.b16 %v5780, %v5776
          %v6121 = vpack.c.b16 %v5785, %v5781
          %v6122 = vpack.c.b16 %v5786, %v5782
          %v6123 = vpack.c.b16 %v5787, %v5783
          %v6124 = vpack.c.b16 %v5788, %v5784
          %v6125 = vpack.c.b16 %v5793, %v5789
          %v6126 = vpack.c.b16 %v5794, %v5790
          %v6127 = vpack.c.b16 %v5795, %v5791
          %v6128 = vpack.c.b16 %v5796, %v5792
          %v6129 = vpack.c.b16 %v5801, %v5797
          %v6130 = vpack.c.b16 %v5802, %v5798
          %v6131 = vpack.c.b16 %v5803, %v5799
          %v6132 = vpack.c.b16 %v5804, %v5800
          %v6133 = vpack.c.b16 %v5809, %v5805
          %v6134 = vpack.c.b16 %v5810, %v5806
          %v6135 = vpack.c.b16 %v5811, %v5807
          %v6136 = vpack.c.b16 %v5812, %v5808
          %v6137 = vpack.c.b16 %v5817, %v5813
          %v6138 = vpack.c.b16 %v5818, %v5814
          %v6139 = vpack.c.b16 %v5819, %v5815
          %v6140 = vpack.c.b16 %v5820, %v5816
          %v6141 = vpack.c.b16 %v5825, %v5821
          %v6142 = vpack.c.b16 %v5826, %v5822
          %v6143 = vpack.c.b16 %v5827, %v5823
          %v6144 = vpack.c.b16 %v5828, %v5824
          %v6145 = vpack.c.b16 %v5833, %v5829
          %v6146 = vpack.c.b16 %v5834, %v5830
          %v6147 = vpack.c.b16 %v5835, %v5831
          %v6148 = vpack.c.b16 %v5836, %v5832
          %v6149 = vpack.c.b16 %v5841, %v5837
          %v6150 = vpack.c.b16 %v5842, %v5838
          %v6151 = vpack.c.b16 %v5843, %v5839
          %v6152 = vpack.c.b16 %v5844, %v5840
          %v6153 = vpack.c.b16 %v5849, %v5845
          %v6154 = vpack.c.b16 %v5850, %v5846
          %v6155 = vpack.c.b16 %v5851, %v5847
          %v6156 = vpack.c.b16 %v5852, %v5848
          %v6157 = vpack.c.b16 %v5857, %v5853
          %v6158 = vpack.c.b16 %v5858, %v5854
          %v6159 = vpack.c.b16 %v5859, %v5855
          %v6160 = vpack.c.b16 %v5860, %v5856
          %v6161 = vpack.c.b16 %v5865, %v5861
          %v6162 = vpack.c.b16 %v5866, %v5862
          %v6163 = vpack.c.b16 %v5867, %v5863
          %v6164 = vpack.c.b16 %v5868, %v5864
          %v6165 = vpack.c.b16 %v5873, %v5869
          %v6166 = vpack.c.b16 %v5874, %v5870
          %v6167 = vpack.c.b16 %v5875, %v5871
          %v6168 = vpack.c.b16 %v5876, %v5872
          %v6169 = vpack.c.b16 %v5881, %v5877
          %v6170 = vpack.c.b16 %v5882, %v5878
          %v6171 = vpack.c.b16 %v5883, %v5879
          %v6172 = vpack.c.b16 %v5884, %v5880
          %v6173 = vpack.c.b16 %v5889, %v5885
          %v6174 = vpack.c.b16 %v5890, %v5886
          %v6175 = vpack.c.b16 %v5891, %v5887
          %v6176 = vpack.c.b16 %v5892, %v5888
          %v6177 = vpack.c.b16 %v5897, %v5893
          %v6178 = vpack.c.b16 %v5898, %v5894
          %v6179 = vpack.c.b16 %v5899, %v5895
          %v6180 = vpack.c.b16 %v5900, %v5896
          %v6181 = vpack.c.b16 %v5905, %v5901
          %v6182 = vpack.c.b16 %v5906, %v5902
          %v6183 = vpack.c.b16 %v5907, %v5903
          %v6184 = vpack.c.b16 %v5908, %v5904
          %v6185 = vpack.c.b16 %v5913, %v5909
          %v6186 = vpack.c.b16 %v5914, %v5910
          %v6187 = vpack.c.b16 %v5915, %v5911
          %v6188 = vpack.c.b16 %v5916, %v5912
          %v6189 = vpack.c.b16 %v5921, %v5917
          %v6190 = vpack.c.b16 %v5922, %v5918
          %v6191 = vpack.c.b16 %v5923, %v5919
          %v6192 = vpack.c.b16 %v5924, %v5920
          %v6193 = vpack.c.b16 %v5929, %v5925
          %v6194 = vpack.c.b16 %v5930, %v5926
          %v6195 = vpack.c.b16 %v5931, %v5927
          %v6196 = vpack.c.b16 %v5932, %v5928
          %v6197 = vpack.c.b16 %v5937, %v5933
          %v6198 = vpack.c.b16 %v5938, %v5934
          %v6199 = vpack.c.b16 %v5939, %v5935
          %v6200 = vpack.c.b16 %v5940, %v5936
          %v6201 = vpack.c.b16 %v5945, %v5941
          %v6202 = vpack.c.b16 %v5946, %v5942
          %v6203 = vpack.c.b16 %v5947, %v5943
          %v6204 = vpack.c.b16 %v5948, %v5944
          %6461 = vmatprep.subr.bf16.mxu0 %v5950
          %6462 = vmatpush1.bf16.msra.mxu0 %v5949
          %6463 = vmatprep.subr.bf16.mxu0 %v5954
          %6464 = vmatpush1.bf16.msra.mxu0 %v5953
          %6465 = vmatprep.subr.bf16.mxu0 %v5958
          %6466 = vmatpush1.bf16.msra.mxu0 %v5957
          %6467 = vmatprep.subr.bf16.mxu0 %v5962
          %6468 = vmatpush1.bf16.msra.mxu0 %v5961
          %6469 = vmatprep.subr.bf16.mxu0 %v5966
          %6470 = vmatpush1.bf16.msra.mxu0 %v5965
          %6471 = vmatprep.subr.bf16.mxu0 %v5970
          %6472 = vmatpush1.bf16.msra.mxu0 %v5969
          %6473 = vmatprep.subr.bf16.mxu0 %v5974
          %6474 = vmatpush1.bf16.msra.mxu0 %v5973
          %6475 = vmatprep.subr.bf16.mxu0 %v5978
          %6476 = vmatpush1.bf16.msra.mxu0 %v5977
          %6477 = vmatprep.subr.bf16.mxu0 %v5982
          %6478 = vmatpush1.bf16.msra.mxu0 %v5981
          %6479 = vmatprep.subr.bf16.mxu0 %v5986
          %6480 = vmatpush1.bf16.msra.mxu0 %v5985
          %6481 = vmatprep.subr.bf16.mxu0 %v5990
          %6482 = vmatpush1.bf16.msra.mxu0 %v5989
          %6483 = vmatprep.subr.bf16.mxu0 %v5994
          %6484 = vmatpush1.bf16.msra.mxu0 %v5993
          %6485 = vmatprep.subr.bf16.mxu0 %v5998
          %6486 = vmatpush1.bf16.msra.mxu0 %v5997
          %6487 = vmatprep.subr.bf16.mxu0 %v6002
          %6488 = vmatpush1.bf16.msra.mxu0 %v6001
          %6489 = vmatprep.subr.bf16.mxu0 %v6006
          %6490 = vmatpush1.bf16.msra.mxu0 %v6005
          %6491 = vmatprep.subr.bf16.mxu0 %v6010
          %6492 = vmatpush1.bf16.msra.mxu0 %v6009
          %6493 = vmatprep.mubr.bf16.mxu0 %v4888
          %6494 = vmatmul.mubr.bf16.gmra.mrb[0].mxu0 %v4887
          %v6495 = vpop.f32.mrb[0].mxu0
          %v6496 = vadd.f32 %v5164, %v6495
          %v6497 = vpop.f32.mrb[0].mxu0
          %v6498 = vadd.f32 %v5168, %v6497
          %v6499 = vpop.f32.mrb[0].mxu0
          %v6500 = vadd.f32 %v5164, %v6499
          %v6501 = vpop.f32.mrb[0].mxu0
          %v6502 = vadd.f32 %v5168, %v6501
          %6503 = vmatprep.mubr.bf16.mxu0 %v4896
          %6504 = vmatmul.mubr.bf16.gmra.mrb[0].mxu0 %v4895
          %v6505 = vpop.f32.mrb[0].mxu0
          %v6506 = vadd.f32 %v5164, %v6505
          %v6507 = vpop.f32.mrb[0].mxu0
          %v6508 = vadd.f32 %v5168, %v6507
          %v6509 = vpop.f32.mrb[0].mxu0
          %v6510 = vadd.f32 %v5164, %v6509
          %v6511 = vpop.f32.mrb[0].mxu0
          %v6512 = vadd.f32 %v5168, %v6511
          %6513 = vdwg.mxu0
          %6514 = vmatprep.subr.bf16.mxu0 %v6014
          %6515 = vmatpush1.bf16.msra.mxu0 %v6013
          %6516 = vmatprep.subr.bf16.mxu0 %v6018
          %6517 = vmatpush1.bf16.msra.mxu0 %v6017
          %6518 = vmatprep.subr.bf16.mxu0 %v6022
          %6519 = vmatpush1.bf16.msra.mxu0 %v6021
          %6520 = vmatprep.subr.bf16.mxu0 %v6026
          %6521 = vmatpush1.bf16.msra.mxu0 %v6025
          %6522 = vmatprep.subr.bf16.mxu0 %v6030
          %6523 = vmatpush1.bf16.msra.mxu0 %v6029
          %6524 = vmatprep.subr.bf16.mxu0 %v6034
          %6525 = vmatpush1.bf16.msra.mxu0 %v6033
          %6526 = vmatprep.subr.bf16.mxu0 %v6038
          %6527 = vmatpush1.bf16.msra.mxu0 %v6037
          %6528 = vmatprep.subr.bf16.mxu0 %v6042
          %6529 = vmatpush1.bf16.msra.mxu0 %v6041
          %6530 = vmatprep.subr.bf16.mxu0 %v6046
          %6531 = vmatpush1.bf16.msra.mxu0 %v6045
          %6532 = vmatprep.subr.bf16.mxu0 %v6050
          %6533 = vmatpush1.bf16.msra.mxu0 %v6049
          %6534 = vmatprep.subr.bf16.mxu0 %v6054
          %6535 = vmatpush1.bf16.msra.mxu0 %v6053
          %6536 = vmatprep.subr.bf16.mxu0 %v6058
          %6537 = vmatpush1.bf16.msra.mxu0 %v6057
          %6538 = vmatprep.subr.bf16.mxu0 %v6062
          %6539 = vmatpush1.bf16.msra.mxu0 %v6061
          %6540 = vmatprep.subr.bf16.mxu0 %v6066
          %6541 = vmatpush1.bf16.msra.mxu0 %v6065
          %6542 = vmatprep.subr.bf16.mxu0 %v6070
          %6543 = vmatpush1.bf16.msra.mxu0 %v6069
          %6544 = vmatprep.subr.bf16.mxu0 %v6074
          %6545 = vmatpush1.bf16.msra.mxu0 %v6073
          %6546 = vmatprep.mubr.bf16.mxu0 %v4890
          %6547 = vmatmul.mubr.bf16.gmra.mrb[0].mxu0 %v4889
          %v6548 = vpop.f32.mrb[0].mxu0
          %v6549 = vadd.f32 %v6496, %v6548
          %v6550 = vpop.f32.mrb[0].mxu0
          %v6551 = vadd.f32 %v6498, %v6550
          %v6552 = vpop.f32.mrb[0].mxu0
          %v6553 = vadd.f32 %v6500, %v6552
          %v6554 = vpop.f32.mrb[0].mxu0
          %v6555 = vadd.f32 %v6502, %v6554
          %6556 = vmatprep.mubr.bf16.mxu0 %v4898
          %6557 = vmatmul.mubr.bf16.gmra.mrb[0].mxu0 %v4897
          %v6558 = vpop.f32.mrb[0].mxu0
          %v6559 = vadd.f32 %v6506, %v6558
          %v6560 = vpop.f32.mrb[0].mxu0
          %v6561 = vadd.f32 %v6508, %v6560
          %v6562 = vpop.f32.mrb[0].mxu0
          %v6563 = vadd.f32 %v6510, %v6562
          %v6564 = vpop.f32.mrb[0].mxu0
          %v6565 = vadd.f32 %v6512, %v6564
          %6566 = vdwg.mxu0
          %6567 = vmatprep.subr.bf16.mxu0 %v6078
          %6568 = vmatpush1.bf16.msra.mxu0 %v6077
          %6569 = vmatprep.subr.bf16.mxu0 %v6082
          %6570 = vmatpush1.bf16.msra.mxu0 %v6081
          %6571 = vmatprep.subr.bf16.mxu0 %v6086
          %6572 = vmatpush1.bf16.msra.mxu0 %v6085
          %6573 = vmatprep.subr.bf16.mxu0 %v6090
          %6574 = vmatpush1.bf16.msra.mxu0 %v6089
          %6575 = vmatprep.subr.bf16.mxu0 %v6094
          %6576 = vmatpush1.bf16.msra.mxu0 %v6093
          %6577 = vmatprep.subr.bf16.mxu0 %v6098
          %6578 = vmatpush1.bf16.msra.mxu0 %v6097
          %6579 = vmatprep.subr.bf16.mxu0 %v6102
          %6580 = vmatpush1.bf16.msra.mxu0 %v6101
          %6581 = vmatprep.subr.bf16.mxu0 %v6106
          %6582 = vmatpush1.bf16.msra.mxu0 %v6105
          %6583 = vmatprep.subr.bf16.mxu0 %v6110
          %6584 = vmatpush1.bf16.msra.mxu0 %v6109
          %6585 = vmatprep.subr.bf16.mxu0 %v6114
          %6586 = vmatpush1.bf16.msra.mxu0 %v6113
          %6587 = vmatprep.subr.bf16.mxu0 %v6118
          %6588 = vmatpush1.bf16.msra.mxu0 %v6117
          %6589 = vmatprep.subr.bf16.mxu0 %v6122
          %6590 = vmatpush1.bf16.msra.mxu0 %v6121
          %6591 = vmatprep.subr.bf16.mxu0 %v6126
          %6592 = vmatpush1.bf16.msra.mxu0 %v6125
          %6593 = vmatprep.subr.bf16.mxu0 %v6130
          %6594 = vmatpush1.bf16.msra.mxu0 %v6129
          %6595 = vmatprep.subr.bf16.mxu0 %v6134
          %6596 = vmatpush1.bf16.msra.mxu0 %v6133
          %6597 = vmatprep.subr.bf16.mxu0 %v6138
          %6598 = vmatpush1.bf16.msra.mxu0 %v6137
          %6599 = vmatprep.mubr.bf16.mxu0 %v4892
          %6600 = vmatmul.mubr.bf16.gmra.mrb[0].mxu0 %v4891
          %v6601 = vpop.f32.mrb[0].mxu0
          %v6602 = vadd.f32 %v6549, %v6601
          %v6603 = vpop.f32.mrb[0].mxu0
          %v6604 = vadd.f32 %v6551, %v6603
          %v6605 = vpop.f32.mrb[0].mxu0
          %v6606 = vadd.f32 %v6553, %v6605
          %v6607 = vpop.f32.mrb[0].mxu0
          %v6608 = vadd.f32 %v6555, %v6607
          %6609 = vmatprep.mubr.bf16.mxu0 %v4900
          %6610 = vmatmul.mubr.bf16.gmra.mrb[0].mxu0 %v4899
          %v6611 = vpop.f32.mrb[0].mxu0
          %v6612 = vadd.f32 %v6559, %v6611
          %v6613 = vpop.f32.mrb[0].mxu0
          %v6614 = vadd.f32 %v6561, %v6613
          %v6615 = vpop.f32.mrb[0].mxu0
          %v6616 = vadd.f32 %v6563, %v6615
          %v6617 = vpop.f32.mrb[0].mxu0
          %v6618 = vadd.f32 %v6565, %v6617
          %6619 = vdwg.mxu0
          %6620 = vmatprep.subr.bf16.mxu0 %v6142
          %6621 = vmatpush1.bf16.msra.mxu0 %v6141
          %6622 = vmatprep.subr.bf16.mxu0 %v6146
          %6623 = vmatpush1.bf16.msra.mxu0 %v6145
          %6624 = vmatprep.subr.bf16.mxu0 %v6150
          %6625 = vmatpush1.bf16.msra.mxu0 %v6149
          %6626 = vmatprep.subr.bf16.mxu0 %v6154
          %6627 = vmatpush1.bf16.msra.mxu0 %v6153
          %6628 = vmatprep.subr.bf16.mxu0 %v6158
          %6629 = vmatpush1.bf16.msra.mxu0 %v6157
          %6630 = vmatprep.subr.bf16.mxu0 %v6162
          %6631 = vmatpush1.bf16.msra.mxu0 %v6161
          %6632 = vmatprep.subr.bf16.mxu0 %v6166
          %6633 = vmatpush1.bf16.msra.mxu0 %v6165
          %6634 = vmatprep.subr.bf16.mxu0 %v6170
          %6635 = vmatpush1.bf16.msra.mxu0 %v6169
          %6636 = vmatprep.subr.bf16.mxu0 %v6174
          %6637 = vmatpush1.bf16.msra.mxu0 %v6173
          %6638 = vmatprep.subr.bf16.mxu0 %v6178
          %6639 = vmatpush1.bf16.msra.mxu0 %v6177
          %6640 = vmatprep.subr.bf16.mxu0 %v6182
          %6641 = vmatpush1.bf16.msra.mxu0 %v6181
          %6642 = vmatprep.subr.bf16.mxu0 %v6186
          %6643 = vmatpush1.bf16.msra.mxu0 %v6185
          %6644 = vmatprep.subr.bf16.mxu0 %v6190
          %6645 = vmatpush1.bf16.msra.mxu0 %v6189
          %6646 = vmatprep.subr.bf16.mxu0 %v6194
          %6647 = vmatpush1.bf16.msra.mxu0 %v6193
          %6648 = vmatprep.subr.bf16.mxu0 %v6198
          %6649 = vmatpush1.bf16.msra.mxu0 %v6197
          %6650 = vmatprep.subr.bf16.mxu0 %v6202
          %6651 = vmatpush1.bf16.msra.mxu0 %v6201
          %6652 = vmatprep.mubr.bf16.mxu0 %v4894
          %6653 = vmatmul.mubr.bf16.gmra.mrb[0].mxu0 %v4893
          %v6654 = vpop.f32.mrb[0].mxu0
          %v6655 = vadd.f32 %v6602, %v6654
          %v6656 = vpop.f32.mrb[0].mxu0
          %v6657 = vadd.f32 %v6604, %v6656
          %v6658 = vpop.f32.mrb[0].mxu0
          %v6659 = vadd.f32 %v6606, %v6658
          %v6660 = vpop.f32.mrb[0].mxu0
          %v6661 = vadd.f32 %v6608, %v6660
          %6662 = vmatprep.mubr.bf16.mxu0 %v4902
          %6663 = vmatmul.mubr.bf16.gmra.mrb[0].mxu0 %v4901
          %v6664 = vpop.f32.mrb[0].mxu0
          %v6665 = vadd.f32 %v6612, %v6664
          %v6666 = vpop.f32.mrb[0].mxu0
          %v6667 = vadd.f32 %v6614, %v6666
          %v6668 = vpop.f32.mrb[0].mxu0
          %v6669 = vadd.f32 %v6616, %v6668
          %v6670 = vpop.f32.mrb[0].mxu0
          %v6671 = vadd.f32 %v6618, %v6670
          %6672 = vdwg.mxu0
          %6673 = vmatprep.subr.bf16.mxu0 %v5952
          %6674 = vmatpush1.bf16.msra.mxu0 %v5951
          %6675 = vmatprep.subr.bf16.mxu0 %v5956
          %6676 = vmatpush1.bf16.msra.mxu0 %v5955
          %6677 = vmatprep.subr.bf16.mxu0 %v5960
          %6678 = vmatpush1.bf16.msra.mxu0 %v5959
          %6679 = vmatprep.subr.bf16.mxu0 %v5964
          %6680 = vmatpush1.bf16.msra.mxu0 %v5963
          %6681 = vmatprep.subr.bf16.mxu0 %v5968
          %6682 = vmatpush1.bf16.msra.mxu0 %v5967
          %6683 = vmatprep.subr.bf16.mxu0 %v5972
          %6684 = vmatpush1.bf16.msra.mxu0 %v5971
          %6685 = vmatprep.subr.bf16.mxu0 %v5976
          %6686 = vmatpush1.bf16.msra.mxu0 %v5975
          %6687 = vmatprep.subr.bf16.mxu0 %v5980
          %6688 = vmatpush1.bf16.msra.mxu0 %v5979
          %6689 = vmatprep.subr.bf16.mxu0 %v5984
          %6690 = vmatpush1.bf16.msra.mxu0 %v5983
          %6691 = vmatprep.subr.bf16.mxu0 %v5988
          %6692 = vmatpush1.bf16.msra.mxu0 %v5987
          %6693 = vmatprep.subr.bf16.mxu0 %v5992
          %6694 = vmatpush1.bf16.msra.mxu0 %v5991
          %6695 = vmatprep.subr.bf16.mxu0 %v5996
          %6696 = vmatpush1.bf16.msra.mxu0 %v5995
          %6697 = vmatprep.subr.bf16.mxu0 %v6000
          %6698 = vmatpush1.bf16.msra.mxu0 %v5999
          %6699 = vmatprep.subr.bf16.mxu0 %v6004
          %6700 = vmatpush1.bf16.msra.mxu0 %v6003
          %6701 = vmatprep.subr.bf16.mxu0 %v6008
          %6702 = vmatpush1.bf16.msra.mxu0 %v6007
          %6703 = vmatprep.subr.bf16.mxu0 %v6012
          %6704 = vmatpush1.bf16.msra.mxu0 %v6011
          %6705 = vmatprep.mubr.bf16.mxu0 %v4888
          %6706 = vmatmul.mubr.bf16.gmra.mrb[0].mxu0 %v4887
          %v6707 = vpop.f32.mrb[0].mxu0
          %v6708 = vadd.f32 %v5172, %v6707
          %v6709 = vpop.f32.mrb[0].mxu0
          %v6710 = vadd.f32 %v5176, %v6709
          %v6711 = vpop.f32.mrb[0].mxu0
          %v6712 = vadd.f32 %v5172, %v6711
          %v6713 = vpop.f32.mrb[0].mxu0
          %v6714 = vadd.f32 %v5176, %v6713
          %6715 = vmatprep.mubr.bf16.mxu0 %v4896
          %6716 = vmatmul.mubr.bf16.gmra.mrb[0].mxu0 %v4895
          %v6717 = vpop.f32.mrb[0].mxu0
          %v6718 = vadd.f32 %v5172, %v6717
          %v6719 = vpop.f32.mrb[0].mxu0
          %v6720 = vadd.f32 %v5176, %v6719
          %v6721 = vpop.f32.mrb[0].mxu0
          %v6722 = vadd.f32 %v5172, %v6721
          %v6723 = vpop.f32.mrb[0].mxu0
          %v6724 = vadd.f32 %v5176, %v6723
          %6725 = vdwg.mxu0
          %6726 = vmatprep.subr.bf16.mxu0 %v6016
          %6727 = vmatpush1.bf16.msra.mxu0 %v6015
          %6728 = vmatprep.subr.bf16.mxu0 %v6020
          %6729 = vmatpush1.bf16.msra.mxu0 %v6019
          %6730 = vmatprep.subr.bf16.mxu0 %v6024
          %6731 = vmatpush1.bf16.msra.mxu0 %v6023
          %6732 = vmatprep.subr.bf16.mxu0 %v6028
          %6733 = vmatpush1.bf16.msra.mxu0 %v6027
          %6734 = vmatprep.subr.bf16.mxu0 %v6032
          %6735 = vmatpush1.bf16.msra.mxu0 %v6031
          %6736 = vmatprep.subr.bf16.mxu0 %v6036
          %6737 = vmatpush1.bf16.msra.mxu0 %v6035
          %6738 = vmatprep.subr.bf16.mxu0 %v6040
          %6739 = vmatpush1.bf16.msra.mxu0 %v6039
          %6740 = vmatprep.subr.bf16.mxu0 %v6044
          %6741 = vmatpush1.bf16.msra.mxu0 %v6043
          %6742 = vmatprep.subr.bf16.mxu0 %v6048
          %6743 = vmatpush1.bf16.msra.mxu0 %v6047
          %6744 = vmatprep.subr.bf16.mxu0 %v6052
          %6745 = vmatpush1.bf16.msra.mxu0 %v6051
          %6746 = vmatprep.subr.bf16.mxu0 %v6056
          %6747 = vmatpush1.bf16.msra.mxu0 %v6055
          %6748 = vmatprep.subr.bf16.mxu0 %v6060
          %6749 = vmatpush1.bf16.msra.mxu0 %v6059
          %6750 = vmatprep.subr.bf16.mxu0 %v6064
          %6751 = vmatpush1.bf16.msra.mxu0 %v6063
          %6752 = vmatprep.subr.bf16.mxu0 %v6068
          %6753 = vmatpush1.bf16.msra.mxu0 %v6067
          %6754 = vmatprep.subr.bf16.mxu0 %v6072
          %6755 = vmatpush1.bf16.msra.mxu0 %v6071
          %6756 = vmatprep.subr.bf16.mxu0 %v6076
          %6757 = vmatpush1.bf16.msra.mxu0 %v6075
          %6758 = vmatprep.mubr.bf16.mxu0 %v4890
          %6759 = vmatmul.mubr.bf16.gmra.mrb[0].mxu0 %v4889
          %v6760 = vpop.f32.mrb[0].mxu0
          %v6761 = vadd.f32 %v6708, %v6760
          %v6762 = vpop.f32.mrb[0].mxu0
          %v6763 = vadd.f32 %v6710, %v6762
          %v6764 = vpop.f32.mrb[0].mxu0
          %v6765 = vadd.f32 %v6712, %v6764
          %v6766 = vpop.f32.mrb[0].mxu0
          %v6767 = vadd.f32 %v6714, %v6766
          %6768 = vmatprep.mubr.bf16.mxu0 %v4898
          %6769 = vmatmul.mubr.bf16.gmra.mrb[0].mxu0 %v4897
          %v6770 = vpop.f32.mrb[0].mxu0
          %v6771 = vadd.f32 %v6718, %v6770
          %v6772 = vpop.f32.mrb[0].mxu0
          %v6773 = vadd.f32 %v6720, %v6772
          %v6774 = vpop.f32.mrb[0].mxu0
          %v6775 = vadd.f32 %v6722, %v6774
          %v6776 = vpop.f32.mrb[0].mxu0
          %v6777 = vadd.f32 %v6724, %v6776
          %6778 = vdwg.mxu0
          %6779 = vmatprep.subr.bf16.mxu0 %v6080
          %6780 = vmatpush1.bf16.msra.mxu0 %v6079
          %6781 = vmatprep.subr.bf16.mxu0 %v6084
          %6782 = vmatpush1.bf16.msra.mxu0 %v6083
          %6783 = vmatprep.subr.bf16.mxu0 %v6088
          %6784 = vmatpush1.bf16.msra.mxu0 %v6087
          %6785 = vmatprep.subr.bf16.mxu0 %v6092
          %6786 = vmatpush1.bf16.msra.mxu0 %v6091
          %6787 = vmatprep.subr.bf16.mxu0 %v6096
          %6788 = vmatpush1.bf16.msra.mxu0 %v6095
          %6789 = vmatprep.subr.bf16.mxu0 %v6100
          %6790 = vmatpush1.bf16.msra.mxu0 %v6099
          %6791 = vmatprep.subr.bf16.mxu0 %v6104
          %6792 = vmatpush1.bf16.msra.mxu0 %v6103
          %6793 = vmatprep.subr.bf16.mxu0 %v6108
          %6794 = vmatpush1.bf16.msra.mxu0 %v6107
          %6795 = vmatprep.subr.bf16.mxu0 %v6112
          %6796 = vmatpush1.bf16.msra.mxu0 %v6111
          %6797 = vmatprep.subr.bf16.mxu0 %v6116
          %6798 = vmatpush1.bf16.msra.mxu0 %v6115
          %6799 = vmatprep.subr.bf16.mxu0 %v6120
          %6800 = vmatpush1.bf16.msra.mxu0 %v6119
          %6801 = vmatprep.subr.bf16.mxu0 %v6124
          %6802 = vmatpush1.bf16.msra.mxu0 %v6123
          %6803 = vmatprep.subr.bf16.mxu0 %v6128
          %6804 = vmatpush1.bf16.msra.mxu0 %v6127
          %6805 = vmatprep.subr.bf16.mxu0 %v6132
          %6806 = vmatpush1.bf16.msra.mxu0 %v6131
          %6807 = vmatprep.subr.bf16.mxu0 %v6136
          %6808 = vmatpush1.bf16.msra.mxu0 %v6135
          %6809 = vmatprep.subr.bf16.mxu0 %v6140
          %6810 = vmatpush1.bf16.msra.mxu0 %v6139
          %6811 = vmatprep.mubr.bf16.mxu0 %v4892
          %6812 = vmatmul.mubr.bf16.gmra.mrb[0].mxu0 %v4891
          %v6813 = vpop.f32.mrb[0].mxu0
          %v6814 = vadd.f32 %v6761, %v6813
          %v6815 = vpop.f32.mrb[0].mxu0
          %v6816 = vadd.f32 %v6763, %v6815
          %v6817 = vpop.f32.mrb[0].mxu0
          %v6818 = vadd.f32 %v6765, %v6817
          %v6819 = vpop.f32.mrb[0].mxu0
          %v6820 = vadd.f32 %v6767, %v6819
          %6821 = vmatprep.mubr.bf16.mxu0 %v4900
          %6822 = vmatmul.mubr.bf16.gmra.mrb[0].mxu0 %v4899
          %v6823 = vpop.f32.mrb[0].mxu0
          %v6824 = vadd.f32 %v6771, %v6823
          %v6825 = vpop.f32.mrb[0].mxu0
          %v6826 = vadd.f32 %v6773, %v6825
          %v6827 = vpop.f32.mrb[0].mxu0
          %v6828 = vadd.f32 %v6775, %v6827
          %v6829 = vpop.f32.mrb[0].mxu0
          %v6830 = vadd.f32 %v6777, %v6829
          %6831 = vdwg.mxu0
          %6832 = vmatprep.subr.bf16.mxu0 %v6144
          %6833 = vmatpush1.bf16.msra.mxu0 %v6143
          %6834 = vmatprep.subr.bf16.mxu0 %v6148
          %6835 = vmatpush1.bf16.msra.mxu0 %v6147
          %6836 = vmatprep.subr.bf16.mxu0 %v6152
          %6837 = vmatpush1.bf16.msra.mxu0 %v6151
          %6838 = vmatprep.subr.bf16.mxu0 %v6156
          %6839 = vmatpush1.bf16.msra.mxu0 %v6155
          %6840 = vmatprep.subr.bf16.mxu0 %v6160
          %6841 = vmatpush1.bf16.msra.mxu0 %v6159
          %6842 = vmatprep.subr.bf16.mxu0 %v6164
          %6843 = vmatpush1.bf16.msra.mxu0 %v6163
          %6844 = vmatprep.subr.bf16.mxu0 %v6168
          %6845 = vmatpush1.bf16.msra.mxu0 %v6167
          %6846 = vmatprep.subr.bf16.mxu0 %v6172
          %6847 = vmatpush1.bf16.msra.mxu0 %v6171
          %6848 = vmatprep.subr.bf16.mxu0 %v6176
          %6849 = vmatpush1.bf16.msra.mxu0 %v6175
          %6850 = vmatprep.subr.bf16.mxu0 %v6180
          %6851 = vmatpush1.bf16.msra.mxu0 %v6179
          %6852 = vmatprep.subr.bf16.mxu0 %v6184
          %6853 = vmatpush1.bf16.msra.mxu0 %v6183
          %6854 = vmatprep.subr.bf16.mxu0 %v6188
          %6855 = vmatpush1.bf16.msra.mxu0 %v6187
          %6856 = vmatprep.subr.bf16.mxu0 %v6192
          %6857 = vmatpush1.bf16.msra.mxu0 %v6191
          %6858 = vmatprep.subr.bf16.mxu0 %v6196
          %6859 = vmatpush1.bf16.msra.mxu0 %v6195
          %6860 = vmatprep.subr.bf16.mxu0 %v6200
          %6861 = vmatpush1.bf16.msra.mxu0 %v6199
          %6862 = vmatprep.subr.bf16.mxu0 %v6204
          %6863 = vmatpush1.bf16.msra.mxu0 %v6203
          %6864 = vmatprep.mubr.bf16.mxu0 %v4894
          %6865 = vmatmul.mubr.bf16.gmra.mrb[0].mxu0 %v4893
          %v6866 = vpop.f32.mrb[0].mxu0
          %v6867 = vadd.f32 %v6814, %v6866
          %v6868 = vpop.f32.mrb[0].mxu0
          %v6869 = vadd.f32 %v6816, %v6868
          %v6870 = vpop.f32.mrb[0].mxu0
          %v6871 = vadd.f32 %v6818, %v6870
          %v6872 = vpop.f32.mrb[0].mxu0
          %v6873 = vadd.f32 %v6820, %v6872
          %6874 = vmatprep.mubr.bf16.mxu0 %v4902
          %6875 = vmatmul.mubr.bf16.gmra.mrb[0].mxu0 %v4901
          %v6876 = vpop.f32.mrb[0].mxu0
          %v6877 = vadd.f32 %v6824, %v6876
          %v6878 = vpop.f32.mrb[0].mxu0
          %v6879 = vadd.f32 %v6826, %v6878
          %v6880 = vpop.f32.mrb[0].mxu0
          %v6881 = vadd.f32 %v6828, %v6880
          %v6882 = vpop.f32.mrb[0].mxu0
          %v6883 = vadd.f32 %v6830, %v6882
          %6884 = vdwg.mxu0
          %v6885 = vmax.f32 %v6655, 0.0
          %v6886 = vmax.f32 %v6657, 0.0
          %v6887 = vmax.f32 %v6867, 0.0
          %v6888 = vmax.f32 %v6869, 0.0
          %v6889 = vmax.f32 %v6659, 0.0
          %v6890 = vmax.f32 %v6661, 0.0
          %v6891 = vmax.f32 %v6871, 0.0
          %v6892 = vmax.f32 %v6873, 0.0
          %v6893 = vmax.f32 %v6665, 0.0
          %v6894 = vmax.f32 %v6667, 0.0
          %v6895 = vmax.f32 %v6877, 0.0
          %v6896 = vmax.f32 %v6879, 0.0
          %v6897 = vmax.f32 %v6669, 0.0
          %v6898 = vmax.f32 %v6671, 0.0
          %v6899 = vmax.f32 %v6881, 0.0
          %v6900 = vmax.f32 %v6883, 0.0
          %v6901 = vld [vmem:[%s12] sm:$0xff]
          %v6902 = vld [vmem:[%s12 + $0x8] sm:$0xff]
          %v6903 = vld [vmem:[%s12 + $0x10] sm:$0xff]
          %v6904 = vld [vmem:[%s12 + $0x18] sm:$0xff]
          %v6905 = vld [vmem:[%s709] sm:$0xff]
          %v6906 = vld [vmem:[%s709 + $0x8] sm:$0xff]
          %v6907 = vld [vmem:[%s709 + $0x10] sm:$0xff]
          %v6908 = vld [vmem:[%s709 + $0x18] sm:$0xff]
          %v6909 = vld [vmem:[%s709 + $0x20] sm:$0xff]
          %v6910 = vld [vmem:[%s709 + $0x28] sm:$0xff]
          %v6911 = vld [vmem:[%s709 + $0x30] sm:$0xff]
          %v6912 = vld [vmem:[%s709 + $0x38] sm:$0xff]
          %v6913 = vld [vmem:[%s709 + $0x40] sm:$0xff]
          %v6914 = vld [vmem:[%s709 + $0x48] sm:$0xff]
          %v6915 = vld [vmem:[%s709 + $0x50] sm:$0xff]
          %v6916 = vld [vmem:[%s709 + $0x58] sm:$0xff]
          %v6917 = vld [vmem:[%s709 + $0x60] sm:$0xff]
          %v6918 = vld [vmem:[%s709 + $0x68] sm:$0xff]
          %v6919 = vld [vmem:[%s709 + $0x70] sm:$0xff]
          %v6920 = vld [vmem:[%s709 + $0x78] sm:$0xff]
          %v6921 = vld [vmem:[%s709 + $0x80] sm:$0xff]
          %v6922 = vld [vmem:[%s709 + $0x88] sm:$0xff]
          %v6923 = vld [vmem:[%s709 + $0x90] sm:$0xff]
          %v6924 = vld [vmem:[%s709 + $0x98] sm:$0xff]
          %v6925 = vld [vmem:[%s709 + $0xa0] sm:$0xff]
          %v6926 = vld [vmem:[%s709 + $0xa8] sm:$0xff]
          %v6927 = vld [vmem:[%s709 + $0xb0] sm:$0xff]
          %v6928 = vld [vmem:[%s709 + $0xb8] sm:$0xff]
          %v6929 = vld [vmem:[%s709 + $0xc0] sm:$0xff]
          %v6930 = vld [vmem:[%s709 + $0xc8] sm:$0xff]
          %v6931 = vld [vmem:[%s709 + $0xd0] sm:$0xff]
          %v6932 = vld [vmem:[%s709 + $0xd8] sm:$0xff]
          %v6933 = vld [vmem:[%s709 + $0xe0] sm:$0xff]
          %v6934 = vld [vmem:[%s709 + $0xe8] sm:$0xff]
          %v6935 = vld [vmem:[%s709 + $0xf0] sm:$0xff]
          %v6936 = vld [vmem:[%s709 + $0xf8] sm:$0xff]
          %v6937 = vld [vmem:[%s709 + $0x100] sm:$0xff]
          %v6938 = vld [vmem:[%s709 + $0x108] sm:$0xff]
          %v6939 = vld [vmem:[%s709 + $0x110] sm:$0xff]
          %v6940 = vld [vmem:[%s709 + $0x118] sm:$0xff]
          %v6941 = vld [vmem:[%s709 + $0x120] sm:$0xff]
          %v6942 = vld [vmem:[%s709 + $0x128] sm:$0xff]
          %v6943 = vld [vmem:[%s709 + $0x130] sm:$0xff]
          %v6944 = vld [vmem:[%s709 + $0x138] sm:$0xff]
          %v6945 = vld [vmem:[%s709 + $0x140] sm:$0xff]
          %v6946 = vld [vmem:[%s709 + $0x148] sm:$0xff]
          %v6947 = vld [vmem:[%s709 + $0x150] sm:$0xff]
          %v6948 = vld [vmem:[%s709 + $0x158] sm:$0xff]
          %v6949 = vld [vmem:[%s709 + $0x160] sm:$0xff]
          %v6950 = vld [vmem:[%s709 + $0x168] sm:$0xff]
          %v6951 = vld [vmem:[%s709 + $0x170] sm:$0xff]
          %v6952 = vld [vmem:[%s709 + $0x178] sm:$0xff]
          %v6953 = vld [vmem:[%s709 + $0x180] sm:$0xff]
          %v6954 = vld [vmem:[%s709 + $0x188] sm:$0xff]
          %v6955 = vld [vmem:[%s709 + $0x190] sm:$0xff]
          %v6956 = vld [vmem:[%s709 + $0x198] sm:$0xff]
          %v6957 = vld [vmem:[%s709 + $0x1a0] sm:$0xff]
          %v6958 = vld [vmem:[%s709 + $0x1a8] sm:$0xff]
          %v6959 = vld [vmem:[%s709 + $0x1b0] sm:$0xff]
          %v6960 = vld [vmem:[%s709 + $0x1b8] sm:$0xff]
          %v6961 = vld [vmem:[%s709 + $0x1c0] sm:$0xff]
          %v6962 = vld [vmem:[%s709 + $0x1c8] sm:$0xff]
          %v6963 = vld [vmem:[%s709 + $0x1d0] sm:$0xff]
          %v6964 = vld [vmem:[%s709 + $0x1d8] sm:$0xff]
          %v6965 = vld [vmem:[%s709 + $0x1e0] sm:$0xff]
          %v6966 = vld [vmem:[%s709 + $0x1e8] sm:$0xff]
          %v6967 = vld [vmem:[%s709 + $0x1f0] sm:$0xff]
          %v6968 = vld [vmem:[%s709 + $0x1f8] sm:$0xff]
          %6969 = vmatprep.subr.mxu0 0.0
          %6970 = vmatpush1.msra.mxu0 %v6905
          %6971 = vmatprep.subr.mxu0 0.0
          %6972 = vmatpush1.msra.mxu0 %v6906
          %6973 = vmatprep.subr.mxu0 0.0
          %6974 = vmatpush1.msra.mxu0 %v6907
          %6975 = vmatprep.subr.mxu0 0.0
          %6976 = vmatpush1.msra.mxu0 %v6908
          %6977 = vmatprep.subr.mxu0 0.0
          %6978 = vmatpush1.msra.mxu0 %v6909
          %6979 = vmatprep.subr.mxu0 0.0
          %6980 = vmatpush1.msra.mxu0 %v6910
          %6981 = vmatprep.subr.mxu0 0.0
          %6982 = vmatpush1.msra.mxu0 %v6911
          %6983 = vmatprep.subr.mxu0 0.0
          %6984 = vmatpush1.msra.mxu0 %v6912
          %6985 = vmatprep.subr.mxu0 0.0
          %6986 = vmatpush1.msra.mxu0 %v6913
          %6987 = vmatprep.subr.mxu0 0.0
          %6988 = vmatpush1.msra.mxu0 %v6914
          %6989 = vmatprep.subr.mxu0 0.0
          %6990 = vmatpush1.msra.mxu0 %v6915
          %6991 = vmatprep.subr.mxu0 0.0
          %6992 = vmatpush1.msra.mxu0 %v6916
          %6993 = vmatprep.subr.mxu0 0.0
          %6994 = vmatpush1.msra.mxu0 %v6917
          %6995 = vmatprep.subr.mxu0 0.0
          %6996 = vmatpush1.msra.mxu0 %v6918
          %6997 = vmatprep.subr.mxu0 0.0
          %6998 = vmatpush1.msra.mxu0 %v6919
          %6999 = vmatprep.subr.mxu0 0.0
          %7000 = vmatpush1.msra.mxu0 %v6920
          %7001 = vmatprep.subr.mxu0 0.0
          %7002 = vmatpush1.msra.mxu0 %v6921
          %7003 = vmatprep.subr.mxu0 0.0
          %7004 = vmatpush1.msra.mxu0 %v6922
          %7005 = vmatprep.subr.mxu0 0.0
          %7006 = vmatpush1.msra.mxu0 %v6923
          %7007 = vmatprep.subr.mxu0 0.0
          %7008 = vmatpush1.msra.mxu0 %v6924
          %7009 = vmatprep.subr.mxu0 0.0
          %7010 = vmatpush1.msra.mxu0 %v6925
          %7011 = vmatprep.subr.mxu0 0.0
          %7012 = vmatpush1.msra.mxu0 %v6926
          %7013 = vmatprep.subr.mxu0 0.0
          %7014 = vmatpush1.msra.mxu0 %v6927
          %7015 = vmatprep.subr.mxu0 0.0
          %7016 = vmatpush1.msra.mxu0 %v6928
          %7017 = vmatprep.subr.mxu0 0.0
          %7018 = vmatpush1.msra.mxu0 %v6929
          %7019 = vmatprep.subr.mxu0 0.0
          %7020 = vmatpush1.msra.mxu0 %v6930
          %7021 = vmatprep.subr.mxu0 0.0
          %7022 = vmatpush1.msra.mxu0 %v6931
          %7023 = vmatprep.subr.mxu0 0.0
          %7024 = vmatpush1.msra.mxu0 %v6932
          %7025 = vmatprep.subr.mxu0 0.0
          %7026 = vmatpush1.msra.mxu0 %v6933
          %7027 = vmatprep.subr.mxu0 0.0
          %7028 = vmatpush1.msra.mxu0 %v6934
          %7029 = vmatprep.subr.mxu0 0.0
          %7030 = vmatpush1.msra.mxu0 %v6935
          %7031 = vmatprep.subr.mxu0 0.0
          %7032 = vmatpush1.msra.mxu0 %v6936
          %7033 = vmatprep.mubr.f32.mxu0 %v6886
          %7034 = vmatmul.mubr.f32.gmra.mrb[0].mxu0 %v6885
          %v7035 = vpop.f32.mrb[0].mxu0
          %v7036 = vadd.f32 0.0, %v7035
          %v7037 = vpop.f32.mrb[0].mxu0
          %7038 = vmatprep.mubr.f32.mxu0 %v6890
          %7039 = vmatmul.mubr.f32.gmra.mrb[0].mxu0 %v6889
          %v7040 = vpop.f32.mrb[0].mxu0
          %v7041 = vadd.f32 0.0, %v7040
          %v7042 = vpop.f32.mrb[0].mxu0
          %7043 = vmatprep.mubr.f32.mxu0 %v6894
          %7044 = vmatmul.mubr.f32.gmra.mrb[0].mxu0 %v6893
          %v7045 = vpop.f32.mrb[0].mxu0
          %v7046 = vadd.f32 0.0, %v7045
          %v7047 = vpop.f32.mrb[0].mxu0
          %7048 = vmatprep.mubr.f32.mxu0 %v6898
          %7049 = vmatmul.mubr.f32.gmra.mrb[0].mxu0 %v6897
          %v7050 = vpop.f32.mrb[0].mxu0
          %v7051 = vadd.f32 0.0, %v7050
          %v7052 = vpop.f32.mrb[0].mxu0
          %7053 = vdwg.mxu0
          %7054 = vmatprep.subr.mxu0 0.0
          %7055 = vmatpush1.msra.mxu0 %v6937
          %7056 = vmatprep.subr.mxu0 0.0
          %7057 = vmatpush1.msra.mxu0 %v6938
          %7058 = vmatprep.subr.mxu0 0.0
          %7059 = vmatpush1.msra.mxu0 %v6939
          %7060 = vmatprep.subr.mxu0 0.0
          %7061 = vmatpush1.msra.mxu0 %v6940
          %7062 = vmatprep.subr.mxu0 0.0
          %7063 = vmatpush1.msra.mxu0 %v6941
          %7064 = vmatprep.subr.mxu0 0.0
          %7065 = vmatpush1.msra.mxu0 %v6942
          %7066 = vmatprep.subr.mxu0 0.0
          %7067 = vmatpush1.msra.mxu0 %v6943
          %7068 = vmatprep.subr.mxu0 0.0
          %7069 = vmatpush1.msra.mxu0 %v6944
          %7070 = vmatprep.subr.mxu0 0.0
          %7071 = vmatpush1.msra.mxu0 %v6945
          %7072 = vmatprep.subr.mxu0 0.0
          %7073 = vmatpush1.msra.mxu0 %v6946
          %7074 = vmatprep.subr.mxu0 0.0
          %7075 = vmatpush1.msra.mxu0 %v6947
          %7076 = vmatprep.subr.mxu0 0.0
          %7077 = vmatpush1.msra.mxu0 %v6948
          %7078 = vmatprep.subr.mxu0 0.0
          %7079 = vmatpush1.msra.mxu0 %v6949
          %7080 = vmatprep.subr.mxu0 0.0
          %7081 = vmatpush1.msra.mxu0 %v6950
          %7082 = vmatprep.subr.mxu0 0.0
          %7083 = vmatpush1.msra.mxu0 %v6951
          %7084 = vmatprep.subr.mxu0 0.0
          %7085 = vmatpush1.msra.mxu0 %v6952
          %7086 = vmatprep.subr.mxu0 0.0
          %7087 = vmatpush1.msra.mxu0 %v6953
          %7088 = vmatprep.subr.mxu0 0.0
          %7089 = vmatpush1.msra.mxu0 %v6954
          %7090 = vmatprep.subr.mxu0 0.0
          %7091 = vmatpush1.msra.mxu0 %v6955
          %7092 = vmatprep.subr.mxu0 0.0
          %7093 = vmatpush1.msra.mxu0 %v6956
          %7094 = vmatprep.subr.mxu0 0.0
          %7095 = vmatpush1.msra.mxu0 %v6957
          %7096 = vmatprep.subr.mxu0 0.0
          %7097 = vmatpush1.msra.mxu0 %v6958
          %7098 = vmatprep.subr.mxu0 0.0
          %7099 = vmatpush1.msra.mxu0 %v6959
          %7100 = vmatprep.subr.mxu0 0.0
          %7101 = vmatpush1.msra.mxu0 %v6960
          %7102 = vmatprep.subr.mxu0 0.0
          %7103 = vmatpush1.msra.mxu0 %v6961
          %7104 = vmatprep.subr.mxu0 0.0
          %7105 = vmatpush1.msra.mxu0 %v6962
          %7106 = vmatprep.subr.mxu0 0.0
          %7107 = vmatpush1.msra.mxu0 %v6963
          %7108 = vmatprep.subr.mxu0 0.0
          %7109 = vmatpush1.msra.mxu0 %v6964
          %7110 = vmatprep.subr.mxu0 0.0
          %7111 = vmatpush1.msra.mxu0 %v6965
          %7112 = vmatprep.subr.mxu0 0.0
          %7113 = vmatpush1.msra.mxu0 %v6966
          %7114 = vmatprep.subr.mxu0 0.0
          %7115 = vmatpush1.msra.mxu0 %v6967
          %7116 = vmatprep.subr.mxu0 0.0
          %7117 = vmatpush1.msra.mxu0 %v6968
          %7118 = vmatprep.mubr.f32.mxu0 %v6888
          %7119 = vmatmul.mubr.f32.gmra.mrb[0].mxu0 %v6887
          %v7120 = vpop.f32.mrb[0].mxu0
          %v7121 = vadd.f32 %v7036, %v7120
          %v7122 = vpop.f32.mrb[0].mxu0
          %7123 = vmatprep.mubr.f32.mxu0 %v6892
          %7124 = vmatmul.mubr.f32.gmra.mrb[0].mxu0 %v6891
          %v7125 = vpop.f32.mrb[0].mxu0
          %v7126 = vadd.f32 %v7041, %v7125
          %v7127 = vpop.f32.mrb[0].mxu0
          %7128 = vmatprep.mubr.f32.mxu0 %v6896
          %7129 = vmatmul.mubr.f32.gmra.mrb[0].mxu0 %v6895
          %v7130 = vpop.f32.mrb[0].mxu0
          %v7131 = vadd.f32 %v7046, %v7130
          %v7132 = vpop.f32.mrb[0].mxu0
          %7133 = vmatprep.mubr.f32.mxu0 %v6900
          %7134 = vmatmul.mubr.f32.gmra.mrb[0].mxu0 %v6899
          %v7135 = vpop.f32.mrb[0].mxu0
          %v7136 = vadd.f32 %v7051, %v7135
          %v7137 = vpop.f32.mrb[0].mxu0
          %7138 = vdwg.mxu0
          %v7139 = vadd.f32 %v6901, %v7121
          %v7140 = vadd.f32 %v6902, %v7126
          %v7141 = vadd.f32 %v6903, %v7131
          %v7142 = vadd.f32 %v6904, %v7136
          %vm7143 = vcmask 15360
          %7144 = vst.msk [vmem:[%s12] sm:$0xff] %vm7143, %v7139
          %7145 = vst.msk [vmem:[%s12 + $0x8] sm:$0xff] %vm7143, %v7140
          %7146 = vst.msk [vmem:[%s12 + $0x10] sm:$0xff] %vm7143, %v7141
          %7147 = vst.msk [vmem:[%s12 + $0x18] sm:$0xff] %vm7143, %v7142
        $region116: #{autoencoder_forward.1} parent=67 // pred_fallthru
          _
        // Predicated region
        $region121: #{autoencoder_forward.1} parent=67 // pred_check
          %p7148 = pneg %p371
        $region122: #{autoencoder_forward.1} parent=67 // pred_check_branch
          %7150 = sbr.rel (%p7148) target = $region124
        $region123: #{autoencoder_forward.1} parent=67 // pred_region
          _
        $region124: #{autoencoder_forward.1} parent=67 // pred_fallthru
          _
        // Predicated region
        $region125: #{autoencoder_forward.1} parent=67 // pred_check
          %p7151 = pneg %p371
        $region126: #{autoencoder_forward.1} parent=67 // pred_check_branch
          %7153 = sbr.rel (%p7151) target = $region128
        $region127: #{autoencoder_forward.1} parent=67 // pred_region
          _
        $region128: #{autoencoder_forward.1} parent=67 // pred_fallthru
          _
      $region68: #{autoencoder_forward.1} parent=5 // pred_fallthru
        _
      %p7154 = scmp.le.s32.totalorder 2, %s29
      // Predicated region
      $region129: #{autoencoder_forward.1} parent=5 // pred_check
        %p7155 = pneg %p7154
      $region130: #{autoencoder_forward.1} parent=5 // pred_check_branch
        %7157 = sbr.rel (%p7155) target = $region132
      $region131: #{autoencoder_forward.1} parent=5 // pred_region
        %s7158 = ssub.s32 %s29, 2
      $region132: #{autoencoder_forward.1} parent=5 // pred_fallthru
        _
    $region6: #{autoencoder_forward.1} parent=1 // loop_footer
      %s33 = sadd.s32 1, %s29
    $region7: #{autoencoder_forward.1} parent=1 // loop_footer_branch
      %28 = sbr.rel target = $region3
    $region8: #{autoencoder_forward.1} parent=1 // loop_exit
      _
    %7159 = vsyncpa [#allocation5], 1
    %s7160 = scalar_lea.sflag [#allocation5], 1
    %7161 = vsyncpa %s7160, 1
    %7162 = vsyncpa [#allocation7], 1
    %s7163 = scalar_lea.sflag [#allocation7], 1
    %7164 = vsyncpa %s7163, 1
    %7165 = vsyncpa [#allocation10], 1
    %7166 = vsyncpa [#allocation13], 1
    %s7167 = scalar_lea.sflag [#allocation13], 1
    %7168 = vsyncpa %s7167, 1
    %7169 = vsyncpa [#allocation16], 1

</llo_original>
